<compile_context>
chip_gen: v5e
topology: v5e:2x2
jax: 0.10.0
libtpu: 0.0.40
codegen_flags: <defaults>
</compile_context>

<pallas_src>
import numpy as np
import jax
import jax.numpy as jnp
from jax import lax
from jax.experimental import pallas as pl
from jax.experimental.pallas import tpu as pltpu  # noqa: F401  (kept for clarity)


# ------------------------------- fused kernel -------------------------------

def digit_kernel(xs_ref, w1_ref, b1_ref, w2_ref, b2_ref,
                 wf1_ref, bf1_ref, wf2_ref, bf2_ref, out_ref):
    B = xs_ref.shape[0]
    XS = xs_ref[...]                                   # (B, 4, 256) phase strips
    W1 = w1_ref[...]                                   # (10, 25)
    W2 = w2_ref[...]                                   # (20, 90)

    # ---------------- conv1 (5x5) + ReLU + 2x2/2 max-pool (fused) ----------------
    # pooled pixel (i, j), pool offset (p0, q0), tap (kh, kw) reads
    # x[2i+p0+kh, 2j+q0+kw] = phase[(p0+kh)%2, (q0+kw)%2][i+(p0+kh)//2, j+(q0+kw)//2]
    # which, on the 16-wide padded phase strip, is lane (i*16 + j) of a single
    # contiguous 192-lane window starting at (dy*16 + dx).  Frame width is 16,
    # lanes j >= 12 of each row are don't-care and never read downstream.
    x3_list = []
    for b in range(B):
        for p0 in range(2):
            for q0 in range(2):
                rows = []
                for kh in range(5):
                    r = p0 + kh
                    pa, dy = r % 2, r // 2
                    for kw in range(5):
                        c = q0 + kw
                        qa, dx = c % 2, c // 2
                        ph = pa * 2 + qa
                        base = dy * 16 + dx
                        rows.append(XS[b, ph:ph + 1, base:base + 192])   # (1, 192)
                x3_list.append(jnp.concatenate(rows, axis=0))            # (25, 192)
    xcat = jnp.concatenate(x3_list, axis=1)                              # (25, B*4*192)
    conv1_all = jnp.dot(W1, xcat, preferred_element_type=jnp.float32)    # (10, B*4*192)

    pooled = []                                                          # per image (10, 192)
    for b in range(B):
        c0 = conv1_all[:, (b * 4 + 0) * 192:(b * 4 + 1) * 192]
        c1 = conv1_all[:, (b * 4 + 1) * 192:(b * 4 + 2) * 192]
        c2 = conv1_all[:, (b * 4 + 2) * 192:(b * 4 + 3) * 192]
        c3 = conv1_all[:, (b * 4 + 3) * 192:(b * 4 + 4) * 192]
        m = jnp.maximum(jnp.maximum(c0, c1), jnp.maximum(c2, c3))        # max-pool 2x2
        pooled.append(jnp.maximum(m + b1_ref[...], 0.0))                 # + bias, ReLU

    # ------------------------------ conv2 (3x3, 10->20) --------------------------
    xcol2 = []
    for b in range(B):
        blocks = []
        for kh in range(3):
            for kw in range(3):
                cols = [pooled[b][:, (y + kh) * 16 + kw:(y + kh) * 16 + kw + 10]
                        for y in range(10)]
                blocks.append(jnp.concatenate(cols, axis=1))             # (10, 100)
            # row order of Xcol2 = (kh*3 + kw)*10 + ci  (matches W2 prep)
        xcol2.append(jnp.concatenate(blocks, axis=0))                    # (90, 100)
    xcol2_all = jnp.concatenate(xcol2, axis=1)                           # (90, B*100)
    conv2_all = (jnp.dot(W2, xcol2_all, preferred_element_type=jnp.float32)
                 + b2_ref[...])                                          # (20, B*100)

    # -------------- flatten (CHW order == torch x.view(B,-1)) + MLP head ---------
    feats_rows = []
    for b in range(B):
        outb = conv2_all[:, b * 100:(b + 1) * 100]                       # (20, 100)
        feats_rows.append(
            jnp.concatenate([outb[c:c + 1, :] for c in range(20)], axis=1))  # (1, 2000)
    feats = jnp.concatenate(feats_rows, axis=0)                          # (B, 2000)

    h = jnp.dot(feats.astype(jnp.bfloat16), wf1_ref[...],
                preferred_element_type=jnp.float32) + bf1_ref[...]       # (B, 500)
    h = jnp.maximum(h, 0.0)
    logits = (jnp.dot(h, wf2_ref[...], preferred_element_type=jnp.float32)
              + bf2_ref[...])                                            # (B, 10)

    mmax = jnp.max(logits, axis=-1, keepdims=True)
    lse = jnp.log(jnp.sum(jnp.exp(logits - mmax), axis=-1, keepdims=True)) + mmax
    out_ref[...] = logits - lse                                          # log_softmax


# ------------------------------ host wrappers --------------------------------

def prepare_params(params):
    """One-time parameter layout prep (outside the per-call forward)."""
    w1, b1, w2, b2, wf1, bf1, wf2, bf2 = params
    w1m = w1.reshape(10, 25)                               # column = kh*5 + kw
    b1c = b1.reshape(10, 1)
    w2m = jnp.transpose(w2, (0, 2, 3, 1)).reshape(20, 90)  # column = (kh*3+kw)*10 + ci
    b2c = b2.reshape(20, 1)
    wf1t = wf1.T.astype(jnp.bfloat16)                      # (2000, 500) bf16
    bf1r = bf1.reshape(1, 500)
    wf2t = wf2.T                                           # (500, 10)
    bf2r = bf2.reshape(1, 10)
    return (w1m, b1c, w2m, b2c, wf1t, bf1r, wf2t, bf2r)


@jax.jit
def digit_forward(x, prepped):
    B = x.shape[0]
    # Phase decimation + zero-pad to (16,16) + row-major flatten -> (B, 4, 256).
    xp = jnp.pad(x[:, 0], ((0, 0), (0, 4), (0, 4)))                     # (B, 32, 32)
    xph = jnp.stack([xp[:, 0::2, 0::2], xp[:, 0::2, 1::2],
                     xp[:, 1::2, 0::2], xp[:, 1::2, 1::2]], axis=1)     # (B, 4, 16, 16)
    xstrips = xph.reshape(B, 4, 256).astype(jnp.float32)
    return pl.pallas_call(
        digit_kernel,
        out_shape=jax.ShapeDtypeStruct((B, 10), jnp.float32),
    )(xstrips, *prepped)


# ------------------------------ pure-JAX reference ---------------------------

def digit_reference(x, params):
    w1, b1, w2, b2, wf1, bf1, wf2, bf2 = params
    B = x.shape[0]
    dn = ('NCHW', 'OIHW', 'NCHW')
    y = lax.conv_general_dilated(x, w1, (1, 1), 'VALID', dimension_numbers=dn)
    y = jnp.maximum(y + b1[None, :, None, None], 0.0)
    y = lax.reduce_window(y, -jnp.inf, lax.max, (1, 1, 2, 2), (1, 1, 2, 2), 'VALID')
    y = lax.conv_general_dilated(y, w2, (1, 1), 'VALID', dimension_numbers=dn)
    y = y + b2[None, :, None, None]
    y = y.reshape(B, -1)
    y = jnp.maximum(y @ wf1.T + bf1, 0.0)
    y = y @ wf2.T + bf2
    return jax.nn.log_softmax(y, axis=1)


if __name__ == "__main__":
    key = jax.random.PRNGKey(0)
    ks = jax.random.split(key, 9)

    def u(k, shape, fan_in):
        bound = 1.0 / np.sqrt(fan_in)
        return jax.random.uniform(k, shape, jnp.float32, -bound, bound)

    # deterministic synthetic parameters (shapes from Digit.__init__)
    params = (
        u(ks[0], (10, 1, 5, 5), 25),    u(ks[1], (10,), 25),      # conv1
        u(ks[2], (20, 10, 3, 3), 90),   u(ks[3], (20,), 90),      # conv2
        u(ks[4], (500, 2000), 2000),    u(ks[5], (500,), 2000),   # fcl
        u(ks[6], (10, 500), 500),       u(ks[7], (10,), 500),     # fcl2
    )
    x = jax.random.normal(ks[8], (2, 1, 28, 28), jnp.float32)     # MNIST-sized, batch=2

    prepped = prepare_params(params)                              # one-time layout/bf16 prep
    out = jax.block_until_ready(digit_forward(x, prepped))
    ref = jax.block_until_ready(digit_reference(x, params))

    assert out.shape == (2, 10)
    if not np.allclose(np.asarray(out), np.asarray(ref), rtol=2e-2, atol=2e-2):
        raise AssertionError("Pallas output does not match pure-JAX reference")
    print("KERNEL_OK")
</pallas_src>

<mosaic_0001>
module attributes {stable_mosaic.version = 11 : i64} {
  func.func @digit_kernel(%arg0: memref<2x4x256xf32, #tpu.memory_space<vmem>>, %arg1: memref<10x25xf32, #tpu.memory_space<vmem>>, %arg2: memref<10x1xf32, #tpu.memory_space<vmem>>, %arg3: memref<20x90xf32, #tpu.memory_space<vmem>>, %arg4: memref<20x1xf32, #tpu.memory_space<vmem>>, %arg5: memref<2000x500xbf16, #tpu.memory_space<vmem>>, %arg6: memref<1x500xf32, #tpu.memory_space<vmem>>, %arg7: memref<500x10xf32, #tpu.memory_space<vmem>>, %arg8: memref<1x10xf32, #tpu.memory_space<vmem>>, %arg9: memref<2x10xf32, #tpu.memory_space<vmem>>) attributes {dimension_semantics = [], scalar_prefetch = 0 : i64, scratch_operands = 0 : i64, tpu.core_type = #tpu.core_type<tc>} {
    %c0 = arith.constant 0 : index
    %c0_0 = arith.constant 0 : index
    %c0_1 = arith.constant 0 : index
    %0 = vector.load %arg0[%c0, %c0_0, %c0_1] : memref<2x4x256xf32, #tpu.memory_space<vmem>>, vector<2x4x256xf32>
    %c0_2 = arith.constant 0 : index
    %c0_3 = arith.constant 0 : index
    %1 = vector.load %arg1[%c0_2, %c0_3] : memref<10x25xf32, #tpu.memory_space<vmem>>, vector<10x25xf32>
    %c0_4 = arith.constant 0 : index
    %c0_5 = arith.constant 0 : index
    %2 = vector.load %arg3[%c0_4, %c0_5] : memref<20x90xf32, #tpu.memory_space<vmem>>, vector<20x90xf32>
    %3 = vector.extract_strided_slice %0 {offsets = [0, 0, 0], sizes = [1, 1, 192], strides = [1, 1, 1]} : vector<2x4x256xf32> to vector<1x1x192xf32>
    %4 = vector.shape_cast %3 : vector<1x1x192xf32> to vector<1x192xf32>
    %5 = vector.extract_strided_slice %0 {offsets = [0, 1, 0], sizes = [1, 1, 192], strides = [1, 1, 1]} : vector<2x4x256xf32> to vector<1x1x192xf32>
    %6 = vector.shape_cast %5 : vector<1x1x192xf32> to vector<1x192xf32>
    %7 = vector.extract_strided_slice %0 {offsets = [0, 0, 1], sizes = [1, 1, 192], strides = [1, 1, 1]} : vector<2x4x256xf32> to vector<1x1x192xf32>
    %8 = vector.shape_cast %7 : vector<1x1x192xf32> to vector<1x192xf32>
    %9 = vector.extract_strided_slice %0 {offsets = [0, 1, 1], sizes = [1, 1, 192], strides = [1, 1, 1]} : vector<2x4x256xf32> to vector<1x1x192xf32>
    %10 = vector.shape_cast %9 : vector<1x1x192xf32> to vector<1x192xf32>
    %11 = vector.extract_strided_slice %0 {offsets = [0, 0, 2], sizes = [1, 1, 192], strides = [1, 1, 1]} : vector<2x4x256xf32> to vector<1x1x192xf32>
    %12 = vector.shape_cast %11 : vector<1x1x192xf32> to vector<1x192xf32>
    %13 = vector.extract_strided_slice %0 {offsets = [0, 2, 0], sizes = [1, 1, 192], strides = [1, 1, 1]} : vector<2x4x256xf32> to vector<1x1x192xf32>
    %14 = vector.shape_cast %13 : vector<1x1x192xf32> to vector<1x192xf32>
    %15 = vector.extract_strided_slice %0 {offsets = [0, 3, 0], sizes = [1, 1, 192], strides = [1, 1, 1]} : vector<2x4x256xf32> to vector<1x1x192xf32>
    %16 = vector.shape_cast %15 : vector<1x1x192xf32> to vector<1x192xf32>
    %17 = vector.extract_strided_slice %0 {offsets = [0, 2, 1], sizes = [1, 1, 192], strides = [1, 1, 1]} : vector<2x4x256xf32> to vector<1x1x192xf32>
    %18 = vector.shape_cast %17 : vector<1x1x192xf32> to vector<1x192xf32>
    %19 = vector.extract_strided_slice %0 {offsets = [0, 3, 1], sizes = [1, 1, 192], strides = [1, 1, 1]} : vector<2x4x256xf32> to vector<1x1x192xf32>
    %20 = vector.shape_cast %19 : vector<1x1x192xf32> to vector<1x192xf32>
    %21 = vector.extract_strided_slice %0 {offsets = [0, 2, 2], sizes = [1, 1, 192], strides = [1, 1, 1]} : vector<2x4x256xf32> to vector<1x1x192xf32>
    %22 = vector.shape_cast %21 : vector<1x1x192xf32> to vector<1x192xf32>
    %23 = vector.extract_strided_slice %0 {offsets = [0, 0, 16], sizes = [1, 1, 192], strides = [1, 1, 1]} : vector<2x4x256xf32> to vector<1x1x192xf32>
    %24 = vector.shape_cast %23 : vector<1x1x192xf32> to vector<1x192xf32>
    %25 = vector.extract_strided_slice %0 {offsets = [0, 1, 16], sizes = [1, 1, 192], strides = [1, 1, 1]} : vector<2x4x256xf32> to vector<1x1x192xf32>
    %26 = vector.shape_cast %25 : vector<1x1x192xf32> to vector<1x192xf32>
    %27 = vector.extract_strided_slice %0 {offsets = [0, 0, 17], sizes = [1, 1, 192], strides = [1, 1, 1]} : vector<2x4x256xf32> to vector<1x1x192xf32>
    %28 = vector.shape_cast %27 : vector<1x1x192xf32> to vector<1x192xf32>
    %29 = vector.extract_strided_slice %0 {offsets = [0, 1, 17], sizes = [1, 1, 192], strides = [1, 1, 1]} : vector<2x4x256xf32> to vector<1x1x192xf32>
    %30 = vector.shape_cast %29 : vector<1x1x192xf32> to vector<1x192xf32>
    %31 = vector.extract_strided_slice %0 {offsets = [0, 0, 18], sizes = [1, 1, 192], strides = [1, 1, 1]} : vector<2x4x256xf32> to vector<1x1x192xf32>
    %32 = vector.shape_cast %31 : vector<1x1x192xf32> to vector<1x192xf32>
    %33 = vector.extract_strided_slice %0 {offsets = [0, 2, 16], sizes = [1, 1, 192], strides = [1, 1, 1]} : vector<2x4x256xf32> to vector<1x1x192xf32>
    %34 = vector.shape_cast %33 : vector<1x1x192xf32> to vector<1x192xf32>
    %35 = vector.extract_strided_slice %0 {offsets = [0, 3, 16], sizes = [1, 1, 192], strides = [1, 1, 1]} : vector<2x4x256xf32> to vector<1x1x192xf32>
    %36 = vector.shape_cast %35 : vector<1x1x192xf32> to vector<1x192xf32>
    %37 = vector.extract_strided_slice %0 {offsets = [0, 2, 17], sizes = [1, 1, 192], strides = [1, 1, 1]} : vector<2x4x256xf32> to vector<1x1x192xf32>
    %38 = vector.shape_cast %37 : vector<1x1x192xf32> to vector<1x192xf32>
    %39 = vector.extract_strided_slice %0 {offsets = [0, 3, 17], sizes = [1, 1, 192], strides = [1, 1, 1]} : vector<2x4x256xf32> to vector<1x1x192xf32>
    %40 = vector.shape_cast %39 : vector<1x1x192xf32> to vector<1x192xf32>
    %41 = vector.extract_strided_slice %0 {offsets = [0, 2, 18], sizes = [1, 1, 192], strides = [1, 1, 1]} : vector<2x4x256xf32> to vector<1x1x192xf32>
    %42 = vector.shape_cast %41 : vector<1x1x192xf32> to vector<1x192xf32>
    %43 = vector.extract_strided_slice %0 {offsets = [0, 0, 32], sizes = [1, 1, 192], strides = [1, 1, 1]} : vector<2x4x256xf32> to vector<1x1x192xf32>
    %44 = vector.shape_cast %43 : vector<1x1x192xf32> to vector<1x192xf32>
    %45 = vector.extract_strided_slice %0 {offsets = [0, 1, 32], sizes = [1, 1, 192], strides = [1, 1, 1]} : vector<2x4x256xf32> to vector<1x1x192xf32>
    %46 = vector.shape_cast %45 : vector<1x1x192xf32> to vector<1x192xf32>
    %47 = vector.extract_strided_slice %0 {offsets = [0, 0, 33], sizes = [1, 1, 192], strides = [1, 1, 1]} : vector<2x4x256xf32> to vector<1x1x192xf32>
    %48 = vector.shape_cast %47 : vector<1x1x192xf32> to vector<1x192xf32>
    %49 = vector.extract_strided_slice %0 {offsets = [0, 1, 33], sizes = [1, 1, 192], strides = [1, 1, 1]} : vector<2x4x256xf32> to vector<1x1x192xf32>
    %50 = vector.shape_cast %49 : vector<1x1x192xf32> to vector<1x192xf32>
    %51 = vector.extract_strided_slice %0 {offsets = [0, 0, 34], sizes = [1, 1, 192], strides = [1, 1, 1]} : vector<2x4x256xf32> to vector<1x1x192xf32>
    %52 = vector.shape_cast %51 : vector<1x1x192xf32> to vector<1x192xf32>
    %53 = tpu.concatenate %4, %6, %8, %10, %12, %14, %16, %18, %20, %22, %24, %26, %28, %30, %32, %34 in 0 : vector<1x192xf32>, vector<1x192xf32>, vector<1x192xf32>, vector<1x192xf32>, vector<1x192xf32>, vector<1x192xf32>, vector<1x192xf32>, vector<1x192xf32>, vector<1x192xf32>, vector<1x192xf32>, vector<1x192xf32>, vector<1x192xf32>, vector<1x192xf32>, vector<1x192xf32>, vector<1x192xf32>, vector<1x192xf32> -> vector<16x192xf32>
    %54 = tpu.concatenate %36, %38, %40, %42, %44, %46, %48, %50, %52 in 0 : vector<1x192xf32>, vector<1x192xf32>, vector<1x192xf32>, vector<1x192xf32>, vector<1x192xf32>, vector<1x192xf32>, vector<1x192xf32>, vector<1x192xf32>, vector<1x192xf32> -> vector<9x192xf32>
    %55 = tpu.concatenate %53, %54 in 0 : vector<16x192xf32>, vector<9x192xf32> -> vector<25x192xf32>
    %56 = vector.extract_strided_slice %0 {offsets = [0, 1, 0], sizes = [1, 1, 192], strides = [1, 1, 1]} : vector<2x4x256xf32> to vector<1x1x192xf32>
    %57 = vector.shape_cast %56 : vector<1x1x192xf32> to vector<1x192xf32>
    %58 = vector.extract_strided_slice %0 {offsets = [0, 0, 1], sizes = [1, 1, 192], strides = [1, 1, 1]} : vector<2x4x256xf32> to vector<1x1x192xf32>
    %59 = vector.shape_cast %58 : vector<1x1x192xf32> to vector<1x192xf32>
    %60 = vector.extract_strided_slice %0 {offsets = [0, 1, 1], sizes = [1, 1, 192], strides = [1, 1, 1]} : vector<2x4x256xf32> to vector<1x1x192xf32>
    %61 = vector.shape_cast %60 : vector<1x1x192xf32> to vector<1x192xf32>
    %62 = vector.extract_strided_slice %0 {offsets = [0, 0, 2], sizes = [1, 1, 192], strides = [1, 1, 1]} : vector<2x4x256xf32> to vector<1x1x192xf32>
    %63 = vector.shape_cast %62 : vector<1x1x192xf32> to vector<1x192xf32>
    %64 = vector.extract_strided_slice %0 {offsets = [0, 1, 2], sizes = [1, 1, 192], strides = [1, 1, 1]} : vector<2x4x256xf32> to vector<1x1x192xf32>
    %65 = vector.shape_cast %64 : vector<1x1x192xf32> to vector<1x192xf32>
    %66 = vector.extract_strided_slice %0 {offsets = [0, 3, 0], sizes = [1, 1, 192], strides = [1, 1, 1]} : vector<2x4x256xf32> to vector<1x1x192xf32>
    %67 = vector.shape_cast %66 : vector<1x1x192xf32> to vector<1x192xf32>
    %68 = vector.extract_strided_slice %0 {offsets = [0, 2, 1], sizes = [1, 1, 192], strides = [1, 1, 1]} : vector<2x4x256xf32> to vector<1x1x192xf32>
    %69 = vector.shape_cast %68 : vector<1x1x192xf32> to vector<1x192xf32>
    %70 = vector.extract_strided_slice %0 {offsets = [0, 3, 1], sizes = [1, 1, 192], strides = [1, 1, 1]} : vector<2x4x256xf32> to vector<1x1x192xf32>
    %71 = vector.shape_cast %70 : vector<1x1x192xf32> to vector<1x192xf32>
    %72 = vector.extract_strided_slice %0 {offsets = [0, 2, 2], sizes = [1, 1, 192], strides = [1, 1, 1]} : vector<2x4x256xf32> to vector<1x1x192xf32>
    %73 = vector.shape_cast %72 : vector<1x1x192xf32> to vector<1x192xf32>
    %74 = vector.extract_strided_slice %0 {offsets = [0, 3, 2], sizes = [1, 1, 192], strides = [1, 1, 1]} : vector<2x4x256xf32> to vector<1x1x192xf32>
    %75 = vector.shape_cast %74 : vector<1x1x192xf32> to vector<1x192xf32>
    %76 = vector.extract_strided_slice %0 {offsets = [0, 1, 16], sizes = [1, 1, 192], strides = [1, 1, 1]} : vector<2x4x256xf32> to vector<1x1x192xf32>
    %77 = vector.shape_cast %76 : vector<1x1x192xf32> to vector<1x192xf32>
    %78 = vector.extract_strided_slice %0 {offsets = [0, 0, 17], sizes = [1, 1, 192], strides = [1, 1, 1]} : vector<2x4x256xf32> to vector<1x1x192xf32>
    %79 = vector.shape_cast %78 : vector<1x1x192xf32> to vector<1x192xf32>
    %80 = vector.extract_strided_slice %0 {offsets = [0, 1, 17], sizes = [1, 1, 192], strides = [1, 1, 1]} : vector<2x4x256xf32> to vector<1x1x192xf32>
    %81 = vector.shape_cast %80 : vector<1x1x192xf32> to vector<1x192xf32>
    %82 = vector.extract_strided_slice %0 {offsets = [0, 0, 18], sizes = [1, 1, 192], strides = [1, 1, 1]} : vector<2x4x256xf32> to vector<1x1x192xf32>
    %83 = vector.shape_cast %82 : vector<1x1x192xf32> to vector<1x192xf32>
    %84 = vector.extract_strided_slice %0 {offsets = [0, 1, 18], sizes = [1, 1, 192], strides = [1, 1, 1]} : vector<2x4x256xf32> to vector<1x1x192xf32>
    %85 = vector.shape_cast %84 : vector<1x1x192xf32> to vector<1x192xf32>
    %86 = vector.extract_strided_slice %0 {offsets = [0, 3, 16], sizes = [1, 1, 192], strides = [1, 1, 1]} : vector<2x4x256xf32> to vector<1x1x192xf32>
    %87 = vector.shape_cast %86 : vector<1x1x192xf32> to vector<1x192xf32>
    %88 = vector.extract_strided_slice %0 {offsets = [0, 2, 17], sizes = [1, 1, 192], strides = [1, 1, 1]} : vector<2x4x256xf32> to vector<1x1x192xf32>
    %89 = vector.shape_cast %88 : vector<1x1x192xf32> to vector<1x192xf32>
    %90 = vector.extract_strided_slice %0 {offsets = [0, 3, 17], sizes = [1, 1, 192], strides = [1, 1, 1]} : vector<2x4x256xf32> to vector<1x1x192xf32>
    %91 = vector.shape_cast %90 : vector<1x1x192xf32> to vector<1x192xf32>
    %92 = vector.extract_strided_slice %0 {offsets = [0, 2, 18], sizes = [1, 1, 192], strides = [1, 1, 1]} : vector<2x4x256xf32> to vector<1x1x192xf32>
    %93 = vector.shape_cast %92 : vector<1x1x192xf32> to vector<1x192xf32>
    %94 = vector.extract_strided_slice %0 {offsets = [0, 3, 18], sizes = [1, 1, 192], strides = [1, 1, 1]} : vector<2x4x256xf32> to vector<1x1x192xf32>
    %95 = vector.shape_cast %94 : vector<1x1x192xf32> to vector<1x192xf32>
    %96 = vector.extract_strided_slice %0 {offsets = [0, 1, 32], sizes = [1, 1, 192], strides = [1, 1, 1]} : vector<2x4x256xf32> to vector<1x1x192xf32>
    %97 = vector.shape_cast %96 : vector<1x1x192xf32> to vector<1x192xf32>
    %98 = vector.extract_strided_slice %0 {offsets = [0, 0, 33], sizes = [1, 1, 192], strides = [1, 1, 1]} : vector<2x4x256xf32> to vector<1x1x192xf32>
    %99 = vector.shape_cast %98 : vector<1x1x192xf32> to vector<1x192xf32>
    %100 = vector.extract_strided_slice %0 {offsets = [0, 1, 33], sizes = [1, 1, 192], strides = [1, 1, 1]} : vector<2x4x256xf32> to vector<1x1x192xf32>
    %101 = vector.shape_cast %100 : vector<1x1x192xf32> to vector<1x192xf32>
    %102 = vector.extract_strided_slice %0 {offsets = [0, 0, 34], sizes = [1, 1, 192], strides = [1, 1, 1]} : vector<2x4x256xf32> to vector<1x1x192xf32>
    %103 = vector.shape_cast %102 : vector<1x1x192xf32> to vector<1x192xf32>
    %104 = vector.extract_strided_slice %0 {offsets = [0, 1, 34], sizes = [1, 1, 192], strides = [1, 1, 1]} : vector<2x4x256xf32> to vector<1x1x192xf32>
    %105 = vector.shape_cast %104 : vector<1x1x192xf32> to vector<1x192xf32>
    %106 = tpu.concatenate %57, %59, %61, %63, %65, %67, %69, %71, %73, %75, %77, %79, %81, %83, %85, %87 in 0 : vector<1x192xf32>, vector<1x192xf32>, vector<1x192xf32>, vector<1x192xf32>, vector<1x192xf32>, vector<1x192xf32>, vector<1x192xf32>, vector<1x192xf32>, vector<1x192xf32>, vector<1x192xf32>, vector<1x192xf32>, vector<1x192xf32>, vector<1x192xf32>, vector<1x192xf32>, vector<1x192xf32>, vector<1x192xf32> -> vector<16x192xf32>
    %107 = tpu.concatenate %89, %91, %93, %95, %97, %99, %101, %103, %105 in 0 : vector<1x192xf32>, vector<1x192xf32>, vector<1x192xf32>, vector<1x192xf32>, vector<1x192xf32>, vector<1x192xf32>, vector<1x192xf32>, vector<1x192xf32>, vector<1x192xf32> -> vector<9x192xf32>
    %108 = tpu.concatenate %106, %107 in 0 : vector<16x192xf32>, vector<9x192xf32> -> vector<25x192xf32>
    %109 = vector.extract_strided_slice %0 {offsets = [0, 2, 0], sizes = [1, 1, 192], strides = [1, 1, 1]} : vector<2x4x256xf32> to vector<1x1x192xf32>
    %110 = vector.shape_cast %109 : vector<1x1x192xf32> to vector<1x192xf32>
    %111 = vector.extract_strided_slice %0 {offsets = [0, 3, 0], sizes = [1, 1, 192], strides = [1, 1, 1]} : vector<2x4x256xf32> to vector<1x1x192xf32>
    %112 = vector.shape_cast %111 : vector<1x1x192xf32> to vector<1x192xf32>
    %113 = vector.extract_strided_slice %0 {offsets = [0, 2, 1], sizes = [1, 1, 192], strides = [1, 1, 1]} : vector<2x4x256xf32> to vector<1x1x192xf32>
    %114 = vector.shape_cast %113 : vector<1x1x192xf32> to vector<1x192xf32>
    %115 = vector.extract_strided_slice %0 {offsets = [0, 3, 1], sizes = [1, 1, 192], strides = [1, 1, 1]} : vector<2x4x256xf32> to vector<1x1x192xf32>
    %116 = vector.shape_cast %115 : vector<1x1x192xf32> to vector<1x192xf32>
    %117 = vector.extract_strided_slice %0 {offsets = [0, 2, 2], sizes = [1, 1, 192], strides = [1, 1, 1]} : vector<2x4x256xf32> to vector<1x1x192xf32>
    %118 = vector.shape_cast %117 : vector<1x1x192xf32> to vector<1x192xf32>
    %119 = vector.extract_strided_slice %0 {offsets = [0, 0, 16], sizes = [1, 1, 192], strides = [1, 1, 1]} : vector<2x4x256xf32> to vector<1x1x192xf32>
    %120 = vector.shape_cast %119 : vector<1x1x192xf32> to vector<1x192xf32>
    %121 = vector.extract_strided_slice %0 {offsets = [0, 1, 16], sizes = [1, 1, 192], strides = [1, 1, 1]} : vector<2x4x256xf32> to vector<1x1x192xf32>
    %122 = vector.shape_cast %121 : vector<1x1x192xf32> to vector<1x192xf32>
    %123 = vector.extract_strided_slice %0 {offsets = [0, 0, 17], sizes = [1, 1, 192], strides = [1, 1, 1]} : vector<2x4x256xf32> to vector<1x1x192xf32>
    %124 = vector.shape_cast %123 : vector<1x1x192xf32> to vector<1x192xf32>
    %125 = vector.extract_strided_slice %0 {offsets = [0, 1, 17], sizes = [1, 1, 192], strides = [1, 1, 1]} : vector<2x4x256xf32> to vector<1x1x192xf32>
    %126 = vector.shape_cast %125 : vector<1x1x192xf32> to vector<1x192xf32>
    %127 = vector.extract_strided_slice %0 {offsets = [0, 0, 18], sizes = [1, 1, 192], strides = [1, 1, 1]} : vector<2x4x256xf32> to vector<1x1x192xf32>
    %128 = vector.shape_cast %127 : vector<1x1x192xf32> to vector<1x192xf32>
    %129 = vector.extract_strided_slice %0 {offsets = [0, 2, 16], sizes = [1, 1, 192], strides = [1, 1, 1]} : vector<2x4x256xf32> to vector<1x1x192xf32>
    %130 = vector.shape_cast %129 : vector<1x1x192xf32> to vector<1x192xf32>
    %131 = vector.extract_strided_slice %0 {offsets = [0, 3, 16], sizes = [1, 1, 192], strides = [1, 1, 1]} : vector<2x4x256xf32> to vector<1x1x192xf32>
    %132 = vector.shape_cast %131 : vector<1x1x192xf32> to vector<1x192xf32>
    %133 = vector.extract_strided_slice %0 {offsets = [0, 2, 17], sizes = [1, 1, 192], strides = [1, 1, 1]} : vector<2x4x256xf32> to vector<1x1x192xf32>
    %134 = vector.shape_cast %133 : vector<1x1x192xf32> to vector<1x192xf32>
    %135 = vector.extract_strided_slice %0 {offsets = [0, 3, 17], sizes = [1, 1, 192], strides = [1, 1, 1]} : vector<2x4x256xf32> to vector<1x1x192xf32>
    %136 = vector.shape_cast %135 : vector<1x1x192xf32> to vector<1x192xf32>
    %137 = vector.extract_strided_slice %0 {offsets = [0, 2, 18], sizes = [1, 1, 192], strides = [1, 1, 1]} : vector<2x4x256xf32> to vector<1x1x192xf32>
    %138 = vector.shape_cast %137 : vector<1x1x192xf32> to vector<1x192xf32>
    %139 = vector.extract_strided_slice %0 {offsets = [0, 0, 32], sizes = [1, 1, 192], strides = [1, 1, 1]} : vector<2x4x256xf32> to vector<1x1x192xf32>
    %140 = vector.shape_cast %139 : vector<1x1x192xf32> to vector<1x192xf32>
    %141 = vector.extract_strided_slice %0 {offsets = [0, 1, 32], sizes = [1, 1, 192], strides = [1, 1, 1]} : vector<2x4x256xf32> to vector<1x1x192xf32>
    %142 = vector.shape_cast %141 : vector<1x1x192xf32> to vector<1x192xf32>
    %143 = vector.extract_strided_slice %0 {offsets = [0, 0, 33], sizes = [1, 1, 192], strides = [1, 1, 1]} : vector<2x4x256xf32> to vector<1x1x192xf32>
    %144 = vector.shape_cast %143 : vector<1x1x192xf32> to vector<1x192xf32>
    %145 = vector.extract_strided_slice %0 {offsets = [0, 1, 33], sizes = [1, 1, 192], strides = [1, 1, 1]} : vector<2x4x256xf32> to vector<1x1x192xf32>
    %146 = vector.shape_cast %145 : vector<1x1x192xf32> to vector<1x192xf32>
    %147 = vector.extract_strided_slice %0 {offsets = [0, 0, 34], sizes = [1, 1, 192], strides = [1, 1, 1]} : vector<2x4x256xf32> to vector<1x1x192xf32>
    %148 = vector.shape_cast %147 : vector<1x1x192xf32> to vector<1x192xf32>
    %149 = vector.extract_strided_slice %0 {offsets = [0, 2, 32], sizes = [1, 1, 192], strides = [1, 1, 1]} : vector<2x4x256xf32> to vector<1x1x192xf32>
    %150 = vector.shape_cast %149 : vector<1x1x192xf32> to vector<1x192xf32>
    %151 = vector.extract_strided_slice %0 {offsets = [0, 3, 32], sizes = [1, 1, 192], strides = [1, 1, 1]} : vector<2x4x256xf32> to vector<1x1x192xf32>
    %152 = vector.shape_cast %151 : vector<1x1x192xf32> to vector<1x192xf32>
    %153 = vector.extract_strided_slice %0 {offsets = [0, 2, 33], sizes = [1, 1, 192], strides = [1, 1, 1]} : vector<2x4x256xf32> to vector<1x1x192xf32>
    %154 = vector.shape_cast %153 : vector<1x1x192xf32> to vector<1x192xf32>
    %155 = vector.extract_strided_slice %0 {offsets = [0, 3, 33], sizes = [1, 1, 192], strides = [1, 1, 1]} : vector<2x4x256xf32> to vector<1x1x192xf32>
    %156 = vector.shape_cast %155 : vector<1x1x192xf32> to vector<1x192xf32>
    %157 = vector.extract_strided_slice %0 {offsets = [0, 2, 34], sizes = [1, 1, 192], strides = [1, 1, 1]} : vector<2x4x256xf32> to vector<1x1x192xf32>
    %158 = vector.shape_cast %157 : vector<1x1x192xf32> to vector<1x192xf32>
    %159 = tpu.concatenate %110, %112, %114, %116, %118, %120, %122, %124, %126, %128, %130, %132, %134, %136, %138, %140 in 0 : vector<1x192xf32>, vector<1x192xf32>, vector<1x192xf32>, vector<1x192xf32>, vector<1x192xf32>, vector<1x192xf32>, vector<1x192xf32>, vector<1x192xf32>, vector<1x192xf32>, vector<1x192xf32>, vector<1x192xf32>, vector<1x192xf32>, vector<1x192xf32>, vector<1x192xf32>, vector<1x192xf32>, vector<1x192xf32> -> vector<16x192xf32>
    %160 = tpu.concatenate %142, %144, %146, %148, %150, %152, %154, %156, %158 in 0 : vector<1x192xf32>, vector<1x192xf32>, vector<1x192xf32>, vector<1x192xf32>, vector<1x192xf32>, vector<1x192xf32>, vector<1x192xf32>, vector<1x192xf32>, vector<1x192xf32> -> vector<9x192xf32>
    %161 = tpu.concatenate %159, %160 in 0 : vector<16x192xf32>, vector<9x192xf32> -> vector<25x192xf32>
    %162 = vector.extract_strided_slice %0 {offsets = [0, 3, 0], sizes = [1, 1, 192], strides = [1, 1, 1]} : vector<2x4x256xf32> to vector<1x1x192xf32>
    %163 = vector.shape_cast %162 : vector<1x1x192xf32> to vector<1x192xf32>
    %164 = vector.extract_strided_slice %0 {offsets = [0, 2, 1], sizes = [1, 1, 192], strides = [1, 1, 1]} : vector<2x4x256xf32> to vector<1x1x192xf32>
    %165 = vector.shape_cast %164 : vector<1x1x192xf32> to vector<1x192xf32>
    %166 = vector.extract_strided_slice %0 {offsets = [0, 3, 1], sizes = [1, 1, 192], strides = [1, 1, 1]} : vector<2x4x256xf32> to vector<1x1x192xf32>
    %167 = vector.shape_cast %166 : vector<1x1x192xf32> to vector<1x192xf32>
    %168 = vector.extract_strided_slice %0 {offsets = [0, 2, 2], sizes = [1, 1, 192], strides = [1, 1, 1]} : vector<2x4x256xf32> to vector<1x1x192xf32>
    %169 = vector.shape_cast %168 : vector<1x1x192xf32> to vector<1x192xf32>
    %170 = vector.extract_strided_slice %0 {offsets = [0, 3, 2], sizes = [1, 1, 192], strides = [1, 1, 1]} : vector<2x4x256xf32> to vector<1x1x192xf32>
    %171 = vector.shape_cast %170 : vector<1x1x192xf32> to vector<1x192xf32>
    %172 = vector.extract_strided_slice %0 {offsets = [0, 1, 16], sizes = [1, 1, 192], strides = [1, 1, 1]} : vector<2x4x256xf32> to vector<1x1x192xf32>
    %173 = vector.shape_cast %172 : vector<1x1x192xf32> to vector<1x192xf32>
    %174 = vector.extract_strided_slice %0 {offsets = [0, 0, 17], sizes = [1, 1, 192], strides = [1, 1, 1]} : vector<2x4x256xf32> to vector<1x1x192xf32>
    %175 = vector.shape_cast %174 : vector<1x1x192xf32> to vector<1x192xf32>
    %176 = vector.extract_strided_slice %0 {offsets = [0, 1, 17], sizes = [1, 1, 192], strides = [1, 1, 1]} : vector<2x4x256xf32> to vector<1x1x192xf32>
    %177 = vector.shape_cast %176 : vector<1x1x192xf32> to vector<1x192xf32>
    %178 = vector.extract_strided_slice %0 {offsets = [0, 0, 18], sizes = [1, 1, 192], strides = [1, 1, 1]} : vector<2x4x256xf32> to vector<1x1x192xf32>
    %179 = vector.shape_cast %178 : vector<1x1x192xf32> to vector<1x192xf32>
    %180 = vector.extract_strided_slice %0 {offsets = [0, 1, 18], sizes = [1, 1, 192], strides = [1, 1, 1]} : vector<2x4x256xf32> to vector<1x1x192xf32>
    %181 = vector.shape_cast %180 : vector<1x1x192xf32> to vector<1x192xf32>
    %182 = vector.extract_strided_slice %0 {offsets = [0, 3, 16], sizes = [1, 1, 192], strides = [1, 1, 1]} : vector<2x4x256xf32> to vector<1x1x192xf32>
    %183 = vector.shape_cast %182 : vector<1x1x192xf32> to vector<1x192xf32>
    %184 = vector.extract_strided_slice %0 {offsets = [0, 2, 17], sizes = [1, 1, 192], strides = [1, 1, 1]} : vector<2x4x256xf32> to vector<1x1x192xf32>
    %185 = vector.shape_cast %184 : vector<1x1x192xf32> to vector<1x192xf32>
    %186 = vector.extract_strided_slice %0 {offsets = [0, 3, 17], sizes = [1, 1, 192], strides = [1, 1, 1]} : vector<2x4x256xf32> to vector<1x1x192xf32>
    %187 = vector.shape_cast %186 : vector<1x1x192xf32> to vector<1x192xf32>
    %188 = vector.extract_strided_slice %0 {offsets = [0, 2, 18], sizes = [1, 1, 192], strides = [1, 1, 1]} : vector<2x4x256xf32> to vector<1x1x192xf32>
    %189 = vector.shape_cast %188 : vector<1x1x192xf32> to vector<1x192xf32>
    %190 = vector.extract_strided_slice %0 {offsets = [0, 3, 18], sizes = [1, 1, 192], strides = [1, 1, 1]} : vector<2x4x256xf32> to vector<1x1x192xf32>
    %191 = vector.shape_cast %190 : vector<1x1x192xf32> to vector<1x192xf32>
    %192 = vector.extract_strided_slice %0 {offsets = [0, 1, 32], sizes = [1, 1, 192], strides = [1, 1, 1]} : vector<2x4x256xf32> to vector<1x1x192xf32>
    %193 = vector.shape_cast %192 : vector<1x1x192xf32> to vector<1x192xf32>
    %194 = vector.extract_strided_slice %0 {offsets = [0, 0, 33], sizes = [1, 1, 192], strides = [1, 1, 1]} : vector<2x4x256xf32> to vector<1x1x192xf32>
    %195 = vector.shape_cast %194 : vector<1x1x192xf32> to vector<1x192xf32>
    %196 = vector.extract_strided_slice %0 {offsets = [0, 1, 33], sizes = [1, 1, 192], strides = [1, 1, 1]} : vector<2x4x256xf32> to vector<1x1x192xf32>
    %197 = vector.shape_cast %196 : vector<1x1x192xf32> to vector<1x192xf32>
    %198 = vector.extract_strided_slice %0 {offsets = [0, 0, 34], sizes = [1, 1, 192], strides = [1, 1, 1]} : vector<2x4x256xf32> to vector<1x1x192xf32>
    %199 = vector.shape_cast %198 : vector<1x1x192xf32> to vector<1x192xf32>
    %200 = vector.extract_strided_slice %0 {offsets = [0, 1, 34], sizes = [1, 1, 192], strides = [1, 1, 1]} : vector<2x4x256xf32> to vector<1x1x192xf32>
    %201 = vector.shape_cast %200 : vector<1x1x192xf32> to vector<1x192xf32>
    %202 = vector.extract_strided_slice %0 {offsets = [0, 3, 32], sizes = [1, 1, 192], strides = [1, 1, 1]} : vector<2x4x256xf32> to vector<1x1x192xf32>
    %203 = vector.shape_cast %202 : vector<1x1x192xf32> to vector<1x192xf32>
    %204 = vector.extract_strided_slice %0 {offsets = [0, 2, 33], sizes = [1, 1, 192], strides = [1, 1, 1]} : vector<2x4x256xf32> to vector<1x1x192xf32>
    %205 = vector.shape_cast %204 : vector<1x1x192xf32> to vector<1x192xf32>
    %206 = vector.extract_strided_slice %0 {offsets = [0, 3, 33], sizes = [1, 1, 192], strides = [1, 1, 1]} : vector<2x4x256xf32> to vector<1x1x192xf32>
    %207 = vector.shape_cast %206 : vector<1x1x192xf32> to vector<1x192xf32>
    %208 = vector.extract_strided_slice %0 {offsets = [0, 2, 34], sizes = [1, 1, 192], strides = [1, 1, 1]} : vector<2x4x256xf32> to vector<1x1x192xf32>
    %209 = vector.shape_cast %208 : vector<1x1x192xf32> to vector<1x192xf32>
    %210 = vector.extract_strided_slice %0 {offsets = [0, 3, 34], sizes = [1, 1, 192], strides = [1, 1, 1]} : vector<2x4x256xf32> to vector<1x1x192xf32>
    %211 = vector.shape_cast %210 : vector<1x1x192xf32> to vector<1x192xf32>
    %212 = tpu.concatenate %163, %165, %167, %169, %171, %173, %175, %177, %179, %181, %183, %185, %187, %189, %191, %193 in 0 : vector<1x192xf32>, vector<1x192xf32>, vector<1x192xf32>, vector<1x192xf32>, vector<1x192xf32>, vector<1x192xf32>, vector<1x192xf32>, vector<1x192xf32>, vector<1x192xf32>, vector<1x192xf32>, vector<1x192xf32>, vector<1x192xf32>, vector<1x192xf32>, vector<1x192xf32>, vector<1x192xf32>, vector<1x192xf32> -> vector<16x192xf32>
    %213 = tpu.concatenate %195, %197, %199, %201, %203, %205, %207, %209, %211 in 0 : vector<1x192xf32>, vector<1x192xf32>, vector<1x192xf32>, vector<1x192xf32>, vector<1x192xf32>, vector<1x192xf32>, vector<1x192xf32>, vector<1x192xf32>, vector<1x192xf32> -> vector<9x192xf32>
    %214 = tpu.concatenate %212, %213 in 0 : vector<16x192xf32>, vector<9x192xf32> -> vector<25x192xf32>
    %215 = vector.extract_strided_slice %0 {offsets = [1, 0, 0], sizes = [1, 1, 192], strides = [1, 1, 1]} : vector<2x4x256xf32> to vector<1x1x192xf32>
    %216 = vector.shape_cast %215 : vector<1x1x192xf32> to vector<1x192xf32>
    %217 = vector.extract_strided_slice %0 {offsets = [1, 1, 0], sizes = [1, 1, 192], strides = [1, 1, 1]} : vector<2x4x256xf32> to vector<1x1x192xf32>
    %218 = vector.shape_cast %217 : vector<1x1x192xf32> to vector<1x192xf32>
    %219 = vector.extract_strided_slice %0 {offsets = [1, 0, 1], sizes = [1, 1, 192], strides = [1, 1, 1]} : vector<2x4x256xf32> to vector<1x1x192xf32>
    %220 = vector.shape_cast %219 : vector<1x1x192xf32> to vector<1x192xf32>
    %221 = vector.extract_strided_slice %0 {offsets = [1, 1, 1], sizes = [1, 1, 192], strides = [1, 1, 1]} : vector<2x4x256xf32> to vector<1x1x192xf32>
    %222 = vector.shape_cast %221 : vector<1x1x192xf32> to vector<1x192xf32>
    %223 = vector.extract_strided_slice %0 {offsets = [1, 0, 2], sizes = [1, 1, 192], strides = [1, 1, 1]} : vector<2x4x256xf32> to vector<1x1x192xf32>
    %224 = vector.shape_cast %223 : vector<1x1x192xf32> to vector<1x192xf32>
    %225 = vector.extract_strided_slice %0 {offsets = [1, 2, 0], sizes = [1, 1, 192], strides = [1, 1, 1]} : vector<2x4x256xf32> to vector<1x1x192xf32>
    %226 = vector.shape_cast %225 : vector<1x1x192xf32> to vector<1x192xf32>
    %227 = vector.extract_strided_slice %0 {offsets = [1, 3, 0], sizes = [1, 1, 192], strides = [1, 1, 1]} : vector<2x4x256xf32> to vector<1x1x192xf32>
    %228 = vector.shape_cast %227 : vector<1x1x192xf32> to vector<1x192xf32>
    %229 = vector.extract_strided_slice %0 {offsets = [1, 2, 1], sizes = [1, 1, 192], strides = [1, 1, 1]} : vector<2x4x256xf32> to vector<1x1x192xf32>
    %230 = vector.shape_cast %229 : vector<1x1x192xf32> to vector<1x192xf32>
    %231 = vector.extract_strided_slice %0 {offsets = [1, 3, 1], sizes = [1, 1, 192], strides = [1, 1, 1]} : vector<2x4x256xf32> to vector<1x1x192xf32>
    %232 = vector.shape_cast %231 : vector<1x1x192xf32> to vector<1x192xf32>
    %233 = vector.extract_strided_slice %0 {offsets = [1, 2, 2], sizes = [1, 1, 192], strides = [1, 1, 1]} : vector<2x4x256xf32> to vector<1x1x192xf32>
    %234 = vector.shape_cast %233 : vector<1x1x192xf32> to vector<1x192xf32>
    %235 = vector.extract_strided_slice %0 {offsets = [1, 0, 16], sizes = [1, 1, 192], strides = [1, 1, 1]} : vector<2x4x256xf32> to vector<1x1x192xf32>
    %236 = vector.shape_cast %235 : vector<1x1x192xf32> to vector<1x192xf32>
    %237 = vector.extract_strided_slice %0 {offsets = [1, 1, 16], sizes = [1, 1, 192], strides = [1, 1, 1]} : vector<2x4x256xf32> to vector<1x1x192xf32>
    %238 = vector.shape_cast %237 : vector<1x1x192xf32> to vector<1x192xf32>
    %239 = vector.extract_strided_slice %0 {offsets = [1, 0, 17], sizes = [1, 1, 192], strides = [1, 1, 1]} : vector<2x4x256xf32> to vector<1x1x192xf32>
    %240 = vector.shape_cast %239 : vector<1x1x192xf32> to vector<1x192xf32>
    %241 = vector.extract_strided_slice %0 {offsets = [1, 1, 17], sizes = [1, 1, 192], strides = [1, 1, 1]} : vector<2x4x256xf32> to vector<1x1x192xf32>
    %242 = vector.shape_cast %241 : vector<1x1x192xf32> to vector<1x192xf32>
    %243 = vector.extract_strided_slice %0 {offsets = [1, 0, 18], sizes = [1, 1, 192], strides = [1, 1, 1]} : vector<2x4x256xf32> to vector<1x1x192xf32>
    %244 = vector.shape_cast %243 : vector<1x1x192xf32> to vector<1x192xf32>
    %245 = vector.extract_strided_slice %0 {offsets = [1, 2, 16], sizes = [1, 1, 192], strides = [1, 1, 1]} : vector<2x4x256xf32> to vector<1x1x192xf32>
    %246 = vector.shape_cast %245 : vector<1x1x192xf32> to vector<1x192xf32>
    %247 = vector.extract_strided_slice %0 {offsets = [1, 3, 16], sizes = [1, 1, 192], strides = [1, 1, 1]} : vector<2x4x256xf32> to vector<1x1x192xf32>
    %248 = vector.shape_cast %247 : vector<1x1x192xf32> to vector<1x192xf32>
    %249 = vector.extract_strided_slice %0 {offsets = [1, 2, 17], sizes = [1, 1, 192], strides = [1, 1, 1]} : vector<2x4x256xf32> to vector<1x1x192xf32>
    %250 = vector.shape_cast %249 : vector<1x1x192xf32> to vector<1x192xf32>
    %251 = vector.extract_strided_slice %0 {offsets = [1, 3, 17], sizes = [1, 1, 192], strides = [1, 1, 1]} : vector<2x4x256xf32> to vector<1x1x192xf32>
    %252 = vector.shape_cast %251 : vector<1x1x192xf32> to vector<1x192xf32>
    %253 = vector.extract_strided_slice %0 {offsets = [1, 2, 18], sizes = [1, 1, 192], strides = [1, 1, 1]} : vector<2x4x256xf32> to vector<1x1x192xf32>
    %254 = vector.shape_cast %253 : vector<1x1x192xf32> to vector<1x192xf32>
    %255 = vector.extract_strided_slice %0 {offsets = [1, 0, 32], sizes = [1, 1, 192], strides = [1, 1, 1]} : vector<2x4x256xf32> to vector<1x1x192xf32>
    %256 = vector.shape_cast %255 : vector<1x1x192xf32> to vector<1x192xf32>
    %257 = vector.extract_strided_slice %0 {offsets = [1, 1, 32], sizes = [1, 1, 192], strides = [1, 1, 1]} : vector<2x4x256xf32> to vector<1x1x192xf32>
    %258 = vector.shape_cast %257 : vector<1x1x192xf32> to vector<1x192xf32>
    %259 = vector.extract_strided_slice %0 {offsets = [1, 0, 33], sizes = [1, 1, 192], strides = [1, 1, 1]} : vector<2x4x256xf32> to vector<1x1x192xf32>
    %260 = vector.shape_cast %259 : vector<1x1x192xf32> to vector<1x192xf32>
    %261 = vector.extract_strided_slice %0 {offsets = [1, 1, 33], sizes = [1, 1, 192], strides = [1, 1, 1]} : vector<2x4x256xf32> to vector<1x1x192xf32>
    %262 = vector.shape_cast %261 : vector<1x1x192xf32> to vector<1x192xf32>
    %263 = vector.extract_strided_slice %0 {offsets = [1, 0, 34], sizes = [1, 1, 192], strides = [1, 1, 1]} : vector<2x4x256xf32> to vector<1x1x192xf32>
    %264 = vector.shape_cast %263 : vector<1x1x192xf32> to vector<1x192xf32>
    %265 = tpu.concatenate %216, %218, %220, %222, %224, %226, %228, %230, %232, %234, %236, %238, %240, %242, %244, %246 in 0 : vector<1x192xf32>, vector<1x192xf32>, vector<1x192xf32>, vector<1x192xf32>, vector<1x192xf32>, vector<1x192xf32>, vector<1x192xf32>, vector<1x192xf32>, vector<1x192xf32>, vector<1x192xf32>, vector<1x192xf32>, vector<1x192xf32>, vector<1x192xf32>, vector<1x192xf32>, vector<1x192xf32>, vector<1x192xf32> -> vector<16x192xf32>
    %266 = tpu.concatenate %248, %250, %252, %254, %256, %258, %260, %262, %264 in 0 : vector<1x192xf32>, vector<1x192xf32>, vector<1x192xf32>, vector<1x192xf32>, vector<1x192xf32>, vector<1x192xf32>, vector<1x192xf32>, vector<1x192xf32>, vector<1x192xf32> -> vector<9x192xf32>
    %267 = tpu.concatenate %265, %266 in 0 : vector<16x192xf32>, vector<9x192xf32> -> vector<25x192xf32>
    %268 = vector.extract_strided_slice %0 {offsets = [1, 1, 0], sizes = [1, 1, 192], strides = [1, 1, 1]} : vector<2x4x256xf32> to vector<1x1x192xf32>
    %269 = vector.shape_cast %268 : vector<1x1x192xf32> to vector<1x192xf32>
    %270 = vector.extract_strided_slice %0 {offsets = [1, 0, 1], sizes = [1, 1, 192], strides = [1, 1, 1]} : vector<2x4x256xf32> to vector<1x1x192xf32>
    %271 = vector.shape_cast %270 : vector<1x1x192xf32> to vector<1x192xf32>
    %272 = vector.extract_strided_slice %0 {offsets = [1, 1, 1], sizes = [1, 1, 192], strides = [1, 1, 1]} : vector<2x4x256xf32> to vector<1x1x192xf32>
    %273 = vector.shape_cast %272 : vector<1x1x192xf32> to vector<1x192xf32>
    %274 = vector.extract_strided_slice %0 {offsets = [1, 0, 2], sizes = [1, 1, 192], strides = [1, 1, 1]} : vector<2x4x256xf32> to vector<1x1x192xf32>
    %275 = vector.shape_cast %274 : vector<1x1x192xf32> to vector<1x192xf32>
    %276 = vector.extract_strided_slice %0 {offsets = [1, 1, 2], sizes = [1, 1, 192], strides = [1, 1, 1]} : vector<2x4x256xf32> to vector<1x1x192xf32>
    %277 = vector.shape_cast %276 : vector<1x1x192xf32> to vector<1x192xf32>
    %278 = vector.extract_strided_slice %0 {offsets = [1, 3, 0], sizes = [1, 1, 192], strides = [1, 1, 1]} : vector<2x4x256xf32> to vector<1x1x192xf32>
    %279 = vector.shape_cast %278 : vector<1x1x192xf32> to vector<1x192xf32>
    %280 = vector.extract_strided_slice %0 {offsets = [1, 2, 1], sizes = [1, 1, 192], strides = [1, 1, 1]} : vector<2x4x256xf32> to vector<1x1x192xf32>
    %281 = vector.shape_cast %280 : vector<1x1x192xf32> to vector<1x192xf32>
    %282 = vector.extract_strided_slice %0 {offsets = [1, 3, 1], sizes = [1, 1, 192], strides = [1, 1, 1]} : vector<2x4x256xf32> to vector<1x1x192xf32>
    %283 = vector.shape_cast %282 : vector<1x1x192xf32> to vector<1x192xf32>
    %284 = vector.extract_strided_slice %0 {offsets = [1, 2, 2], sizes = [1, 1, 192], strides = [1, 1, 1]} : vector<2x4x256xf32> to vector<1x1x192xf32>
    %285 = vector.shape_cast %284 : vector<1x1x192xf32> to vector<1x192xf32>
    %286 = vector.extract_strided_slice %0 {offsets = [1, 3, 2], sizes = [1, 1, 192], strides = [1, 1, 1]} : vector<2x4x256xf32> to vector<1x1x192xf32>
    %287 = vector.shape_cast %286 : vector<1x1x192xf32> to vector<1x192xf32>
    %288 = vector.extract_strided_slice %0 {offsets = [1, 1, 16], sizes = [1, 1, 192], strides = [1, 1, 1]} : vector<2x4x256xf32> to vector<1x1x192xf32>
    %289 = vector.shape_cast %288 : vector<1x1x192xf32> to vector<1x192xf32>
    %290 = vector.extract_strided_slice %0 {offsets = [1, 0, 17], sizes = [1, 1, 192], strides = [1, 1, 1]} : vector<2x4x256xf32> to vector<1x1x192xf32>
    %291 = vector.shape_cast %290 : vector<1x1x192xf32> to vector<1x192xf32>
    %292 = vector.extract_strided_slice %0 {offsets = [1, 1, 17], sizes = [1, 1, 192], strides = [1, 1, 1]} : vector<2x4x256xf32> to vector<1x1x192xf32>
    %293 = vector.shape_cast %292 : vector<1x1x192xf32> to vector<1x192xf32>
    %294 = vector.extract_strided_slice %0 {offsets = [1, 0, 18], sizes = [1, 1, 192], strides = [1, 1, 1]} : vector<2x4x256xf32> to vector<1x1x192xf32>
    %295 = vector.shape_cast %294 : vector<1x1x192xf32> to vector<1x192xf32>
    %296 = vector.extract_strided_slice %0 {offsets = [1, 1, 18], sizes = [1, 1, 192], strides = [1, 1, 1]} : vector<2x4x256xf32> to vector<1x1x192xf32>
    %297 = vector.shape_cast %296 : vector<1x1x192xf32> to vector<1x192xf32>
    %298 = vector.extract_strided_slice %0 {offsets = [1, 3, 16], sizes = [1, 1, 192], strides = [1, 1, 1]} : vector<2x4x256xf32> to vector<1x1x192xf32>
    %299 = vector.shape_cast %298 : vector<1x1x192xf32> to vector<1x192xf32>
    %300 = vector.extract_strided_slice %0 {offsets = [1, 2, 17], sizes = [1, 1, 192], strides = [1, 1, 1]} : vector<2x4x256xf32> to vector<1x1x192xf32>
    %301 = vector.shape_cast %300 : vector<1x1x192xf32> to vector<1x192xf32>
    %302 = vector.extract_strided_slice %0 {offsets = [1, 3, 17], sizes = [1, 1, 192], strides = [1, 1, 1]} : vector<2x4x256xf32> to vector<1x1x192xf32>
    %303 = vector.shape_cast %302 : vector<1x1x192xf32> to vector<1x192xf32>
    %304 = vector.extract_strided_slice %0 {offsets = [1, 2, 18], sizes = [1, 1, 192], strides = [1, 1, 1]} : vector<2x4x256xf32> to vector<1x1x192xf32>
    %305 = vector.shape_cast %304 : vector<1x1x192xf32> to vector<1x192xf32>
    %306 = vector.extract_strided_slice %0 {offsets = [1, 3, 18], sizes = [1, 1, 192], strides = [1, 1, 1]} : vector<2x4x256xf32> to vector<1x1x192xf32>
    %307 = vector.shape_cast %306 : vector<1x1x192xf32> to vector<1x192xf32>
    %308 = vector.extract_strided_slice %0 {offsets = [1, 1, 32], sizes = [1, 1, 192], strides = [1, 1, 1]} : vector<2x4x256xf32> to vector<1x1x192xf32>
    %309 = vector.shape_cast %308 : vector<1x1x192xf32> to vector<1x192xf32>
    %310 = vector.extract_strided_slice %0 {offsets = [1, 0, 33], sizes = [1, 1, 192], strides = [1, 1, 1]} : vector<2x4x256xf32> to vector<1x1x192xf32>
    %311 = vector.shape_cast %310 : vector<1x1x192xf32> to vector<1x192xf32>
    %312 = vector.extract_strided_slice %0 {offsets = [1, 1, 33], sizes = [1, 1, 192], strides = [1, 1, 1]} : vector<2x4x256xf32> to vector<1x1x192xf32>
    %313 = vector.shape_cast %312 : vector<1x1x192xf32> to vector<1x192xf32>
    %314 = vector.extract_strided_slice %0 {offsets = [1, 0, 34], sizes = [1, 1, 192], strides = [1, 1, 1]} : vector<2x4x256xf32> to vector<1x1x192xf32>
    %315 = vector.shape_cast %314 : vector<1x1x192xf32> to vector<1x192xf32>
    %316 = vector.extract_strided_slice %0 {offsets = [1, 1, 34], sizes = [1, 1, 192], strides = [1, 1, 1]} : vector<2x4x256xf32> to vector<1x1x192xf32>
    %317 = vector.shape_cast %316 : vector<1x1x192xf32> to vector<1x192xf32>
    %318 = tpu.concatenate %269, %271, %273, %275, %277, %279, %281, %283, %285, %287, %289, %291, %293, %295, %297, %299 in 0 : vector<1x192xf32>, vector<1x192xf32>, vector<1x192xf32>, vector<1x192xf32>, vector<1x192xf32>, vector<1x192xf32>, vector<1x192xf32>, vector<1x192xf32>, vector<1x192xf32>, vector<1x192xf32>, vector<1x192xf32>, vector<1x192xf32>, vector<1x192xf32>, vector<1x192xf32>, vector<1x192xf32>, vector<1x192xf32> -> vector<16x192xf32>
    %319 = tpu.concatenate %301, %303, %305, %307, %309, %311, %313, %315, %317 in 0 : vector<1x192xf32>, vector<1x192xf32>, vector<1x192xf32>, vector<1x192xf32>, vector<1x192xf32>, vector<1x192xf32>, vector<1x192xf32>, vector<1x192xf32>, vector<1x192xf32> -> vector<9x192xf32>
    %320 = tpu.concatenate %318, %319 in 0 : vector<16x192xf32>, vector<9x192xf32> -> vector<25x192xf32>
    %321 = vector.extract_strided_slice %0 {offsets = [1, 2, 0], sizes = [1, 1, 192], strides = [1, 1, 1]} : vector<2x4x256xf32> to vector<1x1x192xf32>
    %322 = vector.shape_cast %321 : vector<1x1x192xf32> to vector<1x192xf32>
    %323 = vector.extract_strided_slice %0 {offsets = [1, 3, 0], sizes = [1, 1, 192], strides = [1, 1, 1]} : vector<2x4x256xf32> to vector<1x1x192xf32>
    %324 = vector.shape_cast %323 : vector<1x1x192xf32> to vector<1x192xf32>
    %325 = vector.extract_strided_slice %0 {offsets = [1, 2, 1], sizes = [1, 1, 192], strides = [1, 1, 1]} : vector<2x4x256xf32> to vector<1x1x192xf32>
    %326 = vector.shape_cast %325 : vector<1x1x192xf32> to vector<1x192xf32>
    %327 = vector.extract_strided_slice %0 {offsets = [1, 3, 1], sizes = [1, 1, 192], strides = [1, 1, 1]} : vector<2x4x256xf32> to vector<1x1x192xf32>
    %328 = vector.shape_cast %327 : vector<1x1x192xf32> to vector<1x192xf32>
    %329 = vector.extract_strided_slice %0 {offsets = [1, 2, 2], sizes = [1, 1, 192], strides = [1, 1, 1]} : vector<2x4x256xf32> to vector<1x1x192xf32>
    %330 = vector.shape_cast %329 : vector<1x1x192xf32> to vector<1x192xf32>
    %331 = vector.extract_strided_slice %0 {offsets = [1, 0, 16], sizes = [1, 1, 192], strides = [1, 1, 1]} : vector<2x4x256xf32> to vector<1x1x192xf32>
    %332 = vector.shape_cast %331 : vector<1x1x192xf32> to vector<1x192xf32>
    %333 = vector.extract_strided_slice %0 {offsets = [1, 1, 16], sizes = [1, 1, 192], strides = [1, 1, 1]} : vector<2x4x256xf32> to vector<1x1x192xf32>
    %334 = vector.shape_cast %333 : vector<1x1x192xf32> to vector<1x192xf32>
    %335 = vector.extract_strided_slice %0 {offsets = [1, 0, 17], sizes = [1, 1, 192], strides = [1, 1, 1]} : vector<2x4x256xf32> to vector<1x1x192xf32>
    %336 = vector.shape_cast %335 : vector<1x1x192xf32> to vector<1x192xf32>
    %337 = vector.extract_strided_slice %0 {offsets = [1, 1, 17], sizes = [1, 1, 192], strides = [1, 1, 1]} : vector<2x4x256xf32> to vector<1x1x192xf32>
    %338 = vector.shape_cast %337 : vector<1x1x192xf32> to vector<1x192xf32>
    %339 = vector.extract_strided_slice %0 {offsets = [1, 0, 18], sizes = [1, 1, 192], strides = [1, 1, 1]} : vector<2x4x256xf32> to vector<1x1x192xf32>
    %340 = vector.shape_cast %339 : vector<1x1x192xf32> to vector<1x192xf32>
    %341 = vector.extract_strided_slice %0 {offsets = [1, 2, 16], sizes = [1, 1, 192], strides = [1, 1, 1]} : vector<2x4x256xf32> to vector<1x1x192xf32>
    %342 = vector.shape_cast %341 : vector<1x1x192xf32> to vector<1x192xf32>
    %343 = vector.extract_strided_slice %0 {offsets = [1, 3, 16], sizes = [1, 1, 192], strides = [1, 1, 1]} : vector<2x4x256xf32> to vector<1x1x192xf32>
    %344 = vector.shape_cast %343 : vector<1x1x192xf32> to vector<1x192xf32>
    %345 = vector.extract_strided_slice %0 {offsets = [1, 2, 17], sizes = [1, 1, 192], strides = [1, 1, 1]} : vector<2x4x256xf32> to vector<1x1x192xf32>
    %346 = vector.shape_cast %345 : vector<1x1x192xf32> to vector<1x192xf32>
    %347 = vector.extract_strided_slice %0 {offsets = [1, 3, 17], sizes = [1, 1, 192], strides = [1, 1, 1]} : vector<2x4x256xf32> to vector<1x1x192xf32>
    %348 = vector.shape_cast %347 : vector<1x1x192xf32> to vector<1x192xf32>
    %349 = vector.extract_strided_slice %0 {offsets = [1, 2, 18], sizes = [1, 1, 192], strides = [1, 1, 1]} : vector<2x4x256xf32> to vector<1x1x192xf32>
    %350 = vector.shape_cast %349 : vector<1x1x192xf32> to vector<1x192xf32>
    %351 = vector.extract_strided_slice %0 {offsets = [1, 0, 32], sizes = [1, 1, 192], strides = [1, 1, 1]} : vector<2x4x256xf32> to vector<1x1x192xf32>
    %352 = vector.shape_cast %351 : vector<1x1x192xf32> to vector<1x192xf32>
    %353 = vector.extract_strided_slice %0 {offsets = [1, 1, 32], sizes = [1, 1, 192], strides = [1, 1, 1]} : vector<2x4x256xf32> to vector<1x1x192xf32>
    %354 = vector.shape_cast %353 : vector<1x1x192xf32> to vector<1x192xf32>
    %355 = vector.extract_strided_slice %0 {offsets = [1, 0, 33], sizes = [1, 1, 192], strides = [1, 1, 1]} : vector<2x4x256xf32> to vector<1x1x192xf32>
    %356 = vector.shape_cast %355 : vector<1x1x192xf32> to vector<1x192xf32>
    %357 = vector.extract_strided_slice %0 {offsets = [1, 1, 33], sizes = [1, 1, 192], strides = [1, 1, 1]} : vector<2x4x256xf32> to vector<1x1x192xf32>
    %358 = vector.shape_cast %357 : vector<1x1x192xf32> to vector<1x192xf32>
    %359 = vector.extract_strided_slice %0 {offsets = [1, 0, 34], sizes = [1, 1, 192], strides = [1, 1, 1]} : vector<2x4x256xf32> to vector<1x1x192xf32>
    %360 = vector.shape_cast %359 : vector<1x1x192xf32> to vector<1x192xf32>
    %361 = vector.extract_strided_slice %0 {offsets = [1, 2, 32], sizes = [1, 1, 192], strides = [1, 1, 1]} : vector<2x4x256xf32> to vector<1x1x192xf32>
    %362 = vector.shape_cast %361 : vector<1x1x192xf32> to vector<1x192xf32>
    %363 = vector.extract_strided_slice %0 {offsets = [1, 3, 32], sizes = [1, 1, 192], strides = [1, 1, 1]} : vector<2x4x256xf32> to vector<1x1x192xf32>
    %364 = vector.shape_cast %363 : vector<1x1x192xf32> to vector<1x192xf32>
    %365 = vector.extract_strided_slice %0 {offsets = [1, 2, 33], sizes = [1, 1, 192], strides = [1, 1, 1]} : vector<2x4x256xf32> to vector<1x1x192xf32>
    %366 = vector.shape_cast %365 : vector<1x1x192xf32> to vector<1x192xf32>
    %367 = vector.extract_strided_slice %0 {offsets = [1, 3, 33], sizes = [1, 1, 192], strides = [1, 1, 1]} : vector<2x4x256xf32> to vector<1x1x192xf32>
    %368 = vector.shape_cast %367 : vector<1x1x192xf32> to vector<1x192xf32>
    %369 = vector.extract_strided_slice %0 {offsets = [1, 2, 34], sizes = [1, 1, 192], strides = [1, 1, 1]} : vector<2x4x256xf32> to vector<1x1x192xf32>
    %370 = vector.shape_cast %369 : vector<1x1x192xf32> to vector<1x192xf32>
    %371 = tpu.concatenate %322, %324, %326, %328, %330, %332, %334, %336, %338, %340, %342, %344, %346, %348, %350, %352 in 0 : vector<1x192xf32>, vector<1x192xf32>, vector<1x192xf32>, vector<1x192xf32>, vector<1x192xf32>, vector<1x192xf32>, vector<1x192xf32>, vector<1x192xf32>, vector<1x192xf32>, vector<1x192xf32>, vector<1x192xf32>, vector<1x192xf32>, vector<1x192xf32>, vector<1x192xf32>, vector<1x192xf32>, vector<1x192xf32> -> vector<16x192xf32>
    %372 = tpu.concatenate %354, %356, %358, %360, %362, %364, %366, %368, %370 in 0 : vector<1x192xf32>, vector<1x192xf32>, vector<1x192xf32>, vector<1x192xf32>, vector<1x192xf32>, vector<1x192xf32>, vector<1x192xf32>, vector<1x192xf32>, vector<1x192xf32> -> vector<9x192xf32>
    %373 = tpu.concatenate %371, %372 in 0 : vector<16x192xf32>, vector<9x192xf32> -> vector<25x192xf32>
    %374 = vector.extract_strided_slice %0 {offsets = [1, 3, 0], sizes = [1, 1, 192], strides = [1, 1, 1]} : vector<2x4x256xf32> to vector<1x1x192xf32>
    %375 = vector.shape_cast %374 : vector<1x1x192xf32> to vector<1x192xf32>
    %376 = vector.extract_strided_slice %0 {offsets = [1, 2, 1], sizes = [1, 1, 192], strides = [1, 1, 1]} : vector<2x4x256xf32> to vector<1x1x192xf32>
    %377 = vector.shape_cast %376 : vector<1x1x192xf32> to vector<1x192xf32>
    %378 = vector.extract_strided_slice %0 {offsets = [1, 3, 1], sizes = [1, 1, 192], strides = [1, 1, 1]} : vector<2x4x256xf32> to vector<1x1x192xf32>
    %379 = vector.shape_cast %378 : vector<1x1x192xf32> to vector<1x192xf32>
    %380 = vector.extract_strided_slice %0 {offsets = [1, 2, 2], sizes = [1, 1, 192], strides = [1, 1, 1]} : vector<2x4x256xf32> to vector<1x1x192xf32>
    %381 = vector.shape_cast %380 : vector<1x1x192xf32> to vector<1x192xf32>
    %382 = vector.extract_strided_slice %0 {offsets = [1, 3, 2], sizes = [1, 1, 192], strides = [1, 1, 1]} : vector<2x4x256xf32> to vector<1x1x192xf32>
    %383 = vector.shape_cast %382 : vector<1x1x192xf32> to vector<1x192xf32>
    %384 = vector.extract_strided_slice %0 {offsets = [1, 1, 16], sizes = [1, 1, 192], strides = [1, 1, 1]} : vector<2x4x256xf32> to vector<1x1x192xf32>
    %385 = vector.shape_cast %384 : vector<1x1x192xf32> to vector<1x192xf32>
    %386 = vector.extract_strided_slice %0 {offsets = [1, 0, 17], sizes = [1, 1, 192], strides = [1, 1, 1]} : vector<2x4x256xf32> to vector<1x1x192xf32>
    %387 = vector.shape_cast %386 : vector<1x1x192xf32> to vector<1x192xf32>
    %388 = vector.extract_strided_slice %0 {offsets = [1, 1, 17], sizes = [1, 1, 192], strides = [1, 1, 1]} : vector<2x4x256xf32> to vector<1x1x192xf32>
    %389 = vector.shape_cast %388 : vector<1x1x192xf32> to vector<1x192xf32>
    %390 = vector.extract_strided_slice %0 {offsets = [1, 0, 18], sizes = [1, 1, 192], strides = [1, 1, 1]} : vector<2x4x256xf32> to vector<1x1x192xf32>
    %391 = vector.shape_cast %390 : vector<1x1x192xf32> to vector<1x192xf32>
    %392 = vector.extract_strided_slice %0 {offsets = [1, 1, 18], sizes = [1, 1, 192], strides = [1, 1, 1]} : vector<2x4x256xf32> to vector<1x1x192xf32>
    %393 = vector.shape_cast %392 : vector<1x1x192xf32> to vector<1x192xf32>
    %394 = vector.extract_strided_slice %0 {offsets = [1, 3, 16], sizes = [1, 1, 192], strides = [1, 1, 1]} : vector<2x4x256xf32> to vector<1x1x192xf32>
    %395 = vector.shape_cast %394 : vector<1x1x192xf32> to vector<1x192xf32>
    %396 = vector.extract_strided_slice %0 {offsets = [1, 2, 17], sizes = [1, 1, 192], strides = [1, 1, 1]} : vector<2x4x256xf32> to vector<1x1x192xf32>
    %397 = vector.shape_cast %396 : vector<1x1x192xf32> to vector<1x192xf32>
    %398 = vector.extract_strided_slice %0 {offsets = [1, 3, 17], sizes = [1, 1, 192], strides = [1, 1, 1]} : vector<2x4x256xf32> to vector<1x1x192xf32>
    %399 = vector.shape_cast %398 : vector<1x1x192xf32> to vector<1x192xf32>
    %400 = vector.extract_strided_slice %0 {offsets = [1, 2, 18], sizes = [1, 1, 192], strides = [1, 1, 1]} : vector<2x4x256xf32> to vector<1x1x192xf32>
    %401 = vector.shape_cast %400 : vector<1x1x192xf32> to vector<1x192xf32>
    %402 = vector.extract_strided_slice %0 {offsets = [1, 3, 18], sizes = [1, 1, 192], strides = [1, 1, 1]} : vector<2x4x256xf32> to vector<1x1x192xf32>
    %403 = vector.shape_cast %402 : vector<1x1x192xf32> to vector<1x192xf32>
    %404 = vector.extract_strided_slice %0 {offsets = [1, 1, 32], sizes = [1, 1, 192], strides = [1, 1, 1]} : vector<2x4x256xf32> to vector<1x1x192xf32>
    %405 = vector.shape_cast %404 : vector<1x1x192xf32> to vector<1x192xf32>
    %406 = vector.extract_strided_slice %0 {offsets = [1, 0, 33], sizes = [1, 1, 192], strides = [1, 1, 1]} : vector<2x4x256xf32> to vector<1x1x192xf32>
    %407 = vector.shape_cast %406 : vector<1x1x192xf32> to vector<1x192xf32>
    %408 = vector.extract_strided_slice %0 {offsets = [1, 1, 33], sizes = [1, 1, 192], strides = [1, 1, 1]} : vector<2x4x256xf32> to vector<1x1x192xf32>
    %409 = vector.shape_cast %408 : vector<1x1x192xf32> to vector<1x192xf32>
    %410 = vector.extract_strided_slice %0 {offsets = [1, 0, 34], sizes = [1, 1, 192], strides = [1, 1, 1]} : vector<2x4x256xf32> to vector<1x1x192xf32>
    %411 = vector.shape_cast %410 : vector<1x1x192xf32> to vector<1x192xf32>
    %412 = vector.extract_strided_slice %0 {offsets = [1, 1, 34], sizes = [1, 1, 192], strides = [1, 1, 1]} : vector<2x4x256xf32> to vector<1x1x192xf32>
    %413 = vector.shape_cast %412 : vector<1x1x192xf32> to vector<1x192xf32>
    %414 = vector.extract_strided_slice %0 {offsets = [1, 3, 32], sizes = [1, 1, 192], strides = [1, 1, 1]} : vector<2x4x256xf32> to vector<1x1x192xf32>
    %415 = vector.shape_cast %414 : vector<1x1x192xf32> to vector<1x192xf32>
    %416 = vector.extract_strided_slice %0 {offsets = [1, 2, 33], sizes = [1, 1, 192], strides = [1, 1, 1]} : vector<2x4x256xf32> to vector<1x1x192xf32>
    %417 = vector.shape_cast %416 : vector<1x1x192xf32> to vector<1x192xf32>
    %418 = vector.extract_strided_slice %0 {offsets = [1, 3, 33], sizes = [1, 1, 192], strides = [1, 1, 1]} : vector<2x4x256xf32> to vector<1x1x192xf32>
    %419 = vector.shape_cast %418 : vector<1x1x192xf32> to vector<1x192xf32>
    %420 = vector.extract_strided_slice %0 {offsets = [1, 2, 34], sizes = [1, 1, 192], strides = [1, 1, 1]} : vector<2x4x256xf32> to vector<1x1x192xf32>
    %421 = vector.shape_cast %420 : vector<1x1x192xf32> to vector<1x192xf32>
    %422 = vector.extract_strided_slice %0 {offsets = [1, 3, 34], sizes = [1, 1, 192], strides = [1, 1, 1]} : vector<2x4x256xf32> to vector<1x1x192xf32>
    %423 = vector.shape_cast %422 : vector<1x1x192xf32> to vector<1x192xf32>
    %424 = tpu.concatenate %375, %377, %379, %381, %383, %385, %387, %389, %391, %393, %395, %397, %399, %401, %403, %405 in 0 : vector<1x192xf32>, vector<1x192xf32>, vector<1x192xf32>, vector<1x192xf32>, vector<1x192xf32>, vector<1x192xf32>, vector<1x192xf32>, vector<1x192xf32>, vector<1x192xf32>, vector<1x192xf32>, vector<1x192xf32>, vector<1x192xf32>, vector<1x192xf32>, vector<1x192xf32>, vector<1x192xf32>, vector<1x192xf32> -> vector<16x192xf32>
    %425 = tpu.concatenate %407, %409, %411, %413, %415, %417, %419, %421, %423 in 0 : vector<1x192xf32>, vector<1x192xf32>, vector<1x192xf32>, vector<1x192xf32>, vector<1x192xf32>, vector<1x192xf32>, vector<1x192xf32>, vector<1x192xf32>, vector<1x192xf32> -> vector<9x192xf32>
    %426 = tpu.concatenate %424, %425 in 0 : vector<16x192xf32>, vector<9x192xf32> -> vector<25x192xf32>
    %427 = tpu.concatenate %55, %108, %161, %214, %267, %320, %373, %426 in 1 : vector<25x192xf32>, vector<25x192xf32>, vector<25x192xf32>, vector<25x192xf32>, vector<25x192xf32>, vector<25x192xf32>, vector<25x192xf32>, vector<25x192xf32> -> vector<25x1536xf32>
    %cst = arith.constant dense<0.000000e+00> : vector<10x1536xf32>
    %428 = tpu.matmul %1, %427, %cst {dimension_numbers = #tpu.dot_dimension_numbers<[1], [0], [0], [1], [0, 0, 1, 1], [], []>} : vector<10x25xf32>, vector<25x1536xf32>, vector<10x1536xf32> -> vector<10x1536xf32>
    %429 = vector.extract_strided_slice %428 {offsets = [0, 0], sizes = [10, 192], strides = [1, 1]} : vector<10x1536xf32> to vector<10x192xf32>
    %430 = vector.extract_strided_slice %428 {offsets = [0, 192], sizes = [10, 192], strides = [1, 1]} : vector<10x1536xf32> to vector<10x192xf32>
    %431 = vector.extract_strided_slice %428 {offsets = [0, 384], sizes = [10, 192], strides = [1, 1]} : vector<10x1536xf32> to vector<10x192xf32>
    %432 = vector.extract_strided_slice %428 {offsets = [0, 576], sizes = [10, 192], strides = [1, 1]} : vector<10x1536xf32> to vector<10x192xf32>
    %433 = arith.maximumf %429, %430 : vector<10x192xf32>
    %434 = arith.maximumf %431, %432 : vector<10x192xf32>
    %435 = arith.maximumf %433, %434 : vector<10x192xf32>
    %c0_6 = arith.constant 0 : index
    %c0_7 = arith.constant 0 : index
    %436 = vector.load %arg2[%c0_6, %c0_7] : memref<10x1xf32, #tpu.memory_space<vmem>>, vector<10x1xf32>
    %437 = vector.broadcast %436 : vector<10x1xf32> to vector<10x192xf32>
    %438 = arith.addf %435, %437 : vector<10x192xf32>
    %cst_8 = arith.constant 0.000000e+00 : f32
    %439 = vector.broadcast %cst_8 : f32 to vector<10x192xf32>
    %440 = arith.maximumf %438, %439 : vector<10x192xf32>
    %441 = vector.extract_strided_slice %428 {offsets = [0, 768], sizes = [10, 192], strides = [1, 1]} : vector<10x1536xf32> to vector<10x192xf32>
    %442 = vector.extract_strided_slice %428 {offsets = [0, 960], sizes = [10, 192], strides = [1, 1]} : vector<10x1536xf32> to vector<10x192xf32>
    %443 = vector.extract_strided_slice %428 {offsets = [0, 1152], sizes = [10, 192], strides = [1, 1]} : vector<10x1536xf32> to vector<10x192xf32>
    %444 = vector.extract_strided_slice %428 {offsets = [0, 1344], sizes = [10, 192], strides = [1, 1]} : vector<10x1536xf32> to vector<10x192xf32>
    %445 = arith.maximumf %441, %442 : vector<10x192xf32>
    %446 = arith.maximumf %443, %444 : vector<10x192xf32>
    %447 = arith.maximumf %445, %446 : vector<10x192xf32>
    %c0_9 = arith.constant 0 : index
    %c0_10 = arith.constant 0 : index
    %448 = vector.load %arg2[%c0_9, %c0_10] : memref<10x1xf32, #tpu.memory_space<vmem>>, vector<10x1xf32>
    %449 = vector.broadcast %448 : vector<10x1xf32> to vector<10x192xf32>
    %450 = arith.addf %447, %449 : vector<10x192xf32>
    %cst_11 = arith.constant 0.000000e+00 : f32
    %451 = vector.broadcast %cst_11 : f32 to vector<10x192xf32>
    %452 = arith.maximumf %450, %451 : vector<10x192xf32>
    %453 = vector.extract_strided_slice %440 {offsets = [0, 0], sizes = [10, 10], strides = [1, 1]} : vector<10x192xf32> to vector<10x10xf32>
    %454 = vector.extract_strided_slice %440 {offsets = [0, 16], sizes = [10, 10], strides = [1, 1]} : vector<10x192xf32> to vector<10x10xf32>
    %455 = vector.extract_strided_slice %440 {offsets = [0, 32], sizes = [10, 10], strides = [1, 1]} : vector<10x192xf32> to vector<10x10xf32>
    %456 = vector.extract_strided_slice %440 {offsets = [0, 48], sizes = [10, 10], strides = [1, 1]} : vector<10x192xf32> to vector<10x10xf32>
    %457 = vector.extract_strided_slice %440 {offsets = [0, 64], sizes = [10, 10], strides = [1, 1]} : vector<10x192xf32> to vector<10x10xf32>
    %458 = vector.extract_strided_slice %440 {offsets = [0, 80], sizes = [10, 10], strides = [1, 1]} : vector<10x192xf32> to vector<10x10xf32>
    %459 = vector.extract_strided_slice %440 {offsets = [0, 96], sizes = [10, 10], strides = [1, 1]} : vector<10x192xf32> to vector<10x10xf32>
    %460 = vector.extract_strided_slice %440 {offsets = [0, 112], sizes = [10, 10], strides = [1, 1]} : vector<10x192xf32> to vector<10x10xf32>
    %461 = vector.extract_strided_slice %440 {offsets = [0, 128], sizes = [10, 10], strides = [1, 1]} : vector<10x192xf32> to vector<10x10xf32>
    %462 = vector.extract_strided_slice %440 {offsets = [0, 144], sizes = [10, 10], strides = [1, 1]} : vector<10x192xf32> to vector<10x10xf32>
    %463 = tpu.concatenate %453, %454, %455, %456, %457, %458, %459, %460, %461, %462 in 1 : vector<10x10xf32>, vector<10x10xf32>, vector<10x10xf32>, vector<10x10xf32>, vector<10x10xf32>, vector<10x10xf32>, vector<10x10xf32>, vector<10x10xf32>, vector<10x10xf32>, vector<10x10xf32> -> vector<10x100xf32>
    %464 = vector.extract_strided_slice %440 {offsets = [0, 1], sizes = [10, 10], strides = [1, 1]} : vector<10x192xf32> to vector<10x10xf32>
    %465 = vector.extract_strided_slice %440 {offsets = [0, 17], sizes = [10, 10], strides = [1, 1]} : vector<10x192xf32> to vector<10x10xf32>
    %466 = vector.extract_strided_slice %440 {offsets = [0, 33], sizes = [10, 10], strides = [1, 1]} : vector<10x192xf32> to vector<10x10xf32>
    %467 = vector.extract_strided_slice %440 {offsets = [0, 49], sizes = [10, 10], strides = [1, 1]} : vector<10x192xf32> to vector<10x10xf32>
    %468 = vector.extract_strided_slice %440 {offsets = [0, 65], sizes = [10, 10], strides = [1, 1]} : vector<10x192xf32> to vector<10x10xf32>
    %469 = vector.extract_strided_slice %440 {offsets = [0, 81], sizes = [10, 10], strides = [1, 1]} : vector<10x192xf32> to vector<10x10xf32>
    %470 = vector.extract_strided_slice %440 {offsets = [0, 97], sizes = [10, 10], strides = [1, 1]} : vector<10x192xf32> to vector<10x10xf32>
    %471 = vector.extract_strided_slice %440 {offsets = [0, 113], sizes = [10, 10], strides = [1, 1]} : vector<10x192xf32> to vector<10x10xf32>
    %472 = vector.extract_strided_slice %440 {offsets = [0, 129], sizes = [10, 10], strides = [1, 1]} : vector<10x192xf32> to vector<10x10xf32>
    %473 = vector.extract_strided_slice %440 {offsets = [0, 145], sizes = [10, 10], strides = [1, 1]} : vector<10x192xf32> to vector<10x10xf32>
    %474 = tpu.concatenate %464, %465, %466, %467, %468, %469, %470, %471, %472, %473 in 1 : vector<10x10xf32>, vector<10x10xf32>, vector<10x10xf32>, vector<10x10xf32>, vector<10x10xf32>, vector<10x10xf32>, vector<10x10xf32>, vector<10x10xf32>, vector<10x10xf32>, vector<10x10xf32> -> vector<10x100xf32>
    %475 = vector.extract_strided_slice %440 {offsets = [0, 2], sizes = [10, 10], strides = [1, 1]} : vector<10x192xf32> to vector<10x10xf32>
    %476 = vector.extract_strided_slice %440 {offsets = [0, 18], sizes = [10, 10], strides = [1, 1]} : vector<10x192xf32> to vector<10x10xf32>
    %477 = vector.extract_strided_slice %440 {offsets = [0, 34], sizes = [10, 10], strides = [1, 1]} : vector<10x192xf32> to vector<10x10xf32>
    %478 = vector.extract_strided_slice %440 {offsets = [0, 50], sizes = [10, 10], strides = [1, 1]} : vector<10x192xf32> to vector<10x10xf32>
    %479 = vector.extract_strided_slice %440 {offsets = [0, 66], sizes = [10, 10], strides = [1, 1]} : vector<10x192xf32> to vector<10x10xf32>
    %480 = vector.extract_strided_slice %440 {offsets = [0, 82], sizes = [10, 10], strides = [1, 1]} : vector<10x192xf32> to vector<10x10xf32>
    %481 = vector.extract_strided_slice %440 {offsets = [0, 98], sizes = [10, 10], strides = [1, 1]} : vector<10x192xf32> to vector<10x10xf32>
    %482 = vector.extract_strided_slice %440 {offsets = [0, 114], sizes = [10, 10], strides = [1, 1]} : vector<10x192xf32> to vector<10x10xf32>
    %483 = vector.extract_strided_slice %440 {offsets = [0, 130], sizes = [10, 10], strides = [1, 1]} : vector<10x192xf32> to vector<10x10xf32>
    %484 = vector.extract_strided_slice %440 {offsets = [0, 146], sizes = [10, 10], strides = [1, 1]} : vector<10x192xf32> to vector<10x10xf32>
    %485 = tpu.concatenate %475, %476, %477, %478, %479, %480, %481, %482, %483, %484 in 1 : vector<10x10xf32>, vector<10x10xf32>, vector<10x10xf32>, vector<10x10xf32>, vector<10x10xf32>, vector<10x10xf32>, vector<10x10xf32>, vector<10x10xf32>, vector<10x10xf32>, vector<10x10xf32> -> vector<10x100xf32>
    %486 = vector.extract_strided_slice %440 {offsets = [0, 16], sizes = [10, 10], strides = [1, 1]} : vector<10x192xf32> to vector<10x10xf32>
    %487 = vector.extract_strided_slice %440 {offsets = [0, 32], sizes = [10, 10], strides = [1, 1]} : vector<10x192xf32> to vector<10x10xf32>
    %488 = vector.extract_strided_slice %440 {offsets = [0, 48], sizes = [10, 10], strides = [1, 1]} : vector<10x192xf32> to vector<10x10xf32>
    %489 = vector.extract_strided_slice %440 {offsets = [0, 64], sizes = [10, 10], strides = [1, 1]} : vector<10x192xf32> to vector<10x10xf32>
    %490 = vector.extract_strided_slice %440 {offsets = [0, 80], sizes = [10, 10], strides = [1, 1]} : vector<10x192xf32> to vector<10x10xf32>
    %491 = vector.extract_strided_slice %440 {offsets = [0, 96], sizes = [10, 10], strides = [1, 1]} : vector<10x192xf32> to vector<10x10xf32>
    %492 = vector.extract_strided_slice %440 {offsets = [0, 112], sizes = [10, 10], strides = [1, 1]} : vector<10x192xf32> to vector<10x10xf32>
    %493 = vector.extract_strided_slice %440 {offsets = [0, 128], sizes = [10, 10], strides = [1, 1]} : vector<10x192xf32> to vector<10x10xf32>
    %494 = vector.extract_strided_slice %440 {offsets = [0, 144], sizes = [10, 10], strides = [1, 1]} : vector<10x192xf32> to vector<10x10xf32>
    %495 = vector.extract_strided_slice %440 {offsets = [0, 160], sizes = [10, 10], strides = [1, 1]} : vector<10x192xf32> to vector<10x10xf32>
    %496 = tpu.concatenate %486, %487, %488, %489, %490, %491, %492, %493, %494, %495 in 1 : vector<10x10xf32>, vector<10x10xf32>, vector<10x10xf32>, vector<10x10xf32>, vector<10x10xf32>, vector<10x10xf32>, vector<10x10xf32>, vector<10x10xf32>, vector<10x10xf32>, vector<10x10xf32> -> vector<10x100xf32>
    %497 = vector.extract_strided_slice %440 {offsets = [0, 17], sizes = [10, 10], strides = [1, 1]} : vector<10x192xf32> to vector<10x10xf32>
    %498 = vector.extract_strided_slice %440 {offsets = [0, 33], sizes = [10, 10], strides = [1, 1]} : vector<10x192xf32> to vector<10x10xf32>
    %499 = vector.extract_strided_slice %440 {offsets = [0, 49], sizes = [10, 10], strides = [1, 1]} : vector<10x192xf32> to vector<10x10xf32>
    %500 = vector.extract_strided_slice %440 {offsets = [0, 65], sizes = [10, 10], strides = [1, 1]} : vector<10x192xf32> to vector<10x10xf32>
    %501 = vector.extract_strided_slice %440 {offsets = [0, 81], sizes = [10, 10], strides = [1, 1]} : vector<10x192xf32> to vector<10x10xf32>
    %502 = vector.extract_strided_slice %440 {offsets = [0, 97], sizes = [10, 10], strides = [1, 1]} : vector<10x192xf32> to vector<10x10xf32>
    %503 = vector.extract_strided_slice %440 {offsets = [0, 113], sizes = [10, 10], strides = [1, 1]} : vector<10x192xf32> to vector<10x10xf32>
    %504 = vector.extract_strided_slice %440 {offsets = [0, 129], sizes = [10, 10], strides = [1, 1]} : vector<10x192xf32> to vector<10x10xf32>
    %505 = vector.extract_strided_slice %440 {offsets = [0, 145], sizes = [10, 10], strides = [1, 1]} : vector<10x192xf32> to vector<10x10xf32>
    %506 = vector.extract_strided_slice %440 {offsets = [0, 161], sizes = [10, 10], strides = [1, 1]} : vector<10x192xf32> to vector<10x10xf32>
    %507 = tpu.concatenate %497, %498, %499, %500, %501, %502, %503, %504, %505, %506 in 1 : vector<10x10xf32>, vector<10x10xf32>, vector<10x10xf32>, vector<10x10xf32>, vector<10x10xf32>, vector<10x10xf32>, vector<10x10xf32>, vector<10x10xf32>, vector<10x10xf32>, vector<10x10xf32> -> vector<10x100xf32>
    %508 = vector.extract_strided_slice %440 {offsets = [0, 18], sizes = [10, 10], strides = [1, 1]} : vector<10x192xf32> to vector<10x10xf32>
    %509 = vector.extract_strided_slice %440 {offsets = [0, 34], sizes = [10, 10], strides = [1, 1]} : vector<10x192xf32> to vector<10x10xf32>
    %510 = vector.extract_strided_slice %440 {offsets = [0, 50], sizes = [10, 10], strides = [1, 1]} : vector<10x192xf32> to vector<10x10xf32>
    %511 = vector.extract_strided_slice %440 {offsets = [0, 66], sizes = [10, 10], strides = [1, 1]} : vector<10x192xf32> to vector<10x10xf32>
    %512 = vector.extract_strided_slice %440 {offsets = [0, 82], sizes = [10, 10], strides = [1, 1]} : vector<10x192xf32> to vector<10x10xf32>
    %513 = vector.extract_strided_slice %440 {offsets = [0, 98], sizes = [10, 10], strides = [1, 1]} : vector<10x192xf32> to vector<10x10xf32>
    %514 = vector.extract_strided_slice %440 {offsets = [0, 114], sizes = [10, 10], strides = [1, 1]} : vector<10x192xf32> to vector<10x10xf32>
    %515 = vector.extract_strided_slice %440 {offsets = [0, 130], sizes = [10, 10], strides = [1, 1]} : vector<10x192xf32> to vector<10x10xf32>
    %516 = vector.extract_strided_slice %440 {offsets = [0, 146], sizes = [10, 10], strides = [1, 1]} : vector<10x192xf32> to vector<10x10xf32>
    %517 = vector.extract_strided_slice %440 {offsets = [0, 162], sizes = [10, 10], strides = [1, 1]} : vector<10x192xf32> to vector<10x10xf32>
    %518 = tpu.concatenate %508, %509, %510, %511, %512, %513, %514, %515, %516, %517 in 1 : vector<10x10xf32>, vector<10x10xf32>, vector<10x10xf32>, vector<10x10xf32>, vector<10x10xf32>, vector<10x10xf32>, vector<10x10xf32>, vector<10x10xf32>, vector<10x10xf32>, vector<10x10xf32> -> vector<10x100xf32>
    %519 = vector.extract_strided_slice %440 {offsets = [0, 32], sizes = [10, 10], strides = [1, 1]} : vector<10x192xf32> to vector<10x10xf32>
    %520 = vector.extract_strided_slice %440 {offsets = [0, 48], sizes = [10, 10], strides = [1, 1]} : vector<10x192xf32> to vector<10x10xf32>
    %521 = vector.extract_strided_slice %440 {offsets = [0, 64], sizes = [10, 10], strides = [1, 1]} : vector<10x192xf32> to vector<10x10xf32>
    %522 = vector.extract_strided_slice %440 {offsets = [0, 80], sizes = [10, 10], strides = [1, 1]} : vector<10x192xf32> to vector<10x10xf32>
    %523 = vector.extract_strided_slice %440 {offsets = [0, 96], sizes = [10, 10], strides = [1, 1]} : vector<10x192xf32> to vector<10x10xf32>
    %524 = vector.extract_strided_slice %440 {offsets = [0, 112], sizes = [10, 10], strides = [1, 1]} : vector<10x192xf32> to vector<10x10xf32>
    %525 = vector.extract_strided_slice %440 {offsets = [0, 128], sizes = [10, 10], strides = [1, 1]} : vector<10x192xf32> to vector<10x10xf32>
    %526 = vector.extract_strided_slice %440 {offsets = [0, 144], sizes = [10, 10], strides = [1, 1]} : vector<10x192xf32> to vector<10x10xf32>
    %527 = vector.extract_strided_slice %440 {offsets = [0, 160], sizes = [10, 10], strides = [1, 1]} : vector<10x192xf32> to vector<10x10xf32>
    %528 = vector.extract_strided_slice %440 {offsets = [0, 176], sizes = [10, 10], strides = [1, 1]} : vector<10x192xf32> to vector<10x10xf32>
    %529 = tpu.concatenate %519, %520, %521, %522, %523, %524, %525, %526, %527, %528 in 1 : vector<10x10xf32>, vector<10x10xf32>, vector<10x10xf32>, vector<10x10xf32>, vector<10x10xf32>, vector<10x10xf32>, vector<10x10xf32>, vector<10x10xf32>, vector<10x10xf32>, vector<10x10xf32> -> vector<10x100xf32>
    %530 = vector.extract_strided_slice %440 {offsets = [0, 33], sizes = [10, 10], strides = [1, 1]} : vector<10x192xf32> to vector<10x10xf32>
    %531 = vector.extract_strided_slice %440 {offsets = [0, 49], sizes = [10, 10], strides = [1, 1]} : vector<10x192xf32> to vector<10x10xf32>
    %532 = vector.extract_strided_slice %440 {offsets = [0, 65], sizes = [10, 10], strides = [1, 1]} : vector<10x192xf32> to vector<10x10xf32>
    %533 = vector.extract_strided_slice %440 {offsets = [0, 81], sizes = [10, 10], strides = [1, 1]} : vector<10x192xf32> to vector<10x10xf32>
    %534 = vector.extract_strided_slice %440 {offsets = [0, 97], sizes = [10, 10], strides = [1, 1]} : vector<10x192xf32> to vector<10x10xf32>
    %535 = vector.extract_strided_slice %440 {offsets = [0, 113], sizes = [10, 10], strides = [1, 1]} : vector<10x192xf32> to vector<10x10xf32>
    %536 = vector.extract_strided_slice %440 {offsets = [0, 129], sizes = [10, 10], strides = [1, 1]} : vector<10x192xf32> to vector<10x10xf32>
    %537 = vector.extract_strided_slice %440 {offsets = [0, 145], sizes = [10, 10], strides = [1, 1]} : vector<10x192xf32> to vector<10x10xf32>
    %538 = vector.extract_strided_slice %440 {offsets = [0, 161], sizes = [10, 10], strides = [1, 1]} : vector<10x192xf32> to vector<10x10xf32>
    %539 = vector.extract_strided_slice %440 {offsets = [0, 177], sizes = [10, 10], strides = [1, 1]} : vector<10x192xf32> to vector<10x10xf32>
    %540 = tpu.concatenate %530, %531, %532, %533, %534, %535, %536, %537, %538, %539 in 1 : vector<10x10xf32>, vector<10x10xf32>, vector<10x10xf32>, vector<10x10xf32>, vector<10x10xf32>, vector<10x10xf32>, vector<10x10xf32>, vector<10x10xf32>, vector<10x10xf32>, vector<10x10xf32> -> vector<10x100xf32>
    %541 = vector.extract_strided_slice %440 {offsets = [0, 34], sizes = [10, 10], strides = [1, 1]} : vector<10x192xf32> to vector<10x10xf32>
    %542 = vector.extract_strided_slice %440 {offsets = [0, 50], sizes = [10, 10], strides = [1, 1]} : vector<10x192xf32> to vector<10x10xf32>
    %543 = vector.extract_strided_slice %440 {offsets = [0, 66], sizes = [10, 10], strides = [1, 1]} : vector<10x192xf32> to vector<10x10xf32>
    %544 = vector.extract_strided_slice %440 {offsets = [0, 82], sizes = [10, 10], strides = [1, 1]} : vector<10x192xf32> to vector<10x10xf32>
    %545 = vector.extract_strided_slice %440 {offsets = [0, 98], sizes = [10, 10], strides = [1, 1]} : vector<10x192xf32> to vector<10x10xf32>
    %546 = vector.extract_strided_slice %440 {offsets = [0, 114], sizes = [10, 10], strides = [1, 1]} : vector<10x192xf32> to vector<10x10xf32>
    %547 = vector.extract_strided_slice %440 {offsets = [0, 130], sizes = [10, 10], strides = [1, 1]} : vector<10x192xf32> to vector<10x10xf32>
    %548 = vector.extract_strided_slice %440 {offsets = [0, 146], sizes = [10, 10], strides = [1, 1]} : vector<10x192xf32> to vector<10x10xf32>
    %549 = vector.extract_strided_slice %440 {offsets = [0, 162], sizes = [10, 10], strides = [1, 1]} : vector<10x192xf32> to vector<10x10xf32>
    %550 = vector.extract_strided_slice %440 {offsets = [0, 178], sizes = [10, 10], strides = [1, 1]} : vector<10x192xf32> to vector<10x10xf32>
    %551 = tpu.concatenate %541, %542, %543, %544, %545, %546, %547, %548, %549, %550 in 1 : vector<10x10xf32>, vector<10x10xf32>, vector<10x10xf32>, vector<10x10xf32>, vector<10x10xf32>, vector<10x10xf32>, vector<10x10xf32>, vector<10x10xf32>, vector<10x10xf32>, vector<10x10xf32> -> vector<10x100xf32>
    %552 = tpu.concatenate %463, %474, %485, %496, %507, %518, %529, %540, %551 in 0 : vector<10x100xf32>, vector<10x100xf32>, vector<10x100xf32>, vector<10x100xf32>, vector<10x100xf32>, vector<10x100xf32>, vector<10x100xf32>, vector<10x100xf32>, vector<10x100xf32> -> vector<90x100xf32>
    %553 = vector.extract_strided_slice %452 {offsets = [0, 0], sizes = [10, 10], strides = [1, 1]} : vector<10x192xf32> to vector<10x10xf32>
    %554 = vector.extract_strided_slice %452 {offsets = [0, 16], sizes = [10, 10], strides = [1, 1]} : vector<10x192xf32> to vector<10x10xf32>
    %555 = vector.extract_strided_slice %452 {offsets = [0, 32], sizes = [10, 10], strides = [1, 1]} : vector<10x192xf32> to vector<10x10xf32>
    %556 = vector.extract_strided_slice %452 {offsets = [0, 48], sizes = [10, 10], strides = [1, 1]} : vector<10x192xf32> to vector<10x10xf32>
    %557 = vector.extract_strided_slice %452 {offsets = [0, 64], sizes = [10, 10], strides = [1, 1]} : vector<10x192xf32> to vector<10x10xf32>
    %558 = vector.extract_strided_slice %452 {offsets = [0, 80], sizes = [10, 10], strides = [1, 1]} : vector<10x192xf32> to vector<10x10xf32>
    %559 = vector.extract_strided_slice %452 {offsets = [0, 96], sizes = [10, 10], strides = [1, 1]} : vector<10x192xf32> to vector<10x10xf32>
    %560 = vector.extract_strided_slice %452 {offsets = [0, 112], sizes = [10, 10], strides = [1, 1]} : vector<10x192xf32> to vector<10x10xf32>
    %561 = vector.extract_strided_slice %452 {offsets = [0, 128], sizes = [10, 10], strides = [1, 1]} : vector<10x192xf32> to vector<10x10xf32>
    %562 = vector.extract_strided_slice %452 {offsets = [0, 144], sizes = [10, 10], strides = [1, 1]} : vector<10x192xf32> to vector<10x10xf32>
    %563 = tpu.concatenate %553, %554, %555, %556, %557, %558, %559, %560, %561, %562 in 1 : vector<10x10xf32>, vector<10x10xf32>, vector<10x10xf32>, vector<10x10xf32>, vector<10x10xf32>, vector<10x10xf32>, vector<10x10xf32>, vector<10x10xf32>, vector<10x10xf32>, vector<10x10xf32> -> vector<10x100xf32>
    %564 = vector.extract_strided_slice %452 {offsets = [0, 1], sizes = [10, 10], strides = [1, 1]} : vector<10x192xf32> to vector<10x10xf32>
    %565 = vector.extract_strided_slice %452 {offsets = [0, 17], sizes = [10, 10], strides = [1, 1]} : vector<10x192xf32> to vector<10x10xf32>
    %566 = vector.extract_strided_slice %452 {offsets = [0, 33], sizes = [10, 10], strides = [1, 1]} : vector<10x192xf32> to vector<10x10xf32>
    %567 = vector.extract_strided_slice %452 {offsets = [0, 49], sizes = [10, 10], strides = [1, 1]} : vector<10x192xf32> to vector<10x10xf32>
    %568 = vector.extract_strided_slice %452 {offsets = [0, 65], sizes = [10, 10], strides = [1, 1]} : vector<10x192xf32> to vector<10x10xf32>
    %569 = vector.extract_strided_slice %452 {offsets = [0, 81], sizes = [10, 10], strides = [1, 1]} : vector<10x192xf32> to vector<10x10xf32>
    %570 = vector.extract_strided_slice %452 {offsets = [0, 97], sizes = [10, 10], strides = [1, 1]} : vector<10x192xf32> to vector<10x10xf32>
    %571 = vector.extract_strided_slice %452 {offsets = [0, 113], sizes = [10, 10], strides = [1, 1]} : vector<10x192xf32> to vector<10x10xf32>
    %572 = vector.extract_strided_slice %452 {offsets = [0, 129], sizes = [10, 10], strides = [1, 1]} : vector<10x192xf32> to vector<10x10xf32>
    %573 = vector.extract_strided_slice %452 {offsets = [0, 145], sizes = [10, 10], strides = [1, 1]} : vector<10x192xf32> to vector<10x10xf32>
    %574 = tpu.concatenate %564, %565, %566, %567, %568, %569, %570, %571, %572, %573 in 1 : vector<10x10xf32>, vector<10x10xf32>, vector<10x10xf32>, vector<10x10xf32>, vector<10x10xf32>, vector<10x10xf32>, vector<10x10xf32>, vector<10x10xf32>, vector<10x10xf32>, vector<10x10xf32> -> vector<10x100xf32>
    %575 = vector.extract_strided_slice %452 {offsets = [0, 2], sizes = [10, 10], strides = [1, 1]} : vector<10x192xf32> to vector<10x10xf32>
    %576 = vector.extract_strided_slice %452 {offsets = [0, 18], sizes = [10, 10], strides = [1, 1]} : vector<10x192xf32> to vector<10x10xf32>
    %577 = vector.extract_strided_slice %452 {offsets = [0, 34], sizes = [10, 10], strides = [1, 1]} : vector<10x192xf32> to vector<10x10xf32>
    %578 = vector.extract_strided_slice %452 {offsets = [0, 50], sizes = [10, 10], strides = [1, 1]} : vector<10x192xf32> to vector<10x10xf32>
    %579 = vector.extract_strided_slice %452 {offsets = [0, 66], sizes = [10, 10], strides = [1, 1]} : vector<10x192xf32> to vector<10x10xf32>
    %580 = vector.extract_strided_slice %452 {offsets = [0, 82], sizes = [10, 10], strides = [1, 1]} : vector<10x192xf32> to vector<10x10xf32>
    %581 = vector.extract_strided_slice %452 {offsets = [0, 98], sizes = [10, 10], strides = [1, 1]} : vector<10x192xf32> to vector<10x10xf32>
    %582 = vector.extract_strided_slice %452 {offsets = [0, 114], sizes = [10, 10], strides = [1, 1]} : vector<10x192xf32> to vector<10x10xf32>
    %583 = vector.extract_strided_slice %452 {offsets = [0, 130], sizes = [10, 10], strides = [1, 1]} : vector<10x192xf32> to vector<10x10xf32>
    %584 = vector.extract_strided_slice %452 {offsets = [0, 146], sizes = [10, 10], strides = [1, 1]} : vector<10x192xf32> to vector<10x10xf32>
    %585 = tpu.concatenate %575, %576, %577, %578, %579, %580, %581, %582, %583, %584 in 1 : vector<10x10xf32>, vector<10x10xf32>, vector<10x10xf32>, vector<10x10xf32>, vector<10x10xf32>, vector<10x10xf32>, vector<10x10xf32>, vector<10x10xf32>, vector<10x10xf32>, vector<10x10xf32> -> vector<10x100xf32>
    %586 = vector.extract_strided_slice %452 {offsets = [0, 16], sizes = [10, 10], strides = [1, 1]} : vector<10x192xf32> to vector<10x10xf32>
    %587 = vector.extract_strided_slice %452 {offsets = [0, 32], sizes = [10, 10], strides = [1, 1]} : vector<10x192xf32> to vector<10x10xf32>
    %588 = vector.extract_strided_slice %452 {offsets = [0, 48], sizes = [10, 10], strides = [1, 1]} : vector<10x192xf32> to vector<10x10xf32>
    %589 = vector.extract_strided_slice %452 {offsets = [0, 64], sizes = [10, 10], strides = [1, 1]} : vector<10x192xf32> to vector<10x10xf32>
    %590 = vector.extract_strided_slice %452 {offsets = [0, 80], sizes = [10, 10], strides = [1, 1]} : vector<10x192xf32> to vector<10x10xf32>
    %591 = vector.extract_strided_slice %452 {offsets = [0, 96], sizes = [10, 10], strides = [1, 1]} : vector<10x192xf32> to vector<10x10xf32>
    %592 = vector.extract_strided_slice %452 {offsets = [0, 112], sizes = [10, 10], strides = [1, 1]} : vector<10x192xf32> to vector<10x10xf32>
    %593 = vector.extract_strided_slice %452 {offsets = [0, 128], sizes = [10, 10], strides = [1, 1]} : vector<10x192xf32> to vector<10x10xf32>
    %594 = vector.extract_strided_slice %452 {offsets = [0, 144], sizes = [10, 10], strides = [1, 1]} : vector<10x192xf32> to vector<10x10xf32>
    %595 = vector.extract_strided_slice %452 {offsets = [0, 160], sizes = [10, 10], strides = [1, 1]} : vector<10x192xf32> to vector<10x10xf32>
    %596 = tpu.concatenate %586, %587, %588, %589, %590, %591, %592, %593, %594, %595 in 1 : vector<10x10xf32>, vector<10x10xf32>, vector<10x10xf32>, vector<10x10xf32>, vector<10x10xf32>, vector<10x10xf32>, vector<10x10xf32>, vector<10x10xf32>, vector<10x10xf32>, vector<10x10xf32> -> vector<10x100xf32>
    %597 = vector.extract_strided_slice %452 {offsets = [0, 17], sizes = [10, 10], strides = [1, 1]} : vector<10x192xf32> to vector<10x10xf32>
    %598 = vector.extract_strided_slice %452 {offsets = [0, 33], sizes = [10, 10], strides = [1, 1]} : vector<10x192xf32> to vector<10x10xf32>
    %599 = vector.extract_strided_slice %452 {offsets = [0, 49], sizes = [10, 10], strides = [1, 1]} : vector<10x192xf32> to vector<10x10xf32>
    %600 = vector.extract_strided_slice %452 {offsets = [0, 65], sizes = [10, 10], strides = [1, 1]} : vector<10x192xf32> to vector<10x10xf32>
    %601 = vector.extract_strided_slice %452 {offsets = [0, 81], sizes = [10, 10], strides = [1, 1]} : vector<10x192xf32> to vector<10x10xf32>
    %602 = vector.extract_strided_slice %452 {offsets = [0, 97], sizes = [10, 10], strides = [1, 1]} : vector<10x192xf32> to vector<10x10xf32>
    %603 = vector.extract_strided_slice %452 {offsets = [0, 113], sizes = [10, 10], strides = [1, 1]} : vector<10x192xf32> to vector<10x10xf32>
    %604 = vector.extract_strided_slice %452 {offsets = [0, 129], sizes = [10, 10], strides = [1, 1]} : vector<10x192xf32> to vector<10x10xf32>
    %605 = vector.extract_strided_slice %452 {offsets = [0, 145], sizes = [10, 10], strides = [1, 1]} : vector<10x192xf32> to vector<10x10xf32>
    %606 = vector.extract_strided_slice %452 {offsets = [0, 161], sizes = [10, 10], strides = [1, 1]} : vector<10x192xf32> to vector<10x10xf32>
    %607 = tpu.concatenate %597, %598, %599, %600, %601, %602, %603, %604, %605, %606 in 1 : vector<10x10xf32>, vector<10x10xf32>, vector<10x10xf32>, vector<10x10xf32>, vector<10x10xf32>, vector<10x10xf32>, vector<10x10xf32>, vector<10x10xf32>, vector<10x10xf32>, vector<10x10xf32> -> vector<10x100xf32>
    %608 = vector.extract_strided_slice %452 {offsets = [0, 18], sizes = [10, 10], strides = [1, 1]} : vector<10x192xf32> to vector<10x10xf32>
    %609 = vector.extract_strided_slice %452 {offsets = [0, 34], sizes = [10, 10], strides = [1, 1]} : vector<10x192xf32> to vector<10x10xf32>
    %610 = vector.extract_strided_slice %452 {offsets = [0, 50], sizes = [10, 10], strides = [1, 1]} : vector<10x192xf32> to vector<10x10xf32>
    %611 = vector.extract_strided_slice %452 {offsets = [0, 66], sizes = [10, 10], strides = [1, 1]} : vector<10x192xf32> to vector<10x10xf32>
    %612 = vector.extract_strided_slice %452 {offsets = [0, 82], sizes = [10, 10], strides = [1, 1]} : vector<10x192xf32> to vector<10x10xf32>
    %613 = vector.extract_strided_slice %452 {offsets = [0, 98], sizes = [10, 10], strides = [1, 1]} : vector<10x192xf32> to vector<10x10xf32>
    %614 = vector.extract_strided_slice %452 {offsets = [0, 114], sizes = [10, 10], strides = [1, 1]} : vector<10x192xf32> to vector<10x10xf32>
    %615 = vector.extract_strided_slice %452 {offsets = [0, 130], sizes = [10, 10], strides = [1, 1]} : vector<10x192xf32> to vector<10x10xf32>
    %616 = vector.extract_strided_slice %452 {offsets = [0, 146], sizes = [10, 10], strides = [1, 1]} : vector<10x192xf32> to vector<10x10xf32>
    %617 = vector.extract_strided_slice %452 {offsets = [0, 162], sizes = [10, 10], strides = [1, 1]} : vector<10x192xf32> to vector<10x10xf32>
    %618 = tpu.concatenate %608, %609, %610, %611, %612, %613, %614, %615, %616, %617 in 1 : vector<10x10xf32>, vector<10x10xf32>, vector<10x10xf32>, vector<10x10xf32>, vector<10x10xf32>, vector<10x10xf32>, vector<10x10xf32>, vector<10x10xf32>, vector<10x10xf32>, vector<10x10xf32> -> vector<10x100xf32>
    %619 = vector.extract_strided_slice %452 {offsets = [0, 32], sizes = [10, 10], strides = [1, 1]} : vector<10x192xf32> to vector<10x10xf32>
    %620 = vector.extract_strided_slice %452 {offsets = [0, 48], sizes = [10, 10], strides = [1, 1]} : vector<10x192xf32> to vector<10x10xf32>
    %621 = vector.extract_strided_slice %452 {offsets = [0, 64], sizes = [10, 10], strides = [1, 1]} : vector<10x192xf32> to vector<10x10xf32>
    %622 = vector.extract_strided_slice %452 {offsets = [0, 80], sizes = [10, 10], strides = [1, 1]} : vector<10x192xf32> to vector<10x10xf32>
    %623 = vector.extract_strided_slice %452 {offsets = [0, 96], sizes = [10, 10], strides = [1, 1]} : vector<10x192xf32> to vector<10x10xf32>
    %624 = vector.extract_strided_slice %452 {offsets = [0, 112], sizes = [10, 10], strides = [1, 1]} : vector<10x192xf32> to vector<10x10xf32>
    %625 = vector.extract_strided_slice %452 {offsets = [0, 128], sizes = [10, 10], strides = [1, 1]} : vector<10x192xf32> to vector<10x10xf32>
    %626 = vector.extract_strided_slice %452 {offsets = [0, 144], sizes = [10, 10], strides = [1, 1]} : vector<10x192xf32> to vector<10x10xf32>
    %627 = vector.extract_strided_slice %452 {offsets = [0, 160], sizes = [10, 10], strides = [1, 1]} : vector<10x192xf32> to vector<10x10xf32>
    %628 = vector.extract_strided_slice %452 {offsets = [0, 176], sizes = [10, 10], strides = [1, 1]} : vector<10x192xf32> to vector<10x10xf32>
    %629 = tpu.concatenate %619, %620, %621, %622, %623, %624, %625, %626, %627, %628 in 1 : vector<10x10xf32>, vector<10x10xf32>, vector<10x10xf32>, vector<10x10xf32>, vector<10x10xf32>, vector<10x10xf32>, vector<10x10xf32>, vector<10x10xf32>, vector<10x10xf32>, vector<10x10xf32> -> vector<10x100xf32>
    %630 = vector.extract_strided_slice %452 {offsets = [0, 33], sizes = [10, 10], strides = [1, 1]} : vector<10x192xf32> to vector<10x10xf32>
    %631 = vector.extract_strided_slice %452 {offsets = [0, 49], sizes = [10, 10], strides = [1, 1]} : vector<10x192xf32> to vector<10x10xf32>
    %632 = vector.extract_strided_slice %452 {offsets = [0, 65], sizes = [10, 10], strides = [1, 1]} : vector<10x192xf32> to vector<10x10xf32>
    %633 = vector.extract_strided_slice %452 {offsets = [0, 81], sizes = [10, 10], strides = [1, 1]} : vector<10x192xf32> to vector<10x10xf32>
    %634 = vector.extract_strided_slice %452 {offsets = [0, 97], sizes = [10, 10], strides = [1, 1]} : vector<10x192xf32> to vector<10x10xf32>
    %635 = vector.extract_strided_slice %452 {offsets = [0, 113], sizes = [10, 10], strides = [1, 1]} : vector<10x192xf32> to vector<10x10xf32>
    %636 = vector.extract_strided_slice %452 {offsets = [0, 129], sizes = [10, 10], strides = [1, 1]} : vector<10x192xf32> to vector<10x10xf32>
    %637 = vector.extract_strided_slice %452 {offsets = [0, 145], sizes = [10, 10], strides = [1, 1]} : vector<10x192xf32> to vector<10x10xf32>
    %638 = vector.extract_strided_slice %452 {offsets = [0, 161], sizes = [10, 10], strides = [1, 1]} : vector<10x192xf32> to vector<10x10xf32>
    %639 = vector.extract_strided_slice %452 {offsets = [0, 177], sizes = [10, 10], strides = [1, 1]} : vector<10x192xf32> to vector<10x10xf32>
    %640 = tpu.concatenate %630, %631, %632, %633, %634, %635, %636, %637, %638, %639 in 1 : vector<10x10xf32>, vector<10x10xf32>, vector<10x10xf32>, vector<10x10xf32>, vector<10x10xf32>, vector<10x10xf32>, vector<10x10xf32>, vector<10x10xf32>, vector<10x10xf32>, vector<10x10xf32> -> vector<10x100xf32>
    %641 = vector.extract_strided_slice %452 {offsets = [0, 34], sizes = [10, 10], strides = [1, 1]} : vector<10x192xf32> to vector<10x10xf32>
    %642 = vector.extract_strided_slice %452 {offsets = [0, 50], sizes = [10, 10], strides = [1, 1]} : vector<10x192xf32> to vector<10x10xf32>
    %643 = vector.extract_strided_slice %452 {offsets = [0, 66], sizes = [10, 10], strides = [1, 1]} : vector<10x192xf32> to vector<10x10xf32>
    %644 = vector.extract_strided_slice %452 {offsets = [0, 82], sizes = [10, 10], strides = [1, 1]} : vector<10x192xf32> to vector<10x10xf32>
    %645 = vector.extract_strided_slice %452 {offsets = [0, 98], sizes = [10, 10], strides = [1, 1]} : vector<10x192xf32> to vector<10x10xf32>
    %646 = vector.extract_strided_slice %452 {offsets = [0, 114], sizes = [10, 10], strides = [1, 1]} : vector<10x192xf32> to vector<10x10xf32>
    %647 = vector.extract_strided_slice %452 {offsets = [0, 130], sizes = [10, 10], strides = [1, 1]} : vector<10x192xf32> to vector<10x10xf32>
    %648 = vector.extract_strided_slice %452 {offsets = [0, 146], sizes = [10, 10], strides = [1, 1]} : vector<10x192xf32> to vector<10x10xf32>
    %649 = vector.extract_strided_slice %452 {offsets = [0, 162], sizes = [10, 10], strides = [1, 1]} : vector<10x192xf32> to vector<10x10xf32>
    %650 = vector.extract_strided_slice %452 {offsets = [0, 178], sizes = [10, 10], strides = [1, 1]} : vector<10x192xf32> to vector<10x10xf32>
    %651 = tpu.concatenate %641, %642, %643, %644, %645, %646, %647, %648, %649, %650 in 1 : vector<10x10xf32>, vector<10x10xf32>, vector<10x10xf32>, vector<10x10xf32>, vector<10x10xf32>, vector<10x10xf32>, vector<10x10xf32>, vector<10x10xf32>, vector<10x10xf32>, vector<10x10xf32> -> vector<10x100xf32>
    %652 = tpu.concatenate %563, %574, %585, %596, %607, %618, %629, %640, %651 in 0 : vector<10x100xf32>, vector<10x100xf32>, vector<10x100xf32>, vector<10x100xf32>, vector<10x100xf32>, vector<10x100xf32>, vector<10x100xf32>, vector<10x100xf32>, vector<10x100xf32> -> vector<90x100xf32>
    %653 = tpu.concatenate %552, %652 in 1 : vector<90x100xf32>, vector<90x100xf32> -> vector<90x200xf32>
    %cst_12 = arith.constant dense<0.000000e+00> : vector<20x200xf32>
    %654 = tpu.matmul %2, %653, %cst_12 {dimension_numbers = #tpu.dot_dimension_numbers<[1], [0], [0], [1], [0, 0, 1, 1], [], []>} : vector<20x90xf32>, vector<90x200xf32>, vector<20x200xf32> -> vector<20x200xf32>
    %c0_13 = arith.constant 0 : index
    %c0_14 = arith.constant 0 : index
    %655 = vector.load %arg4[%c0_13, %c0_14] : memref<20x1xf32, #tpu.memory_space<vmem>>, vector<20x1xf32>
    %656 = vector.broadcast %655 : vector<20x1xf32> to vector<20x200xf32>
    %657 = arith.addf %654, %656 : vector<20x200xf32>
    %658 = vector.extract_strided_slice %657 {offsets = [0, 0], sizes = [20, 100], strides = [1, 1]} : vector<20x200xf32> to vector<20x100xf32>
    %659 = vector.extract_strided_slice %658 {offsets = [0, 0], sizes = [1, 100], strides = [1, 1]} : vector<20x100xf32> to vector<1x100xf32>
    %660 = vector.extract_strided_slice %658 {offsets = [1, 0], sizes = [1, 100], strides = [1, 1]} : vector<20x100xf32> to vector<1x100xf32>
    %661 = vector.extract_strided_slice %658 {offsets = [2, 0], sizes = [1, 100], strides = [1, 1]} : vector<20x100xf32> to vector<1x100xf32>
    %662 = vector.extract_strided_slice %658 {offsets = [3, 0], sizes = [1, 100], strides = [1, 1]} : vector<20x100xf32> to vector<1x100xf32>
    %663 = vector.extract_strided_slice %658 {offsets = [4, 0], sizes = [1, 100], strides = [1, 1]} : vector<20x100xf32> to vector<1x100xf32>
    %664 = vector.extract_strided_slice %658 {offsets = [5, 0], sizes = [1, 100], strides = [1, 1]} : vector<20x100xf32> to vector<1x100xf32>
    %665 = vector.extract_strided_slice %658 {offsets = [6, 0], sizes = [1, 100], strides = [1, 1]} : vector<20x100xf32> to vector<1x100xf32>
    %666 = vector.extract_strided_slice %658 {offsets = [7, 0], sizes = [1, 100], strides = [1, 1]} : vector<20x100xf32> to vector<1x100xf32>
    %667 = vector.extract_strided_slice %658 {offsets = [8, 0], sizes = [1, 100], strides = [1, 1]} : vector<20x100xf32> to vector<1x100xf32>
    %668 = vector.extract_strided_slice %658 {offsets = [9, 0], sizes = [1, 100], strides = [1, 1]} : vector<20x100xf32> to vector<1x100xf32>
    %669 = vector.extract_strided_slice %658 {offsets = [10, 0], sizes = [1, 100], strides = [1, 1]} : vector<20x100xf32> to vector<1x100xf32>
    %670 = vector.extract_strided_slice %658 {offsets = [11, 0], sizes = [1, 100], strides = [1, 1]} : vector<20x100xf32> to vector<1x100xf32>
    %671 = vector.extract_strided_slice %658 {offsets = [12, 0], sizes = [1, 100], strides = [1, 1]} : vector<20x100xf32> to vector<1x100xf32>
    %672 = vector.extract_strided_slice %658 {offsets = [13, 0], sizes = [1, 100], strides = [1, 1]} : vector<20x100xf32> to vector<1x100xf32>
    %673 = vector.extract_strided_slice %658 {offsets = [14, 0], sizes = [1, 100], strides = [1, 1]} : vector<20x100xf32> to vector<1x100xf32>
    %674 = vector.extract_strided_slice %658 {offsets = [15, 0], sizes = [1, 100], strides = [1, 1]} : vector<20x100xf32> to vector<1x100xf32>
    %675 = vector.extract_strided_slice %658 {offsets = [16, 0], sizes = [1, 100], strides = [1, 1]} : vector<20x100xf32> to vector<1x100xf32>
    %676 = vector.extract_strided_slice %658 {offsets = [17, 0], sizes = [1, 100], strides = [1, 1]} : vector<20x100xf32> to vector<1x100xf32>
    %677 = vector.extract_strided_slice %658 {offsets = [18, 0], sizes = [1, 100], strides = [1, 1]} : vector<20x100xf32> to vector<1x100xf32>
    %678 = vector.extract_strided_slice %658 {offsets = [19, 0], sizes = [1, 100], strides = [1, 1]} : vector<20x100xf32> to vector<1x100xf32>
    %679 = tpu.concatenate %659, %660, %661, %662, %663, %664, %665, %666, %667, %668, %669, %670, %671, %672, %673, %674 in 1 : vector<1x100xf32>, vector<1x100xf32>, vector<1x100xf32>, vector<1x100xf32>, vector<1x100xf32>, vector<1x100xf32>, vector<1x100xf32>, vector<1x100xf32>, vector<1x100xf32>, vector<1x100xf32>, vector<1x100xf32>, vector<1x100xf32>, vector<1x100xf32>, vector<1x100xf32>, vector<1x100xf32>, vector<1x100xf32> -> vector<1x1600xf32>
    %680 = tpu.concatenate %675, %676, %677, %678 in 1 : vector<1x100xf32>, vector<1x100xf32>, vector<1x100xf32>, vector<1x100xf32> -> vector<1x400xf32>
    %681 = tpu.concatenate %679, %680 in 1 : vector<1x1600xf32>, vector<1x400xf32> -> vector<1x2000xf32>
    %682 = vector.extract_strided_slice %657 {offsets = [0, 100], sizes = [20, 100], strides = [1, 1]} : vector<20x200xf32> to vector<20x100xf32>
    %683 = vector.extract_strided_slice %682 {offsets = [0, 0], sizes = [1, 100], strides = [1, 1]} : vector<20x100xf32> to vector<1x100xf32>
    %684 = vector.extract_strided_slice %682 {offsets = [1, 0], sizes = [1, 100], strides = [1, 1]} : vector<20x100xf32> to vector<1x100xf32>
    %685 = vector.extract_strided_slice %682 {offsets = [2, 0], sizes = [1, 100], strides = [1, 1]} : vector<20x100xf32> to vector<1x100xf32>
    %686 = vector.extract_strided_slice %682 {offsets = [3, 0], sizes = [1, 100], strides = [1, 1]} : vector<20x100xf32> to vector<1x100xf32>
    %687 = vector.extract_strided_slice %682 {offsets = [4, 0], sizes = [1, 100], strides = [1, 1]} : vector<20x100xf32> to vector<1x100xf32>
    %688 = vector.extract_strided_slice %682 {offsets = [5, 0], sizes = [1, 100], strides = [1, 1]} : vector<20x100xf32> to vector<1x100xf32>
    %689 = vector.extract_strided_slice %682 {offsets = [6, 0], sizes = [1, 100], strides = [1, 1]} : vector<20x100xf32> to vector<1x100xf32>
    %690 = vector.extract_strided_slice %682 {offsets = [7, 0], sizes = [1, 100], strides = [1, 1]} : vector<20x100xf32> to vector<1x100xf32>
    %691 = vector.extract_strided_slice %682 {offsets = [8, 0], sizes = [1, 100], strides = [1, 1]} : vector<20x100xf32> to vector<1x100xf32>
    %692 = vector.extract_strided_slice %682 {offsets = [9, 0], sizes = [1, 100], strides = [1, 1]} : vector<20x100xf32> to vector<1x100xf32>
    %693 = vector.extract_strided_slice %682 {offsets = [10, 0], sizes = [1, 100], strides = [1, 1]} : vector<20x100xf32> to vector<1x100xf32>
    %694 = vector.extract_strided_slice %682 {offsets = [11, 0], sizes = [1, 100], strides = [1, 1]} : vector<20x100xf32> to vector<1x100xf32>
    %695 = vector.extract_strided_slice %682 {offsets = [12, 0], sizes = [1, 100], strides = [1, 1]} : vector<20x100xf32> to vector<1x100xf32>
    %696 = vector.extract_strided_slice %682 {offsets = [13, 0], sizes = [1, 100], strides = [1, 1]} : vector<20x100xf32> to vector<1x100xf32>
    %697 = vector.extract_strided_slice %682 {offsets = [14, 0], sizes = [1, 100], strides = [1, 1]} : vector<20x100xf32> to vector<1x100xf32>
    %698 = vector.extract_strided_slice %682 {offsets = [15, 0], sizes = [1, 100], strides = [1, 1]} : vector<20x100xf32> to vector<1x100xf32>
    %699 = vector.extract_strided_slice %682 {offsets = [16, 0], sizes = [1, 100], strides = [1, 1]} : vector<20x100xf32> to vector<1x100xf32>
    %700 = vector.extract_strided_slice %682 {offsets = [17, 0], sizes = [1, 100], strides = [1, 1]} : vector<20x100xf32> to vector<1x100xf32>
    %701 = vector.extract_strided_slice %682 {offsets = [18, 0], sizes = [1, 100], strides = [1, 1]} : vector<20x100xf32> to vector<1x100xf32>
    %702 = vector.extract_strided_slice %682 {offsets = [19, 0], sizes = [1, 100], strides = [1, 1]} : vector<20x100xf32> to vector<1x100xf32>
    %703 = tpu.concatenate %683, %684, %685, %686, %687, %688, %689, %690, %691, %692, %693, %694, %695, %696, %697, %698 in 1 : vector<1x100xf32>, vector<1x100xf32>, vector<1x100xf32>, vector<1x100xf32>, vector<1x100xf32>, vector<1x100xf32>, vector<1x100xf32>, vector<1x100xf32>, vector<1x100xf32>, vector<1x100xf32>, vector<1x100xf32>, vector<1x100xf32>, vector<1x100xf32>, vector<1x100xf32>, vector<1x100xf32>, vector<1x100xf32> -> vector<1x1600xf32>
    %704 = tpu.concatenate %699, %700, %701, %702 in 1 : vector<1x100xf32>, vector<1x100xf32>, vector<1x100xf32>, vector<1x100xf32> -> vector<1x400xf32>
    %705 = tpu.concatenate %703, %704 in 1 : vector<1x1600xf32>, vector<1x400xf32> -> vector<1x2000xf32>
    %706 = tpu.concatenate %681, %705 in 0 : vector<1x2000xf32>, vector<1x2000xf32> -> vector<2x2000xf32>
    %707 = arith.truncf %706 : vector<2x2000xf32> to vector<2x2000xbf16>
    %c0_15 = arith.constant 0 : index
    %c0_16 = arith.constant 0 : index
    %708 = vector.load %arg5[%c0_15, %c0_16] : memref<2000x500xbf16, #tpu.memory_space<vmem>>, vector<2000x500xbf16>
    %cst_17 = arith.constant dense<0.000000e+00> : vector<2x500xf32>
    %709 = tpu.matmul %707, %708, %cst_17 {dimension_numbers = #tpu.dot_dimension_numbers<[1], [0], [0], [1], [0, 0, 1, 1], [], []>} : vector<2x2000xbf16>, vector<2000x500xbf16>, vector<2x500xf32> -> vector<2x500xf32>
    %c0_18 = arith.constant 0 : index
    %c0_19 = arith.constant 0 : index
    %710 = vector.load %arg6[%c0_18, %c0_19] : memref<1x500xf32, #tpu.memory_space<vmem>>, vector<1x500xf32>
    %711 = vector.broadcast %710 : vector<1x500xf32> to vector<2x500xf32>
    %712 = arith.addf %709, %711 : vector<2x500xf32>
    %cst_20 = arith.constant 0.000000e+00 : f32
    %713 = vector.broadcast %cst_20 : f32 to vector<2x500xf32>
    %714 = arith.maximumf %712, %713 : vector<2x500xf32>
    %c0_21 = arith.constant 0 : index
    %c0_22 = arith.constant 0 : index
    %715 = vector.load %arg7[%c0_21, %c0_22] : memref<500x10xf32, #tpu.memory_space<vmem>>, vector<500x10xf32>
    %cst_23 = arith.constant dense<0.000000e+00> : vector<2x10xf32>
    %716 = tpu.matmul %714, %715, %cst_23 {dimension_numbers = #tpu.dot_dimension_numbers<[1], [0], [0], [1], [0, 0, 1, 1], [], []>} : vector<2x500xf32>, vector<500x10xf32>, vector<2x10xf32> -> vector<2x10xf32>
    %c0_24 = arith.constant 0 : index
    %c0_25 = arith.constant 0 : index
    %717 = vector.load %arg8[%c0_24, %c0_25] : memref<1x10xf32, #tpu.memory_space<vmem>>, vector<1x10xf32>
    %718 = vector.broadcast %717 : vector<1x10xf32> to vector<2x10xf32>
    %719 = arith.addf %716, %718 : vector<2x10xf32>
    %cst_26 = arith.constant dense<0xFF800000> : vector<2xf32>
    %720 = vector.multi_reduction <maximumf>, %719, %cst_26 [1] : vector<2x10xf32> to vector<2xf32>
    %721 = vector.shape_cast %720 : vector<2xf32> to vector<2x1xf32>
    %722 = vector.broadcast %721 : vector<2x1xf32> to vector<2x10xf32>
    %723 = arith.subf %719, %722 : vector<2x10xf32>
    %724 = math.exp %723 : vector<2x10xf32>
    %cst_27 = arith.constant dense<0.000000e+00> : vector<2xf32>
    %725 = vector.multi_reduction <add>, %724, %cst_27 [1] : vector<2x10xf32> to vector<2xf32>
    %726 = vector.shape_cast %725 : vector<2xf32> to vector<2x1xf32>
    %727 = math.log %726 : vector<2x1xf32>
    %728 = arith.addf %727, %721 : vector<2x1xf32>
    %729 = vector.broadcast %728 : vector<2x1xf32> to vector<2x10xf32>
    %730 = arith.subf %719, %729 : vector<2x10xf32>
    %c0_28 = arith.constant 0 : index
    %c0_29 = arith.constant 0 : index
    %731 = vector.load %arg9[%c0_28, %c0_29] : memref<2x10xf32, #tpu.memory_space<vmem>>, vector<2x10xf32>
    tpu.vector_store %arg9[%c0_28, %c0_29], %730 {strides = array<i32>} : memref<2x10xf32, #tpu.memory_space<vmem>>, vector<2x10xf32>,
    return
  }
}

</mosaic_0001>

<llo_original>
// kernel: digit_forward.1
$region0: #{digit_forward.1}
  #allocation0 [shape = 'u32[]', space=smem, size = 0x4, offset = 0x4, fixed_abs, tag = 'smem constant byte address 0x4 - core index']
  #allocation1 [shape = 'u32[72,128]{1,0:T(1,128)}', space=vmem, size = 0x9000, scoped, tag = 'internal scratch']
  %s0 = inlined_call_operand.vmem [shape: f32[2,4,256], index: 0, kind: input, shape index: {}]
  %s1 = inlined_call_operand.hbm [shape: f32[10,25], index: 1, kind: input, shape index: {}]
  %s2 = inlined_call_operand.vmem [shape: f32[10,1], index: 2, kind: input, shape index: {}]
  %s3 = inlined_call_operand.hbm [shape: f32[20,90], index: 3, kind: input, shape index: {}]
  %s4 = inlined_call_operand.vmem [shape: f32[20,1], index: 4, kind: input, shape index: {}]
  %s5 = inlined_call_operand.hbm [shape: bf16[2000,500], index: 5, kind: input, shape index: {}]
  %s6 = inlined_call_operand.hbm [shape: f32[1,500], index: 6, kind: input, shape index: {}]
  %s7 = inlined_call_operand.vmem [shape: f32[500,10], index: 7, kind: input, shape index: {}]
  %s8 = inlined_call_operand.hbm [shape: f32[1,10], index: 8, kind: input, shape index: {}]
  %s9 = inlined_call_operand.hbm [shape: f32[2,10], index: 9, kind: output, shape index: {}]
  %s10 = sld [smem:[#allocation0]]
  $region66: #{digit_forward.1} parent=0
    _
  %s12 = ssub.s32 1, %s10
  %s13 = scalar_select 0, %s12, %s10
  $region1: #{digit_forward.1} parent=0
    #allocation2 [shape = 'u8[8192]{0}', space=vmem, size = 0x2000, scoped, tag = 'input window, operand 1, single buffered']
    #allocation3 [shape = 's32[1]{0}', space=sflag, size = 0x4, scoped, tag = 'scoped memory for digit_forward.1']
    #allocation4 [shape = 's32[1]{0}', space=sflag, size = 0x4, scoped, tag = 'scoped memory for digit_forward.1']
    #allocation5 [shape = 'u8[12288]{0}', space=vmem, size = 0x3000, scoped, tag = 'input window, operand 3, single buffered']
    #allocation6 [shape = 's32[1]{0}', space=sflag, size = 0x4, scoped, tag = 'scoped memory for digit_forward.1']
    #allocation7 [shape = 'u8[2048000]{0}', space=vmem, size = 0x1f4000, scoped, tag = 'input window, operand 5, single buffered']
    #allocation8 [shape = 'u8[2048]{0}', space=vmem, size = 0x800, scoped, tag = 'input window, operand 6, single buffered']
    #allocation9 [shape = 's32[1]{0}', space=sflag, size = 0x4, scoped, tag = 'scoped memory for digit_forward.1']
    #allocation10 [shape = 'u8[512]{0}', space=vmem, size = 0x400, scoped, tag = 'input window, operand 8, single buffered']
    #allocation11 [shape = 'u8[1024]{0}', space=vmem, size = 0x400, scoped, tag = 'output window, operand 0, single buffered']
    %14 = vsyncpa [#allocation3], 0
    %15 = vsyncpa [#allocation6], 0
    %16 = vsyncpa [#allocation9], 0
    %17 = vsyncpa [#allocation4], 0
    // Predicated region
    $region2: #{digit_forward.1} parent=1 // pred_check
      _
    $region3: #{digit_forward.1} parent=1 // pred_check_branch
      %19 = sbr.rel (0) target = $region5
    $region4: #{digit_forward.1} parent=1 // pred_region
      _
    $region5: #{digit_forward.1} parent=1 // pred_fallthru
      _
    // Predicated region
    $region6: #{digit_forward.1} parent=1 // pred_check
      _
    $region7: #{digit_forward.1} parent=1 // pred_check_branch
      %21 = sbr.rel (0) target = $region9
    $region8: #{digit_forward.1} parent=1 // pred_region
      %23 = vsyncadd [#allocation3], 0
      %s24 = sshll.u32 %s1, 4
      %s25 = int_to_ptr.hbm [resolvable:$true] %s24
      %s26 = sshll.u32 [#allocation2], 4
      %s27 = int_to_ptr.vmem [resolvable:$true] %s26
      %32 = dma.hbm_to_vmem [thread:$0]  %s25, 256, %s27, [#allocation3], 128, 128, 8
    $region9: #{digit_forward.1} parent=1 // pred_fallthru
      _
    // Predicated region
    $region10: #{digit_forward.1} parent=1 // pred_check
      _
    $region11: #{digit_forward.1} parent=1 // pred_check_branch
      %34 = sbr.rel (0) target = $region13
    $region12: #{digit_forward.1} parent=1 // pred_region
      _
    $region13: #{digit_forward.1} parent=1 // pred_fallthru
      _
    // Predicated region
    $region14: #{digit_forward.1} parent=1 // pred_check
      _
    $region15: #{digit_forward.1} parent=1 // pred_check_branch
      %36 = sbr.rel (0) target = $region17
    $region16: #{digit_forward.1} parent=1 // pred_region
      %38 = vsyncadd [#allocation6], 0
      %s39 = sshll.u32 %s3, 4
      %s40 = int_to_ptr.hbm [resolvable:$true] %s39
      %s41 = sshll.u32 [#allocation5], 4
      %s42 = int_to_ptr.vmem [resolvable:$true] %s41
      %47 = dma.hbm_to_vmem [thread:$0]  %s40, 384, %s42, [#allocation6], 128, 128, 8
    $region17: #{digit_forward.1} parent=1 // pred_fallthru
      _
    // Predicated region
    $region18: #{digit_forward.1} parent=1 // pred_check
      _
    $region19: #{digit_forward.1} parent=1 // pred_check_branch
      %49 = sbr.rel (0) target = $region21
    $region20: #{digit_forward.1} parent=1 // pred_region
      _
    $region21: #{digit_forward.1} parent=1 // pred_fallthru
      _
    // Predicated region
    $region22: #{digit_forward.1} parent=1 // pred_check
      _
    $region23: #{digit_forward.1} parent=1 // pred_check_branch
      %51 = sbr.rel (0) target = $region25
    $region24: #{digit_forward.1} parent=1 // pred_region
      %53 = vsyncadd [#allocation6], 0
      %s54 = sshll.u32 %s5, 4
      %s55 = int_to_ptr.hbm [resolvable:$true] %s54
      %s56 = sshll.u32 [#allocation7], 4
      %s57 = int_to_ptr.vmem [resolvable:$true] %s56
      %62 = dma.hbm_to_vmem [thread:$0]  %s55, 64000, %s57, [#allocation6], 256, 256, 16
    $region25: #{digit_forward.1} parent=1 // pred_fallthru
      _
    // Predicated region
    $region26: #{digit_forward.1} parent=1 // pred_check
      _
    $region27: #{digit_forward.1} parent=1 // pred_check_branch
      %64 = sbr.rel (0) target = $region29
    $region28: #{digit_forward.1} parent=1 // pred_region
      %66 = vsyncadd [#allocation9], 0
      %s68 = sshll.u32 %s6, 4
      %s69 = int_to_ptr.hbm [resolvable:$true] %s68
      %s70 = sshll.u32 [#allocation8], 4
      %s71 = int_to_ptr.vmem [resolvable:$true] %s70
      %73 = dma.hbm_to_vmem [thread:$0]  %s69, 64, %s71, [#allocation9]
    $region29: #{digit_forward.1} parent=1 // pred_fallthru
      _
    // Predicated region
    $region30: #{digit_forward.1} parent=1 // pred_check
      _
    $region31: #{digit_forward.1} parent=1 // pred_check_branch
      %75 = sbr.rel (0) target = $region33
    $region32: #{digit_forward.1} parent=1 // pred_region
      _
    $region33: #{digit_forward.1} parent=1 // pred_fallthru
      _
    // Predicated region
    $region34: #{digit_forward.1} parent=1 // pred_check
      _
    $region35: #{digit_forward.1} parent=1 // pred_check_branch
      %77 = sbr.rel (0) target = $region37
    $region36: #{digit_forward.1} parent=1 // pred_region
      %79 = vsyncadd [#allocation9], 0
      %s81 = sshll.u32 %s8, 4
      %s82 = int_to_ptr.hbm [resolvable:$true] %s81
      %s83 = sshll.u32 [#allocation10], 4
      %s84 = int_to_ptr.vmem [resolvable:$true] %s83
      %86 = dma.hbm_to_vmem [thread:$0]  %s82, 16, %s84, [#allocation9]
    $region37: #{digit_forward.1} parent=1 // pred_fallthru
      _
    // Predicated region
    $region38: #{digit_forward.1} parent=1 // pred_check
      _
    $region39: #{digit_forward.1} parent=1 // pred_check_branch
      %88 = sbr.rel (0) target = $region41
    $region40: #{digit_forward.1} parent=1 // pred_region
      %90 = dma.done [#allocation3], 256
    $region41: #{digit_forward.1} parent=1 // pred_fallthru
      _
    // Predicated region
    $region42: #{digit_forward.1} parent=1 // pred_check
      _
    $region43: #{digit_forward.1} parent=1 // pred_check_branch
      %92 = sbr.rel (0) target = $region45
    $region44: #{digit_forward.1} parent=1 // pred_region
      %94 = dma.done [#allocation6], 384
    $region45: #{digit_forward.1} parent=1 // pred_fallthru
      _
    // Predicated region
    $region46: #{digit_forward.1} parent=1 // pred_check
      _
    $region47: #{digit_forward.1} parent=1 // pred_check_branch
      %96 = sbr.rel (0) target = $region49
    $region48: #{digit_forward.1} parent=1 // pred_region
      %98 = dma.done [#allocation6], 64000
    $region49: #{digit_forward.1} parent=1 // pred_fallthru
      _
    // Predicated region
    $region50: #{digit_forward.1} parent=1 // pred_check
      _
    $region51: #{digit_forward.1} parent=1 // pred_check_branch
      %100 = sbr.rel (0) target = $region53
    $region52: #{digit_forward.1} parent=1 // pred_region
      %102 = dma.done [#allocation9], 64
    $region53: #{digit_forward.1} parent=1 // pred_fallthru
      _
    // Predicated region
    $region54: #{digit_forward.1} parent=1 // pred_check
      _
    $region55: #{digit_forward.1} parent=1 // pred_check_branch
      %104 = sbr.rel (0) target = $region57
    $region56: #{digit_forward.1} parent=1 // pred_region
      %106 = dma.done [#allocation9], 16
    $region57: #{digit_forward.1} parent=1 // pred_fallthru
      _
    %v108 = vld [vmem:[%s0] sm:$0xff]
    %v109 = vld [vmem:[%s0 + $0x8] sm:$0xff]
    %v110 = vld [vmem:[#allocation2] sm:$0xff]
    %v111 = vld [vmem:[#allocation2 + $0x8] sm:$0x3]
    %v112 = vld [vmem:[#allocation5] sm:$0xff]
    %v113 = vld [vmem:[#allocation5 + $0x8] sm:$0xff]
    %v114 = vld [vmem:[#allocation5 + $0x10] sm:$0xf]
    %v116 = vperm.slane %v108, 0
    %v117 = vperm.slane %v108, 4
    %v120 = vperm.slane %v108, 1
    %v121 = vperm.slane %v108, 5
    %124 = vrot.lane.b32.xlu0 %v116, 127
    %v125 = vpop.permute.xlu0 %124
    %126 = vrot.lane.b32.xlu0 %v117, 127
    %v127 = vpop.permute.xlu0 %126
    %vm128 = vcmask 1039360
    %v129 = vsel %vm128, %v125, %v127
    %132 = vrot.lane.b32.xlu0 %v120, 127
    %v133 = vpop.permute.xlu0 %132
    %134 = vrot.lane.b32.xlu0 %v121, 127
    %v135 = vpop.permute.xlu0 %134
    %v136 = vsel %vm128, %v133, %v135
    %139 = vrot.lane.b32.xlu0 %v116, 126
    %v140 = vpop.permute.xlu0 %139
    %141 = vrot.lane.b32.xlu0 %v117, 126
    %v142 = vpop.permute.xlu0 %141
    %vm143 = vcmask 1031168
    %v144 = vsel %vm143, %v140, %v142
    %v147 = vperm.slane %v108, 2
    %v148 = vperm.slane %v108, 6
    %v151 = vperm.slane %v108, 3
    %v152 = vperm.slane %v108, 7
    %155 = vrot.lane.b32.xlu0 %v147, 127
    %v156 = vpop.permute.xlu0 %155
    %157 = vrot.lane.b32.xlu0 %v148, 127
    %v158 = vpop.permute.xlu0 %157
    %v159 = vsel %vm128, %v156, %v158
    %162 = vrot.lane.b32.xlu0 %v151, 127
    %v163 = vpop.permute.xlu0 %162
    %164 = vrot.lane.b32.xlu0 %v152, 127
    %v165 = vpop.permute.xlu0 %164
    %v166 = vsel %vm128, %v163, %v165
    %169 = vrot.lane.b32.xlu0 %v147, 126
    %v170 = vpop.permute.xlu0 %169
    %171 = vrot.lane.b32.xlu0 %v148, 126
    %v172 = vpop.permute.xlu0 %171
    %v173 = vsel %vm143, %v170, %v172
    %176 = vrot.lane.b32.xlu0 %v116, 112
    %v177 = vpop.permute.xlu0 %176
    %178 = vrot.lane.b32.xlu0 %v117, 112
    %v179 = vpop.permute.xlu0 %178
    %vm180 = vcmask 916480
    %v181 = vsel %vm180, %v177, %v179
    %184 = vrot.lane.b32.xlu0 %v120, 112
    %v185 = vpop.permute.xlu0 %184
    %186 = vrot.lane.b32.xlu0 %v121, 112
    %v187 = vpop.permute.xlu0 %186
    %v188 = vsel %vm180, %v185, %v187
    %191 = vrot.lane.b32.xlu0 %v116, 111
    %v192 = vpop.permute.xlu0 %191
    %193 = vrot.lane.b32.xlu0 %v117, 111
    %v194 = vpop.permute.xlu0 %193
    %vm195 = vcmask 908288
    %v196 = vsel %vm195, %v192, %v194
    %199 = vrot.lane.b32.xlu0 %v120, 111
    %v200 = vpop.permute.xlu0 %199
    %201 = vrot.lane.b32.xlu0 %v121, 111
    %v202 = vpop.permute.xlu0 %201
    %v203 = vsel %vm195, %v200, %v202
    %206 = vrot.lane.b32.xlu0 %v116, 110
    %v207 = vpop.permute.xlu0 %206
    %208 = vrot.lane.b32.xlu0 %v117, 110
    %v209 = vpop.permute.xlu0 %208
    %vm210 = vcmask 900096
    %v211 = vsel %vm210, %v207, %v209
    %214 = vrot.lane.b32.xlu0 %v147, 112
    %v215 = vpop.permute.xlu0 %214
    %216 = vrot.lane.b32.xlu0 %v148, 112
    %v217 = vpop.permute.xlu0 %216
    %v218 = vsel %vm180, %v215, %v217
    %vm221 = vcmask 1040384
    %v222 = vsel %vm221, %v116, %v120
    %v223 = vsel %vm221, %v117, %v121
    %vm224 = vcmask 1041408
    %v225 = vsel %vm224, %v222, %v129
    %v226 = vsel %vm224, %v223, %v127
    %vm227 = vcmask 1042432
    %v228 = vsel %vm227, %v225, %v136
    %v229 = vsel %vm227, %v226, %v135
    %vm230 = vcmask 1043456
    %v231 = vsel %vm230, %v228, %v144
    %v232 = vsel %vm230, %v229, %v142
    %vm233 = vcmask 1044480
    %v234 = vsel %vm233, %v231, %v147
    %v235 = vsel %vm233, %v232, %v148
    %vm236 = vcmask 1045504
    %v237 = vsel %vm236, %v234, %v151
    %v238 = vsel %vm236, %v235, %v152
    %vm239 = vcmask 1046528
    %v240 = vsel %vm239, %v237, %v159
    %v241 = vsel %vm239, %v238, %v158
    %v242 = vsel %vm221, %v166, %v173
    %v243 = vsel %vm221, %v165, %v172
    %v244 = vsel %vm224, %v242, %v181
    %v245 = vsel %vm224, %v243, %v179
    %v246 = vsel %vm227, %v244, %v188
    %v247 = vsel %vm227, %v245, %v187
    %v248 = vsel %vm230, %v246, %v196
    %v249 = vsel %vm230, %v247, %v194
    %v250 = vsel %vm233, %v248, %v203
    %v251 = vsel %vm233, %v249, %v202
    %v252 = vsel %vm236, %v250, %v211
    %v253 = vsel %vm236, %v251, %v209
    %v254 = vsel %vm239, %v252, %v218
    %v255 = vsel %vm239, %v253, %v217
    %v256 = vsel %vm221, %v151, %v159
    %v257 = vsel %vm221, %v152, %v158
    %v258 = vsel %vm224, %v256, %v166
    %v259 = vsel %vm224, %v257, %v165
    %v260 = vsel %vm227, %v258, %v173
    %v261 = vsel %vm227, %v259, %v172
    %v262 = vsel %vm230, %v260, %v181
    %v263 = vsel %vm230, %v261, %v179
    %v264 = vsel %vm233, %v262, %v188
    %v265 = vsel %vm233, %v263, %v187
    %v266 = vsel %vm236, %v264, %v196
    %v267 = vsel %vm236, %v265, %v194
    %v268 = vsel %vm239, %v266, %v203
    %v269 = vsel %vm239, %v267, %v202
    %272 = vrot.lane.b32.xlu0 %v268, 112
    %v273 = vpop.permute.xlu0 %272
    %274 = vrot.lane.b32.xlu0 %v269, 112
    %v275 = vpop.permute.xlu0 %274
    %276 = vrot.lane.b32.xlu0 %v211, 112
    %v277 = vpop.permute.xlu0 %276
    %278 = vrot.lane.b32.xlu0 %v209, 112
    %v279 = vpop.permute.xlu0 %278
    %v280 = vsel %vm180, %v273, %v275
    %v281 = vsel %vm180, %v277, %v279
    %285 = vrot.lane.b32.xlu0 %v120, 126
    %v286 = vpop.permute.xlu0 %285
    %287 = vrot.lane.b32.xlu0 %v121, 126
    %v288 = vpop.permute.xlu0 %287
    %v289 = vsel %vm143, %v286, %v288
    %292 = vrot.lane.b32.xlu0 %v151, 126
    %v293 = vpop.permute.xlu0 %292
    %294 = vrot.lane.b32.xlu0 %v152, 126
    %v295 = vpop.permute.xlu0 %294
    %v296 = vsel %vm143, %v293, %v295
    %299 = vrot.lane.b32.xlu0 %v120, 110
    %v300 = vpop.permute.xlu0 %299
    %301 = vrot.lane.b32.xlu0 %v121, 110
    %v302 = vpop.permute.xlu0 %301
    %v303 = vsel %vm210, %v300, %v302
    %306 = vrot.lane.b32.xlu0 %v151, 112
    %v307 = vpop.permute.xlu0 %306
    %308 = vrot.lane.b32.xlu0 %v152, 112
    %v309 = vpop.permute.xlu0 %308
    %v310 = vsel %vm180, %v307, %v309
    %v313 = vsel %vm221, %v120, %v129
    %v314 = vsel %vm221, %v121, %v127
    %v315 = vsel %vm224, %v313, %v136
    %v316 = vsel %vm224, %v314, %v135
    %v317 = vsel %vm227, %v315, %v144
    %v318 = vsel %vm227, %v316, %v142
    %v319 = vsel %vm230, %v317, %v289
    %v320 = vsel %vm230, %v318, %v288
    %v321 = vsel %vm233, %v319, %v151
    %v322 = vsel %vm233, %v320, %v152
    %v323 = vsel %vm236, %v321, %v159
    %v324 = vsel %vm236, %v322, %v158
    %v325 = vsel %vm239, %v323, %v166
    %v326 = vsel %vm239, %v324, %v165
    %v327 = vsel %vm221, %v173, %v296
    %v328 = vsel %vm221, %v172, %v295
    %v329 = vsel %vm224, %v327, %v188
    %v330 = vsel %vm224, %v328, %v187
    %v331 = vsel %vm227, %v329, %v196
    %v332 = vsel %vm227, %v330, %v194
    %v333 = vsel %vm230, %v331, %v203
    %v334 = vsel %vm230, %v332, %v202
    %v335 = vsel %vm233, %v333, %v211
    %v336 = vsel %vm233, %v334, %v209
    %v337 = vsel %vm236, %v335, %v303
    %v338 = vsel %vm236, %v336, %v302
    %v339 = vsel %vm239, %v337, %v310
    %v340 = vsel %vm239, %v338, %v309
    %341 = vrot.lane.b32.xlu0 %v120, 113
    %v342 = vpop.permute.xlu0 %341
    %343 = vrot.lane.b32.xlu0 %v121, 113
    %v344 = vpop.permute.xlu0 %343
    %vm345 = vcmask 924672
    %v346 = vsel %vm345, %v342, %v344
    %v349 = vsel %vm221, %v147, %v151
    %v350 = vsel %vm221, %v148, %v152
    %v351 = vsel %vm224, %v349, %v159
    %v352 = vsel %vm224, %v350, %v158
    %v353 = vsel %vm227, %v351, %v166
    %v354 = vsel %vm227, %v352, %v165
    %v355 = vsel %vm230, %v353, %v346
    %v356 = vsel %vm230, %v354, %v344
    %v357 = vsel %vm233, %v355, %v181
    %v358 = vsel %vm233, %v356, %v179
    %v359 = vsel %vm236, %v357, %v188
    %v360 = vsel %vm236, %v358, %v187
    %v361 = vsel %vm239, %v359, %v196
    %v362 = vsel %vm239, %v360, %v194
    %365 = vrot.lane.b32.xlu0 %v361, 111
    %v366 = vpop.permute.xlu0 %365
    %367 = vrot.lane.b32.xlu0 %v362, 111
    %v368 = vpop.permute.xlu0 %367
    %369 = vrot.lane.b32.xlu0 %v203, 111
    %v370 = vpop.permute.xlu0 %369
    %371 = vrot.lane.b32.xlu0 %v202, 111
    %v372 = vpop.permute.xlu0 %371
    %v373 = vsel %vm195, %v366, %v368
    %v374 = vsel %vm195, %v370, %v372
    %375 = vrot.lane.b32.xlu0 %v147, 111
    %v376 = vpop.permute.xlu0 %375
    %377 = vrot.lane.b32.xlu0 %v148, 111
    %v378 = vpop.permute.xlu0 %377
    %v379 = vsel %vm195, %v376, %v378
    %382 = vrot.lane.b32.xlu0 %v151, 111
    %v383 = vpop.permute.xlu0 %382
    %384 = vrot.lane.b32.xlu0 %v152, 111
    %v385 = vpop.permute.xlu0 %384
    %v386 = vsel %vm195, %v383, %v385
    %389 = vrot.lane.b32.xlu0 %v147, 110
    %v390 = vpop.permute.xlu0 %389
    %391 = vrot.lane.b32.xlu0 %v148, 110
    %v392 = vpop.permute.xlu0 %391
    %v393 = vsel %vm210, %v390, %v392
    %396 = vrot.lane.b32.xlu0 %v116, 96
    %v397 = vpop.permute.xlu0 %396
    %398 = vrot.lane.b32.xlu0 %v117, 96
    %v399 = vpop.permute.xlu0 %398
    %vm400 = vcmask 785408
    %v401 = vsel %vm400, %v397, %v399
    %v404 = vsel %vm230, %v353, %v173
    %v405 = vsel %vm230, %v354, %v172
    %v406 = vsel %vm233, %v404, %v181
    %v407 = vsel %vm233, %v405, %v179
    %v408 = vsel %vm236, %v406, %v188
    %v409 = vsel %vm236, %v407, %v187
    %v410 = vsel %vm239, %v408, %v196
    %v411 = vsel %vm239, %v409, %v194
    %v412 = vsel %vm221, %v203, %v211
    %v413 = vsel %vm221, %v202, %v209
    %v414 = vsel %vm224, %v412, %v218
    %v415 = vsel %vm224, %v413, %v217
    %v416 = vsel %vm227, %v414, %v310
    %v417 = vsel %vm227, %v415, %v309
    %v418 = vsel %vm230, %v416, %v379
    %v419 = vsel %vm230, %v417, %v378
    %v420 = vsel %vm233, %v418, %v386
    %v421 = vsel %vm233, %v419, %v385
    %v422 = vsel %vm236, %v420, %v393
    %v423 = vsel %vm236, %v421, %v392
    %v424 = vsel %vm239, %v422, %v401
    %v425 = vsel %vm239, %v423, %v399
    %v426 = vsel %vm230, %v317, %v147
    %v427 = vsel %vm230, %v318, %v148
    %v428 = vsel %vm233, %v426, %v151
    %v429 = vsel %vm233, %v427, %v152
    %v430 = vsel %vm236, %v428, %v159
    %v431 = vsel %vm236, %v429, %v158
    %v432 = vsel %vm239, %v430, %v166
    %v433 = vsel %vm239, %v431, %v165
    %436 = vrot.lane.b32.xlu0 %v432, 96
    %v437 = vpop.permute.xlu0 %436
    %438 = vrot.lane.b32.xlu0 %v433, 96
    %v439 = vpop.permute.xlu0 %438
    %440 = vrot.lane.b32.xlu0 %v173, 96
    %v441 = vpop.permute.xlu0 %440
    %442 = vrot.lane.b32.xlu0 %v172, 96
    %v443 = vpop.permute.xlu0 %442
    %v444 = vsel %vm400, %v437, %v439
    %v445 = vsel %vm400, %v441, %v443
    %449 = vrot.lane.b32.xlu0 %v151, 110
    %v450 = vpop.permute.xlu0 %449
    %451 = vrot.lane.b32.xlu0 %v152, 110
    %v452 = vpop.permute.xlu0 %451
    %v453 = vsel %vm210, %v450, %v452
    %456 = vrot.lane.b32.xlu0 %v120, 96
    %v457 = vpop.permute.xlu0 %456
    %458 = vrot.lane.b32.xlu0 %v121, 96
    %v459 = vpop.permute.xlu0 %458
    %v460 = vsel %vm400, %v457, %v459
    %v463 = vsel %vm230, %v260, %v296
    %v464 = vsel %vm230, %v261, %v295
    %v465 = vsel %vm233, %v463, %v188
    %v466 = vsel %vm233, %v464, %v187
    %v467 = vsel %vm236, %v465, %v196
    %v468 = vsel %vm236, %v466, %v194
    %v469 = vsel %vm239, %v467, %v203
    %v470 = vsel %vm239, %v468, %v202
    %v471 = vsel %vm221, %v211, %v303
    %v472 = vsel %vm221, %v209, %v302
    %v473 = vsel %vm224, %v471, %v310
    %v474 = vsel %vm224, %v472, %v309
    %v475 = vsel %vm227, %v473, %v379
    %v476 = vsel %vm227, %v474, %v378
    %v477 = vsel %vm230, %v475, %v386
    %v478 = vsel %vm230, %v476, %v385
    %v479 = vsel %vm233, %v477, %v393
    %v480 = vsel %vm233, %v478, %v392
    %v481 = vsel %vm236, %v479, %v453
    %v482 = vsel %vm236, %v480, %v452
    %v483 = vsel %vm239, %v481, %v460
    %v484 = vsel %vm239, %v482, %v459
    %485 = vrot.lane.b32.xlu0 %v151, 1
    %v486 = vpop.permute.xlu0 %485
    %487 = vrot.lane.b32.xlu0 %v152, 1
    %v488 = vpop.permute.xlu0 %487
    %vm489 = vcmask 7168
    %v490 = vsel %vm489, %v486, %v488
    %v493 = vsel %vm230, %v228, %v486
    %v494 = vsel %vm230, %v229, %v490
    %v495 = vsel %vm233, %v493, %v147
    %v496 = vsel %vm233, %v494, %v148
    %v497 = vsel %vm236, %v495, %v151
    %v498 = vsel %vm236, %v496, %v152
    %v499 = vsel %vm239, %v497, %v159
    %v500 = vsel %vm239, %v498, %v158
    %503 = vrot.lane.b32.xlu0 %v499, 95
    %v504 = vpop.permute.xlu0 %503
    %505 = vrot.lane.b32.xlu0 %v500, 95
    %v506 = vpop.permute.xlu0 %505
    %507 = vrot.lane.b32.xlu0 %v166, 95
    %v508 = vpop.permute.xlu0 %507
    %509 = vrot.lane.b32.xlu0 %v165, 95
    %v510 = vpop.permute.xlu0 %509
    %vm511 = vcmask 777216
    %v512 = vsel %vm511, %v504, %v506
    %v513 = vsel %vm511, %v508, %v510
    %v515 = vperm.slane %v109, 0
    %v516 = vperm.slane %v109, 4
    %v519 = vperm.slane %v109, 1
    %v520 = vperm.slane %v109, 5
    %523 = vrot.lane.b32.xlu0 %v515, 127
    %v524 = vpop.permute.xlu0 %523
    %525 = vrot.lane.b32.xlu0 %v516, 127
    %v526 = vpop.permute.xlu0 %525
    %v527 = vsel %vm128, %v524, %v526
    %530 = vrot.lane.b32.xlu0 %v519, 127
    %v531 = vpop.permute.xlu0 %530
    %532 = vrot.lane.b32.xlu0 %v520, 127
    %v533 = vpop.permute.xlu0 %532
    %v534 = vsel %vm128, %v531, %v533
    %537 = vrot.lane.b32.xlu0 %v515, 126
    %v538 = vpop.permute.xlu0 %537
    %539 = vrot.lane.b32.xlu0 %v516, 126
    %v540 = vpop.permute.xlu0 %539
    %v541 = vsel %vm143, %v538, %v540
    %v544 = vperm.slane %v109, 2
    %v545 = vperm.slane %v109, 6
    %v548 = vperm.slane %v109, 3
    %v549 = vperm.slane %v109, 7
    %552 = vrot.lane.b32.xlu0 %v544, 127
    %v553 = vpop.permute.xlu0 %552
    %554 = vrot.lane.b32.xlu0 %v545, 127
    %v555 = vpop.permute.xlu0 %554
    %v556 = vsel %vm128, %v553, %v555
    %559 = vrot.lane.b32.xlu0 %v548, 127
    %v560 = vpop.permute.xlu0 %559
    %561 = vrot.lane.b32.xlu0 %v549, 127
    %v562 = vpop.permute.xlu0 %561
    %v563 = vsel %vm128, %v560, %v562
    %566 = vrot.lane.b32.xlu0 %v544, 126
    %v567 = vpop.permute.xlu0 %566
    %568 = vrot.lane.b32.xlu0 %v545, 126
    %v569 = vpop.permute.xlu0 %568
    %v570 = vsel %vm143, %v567, %v569
    %573 = vrot.lane.b32.xlu0 %v515, 112
    %v574 = vpop.permute.xlu0 %573
    %575 = vrot.lane.b32.xlu0 %v516, 112
    %v576 = vpop.permute.xlu0 %575
    %v577 = vsel %vm180, %v574, %v576
    %580 = vrot.lane.b32.xlu0 %v519, 112
    %v581 = vpop.permute.xlu0 %580
    %582 = vrot.lane.b32.xlu0 %v520, 112
    %v583 = vpop.permute.xlu0 %582
    %v584 = vsel %vm180, %v581, %v583
    %587 = vrot.lane.b32.xlu0 %v515, 111
    %v588 = vpop.permute.xlu0 %587
    %589 = vrot.lane.b32.xlu0 %v516, 111
    %v590 = vpop.permute.xlu0 %589
    %v591 = vsel %vm195, %v588, %v590
    %594 = vrot.lane.b32.xlu0 %v519, 111
    %v595 = vpop.permute.xlu0 %594
    %596 = vrot.lane.b32.xlu0 %v520, 111
    %v597 = vpop.permute.xlu0 %596
    %v598 = vsel %vm195, %v595, %v597
    %601 = vrot.lane.b32.xlu0 %v515, 110
    %v602 = vpop.permute.xlu0 %601
    %603 = vrot.lane.b32.xlu0 %v516, 110
    %v604 = vpop.permute.xlu0 %603
    %v605 = vsel %vm210, %v602, %v604
    %608 = vrot.lane.b32.xlu0 %v544, 112
    %v609 = vpop.permute.xlu0 %608
    %610 = vrot.lane.b32.xlu0 %v545, 112
    %v611 = vpop.permute.xlu0 %610
    %v612 = vsel %vm180, %v609, %v611
    %v615 = vsel %vm221, %v515, %v519
    %v616 = vsel %vm221, %v516, %v520
    %v617 = vsel %vm224, %v615, %v527
    %v618 = vsel %vm224, %v616, %v526
    %v619 = vsel %vm227, %v617, %v534
    %v620 = vsel %vm227, %v618, %v533
    %v621 = vsel %vm230, %v619, %v541
    %v622 = vsel %vm230, %v620, %v540
    %v623 = vsel %vm233, %v621, %v544
    %v624 = vsel %vm233, %v622, %v545
    %v625 = vsel %vm236, %v623, %v548
    %v626 = vsel %vm236, %v624, %v549
    %v627 = vsel %vm239, %v625, %v556
    %v628 = vsel %vm239, %v626, %v555
    %v629 = vsel %vm221, %v563, %v570
    %v630 = vsel %vm221, %v562, %v569
    %v631 = vsel %vm224, %v629, %v577
    %v632 = vsel %vm224, %v630, %v576
    %v633 = vsel %vm227, %v631, %v584
    %v634 = vsel %vm227, %v632, %v583
    %v635 = vsel %vm230, %v633, %v591
    %v636 = vsel %vm230, %v634, %v590
    %v637 = vsel %vm233, %v635, %v598
    %v638 = vsel %vm233, %v636, %v597
    %v639 = vsel %vm236, %v637, %v605
    %v640 = vsel %vm236, %v638, %v604
    %v641 = vsel %vm239, %v639, %v612
    %v642 = vsel %vm239, %v640, %v611
    %v643 = vsel %vm221, %v548, %v556
    %v644 = vsel %vm221, %v549, %v555
    %v645 = vsel %vm224, %v643, %v563
    %v646 = vsel %vm224, %v644, %v562
    %v647 = vsel %vm227, %v645, %v570
    %v648 = vsel %vm227, %v646, %v569
    %v649 = vsel %vm230, %v647, %v577
    %v650 = vsel %vm230, %v648, %v576
    %v651 = vsel %vm233, %v649, %v584
    %v652 = vsel %vm233, %v650, %v583
    %v653 = vsel %vm236, %v651, %v591
    %v654 = vsel %vm236, %v652, %v590
    %v655 = vsel %vm239, %v653, %v598
    %v656 = vsel %vm239, %v654, %v597
    %659 = vrot.lane.b32.xlu0 %v655, 112
    %v660 = vpop.permute.xlu0 %659
    %661 = vrot.lane.b32.xlu0 %v656, 112
    %v662 = vpop.permute.xlu0 %661
    %663 = vrot.lane.b32.xlu0 %v605, 112
    %v664 = vpop.permute.xlu0 %663
    %665 = vrot.lane.b32.xlu0 %v604, 112
    %v666 = vpop.permute.xlu0 %665
    %v667 = vsel %vm180, %v660, %v662
    %v668 = vsel %vm180, %v664, %v666
    %672 = vrot.lane.b32.xlu0 %v519, 126
    %v673 = vpop.permute.xlu0 %672
    %674 = vrot.lane.b32.xlu0 %v520, 126
    %v675 = vpop.permute.xlu0 %674
    %v676 = vsel %vm143, %v673, %v675
    %679 = vrot.lane.b32.xlu0 %v548, 126
    %v680 = vpop.permute.xlu0 %679
    %681 = vrot.lane.b32.xlu0 %v549, 126
    %v682 = vpop.permute.xlu0 %681
    %v683 = vsel %vm143, %v680, %v682
    %686 = vrot.lane.b32.xlu0 %v519, 110
    %v687 = vpop.permute.xlu0 %686
    %688 = vrot.lane.b32.xlu0 %v520, 110
    %v689 = vpop.permute.xlu0 %688
    %v690 = vsel %vm210, %v687, %v689
    %693 = vrot.lane.b32.xlu0 %v548, 112
    %v694 = vpop.permute.xlu0 %693
    %695 = vrot.lane.b32.xlu0 %v549, 112
    %v696 = vpop.permute.xlu0 %695
    %v697 = vsel %vm180, %v694, %v696
    %v700 = vsel %vm221, %v519, %v527
    %v701 = vsel %vm221, %v520, %v526
    %v702 = vsel %vm224, %v700, %v534
    %v703 = vsel %vm224, %v701, %v533
    %v704 = vsel %vm227, %v702, %v541
    %v705 = vsel %vm227, %v703, %v540
    %v706 = vsel %vm230, %v704, %v676
    %v707 = vsel %vm230, %v705, %v675
    %v708 = vsel %vm233, %v706, %v548
    %v709 = vsel %vm233, %v707, %v549
    %v710 = vsel %vm236, %v708, %v556
    %v711 = vsel %vm236, %v709, %v555
    %v712 = vsel %vm239, %v710, %v563
    %v713 = vsel %vm239, %v711, %v562
    %v714 = vsel %vm221, %v570, %v683
    %v715 = vsel %vm221, %v569, %v682
    %v716 = vsel %vm224, %v714, %v584
    %v717 = vsel %vm224, %v715, %v583
    %v718 = vsel %vm227, %v716, %v591
    %v719 = vsel %vm227, %v717, %v590
    %v720 = vsel %vm230, %v718, %v598
    %v721 = vsel %vm230, %v719, %v597
    %v722 = vsel %vm233, %v720, %v605
    %v723 = vsel %vm233, %v721, %v604
    %v724 = vsel %vm236, %v722, %v690
    %v725 = vsel %vm236, %v723, %v689
    %v726 = vsel %vm239, %v724, %v697
    %v727 = vsel %vm239, %v725, %v696
    %728 = vrot.lane.b32.xlu0 %v519, 113
    %v729 = vpop.permute.xlu0 %728
    %730 = vrot.lane.b32.xlu0 %v520, 113
    %v731 = vpop.permute.xlu0 %730
    %v732 = vsel %vm345, %v729, %v731
    %v735 = vsel %vm221, %v544, %v548
    %v736 = vsel %vm221, %v545, %v549
    %v737 = vsel %vm224, %v735, %v556
    %v738 = vsel %vm224, %v736, %v555
    %v739 = vsel %vm227, %v737, %v563
    %v740 = vsel %vm227, %v738, %v562
    %v741 = vsel %vm230, %v739, %v732
    %v742 = vsel %vm230, %v740, %v731
    %v743 = vsel %vm233, %v741, %v577
    %v744 = vsel %vm233, %v742, %v576
    %v745 = vsel %vm236, %v743, %v584
    %v746 = vsel %vm236, %v744, %v583
    %v747 = vsel %vm239, %v745, %v591
    %v748 = vsel %vm239, %v746, %v590
    %751 = vrot.lane.b32.xlu0 %v747, 111
    %v752 = vpop.permute.xlu0 %751
    %753 = vrot.lane.b32.xlu0 %v748, 111
    %v754 = vpop.permute.xlu0 %753
    %755 = vrot.lane.b32.xlu0 %v598, 111
    %v756 = vpop.permute.xlu0 %755
    %757 = vrot.lane.b32.xlu0 %v597, 111
    %v758 = vpop.permute.xlu0 %757
    %v759 = vsel %vm195, %v752, %v754
    %v760 = vsel %vm195, %v756, %v758
    %761 = vrot.lane.b32.xlu0 %v544, 111
    %v762 = vpop.permute.xlu0 %761
    %763 = vrot.lane.b32.xlu0 %v545, 111
    %v764 = vpop.permute.xlu0 %763
    %v765 = vsel %vm195, %v762, %v764
    %768 = vrot.lane.b32.xlu0 %v548, 111
    %v769 = vpop.permute.xlu0 %768
    %770 = vrot.lane.b32.xlu0 %v549, 111
    %v771 = vpop.permute.xlu0 %770
    %v772 = vsel %vm195, %v769, %v771
    %775 = vrot.lane.b32.xlu0 %v544, 110
    %v776 = vpop.permute.xlu0 %775
    %777 = vrot.lane.b32.xlu0 %v545, 110
    %v778 = vpop.permute.xlu0 %777
    %v779 = vsel %vm210, %v776, %v778
    %782 = vrot.lane.b32.xlu0 %v515, 96
    %v783 = vpop.permute.xlu0 %782
    %784 = vrot.lane.b32.xlu0 %v516, 96
    %v785 = vpop.permute.xlu0 %784
    %v786 = vsel %vm400, %v783, %v785
    %v789 = vsel %vm230, %v739, %v570
    %v790 = vsel %vm230, %v740, %v569
    %v791 = vsel %vm233, %v789, %v577
    %v792 = vsel %vm233, %v790, %v576
    %v793 = vsel %vm236, %v791, %v584
    %v794 = vsel %vm236, %v792, %v583
    %v795 = vsel %vm239, %v793, %v591
    %v796 = vsel %vm239, %v794, %v590
    %v797 = vsel %vm221, %v598, %v605
    %v798 = vsel %vm221, %v597, %v604
    %v799 = vsel %vm224, %v797, %v612
    %v800 = vsel %vm224, %v798, %v611
    %v801 = vsel %vm227, %v799, %v697
    %v802 = vsel %vm227, %v800, %v696
    %v803 = vsel %vm230, %v801, %v765
    %v804 = vsel %vm230, %v802, %v764
    %v805 = vsel %vm233, %v803, %v772
    %v806 = vsel %vm233, %v804, %v771
    %v807 = vsel %vm236, %v805, %v779
    %v808 = vsel %vm236, %v806, %v778
    %v809 = vsel %vm239, %v807, %v786
    %v810 = vsel %vm239, %v808, %v785
    %v811 = vsel %vm230, %v704, %v544
    %v812 = vsel %vm230, %v705, %v545
    %v813 = vsel %vm233, %v811, %v548
    %v814 = vsel %vm233, %v812, %v549
    %v815 = vsel %vm236, %v813, %v556
    %v816 = vsel %vm236, %v814, %v555
    %v817 = vsel %vm239, %v815, %v563
    %v818 = vsel %vm239, %v816, %v562
    %821 = vrot.lane.b32.xlu0 %v817, 96
    %v822 = vpop.permute.xlu0 %821
    %823 = vrot.lane.b32.xlu0 %v818, 96
    %v824 = vpop.permute.xlu0 %823
    %825 = vrot.lane.b32.xlu0 %v570, 96
    %v826 = vpop.permute.xlu0 %825
    %827 = vrot.lane.b32.xlu0 %v569, 96
    %v828 = vpop.permute.xlu0 %827
    %v829 = vsel %vm400, %v822, %v824
    %v830 = vsel %vm400, %v826, %v828
    %834 = vrot.lane.b32.xlu0 %v548, 110
    %v835 = vpop.permute.xlu0 %834
    %836 = vrot.lane.b32.xlu0 %v549, 110
    %v837 = vpop.permute.xlu0 %836
    %v838 = vsel %vm210, %v835, %v837
    %841 = vrot.lane.b32.xlu0 %v519, 96
    %v842 = vpop.permute.xlu0 %841
    %843 = vrot.lane.b32.xlu0 %v520, 96
    %v844 = vpop.permute.xlu0 %843
    %v845 = vsel %vm400, %v842, %v844
    %v848 = vsel %vm230, %v647, %v683
    %v849 = vsel %vm230, %v648, %v682
    %v850 = vsel %vm233, %v848, %v584
    %v851 = vsel %vm233, %v849, %v583
    %v852 = vsel %vm236, %v850, %v591
    %v853 = vsel %vm236, %v851, %v590
    %v854 = vsel %vm239, %v852, %v598
    %v855 = vsel %vm239, %v853, %v597
    %v856 = vsel %vm221, %v605, %v690
    %v857 = vsel %vm221, %v604, %v689
    %v858 = vsel %vm224, %v856, %v697
    %v859 = vsel %vm224, %v857, %v696
    %v860 = vsel %vm227, %v858, %v765
    %v861 = vsel %vm227, %v859, %v764
    %v862 = vsel %vm230, %v860, %v772
    %v863 = vsel %vm230, %v861, %v771
    %v864 = vsel %vm233, %v862, %v779
    %v865 = vsel %vm233, %v863, %v778
    %v866 = vsel %vm236, %v864, %v838
    %v867 = vsel %vm236, %v865, %v837
    %v868 = vsel %vm239, %v866, %v845
    %v869 = vsel %vm239, %v867, %v844
    %870 = vrot.lane.b32.xlu0 %v548, 1
    %v871 = vpop.permute.xlu0 %870
    %872 = vrot.lane.b32.xlu0 %v549, 1
    %v873 = vpop.permute.xlu0 %872
    %v874 = vsel %vm489, %v871, %v873
    %v877 = vsel %vm230, %v619, %v871
    %v878 = vsel %vm230, %v620, %v874
    %v879 = vsel %vm233, %v877, %v544
    %v880 = vsel %vm233, %v878, %v545
    %v881 = vsel %vm236, %v879, %v548
    %v882 = vsel %vm236, %v880, %v549
    %v883 = vsel %vm239, %v881, %v556
    %v884 = vsel %vm239, %v882, %v555
    %887 = vrot.lane.b32.xlu0 %v883, 95
    %v888 = vpop.permute.xlu0 %887
    %889 = vrot.lane.b32.xlu0 %v884, 95
    %v890 = vpop.permute.xlu0 %889
    %891 = vrot.lane.b32.xlu0 %v563, 95
    %v892 = vpop.permute.xlu0 %891
    %893 = vrot.lane.b32.xlu0 %v562, 95
    %v894 = vpop.permute.xlu0 %893
    %v895 = vsel %vm511, %v888, %v890
    %v896 = vsel %vm511, %v892, %v894
    %901 = vrot.lane.b32.xlu0 %v325, 64
    %v902 = vpop.permute.xlu0 %901
    %903 = vrot.lane.b32.xlu0 %v326, 64
    %v904 = vpop.permute.xlu0 %903
    %905 = vrot.lane.b32.xlu0 %v339, 64
    %v906 = vpop.permute.xlu0 %905
    %907 = vrot.lane.b32.xlu0 %v340, 64
    %v908 = vpop.permute.xlu0 %907
    %909 = vrot.lane.b32.xlu0 %v373, 64
    %v910 = vpop.permute.xlu0 %909
    %911 = vrot.lane.b32.xlu0 %v368, 64
    %v912 = vpop.permute.xlu0 %911
    %913 = vrot.lane.b32.xlu0 %v374, 64
    %v914 = vpop.permute.xlu0 %913
    %915 = vrot.lane.b32.xlu0 %v372, 64
    %v916 = vpop.permute.xlu0 %915
    %vm917 = vcmask 523264
    %v918 = vsel %vm917, %v902, %v904
    %v919 = vsel %vm917, %v906, %v908
    %v920 = vsel %vm917, %v910, %v912
    %v921 = vsel %vm917, %v914, %v916
    %933 = vrot.lane.b32.xlu0 %v469, 64
    %v934 = vpop.permute.xlu0 %933
    %935 = vrot.lane.b32.xlu0 %v470, 64
    %v936 = vpop.permute.xlu0 %935
    %937 = vrot.lane.b32.xlu0 %v483, 64
    %v938 = vpop.permute.xlu0 %937
    %939 = vrot.lane.b32.xlu0 %v484, 64
    %v940 = vpop.permute.xlu0 %939
    %941 = vrot.lane.b32.xlu0 %v512, 64
    %v942 = vpop.permute.xlu0 %941
    %943 = vrot.lane.b32.xlu0 %v506, 64
    %v944 = vpop.permute.xlu0 %943
    %945 = vrot.lane.b32.xlu0 %v513, 64
    %v946 = vpop.permute.xlu0 %945
    %947 = vrot.lane.b32.xlu0 %v510, 64
    %v948 = vpop.permute.xlu0 %947
    %v949 = vsel %vm917, %v934, %v936
    %v950 = vsel %vm917, %v938, %v940
    %v951 = vsel %vm917, %v942, %v944
    %v952 = vsel %vm917, %v946, %v948
    %964 = vrot.lane.b32.xlu0 %v712, 64
    %v965 = vpop.permute.xlu0 %964
    %966 = vrot.lane.b32.xlu0 %v713, 64
    %v967 = vpop.permute.xlu0 %966
    %968 = vrot.lane.b32.xlu0 %v726, 64
    %v969 = vpop.permute.xlu0 %968
    %970 = vrot.lane.b32.xlu0 %v727, 64
    %v971 = vpop.permute.xlu0 %970
    %972 = vrot.lane.b32.xlu0 %v759, 64
    %v973 = vpop.permute.xlu0 %972
    %974 = vrot.lane.b32.xlu0 %v754, 64
    %v975 = vpop.permute.xlu0 %974
    %976 = vrot.lane.b32.xlu0 %v760, 64
    %v977 = vpop.permute.xlu0 %976
    %978 = vrot.lane.b32.xlu0 %v758, 64
    %v979 = vpop.permute.xlu0 %978
    %v980 = vsel %vm917, %v965, %v967
    %v981 = vsel %vm917, %v969, %v971
    %v982 = vsel %vm917, %v973, %v975
    %v983 = vsel %vm917, %v977, %v979
    %995 = vrot.lane.b32.xlu0 %v854, 64
    %v996 = vpop.permute.xlu0 %995
    %997 = vrot.lane.b32.xlu0 %v855, 64
    %v998 = vpop.permute.xlu0 %997
    %999 = vrot.lane.b32.xlu0 %v868, 64
    %v1000 = vpop.permute.xlu0 %999
    %1001 = vrot.lane.b32.xlu0 %v869, 64
    %v1002 = vpop.permute.xlu0 %1001
    %1003 = vrot.lane.b32.xlu0 %v895, 64
    %v1004 = vpop.permute.xlu0 %1003
    %1005 = vrot.lane.b32.xlu0 %v890, 64
    %v1006 = vpop.permute.xlu0 %1005
    %1007 = vrot.lane.b32.xlu0 %v896, 64
    %v1008 = vpop.permute.xlu0 %1007
    %1009 = vrot.lane.b32.xlu0 %v894, 64
    %v1010 = vpop.permute.xlu0 %1009
    %v1011 = vsel %vm917, %v996, %v998
    %v1012 = vsel %vm917, %v1000, %v1002
    %v1013 = vsel %vm917, %v1004, %v1006
    %v1014 = vsel %vm917, %v1008, %v1010
    %v1022 = vsel %vm917, %v241, %v902
    %v1023 = vsel %vm917, %v255, %v906
    %v1024 = vsel %vm917, %v275, %v910
    %v1025 = vsel %vm917, %v279, %v914
    %v1026 = vsel %vm917, %v411, %v934
    %v1027 = vsel %vm917, %v425, %v938
    %v1028 = vsel %vm917, %v439, %v942
    %v1029 = vsel %vm917, %v443, %v946
    %v1030 = vsel %vm917, %v628, %v965
    %v1031 = vsel %vm917, %v642, %v969
    %v1032 = vsel %vm917, %v662, %v973
    %v1033 = vsel %vm917, %v666, %v977
    %v1034 = vsel %vm917, %v796, %v996
    %v1035 = vsel %vm917, %v810, %v1000
    %v1036 = vsel %vm917, %v824, %v1004
    %v1037 = vsel %vm917, %v828, %v1008
    %vm1038 = vcmask 203776
    %v1040 = vsel %vm1038, %v110, 0
    %v1043 = vsel %vm1038, %v111, 0
    %v1045 = vsel %vm221, %v281, 0
    %v1048 = vsel %vm221, %v1025, 0
    %v1050 = vsel %vm221, %v921, 0
    %v1052 = vsel %vm221, %v445, 0
    %v1055 = vsel %vm221, %v1029, 0
    %v1057 = vsel %vm221, %v952, 0
    %v1059 = vsel %vm221, %v668, 0
    %v1062 = vsel %vm221, %v1033, 0
    %v1064 = vsel %vm221, %v983, 0
    %v1066 = vsel %vm221, %v830, 0
    %v1069 = vsel %vm221, %v1037, 0
    %v1071 = vsel %vm221, %v1014, 0
    %1073 = vmatpush.msra.mxu0 0.0
    %1074 = vmatpush.msra.mxu0 0.0
    %1075 = vmatpush.msra.mxu0 0.0
    %1076 = vmatpush.msra.mxu0 0.0
    %1077 = vmatpush.msra.mxu0 0.0
    %1078 = vmatpush.msra.mxu0 0.0
    %1079 = vmatpush.msra.mxu0 0.0
    %1080 = vmatpush.msra.mxu0 0.0
    %1081 = vmatpush.msra.mxu0 0.0
    %1082 = vmatpush.msra.mxu0 0.0
    %1083 = vmatpush.msra.mxu0 0.0
    %1084 = vmatpush.msra.mxu0 0.0
    %1085 = vmatpush.msra.mxu0 %v1045
    %1086 = vmatpush.msra.mxu0 %v280
    %1087 = vmatpush.msra.mxu0 %v254
    %1088 = vmatpush.msra.mxu0 %v240
    %1089 = vmatmul.f32.gmra.mxu0 %v1040
    %v1090 = vpop.f32.mrf.mxu0
    %v1091 = vadd.f32 0.0, %v1090
    %1092 = vmatmul.f32.gmra.mxu0 %v1043
    %v1093 = vpop.f32.mrf.mxu0
    %v1094 = vadd.f32 0.0, %v1093
    %1095 = vdwg.mxu0
    %1096 = vmatpush.msra.mxu0 0.0
    %1097 = vmatpush.msra.mxu0 0.0
    %1098 = vmatpush.msra.mxu0 0.0
    %1099 = vmatpush.msra.mxu0 0.0
    %1100 = vmatpush.msra.mxu0 0.0
    %1101 = vmatpush.msra.mxu0 0.0
    %1102 = vmatpush.msra.mxu0 0.0
    %1103 = vmatpush.msra.mxu0 0.0
    %1104 = vmatpush.msra.mxu0 0.0
    %1105 = vmatpush.msra.mxu0 0.0
    %1106 = vmatpush.msra.mxu0 0.0
    %1107 = vmatpush.msra.mxu0 0.0
    %1108 = vmatpush.msra.mxu0 %v1048
    %1109 = vmatpush.msra.mxu0 %v1024
    %1110 = vmatpush.msra.mxu0 %v1023
    %1111 = vmatpush.msra.mxu0 %v1022
    %1112 = vmatmul.f32.gmra.mxu0 %v1040
    %v1113 = vpop.f32.mrf.mxu0
    %v1114 = vadd.f32 0.0, %v1113
    %1115 = vmatmul.f32.gmra.mxu0 %v1043
    %v1116 = vpop.f32.mrf.mxu0
    %v1117 = vadd.f32 0.0, %v1116
    %1118 = vdwg.mxu0
    %1119 = vmatpush.msra.mxu0 0.0
    %1120 = vmatpush.msra.mxu0 0.0
    %1121 = vmatpush.msra.mxu0 0.0
    %1122 = vmatpush.msra.mxu0 0.0
    %1123 = vmatpush.msra.mxu0 0.0
    %1124 = vmatpush.msra.mxu0 0.0
    %1125 = vmatpush.msra.mxu0 0.0
    %1126 = vmatpush.msra.mxu0 0.0
    %1127 = vmatpush.msra.mxu0 0.0
    %1128 = vmatpush.msra.mxu0 0.0
    %1129 = vmatpush.msra.mxu0 0.0
    %1130 = vmatpush.msra.mxu0 0.0
    %1131 = vmatpush.msra.mxu0 %v1050
    %1132 = vmatpush.msra.mxu0 %v920
    %1133 = vmatpush.msra.mxu0 %v919
    %1134 = vmatpush.msra.mxu0 %v918
    %1135 = vmatmul.f32.gmra.mxu0 %v1040
    %v1136 = vpop.f32.mrf.mxu0
    %v1137 = vadd.f32 0.0, %v1136
    %1138 = vmatmul.f32.gmra.mxu0 %v1043
    %v1139 = vpop.f32.mrf.mxu0
    %v1140 = vadd.f32 0.0, %v1139
    %1141 = vdwg.mxu0
    %1142 = vmatpush.msra.mxu0 0.0
    %1143 = vmatpush.msra.mxu0 0.0
    %1144 = vmatpush.msra.mxu0 0.0
    %1145 = vmatpush.msra.mxu0 0.0
    %1146 = vmatpush.msra.mxu0 0.0
    %1147 = vmatpush.msra.mxu0 0.0
    %1148 = vmatpush.msra.mxu0 0.0
    %1149 = vmatpush.msra.mxu0 0.0
    %1150 = vmatpush.msra.mxu0 0.0
    %1151 = vmatpush.msra.mxu0 0.0
    %1152 = vmatpush.msra.mxu0 0.0
    %1153 = vmatpush.msra.mxu0 0.0
    %1154 = vmatpush.msra.mxu0 %v1052
    %1155 = vmatpush.msra.mxu0 %v444
    %1156 = vmatpush.msra.mxu0 %v424
    %1157 = vmatpush.msra.mxu0 %v410
    %1158 = vmatmul.f32.gmra.mxu0 %v1040
    %v1159 = vpop.f32.mrf.mxu0
    %v1160 = vadd.f32 0.0, %v1159
    %1161 = vmatmul.f32.gmra.mxu0 %v1043
    %v1162 = vpop.f32.mrf.mxu0
    %v1163 = vadd.f32 0.0, %v1162
    %1164 = vdwg.mxu0
    %1165 = vmatpush.msra.mxu0 0.0
    %1166 = vmatpush.msra.mxu0 0.0
    %1167 = vmatpush.msra.mxu0 0.0
    %1168 = vmatpush.msra.mxu0 0.0
    %1169 = vmatpush.msra.mxu0 0.0
    %1170 = vmatpush.msra.mxu0 0.0
    %1171 = vmatpush.msra.mxu0 0.0
    %1172 = vmatpush.msra.mxu0 0.0
    %1173 = vmatpush.msra.mxu0 0.0
    %1174 = vmatpush.msra.mxu0 0.0
    %1175 = vmatpush.msra.mxu0 0.0
    %1176 = vmatpush.msra.mxu0 0.0
    %1177 = vmatpush.msra.mxu0 %v1055
    %1178 = vmatpush.msra.mxu0 %v1028
    %1179 = vmatpush.msra.mxu0 %v1027
    %1180 = vmatpush.msra.mxu0 %v1026
    %1181 = vmatmul.f32.gmra.mxu0 %v1040
    %v1182 = vpop.f32.mrf.mxu0
    %v1183 = vadd.f32 0.0, %v1182
    %1184 = vmatmul.f32.gmra.mxu0 %v1043
    %v1185 = vpop.f32.mrf.mxu0
    %v1186 = vadd.f32 0.0, %v1185
    %1187 = vdwg.mxu0
    %1188 = vmatpush.msra.mxu0 0.0
    %1189 = vmatpush.msra.mxu0 0.0
    %1190 = vmatpush.msra.mxu0 0.0
    %1191 = vmatpush.msra.mxu0 0.0
    %1192 = vmatpush.msra.mxu0 0.0
    %1193 = vmatpush.msra.mxu0 0.0
    %1194 = vmatpush.msra.mxu0 0.0
    %1195 = vmatpush.msra.mxu0 0.0
    %1196 = vmatpush.msra.mxu0 0.0
    %1197 = vmatpush.msra.mxu0 0.0
    %1198 = vmatpush.msra.mxu0 0.0
    %1199 = vmatpush.msra.mxu0 0.0
    %1200 = vmatpush.msra.mxu0 %v1057
    %1201 = vmatpush.msra.mxu0 %v951
    %1202 = vmatpush.msra.mxu0 %v950
    %1203 = vmatpush.msra.mxu0 %v949
    %1204 = vmatmul.f32.gmra.mxu0 %v1040
    %v1205 = vpop.f32.mrf.mxu0
    %v1206 = vadd.f32 0.0, %v1205
    %1207 = vmatmul.f32.gmra.mxu0 %v1043
    %v1208 = vpop.f32.mrf.mxu0
    %v1209 = vadd.f32 0.0, %v1208
    %1210 = vdwg.mxu0
    %1211 = vmatpush.msra.mxu0 0.0
    %1212 = vmatpush.msra.mxu0 0.0
    %1213 = vmatpush.msra.mxu0 0.0
    %1214 = vmatpush.msra.mxu0 0.0
    %1215 = vmatpush.msra.mxu0 0.0
    %1216 = vmatpush.msra.mxu0 0.0
    %1217 = vmatpush.msra.mxu0 0.0
    %1218 = vmatpush.msra.mxu0 0.0
    %1219 = vmatpush.msra.mxu0 0.0
    %1220 = vmatpush.msra.mxu0 0.0
    %1221 = vmatpush.msra.mxu0 0.0
    %1222 = vmatpush.msra.mxu0 0.0
    %1223 = vmatpush.msra.mxu0 %v1059
    %1224 = vmatpush.msra.mxu0 %v667
    %1225 = vmatpush.msra.mxu0 %v641
    %1226 = vmatpush.msra.mxu0 %v627
    %1227 = vmatmul.f32.gmra.mxu0 %v1040
    %v1228 = vpop.f32.mrf.mxu0
    %v1229 = vadd.f32 0.0, %v1228
    %1230 = vmatmul.f32.gmra.mxu0 %v1043
    %v1231 = vpop.f32.mrf.mxu0
    %v1232 = vadd.f32 0.0, %v1231
    %1233 = vdwg.mxu0
    %1234 = vmatpush.msra.mxu0 0.0
    %1235 = vmatpush.msra.mxu0 0.0
    %1236 = vmatpush.msra.mxu0 0.0
    %1237 = vmatpush.msra.mxu0 0.0
    %1238 = vmatpush.msra.mxu0 0.0
    %1239 = vmatpush.msra.mxu0 0.0
    %1240 = vmatpush.msra.mxu0 0.0
    %1241 = vmatpush.msra.mxu0 0.0
    %1242 = vmatpush.msra.mxu0 0.0
    %1243 = vmatpush.msra.mxu0 0.0
    %1244 = vmatpush.msra.mxu0 0.0
    %1245 = vmatpush.msra.mxu0 0.0
    %1246 = vmatpush.msra.mxu0 %v1062
    %1247 = vmatpush.msra.mxu0 %v1032
    %1248 = vmatpush.msra.mxu0 %v1031
    %1249 = vmatpush.msra.mxu0 %v1030
    %1250 = vmatmul.f32.gmra.mxu0 %v1040
    %v1251 = vpop.f32.mrf.mxu0
    %v1252 = vadd.f32 0.0, %v1251
    %1253 = vmatmul.f32.gmra.mxu0 %v1043
    %v1254 = vpop.f32.mrf.mxu0
    %v1255 = vadd.f32 0.0, %v1254
    %1256 = vdwg.mxu0
    %1257 = vmatpush.msra.mxu0 0.0
    %1258 = vmatpush.msra.mxu0 0.0
    %1259 = vmatpush.msra.mxu0 0.0
    %1260 = vmatpush.msra.mxu0 0.0
    %1261 = vmatpush.msra.mxu0 0.0
    %1262 = vmatpush.msra.mxu0 0.0
    %1263 = vmatpush.msra.mxu0 0.0
    %1264 = vmatpush.msra.mxu0 0.0
    %1265 = vmatpush.msra.mxu0 0.0
    %1266 = vmatpush.msra.mxu0 0.0
    %1267 = vmatpush.msra.mxu0 0.0
    %1268 = vmatpush.msra.mxu0 0.0
    %1269 = vmatpush.msra.mxu0 %v1064
    %1270 = vmatpush.msra.mxu0 %v982
    %1271 = vmatpush.msra.mxu0 %v981
    %1272 = vmatpush.msra.mxu0 %v980
    %1273 = vmatmul.f32.gmra.mxu0 %v1040
    %v1274 = vpop.f32.mrf.mxu0
    %v1275 = vadd.f32 0.0, %v1274
    %1276 = vmatmul.f32.gmra.mxu0 %v1043
    %v1277 = vpop.f32.mrf.mxu0
    %v1278 = vadd.f32 0.0, %v1277
    %1279 = vdwg.mxu0
    %1280 = vmatpush.msra.mxu0 0.0
    %1281 = vmatpush.msra.mxu0 0.0
    %1282 = vmatpush.msra.mxu0 0.0
    %1283 = vmatpush.msra.mxu0 0.0
    %1284 = vmatpush.msra.mxu0 0.0
    %1285 = vmatpush.msra.mxu0 0.0
    %1286 = vmatpush.msra.mxu0 0.0
    %1287 = vmatpush.msra.mxu0 0.0
    %1288 = vmatpush.msra.mxu0 0.0
    %1289 = vmatpush.msra.mxu0 0.0
    %1290 = vmatpush.msra.mxu0 0.0
    %1291 = vmatpush.msra.mxu0 0.0
    %1292 = vmatpush.msra.mxu0 %v1066
    %1293 = vmatpush.msra.mxu0 %v829
    %1294 = vmatpush.msra.mxu0 %v809
    %1295 = vmatpush.msra.mxu0 %v795
    %1296 = vmatmul.f32.gmra.mxu0 %v1040
    %v1297 = vpop.f32.mrf.mxu0
    %v1298 = vadd.f32 0.0, %v1297
    %1299 = vmatmul.f32.gmra.mxu0 %v1043
    %v1300 = vpop.f32.mrf.mxu0
    %v1301 = vadd.f32 0.0, %v1300
    %1302 = vdwg.mxu0
    %1303 = vmatpush.msra.mxu0 0.0
    %1304 = vmatpush.msra.mxu0 0.0
    %1305 = vmatpush.msra.mxu0 0.0
    %1306 = vmatpush.msra.mxu0 0.0
    %1307 = vmatpush.msra.mxu0 0.0
    %1308 = vmatpush.msra.mxu0 0.0
    %1309 = vmatpush.msra.mxu0 0.0
    %1310 = vmatpush.msra.mxu0 0.0
    %1311 = vmatpush.msra.mxu0 0.0
    %1312 = vmatpush.msra.mxu0 0.0
    %1313 = vmatpush.msra.mxu0 0.0
    %1314 = vmatpush.msra.mxu0 0.0
    %1315 = vmatpush.msra.mxu0 %v1069
    %1316 = vmatpush.msra.mxu0 %v1036
    %1317 = vmatpush.msra.mxu0 %v1035
    %1318 = vmatpush.msra.mxu0 %v1034
    %1319 = vmatmul.f32.gmra.mxu0 %v1040
    %v1320 = vpop.f32.mrf.mxu0
    %v1321 = vadd.f32 0.0, %v1320
    %1322 = vmatmul.f32.gmra.mxu0 %v1043
    %v1323 = vpop.f32.mrf.mxu0
    %v1324 = vadd.f32 0.0, %v1323
    %1325 = vdwg.mxu0
    %1326 = vmatpush.msra.mxu0 0.0
    %1327 = vmatpush.msra.mxu0 0.0
    %1328 = vmatpush.msra.mxu0 0.0
    %1329 = vmatpush.msra.mxu0 0.0
    %1330 = vmatpush.msra.mxu0 0.0
    %1331 = vmatpush.msra.mxu0 0.0
    %1332 = vmatpush.msra.mxu0 0.0
    %1333 = vmatpush.msra.mxu0 0.0
    %1334 = vmatpush.msra.mxu0 0.0
    %1335 = vmatpush.msra.mxu0 0.0
    %1336 = vmatpush.msra.mxu0 0.0
    %1337 = vmatpush.msra.mxu0 0.0
    %1338 = vmatpush.msra.mxu0 %v1071
    %1339 = vmatpush.msra.mxu0 %v1013
    %1340 = vmatpush.msra.mxu0 %v1012
    %1341 = vmatpush.msra.mxu0 %v1011
    %1342 = vmatmul.f32.gmra.mxu0 %v1040
    %v1343 = vpop.f32.mrf.mxu0
    %v1344 = vadd.f32 0.0, %v1343
    %1345 = vmatmul.f32.gmra.mxu0 %v1043
    %v1346 = vpop.f32.mrf.mxu0
    %v1347 = vadd.f32 0.0, %v1346
    %1348 = vdwg.mxu0
    %1353 = vrot.lane.b32.xlu0 %v1114, 64
    %v1354 = vpop.permute.xlu0 %1353
    %1355 = vrot.lane.b32.xlu0 %v1137, 64
    %v1356 = vpop.permute.xlu0 %1355
    %1357 = vrot.lane.b32.xlu0 %v1117, 64
    %v1358 = vpop.permute.xlu0 %1357
    %1359 = vrot.lane.b32.xlu0 %v1140, 64
    %v1360 = vpop.permute.xlu0 %1359
    %v1361 = vsel %vm917, %v1354, %v1356
    %v1362 = vsel %vm917, %v1358, %v1360
    %v1367 = vmax.f32 %v1091, %v1361
    %v1368 = vmax.f32 %v1114, %v1356
    %v1369 = vmax.f32 %v1094, %v1362
    %v1370 = vmax.f32 %v1117, %v1360
    %1375 = vrot.lane.b32.xlu0 %v1183, 64
    %v1376 = vpop.permute.xlu0 %1375
    %1377 = vrot.lane.b32.xlu0 %v1206, 64
    %v1378 = vpop.permute.xlu0 %1377
    %1379 = vrot.lane.b32.xlu0 %v1186, 64
    %v1380 = vpop.permute.xlu0 %1379
    %1381 = vrot.lane.b32.xlu0 %v1209, 64
    %v1382 = vpop.permute.xlu0 %1381
    %v1383 = vsel %vm917, %v1376, %v1378
    %v1384 = vsel %vm917, %v1380, %v1382
    %v1389 = vmax.f32 %v1160, %v1383
    %v1390 = vmax.f32 %v1183, %v1378
    %v1391 = vmax.f32 %v1163, %v1384
    %v1392 = vmax.f32 %v1186, %v1382
    %v1393 = vmax.f32 %v1367, %v1389
    %v1394 = vmax.f32 %v1368, %v1390
    %v1395 = vmax.f32 %v1369, %v1391
    %v1396 = vmax.f32 %v1370, %v1392
    %v1397 = vld [vmem:[%s2] sm:$0xff]
    %v1398 = vld [vmem:[%s2 + $0x8] sm:$0x3]
    %1400 = vset.pattern.permute.xlu0 0
    %1401 = vperm.xlu0 %1400, %v1397
    %v1402 = vpop.permute.xlu0 %1401
    %1405 = vset.pattern.permute.xlu0 0
    %1406 = vperm.xlu0 %1405, %v1398
    %v1407 = vpop.permute.xlu0 %1406
    %v1409 = vadd.f32 %v1393, %v1402
    %v1410 = vadd.f32 %v1394, %v1402
    %v1411 = vadd.f32 %v1395, %v1407
    %v1412 = vadd.f32 %v1396, %v1407
    %v1413 = vmax.f32 %v1409, 0.0
    %v1414 = vmax.f32 %v1410, 0.0
    %v1415 = vmax.f32 %v1411, 0.0
    %v1416 = vmax.f32 %v1412, 0.0
    %1421 = vrot.lane.b32.xlu0 %v1252, 64
    %v1422 = vpop.permute.xlu0 %1421
    %1423 = vrot.lane.b32.xlu0 %v1275, 64
    %v1424 = vpop.permute.xlu0 %1423
    %1425 = vrot.lane.b32.xlu0 %v1255, 64
    %v1426 = vpop.permute.xlu0 %1425
    %1427 = vrot.lane.b32.xlu0 %v1278, 64
    %v1428 = vpop.permute.xlu0 %1427
    %v1429 = vsel %vm917, %v1422, %v1424
    %v1430 = vsel %vm917, %v1426, %v1428
    %v1435 = vmax.f32 %v1229, %v1429
    %v1436 = vmax.f32 %v1252, %v1424
    %v1437 = vmax.f32 %v1232, %v1430
    %v1438 = vmax.f32 %v1255, %v1428
    %1443 = vrot.lane.b32.xlu0 %v1321, 64
    %v1444 = vpop.permute.xlu0 %1443
    %1445 = vrot.lane.b32.xlu0 %v1344, 64
    %v1446 = vpop.permute.xlu0 %1445
    %1447 = vrot.lane.b32.xlu0 %v1324, 64
    %v1448 = vpop.permute.xlu0 %1447
    %1449 = vrot.lane.b32.xlu0 %v1347, 64
    %v1450 = vpop.permute.xlu0 %1449
    %v1451 = vsel %vm917, %v1444, %v1446
    %v1452 = vsel %vm917, %v1448, %v1450
    %v1457 = vmax.f32 %v1298, %v1451
    %v1458 = vmax.f32 %v1321, %v1446
    %v1459 = vmax.f32 %v1301, %v1452
    %v1460 = vmax.f32 %v1324, %v1450
    %v1461 = vmax.f32 %v1435, %v1457
    %v1462 = vmax.f32 %v1436, %v1458
    %v1463 = vmax.f32 %v1437, %v1459
    %v1464 = vmax.f32 %v1438, %v1460
    %v1465 = vadd.f32 %v1461, %v1402
    %v1466 = vadd.f32 %v1462, %v1402
    %v1467 = vadd.f32 %v1463, %v1407
    %v1468 = vadd.f32 %v1464, %v1407
    %v1469 = vmax.f32 %v1465, 0.0
    %v1470 = vmax.f32 %v1466, 0.0
    %v1471 = vmax.f32 %v1467, 0.0
    %v1472 = vmax.f32 %v1468, 0.0
    %1475 = vrot.lane.b32.xlu0 %v1413, 122
    %v1476 = vpop.permute.xlu0 %1475
    %1477 = vrot.lane.b32.xlu0 %v1415, 122
    %v1478 = vpop.permute.xlu0 %1477
    %1481 = vrot.lane.b32.xlu0 %v1413, 116
    %v1482 = vpop.permute.xlu0 %1481
    %1483 = vrot.lane.b32.xlu0 %v1415, 116
    %v1484 = vpop.permute.xlu0 %1483
    %1487 = vrot.lane.b32.xlu0 %v1413, 110
    %v1488 = vpop.permute.xlu0 %1487
    %1489 = vrot.lane.b32.xlu0 %v1415, 110
    %v1490 = vpop.permute.xlu0 %1489
    %1493 = vrot.lane.b32.xlu0 %v1413, 104
    %v1494 = vpop.permute.xlu0 %1493
    %1495 = vrot.lane.b32.xlu0 %v1415, 104
    %v1496 = vpop.permute.xlu0 %1495
    %1499 = vrot.lane.b32.xlu0 %v1413, 98
    %v1500 = vpop.permute.xlu0 %1499
    %1501 = vrot.lane.b32.xlu0 %v1415, 98
    %v1502 = vpop.permute.xlu0 %1501
    %1505 = vrot.lane.b32.xlu0 %v1413, 92
    %v1506 = vpop.permute.xlu0 %1505
    %1507 = vrot.lane.b32.xlu0 %v1415, 92
    %v1508 = vpop.permute.xlu0 %1507
    %1511 = vrot.lane.b32.xlu0 %v1413, 86
    %v1512 = vpop.permute.xlu0 %1511
    %1513 = vrot.lane.b32.xlu0 %v1415, 86
    %v1514 = vpop.permute.xlu0 %1513
    %1519 = vrot.lane.b32.xlu0 %v1414, 80
    %v1520 = vpop.permute.xlu0 %1519
    %1521 = vrot.lane.b32.xlu0 %v1416, 80
    %v1522 = vpop.permute.xlu0 %1521
    %1525 = vrot.lane.b32.xlu0 %v1414, 74
    %v1526 = vpop.permute.xlu0 %1525
    %1527 = vrot.lane.b32.xlu0 %v1416, 74
    %v1528 = vpop.permute.xlu0 %1527
    %vm1531 = vcmask 80896
    %v1532 = vsel %vm1531, %v1413, %v1476
    %v1533 = vsel %vm1531, %v1415, %v1478
    %vm1534 = vcmask 162816
    %v1535 = vsel %vm1534, %v1532, %v1482
    %v1536 = vsel %vm1534, %v1533, %v1484
    %vm1537 = vcmask 244736
    %v1538 = vsel %vm1537, %v1535, %v1488
    %v1539 = vsel %vm1537, %v1536, %v1490
    %vm1540 = vcmask 326656
    %v1541 = vsel %vm1540, %v1538, %v1494
    %v1542 = vsel %vm1540, %v1539, %v1496
    %vm1543 = vcmask 408576
    %v1544 = vsel %vm1543, %v1541, %v1500
    %v1545 = vsel %vm1543, %v1542, %v1502
    %vm1546 = vcmask 490496
    %v1547 = vsel %vm1546, %v1544, %v1506
    %v1548 = vsel %vm1546, %v1545, %v1508
    %vm1549 = vcmask 572416
    %v1550 = vsel %vm1549, %v1547, %v1512
    %v1551 = vsel %vm1549, %v1548, %v1514
    %vm1552 = vcmask 654336
    %v1553 = vsel %vm1552, %v1550, %v1520
    %v1554 = vsel %vm1552, %v1551, %v1522
    %vm1555 = vcmask 736256
    %v1556 = vsel %vm1555, %v1553, %v1526
    %v1557 = vsel %vm1555, %v1554, %v1528
    %1558 = vrot.lane.b32.xlu0 %v1413, 127
    %v1559 = vpop.permute.xlu0 %1558
    %1560 = vrot.lane.b32.xlu0 %v1415, 127
    %v1561 = vpop.permute.xlu0 %1560
    %1564 = vrot.lane.b32.xlu0 %v1413, 121
    %v1565 = vpop.permute.xlu0 %1564
    %1566 = vrot.lane.b32.xlu0 %v1415, 121
    %v1567 = vpop.permute.xlu0 %1566
    %1570 = vrot.lane.b32.xlu0 %v1413, 115
    %v1571 = vpop.permute.xlu0 %1570
    %1572 = vrot.lane.b32.xlu0 %v1415, 115
    %v1573 = vpop.permute.xlu0 %1572
    %1576 = vrot.lane.b32.xlu0 %v1413, 109
    %v1577 = vpop.permute.xlu0 %1576
    %1578 = vrot.lane.b32.xlu0 %v1415, 109
    %v1579 = vpop.permute.xlu0 %1578
    %1582 = vrot.lane.b32.xlu0 %v1413, 103
    %v1583 = vpop.permute.xlu0 %1582
    %1584 = vrot.lane.b32.xlu0 %v1415, 103
    %v1585 = vpop.permute.xlu0 %1584
    %1588 = vrot.lane.b32.xlu0 %v1413, 97
    %v1589 = vpop.permute.xlu0 %1588
    %1590 = vrot.lane.b32.xlu0 %v1415, 97
    %v1591 = vpop.permute.xlu0 %1590
    %1594 = vrot.lane.b32.xlu0 %v1413, 91
    %v1595 = vpop.permute.xlu0 %1594
    %1596 = vrot.lane.b32.xlu0 %v1415, 91
    %v1597 = vpop.permute.xlu0 %1596
    %1600 = vrot.lane.b32.xlu0 %v1413, 85
    %v1601 = vpop.permute.xlu0 %1600
    %1602 = vrot.lane.b32.xlu0 %v1415, 85
    %v1603 = vpop.permute.xlu0 %1602
    %1606 = vrot.lane.b32.xlu0 %v1414, 79
    %v1607 = vpop.permute.xlu0 %1606
    %1608 = vrot.lane.b32.xlu0 %v1416, 79
    %v1609 = vpop.permute.xlu0 %1608
    %1612 = vrot.lane.b32.xlu0 %v1414, 73
    %v1613 = vpop.permute.xlu0 %1612
    %1614 = vrot.lane.b32.xlu0 %v1416, 73
    %v1615 = vpop.permute.xlu0 %1614
    %v1618 = vsel %vm1531, %v1559, %v1565
    %v1619 = vsel %vm1531, %v1561, %v1567
    %v1620 = vsel %vm1534, %v1618, %v1571
    %v1621 = vsel %vm1534, %v1619, %v1573
    %v1622 = vsel %vm1537, %v1620, %v1577
    %v1623 = vsel %vm1537, %v1621, %v1579
    %v1624 = vsel %vm1540, %v1622, %v1583
    %v1625 = vsel %vm1540, %v1623, %v1585
    %v1626 = vsel %vm1543, %v1624, %v1589
    %v1627 = vsel %vm1543, %v1625, %v1591
    %v1628 = vsel %vm1546, %v1626, %v1595
    %v1629 = vsel %vm1546, %v1627, %v1597
    %v1630 = vsel %vm1549, %v1628, %v1601
    %v1631 = vsel %vm1549, %v1629, %v1603
    %v1632 = vsel %vm1552, %v1630, %v1607
    %v1633 = vsel %vm1552, %v1631, %v1609
    %v1634 = vsel %vm1555, %v1632, %v1613
    %v1635 = vsel %vm1555, %v1633, %v1615
    %1636 = vrot.lane.b32.xlu0 %v1413, 126
    %v1637 = vpop.permute.xlu0 %1636
    %1638 = vrot.lane.b32.xlu0 %v1415, 126
    %v1639 = vpop.permute.xlu0 %1638
    %1642 = vrot.lane.b32.xlu0 %v1413, 120
    %v1643 = vpop.permute.xlu0 %1642
    %1644 = vrot.lane.b32.xlu0 %v1415, 120
    %v1645 = vpop.permute.xlu0 %1644
    %1648 = vrot.lane.b32.xlu0 %v1413, 114
    %v1649 = vpop.permute.xlu0 %1648
    %1650 = vrot.lane.b32.xlu0 %v1415, 114
    %v1651 = vpop.permute.xlu0 %1650
    %1654 = vrot.lane.b32.xlu0 %v1413, 108
    %v1655 = vpop.permute.xlu0 %1654
    %1656 = vrot.lane.b32.xlu0 %v1415, 108
    %v1657 = vpop.permute.xlu0 %1656
    %1660 = vrot.lane.b32.xlu0 %v1413, 102
    %v1661 = vpop.permute.xlu0 %1660
    %1662 = vrot.lane.b32.xlu0 %v1415, 102
    %v1663 = vpop.permute.xlu0 %1662
    %1666 = vrot.lane.b32.xlu0 %v1413, 96
    %v1667 = vpop.permute.xlu0 %1666
    %1668 = vrot.lane.b32.xlu0 %v1415, 96
    %v1669 = vpop.permute.xlu0 %1668
    %1672 = vrot.lane.b32.xlu0 %v1413, 90
    %v1673 = vpop.permute.xlu0 %1672
    %1674 = vrot.lane.b32.xlu0 %v1415, 90
    %v1675 = vpop.permute.xlu0 %1674
    %1678 = vrot.lane.b32.xlu0 %v1413, 84
    %v1679 = vpop.permute.xlu0 %1678
    %1680 = vrot.lane.b32.xlu0 %v1415, 84
    %v1681 = vpop.permute.xlu0 %1680
    %1684 = vrot.lane.b32.xlu0 %v1414, 78
    %v1685 = vpop.permute.xlu0 %1684
    %1686 = vrot.lane.b32.xlu0 %v1416, 78
    %v1687 = vpop.permute.xlu0 %1686
    %1690 = vrot.lane.b32.xlu0 %v1414, 72
    %v1691 = vpop.permute.xlu0 %1690
    %1692 = vrot.lane.b32.xlu0 %v1416, 72
    %v1693 = vpop.permute.xlu0 %1692
    %v1696 = vsel %vm1531, %v1637, %v1643
    %v1697 = vsel %vm1531, %v1639, %v1645
    %v1698 = vsel %vm1534, %v1696, %v1649
    %v1699 = vsel %vm1534, %v1697, %v1651
    %v1700 = vsel %vm1537, %v1698, %v1655
    %v1701 = vsel %vm1537, %v1699, %v1657
    %v1702 = vsel %vm1540, %v1700, %v1661
    %v1703 = vsel %vm1540, %v1701, %v1663
    %v1704 = vsel %vm1543, %v1702, %v1667
    %v1705 = vsel %vm1543, %v1703, %v1669
    %v1706 = vsel %vm1546, %v1704, %v1673
    %v1707 = vsel %vm1546, %v1705, %v1675
    %v1708 = vsel %vm1549, %v1706, %v1679
    %v1709 = vsel %vm1549, %v1707, %v1681
    %v1710 = vsel %vm1552, %v1708, %v1685
    %v1711 = vsel %vm1552, %v1709, %v1687
    %v1712 = vsel %vm1555, %v1710, %v1691
    %v1713 = vsel %vm1555, %v1711, %v1693
    %1714 = vrot.lane.b32.xlu0 %v1413, 112
    %v1715 = vpop.permute.xlu0 %1714
    %1716 = vrot.lane.b32.xlu0 %v1415, 112
    %v1717 = vpop.permute.xlu0 %1716
    %1720 = vrot.lane.b32.xlu0 %v1413, 106
    %v1721 = vpop.permute.xlu0 %1720
    %1722 = vrot.lane.b32.xlu0 %v1415, 106
    %v1723 = vpop.permute.xlu0 %1722
    %1726 = vrot.lane.b32.xlu0 %v1413, 100
    %v1727 = vpop.permute.xlu0 %1726
    %1728 = vrot.lane.b32.xlu0 %v1415, 100
    %v1729 = vpop.permute.xlu0 %1728
    %1732 = vrot.lane.b32.xlu0 %v1413, 94
    %v1733 = vpop.permute.xlu0 %1732
    %1734 = vrot.lane.b32.xlu0 %v1415, 94
    %v1735 = vpop.permute.xlu0 %1734
    %1738 = vrot.lane.b32.xlu0 %v1413, 88
    %v1739 = vpop.permute.xlu0 %1738
    %1740 = vrot.lane.b32.xlu0 %v1415, 88
    %v1741 = vpop.permute.xlu0 %1740
    %1744 = vrot.lane.b32.xlu0 %v1413, 82
    %v1745 = vpop.permute.xlu0 %1744
    %1746 = vrot.lane.b32.xlu0 %v1415, 82
    %v1747 = vpop.permute.xlu0 %1746
    %1750 = vrot.lane.b32.xlu0 %v1413, 76
    %v1751 = vpop.permute.xlu0 %1750
    %1752 = vrot.lane.b32.xlu0 %v1415, 76
    %v1753 = vpop.permute.xlu0 %1752
    %1756 = vrot.lane.b32.xlu0 %v1414, 70
    %v1757 = vpop.permute.xlu0 %1756
    %1758 = vrot.lane.b32.xlu0 %v1416, 70
    %v1759 = vpop.permute.xlu0 %1758
    %1762 = vrot.lane.b32.xlu0 %v1414, 64
    %v1763 = vpop.permute.xlu0 %1762
    %1764 = vrot.lane.b32.xlu0 %v1416, 64
    %v1765 = vpop.permute.xlu0 %1764
    %1768 = vrot.lane.b32.xlu0 %v1414, 58
    %v1769 = vpop.permute.xlu0 %1768
    %1770 = vrot.lane.b32.xlu0 %v1416, 58
    %v1771 = vpop.permute.xlu0 %1770
    %v1774 = vsel %vm1531, %v1715, %v1721
    %v1775 = vsel %vm1531, %v1717, %v1723
    %v1776 = vsel %vm1534, %v1774, %v1727
    %v1777 = vsel %vm1534, %v1775, %v1729
    %v1778 = vsel %vm1537, %v1776, %v1733
    %v1779 = vsel %vm1537, %v1777, %v1735
    %v1780 = vsel %vm1540, %v1778, %v1739
    %v1781 = vsel %vm1540, %v1779, %v1741
    %v1782 = vsel %vm1543, %v1780, %v1745
    %v1783 = vsel %vm1543, %v1781, %v1747
    %v1784 = vsel %vm1546, %v1782, %v1751
    %v1785 = vsel %vm1546, %v1783, %v1753
    %v1786 = vsel %vm1549, %v1784, %v1757
    %v1787 = vsel %vm1549, %v1785, %v1759
    %v1788 = vsel %vm1552, %v1786, %v1763
    %v1789 = vsel %vm1552, %v1787, %v1765
    %v1790 = vsel %vm1555, %v1788, %v1769
    %v1791 = vsel %vm1555, %v1789, %v1771
    %1792 = vrot.lane.b32.xlu0 %v1413, 111
    %v1793 = vpop.permute.xlu0 %1792
    %1794 = vrot.lane.b32.xlu0 %v1415, 111
    %v1795 = vpop.permute.xlu0 %1794
    %1798 = vrot.lane.b32.xlu0 %v1413, 105
    %v1799 = vpop.permute.xlu0 %1798
    %1800 = vrot.lane.b32.xlu0 %v1415, 105
    %v1801 = vpop.permute.xlu0 %1800
    %1804 = vrot.lane.b32.xlu0 %v1413, 99
    %v1805 = vpop.permute.xlu0 %1804
    %1806 = vrot.lane.b32.xlu0 %v1415, 99
    %v1807 = vpop.permute.xlu0 %1806
    %1810 = vrot.lane.b32.xlu0 %v1413, 93
    %v1811 = vpop.permute.xlu0 %1810
    %1812 = vrot.lane.b32.xlu0 %v1415, 93
    %v1813 = vpop.permute.xlu0 %1812
    %1816 = vrot.lane.b32.xlu0 %v1413, 87
    %v1817 = vpop.permute.xlu0 %1816
    %1818 = vrot.lane.b32.xlu0 %v1415, 87
    %v1819 = vpop.permute.xlu0 %1818
    %1822 = vrot.lane.b32.xlu0 %v1413, 81
    %v1823 = vpop.permute.xlu0 %1822
    %1824 = vrot.lane.b32.xlu0 %v1415, 81
    %v1825 = vpop.permute.xlu0 %1824
    %1828 = vrot.lane.b32.xlu0 %v1413, 75
    %v1829 = vpop.permute.xlu0 %1828
    %1830 = vrot.lane.b32.xlu0 %v1415, 75
    %v1831 = vpop.permute.xlu0 %1830
    %1834 = vrot.lane.b32.xlu0 %v1414, 69
    %v1835 = vpop.permute.xlu0 %1834
    %1836 = vrot.lane.b32.xlu0 %v1416, 69
    %v1837 = vpop.permute.xlu0 %1836
    %1840 = vrot.lane.b32.xlu0 %v1414, 63
    %v1841 = vpop.permute.xlu0 %1840
    %1842 = vrot.lane.b32.xlu0 %v1416, 63
    %v1843 = vpop.permute.xlu0 %1842
    %1846 = vrot.lane.b32.xlu0 %v1414, 57
    %v1847 = vpop.permute.xlu0 %1846
    %1848 = vrot.lane.b32.xlu0 %v1416, 57
    %v1849 = vpop.permute.xlu0 %1848
    %v1852 = vsel %vm1531, %v1793, %v1799
    %v1853 = vsel %vm1531, %v1795, %v1801
    %v1854 = vsel %vm1534, %v1852, %v1805
    %v1855 = vsel %vm1534, %v1853, %v1807
    %v1856 = vsel %vm1537, %v1854, %v1811
    %v1857 = vsel %vm1537, %v1855, %v1813
    %v1858 = vsel %vm1540, %v1856, %v1817
    %v1859 = vsel %vm1540, %v1857, %v1819
    %v1860 = vsel %vm1543, %v1858, %v1823
    %v1861 = vsel %vm1543, %v1859, %v1825
    %v1862 = vsel %vm1546, %v1860, %v1829
    %v1863 = vsel %vm1546, %v1861, %v1831
    %v1864 = vsel %vm1549, %v1862, %v1835
    %v1865 = vsel %vm1549, %v1863, %v1837
    %v1866 = vsel %vm1552, %v1864, %v1841
    %v1867 = vsel %vm1552, %v1865, %v1843
    %v1868 = vsel %vm1555, %v1866, %v1847
    %v1869 = vsel %vm1555, %v1867, %v1849
    %1870 = vrot.lane.b32.xlu0 %v1413, 80
    %v1871 = vpop.permute.xlu0 %1870
    %1872 = vrot.lane.b32.xlu0 %v1415, 80
    %v1873 = vpop.permute.xlu0 %1872
    %1876 = vrot.lane.b32.xlu0 %v1413, 74
    %v1877 = vpop.permute.xlu0 %1876
    %1878 = vrot.lane.b32.xlu0 %v1415, 74
    %v1879 = vpop.permute.xlu0 %1878
    %1882 = vrot.lane.b32.xlu0 %v1414, 68
    %v1883 = vpop.permute.xlu0 %1882
    %1884 = vrot.lane.b32.xlu0 %v1416, 68
    %v1885 = vpop.permute.xlu0 %1884
    %1888 = vrot.lane.b32.xlu0 %v1414, 62
    %v1889 = vpop.permute.xlu0 %1888
    %1890 = vrot.lane.b32.xlu0 %v1416, 62
    %v1891 = vpop.permute.xlu0 %1890
    %1894 = vrot.lane.b32.xlu0 %v1414, 56
    %v1895 = vpop.permute.xlu0 %1894
    %1896 = vrot.lane.b32.xlu0 %v1416, 56
    %v1897 = vpop.permute.xlu0 %1896
    %v1900 = vsel %vm1531, %v1488, %v1494
    %v1901 = vsel %vm1531, %v1490, %v1496
    %v1902 = vsel %vm1534, %v1900, %v1500
    %v1903 = vsel %vm1534, %v1901, %v1502
    %v1904 = vsel %vm1537, %v1902, %v1506
    %v1905 = vsel %vm1537, %v1903, %v1508
    %v1906 = vsel %vm1540, %v1904, %v1512
    %v1907 = vsel %vm1540, %v1905, %v1514
    %v1908 = vsel %vm1543, %v1906, %v1871
    %v1909 = vsel %vm1543, %v1907, %v1873
    %v1910 = vsel %vm1546, %v1908, %v1877
    %v1911 = vsel %vm1546, %v1909, %v1879
    %v1912 = vsel %vm1549, %v1910, %v1883
    %v1913 = vsel %vm1549, %v1911, %v1885
    %v1914 = vsel %vm1552, %v1912, %v1889
    %v1915 = vsel %vm1552, %v1913, %v1891
    %v1916 = vsel %vm1555, %v1914, %v1895
    %v1917 = vsel %vm1555, %v1915, %v1897
    %1918 = vrot.lane.b32.xlu0 %v1413, 78
    %v1919 = vpop.permute.xlu0 %1918
    %1920 = vrot.lane.b32.xlu0 %v1415, 78
    %v1921 = vpop.permute.xlu0 %1920
    %1924 = vrot.lane.b32.xlu0 %v1413, 72
    %v1925 = vpop.permute.xlu0 %1924
    %1926 = vrot.lane.b32.xlu0 %v1415, 72
    %v1927 = vpop.permute.xlu0 %1926
    %1930 = vrot.lane.b32.xlu0 %v1413, 66
    %v1931 = vpop.permute.xlu0 %1930
    %1932 = vrot.lane.b32.xlu0 %v1415, 66
    %v1933 = vpop.permute.xlu0 %1932
    %1936 = vrot.lane.b32.xlu0 %v1414, 60
    %v1937 = vpop.permute.xlu0 %1936
    %1938 = vrot.lane.b32.xlu0 %v1416, 60
    %v1939 = vpop.permute.xlu0 %1938
    %1942 = vrot.lane.b32.xlu0 %v1414, 54
    %v1943 = vpop.permute.xlu0 %1942
    %1944 = vrot.lane.b32.xlu0 %v1416, 54
    %v1945 = vpop.permute.xlu0 %1944
    %1948 = vrot.lane.b32.xlu0 %v1414, 48
    %v1949 = vpop.permute.xlu0 %1948
    %1950 = vrot.lane.b32.xlu0 %v1416, 48
    %v1951 = vpop.permute.xlu0 %1950
    %1954 = vrot.lane.b32.xlu0 %v1414, 42
    %v1955 = vpop.permute.xlu0 %1954
    %1956 = vrot.lane.b32.xlu0 %v1416, 42
    %v1957 = vpop.permute.xlu0 %1956
    %v1960 = vsel %vm1531, %v1667, %v1673
    %v1961 = vsel %vm1531, %v1669, %v1675
    %v1962 = vsel %vm1534, %v1960, %v1679
    %v1963 = vsel %vm1534, %v1961, %v1681
    %v1964 = vsel %vm1537, %v1962, %v1919
    %v1965 = vsel %vm1537, %v1963, %v1921
    %v1966 = vsel %vm1540, %v1964, %v1925
    %v1967 = vsel %vm1540, %v1965, %v1927
    %v1968 = vsel %vm1543, %v1966, %v1931
    %v1969 = vsel %vm1543, %v1967, %v1933
    %v1970 = vsel %vm1546, %v1968, %v1937
    %v1971 = vsel %vm1546, %v1969, %v1939
    %v1972 = vsel %vm1549, %v1970, %v1943
    %v1973 = vsel %vm1549, %v1971, %v1945
    %v1974 = vsel %vm1552, %v1972, %v1949
    %v1975 = vsel %vm1552, %v1973, %v1951
    %v1976 = vsel %vm1555, %v1974, %v1955
    %v1977 = vsel %vm1555, %v1975, %v1957
    %1978 = vrot.lane.b32.xlu0 %v1413, 95
    %v1979 = vpop.permute.xlu0 %1978
    %1980 = vrot.lane.b32.xlu0 %v1415, 95
    %v1981 = vpop.permute.xlu0 %1980
    %1984 = vrot.lane.b32.xlu0 %v1413, 89
    %v1985 = vpop.permute.xlu0 %1984
    %1986 = vrot.lane.b32.xlu0 %v1415, 89
    %v1987 = vpop.permute.xlu0 %1986
    %1990 = vrot.lane.b32.xlu0 %v1413, 83
    %v1991 = vpop.permute.xlu0 %1990
    %1992 = vrot.lane.b32.xlu0 %v1415, 83
    %v1993 = vpop.permute.xlu0 %1992
    %1996 = vrot.lane.b32.xlu0 %v1413, 77
    %v1997 = vpop.permute.xlu0 %1996
    %1998 = vrot.lane.b32.xlu0 %v1415, 77
    %v1999 = vpop.permute.xlu0 %1998
    %2002 = vrot.lane.b32.xlu0 %v1413, 71
    %v2003 = vpop.permute.xlu0 %2002
    %2004 = vrot.lane.b32.xlu0 %v1415, 71
    %v2005 = vpop.permute.xlu0 %2004
    %2008 = vrot.lane.b32.xlu0 %v1413, 65
    %v2009 = vpop.permute.xlu0 %2008
    %2010 = vrot.lane.b32.xlu0 %v1415, 65
    %v2011 = vpop.permute.xlu0 %2010
    %2014 = vrot.lane.b32.xlu0 %v1414, 59
    %v2015 = vpop.permute.xlu0 %2014
    %2016 = vrot.lane.b32.xlu0 %v1416, 59
    %v2017 = vpop.permute.xlu0 %2016
    %2020 = vrot.lane.b32.xlu0 %v1414, 53
    %v2021 = vpop.permute.xlu0 %2020
    %2022 = vrot.lane.b32.xlu0 %v1416, 53
    %v2023 = vpop.permute.xlu0 %2022
    %2026 = vrot.lane.b32.xlu0 %v1414, 47
    %v2027 = vpop.permute.xlu0 %2026
    %2028 = vrot.lane.b32.xlu0 %v1416, 47
    %v2029 = vpop.permute.xlu0 %2028
    %2032 = vrot.lane.b32.xlu0 %v1414, 41
    %v2033 = vpop.permute.xlu0 %2032
    %2034 = vrot.lane.b32.xlu0 %v1416, 41
    %v2035 = vpop.permute.xlu0 %2034
    %v2038 = vsel %vm1531, %v1979, %v1985
    %v2039 = vsel %vm1531, %v1981, %v1987
    %v2040 = vsel %vm1534, %v2038, %v1991
    %v2041 = vsel %vm1534, %v2039, %v1993
    %v2042 = vsel %vm1537, %v2040, %v1997
    %v2043 = vsel %vm1537, %v2041, %v1999
    %v2044 = vsel %vm1540, %v2042, %v2003
    %v2045 = vsel %vm1540, %v2043, %v2005
    %v2046 = vsel %vm1543, %v2044, %v2009
    %v2047 = vsel %vm1543, %v2045, %v2011
    %v2048 = vsel %vm1546, %v2046, %v2015
    %v2049 = vsel %vm1546, %v2047, %v2017
    %v2050 = vsel %vm1549, %v2048, %v2021
    %v2051 = vsel %vm1549, %v2049, %v2023
    %v2052 = vsel %vm1552, %v2050, %v2027
    %v2053 = vsel %vm1552, %v2051, %v2029
    %v2054 = vsel %vm1555, %v2052, %v2033
    %v2055 = vsel %vm1555, %v2053, %v2035
    %2056 = vrot.lane.b32.xlu0 %v1413, 70
    %v2057 = vpop.permute.xlu0 %2056
    %2058 = vrot.lane.b32.xlu0 %v1415, 70
    %v2059 = vpop.permute.xlu0 %2058
    %2062 = vrot.lane.b32.xlu0 %v1413, 64
    %v2063 = vpop.permute.xlu0 %2062
    %2064 = vrot.lane.b32.xlu0 %v1415, 64
    %v2065 = vpop.permute.xlu0 %2064
    %2068 = vrot.lane.b32.xlu0 %v1414, 52
    %v2069 = vpop.permute.xlu0 %2068
    %2070 = vrot.lane.b32.xlu0 %v1416, 52
    %v2071 = vpop.permute.xlu0 %2070
    %2074 = vrot.lane.b32.xlu0 %v1414, 46
    %v2075 = vpop.permute.xlu0 %2074
    %2076 = vrot.lane.b32.xlu0 %v1416, 46
    %v2077 = vpop.permute.xlu0 %2076
    %2080 = vrot.lane.b32.xlu0 %v1414, 40
    %v2081 = vpop.permute.xlu0 %2080
    %2082 = vrot.lane.b32.xlu0 %v1416, 40
    %v2083 = vpop.permute.xlu0 %2082
    %v2086 = vsel %vm1531, %v1733, %v1739
    %v2087 = vsel %vm1531, %v1735, %v1741
    %v2088 = vsel %vm1534, %v2086, %v1745
    %v2089 = vsel %vm1534, %v2087, %v1747
    %v2090 = vsel %vm1537, %v2088, %v1751
    %v2091 = vsel %vm1537, %v2089, %v1753
    %v2092 = vsel %vm1540, %v2090, %v2057
    %v2093 = vsel %vm1540, %v2091, %v2059
    %v2094 = vsel %vm1543, %v2092, %v2063
    %v2095 = vsel %vm1543, %v2093, %v2065
    %v2096 = vsel %vm1546, %v2094, %v1769
    %v2097 = vsel %vm1546, %v2095, %v1771
    %v2098 = vsel %vm1549, %v2096, %v2069
    %v2099 = vsel %vm1549, %v2097, %v2071
    %v2100 = vsel %vm1552, %v2098, %v2075
    %v2101 = vsel %vm1552, %v2099, %v2077
    %v2102 = vsel %vm1555, %v2100, %v2081
    %v2103 = vsel %vm1555, %v2101, %v2083
    %v2106 = vrot.slane %v1634, 6
    %v2107 = vrot.slane %v1635, 6
    %v2108 = vsel %vm224, %v2106, %v2107
    %v2113 = vrot.slane %v1712, 4
    %v2114 = vrot.slane %v1713, 4
    %v2115 = vsel %vm230, %v2113, %v2114
    %v2120 = vrot.slane %v1790, 2
    %v2121 = vrot.slane %v1791, 2
    %v2122 = vsel %vm236, %v2120, %v2121
    %v2127 = vrot.slane %v1916, 6
    %v2128 = vrot.slane %v1917, 6
    %v2129 = vsel %vm224, %v2127, %v2128
    %v2134 = vrot.slane %v1976, 4
    %v2135 = vrot.slane %v1977, 4
    %v2136 = vsel %vm230, %v2134, %v2135
    %v2141 = vrot.slane %v2054, 2
    %v2142 = vrot.slane %v2055, 2
    %v2143 = vsel %vm236, %v2141, %v2142
    %v2146 = vsel %vm224, %v1557, %v2106
    %v2147 = vsel %vm230, %v2108, %v2113
    %v2148 = vsel %vm236, %v2115, %v2120
    %v2149 = vsel %vm224, %v1869, %v2127
    %v2150 = vsel %vm230, %v2129, %v2134
    %v2151 = vsel %vm236, %v2136, %v2141
    %2154 = vrot.lane.b32.xlu0 %v1469, 122
    %v2155 = vpop.permute.xlu0 %2154
    %2156 = vrot.lane.b32.xlu0 %v1471, 122
    %v2157 = vpop.permute.xlu0 %2156
    %2160 = vrot.lane.b32.xlu0 %v1469, 116
    %v2161 = vpop.permute.xlu0 %2160
    %2162 = vrot.lane.b32.xlu0 %v1471, 116
    %v2163 = vpop.permute.xlu0 %2162
    %2166 = vrot.lane.b32.xlu0 %v1469, 110
    %v2167 = vpop.permute.xlu0 %2166
    %2168 = vrot.lane.b32.xlu0 %v1471, 110
    %v2169 = vpop.permute.xlu0 %2168
    %2172 = vrot.lane.b32.xlu0 %v1469, 104
    %v2173 = vpop.permute.xlu0 %2172
    %2174 = vrot.lane.b32.xlu0 %v1471, 104
    %v2175 = vpop.permute.xlu0 %2174
    %2178 = vrot.lane.b32.xlu0 %v1469, 98
    %v2179 = vpop.permute.xlu0 %2178
    %2180 = vrot.lane.b32.xlu0 %v1471, 98
    %v2181 = vpop.permute.xlu0 %2180
    %2184 = vrot.lane.b32.xlu0 %v1469, 92
    %v2185 = vpop.permute.xlu0 %2184
    %2186 = vrot.lane.b32.xlu0 %v1471, 92
    %v2187 = vpop.permute.xlu0 %2186
    %2190 = vrot.lane.b32.xlu0 %v1469, 86
    %v2191 = vpop.permute.xlu0 %2190
    %2192 = vrot.lane.b32.xlu0 %v1471, 86
    %v2193 = vpop.permute.xlu0 %2192
    %2198 = vrot.lane.b32.xlu0 %v1470, 80
    %v2199 = vpop.permute.xlu0 %2198
    %2200 = vrot.lane.b32.xlu0 %v1472, 80
    %v2201 = vpop.permute.xlu0 %2200
    %2204 = vrot.lane.b32.xlu0 %v1470, 74
    %v2205 = vpop.permute.xlu0 %2204
    %2206 = vrot.lane.b32.xlu0 %v1472, 74
    %v2207 = vpop.permute.xlu0 %2206
    %v2210 = vsel %vm1531, %v1469, %v2155
    %v2211 = vsel %vm1531, %v1471, %v2157
    %v2212 = vsel %vm1534, %v2210, %v2161
    %v2213 = vsel %vm1534, %v2211, %v2163
    %v2214 = vsel %vm1537, %v2212, %v2167
    %v2215 = vsel %vm1537, %v2213, %v2169
    %v2216 = vsel %vm1540, %v2214, %v2173
    %v2217 = vsel %vm1540, %v2215, %v2175
    %v2218 = vsel %vm1543, %v2216, %v2179
    %v2219 = vsel %vm1543, %v2217, %v2181
    %v2220 = vsel %vm1546, %v2218, %v2185
    %v2221 = vsel %vm1546, %v2219, %v2187
    %v2222 = vsel %vm1549, %v2220, %v2191
    %v2223 = vsel %vm1549, %v2221, %v2193
    %v2224 = vsel %vm1552, %v2222, %v2199
    %v2225 = vsel %vm1552, %v2223, %v2201
    %v2226 = vsel %vm1555, %v2224, %v2205
    %v2227 = vsel %vm1555, %v2225, %v2207
    %2228 = vrot.lane.b32.xlu0 %v1469, 127
    %v2229 = vpop.permute.xlu0 %2228
    %2230 = vrot.lane.b32.xlu0 %v1471, 127
    %v2231 = vpop.permute.xlu0 %2230
    %2234 = vrot.lane.b32.xlu0 %v1469, 121
    %v2235 = vpop.permute.xlu0 %2234
    %2236 = vrot.lane.b32.xlu0 %v1471, 121
    %v2237 = vpop.permute.xlu0 %2236
    %2240 = vrot.lane.b32.xlu0 %v1469, 115
    %v2241 = vpop.permute.xlu0 %2240
    %2242 = vrot.lane.b32.xlu0 %v1471, 115
    %v2243 = vpop.permute.xlu0 %2242
    %2246 = vrot.lane.b32.xlu0 %v1469, 109
    %v2247 = vpop.permute.xlu0 %2246
    %2248 = vrot.lane.b32.xlu0 %v1471, 109
    %v2249 = vpop.permute.xlu0 %2248
    %2252 = vrot.lane.b32.xlu0 %v1469, 103
    %v2253 = vpop.permute.xlu0 %2252
    %2254 = vrot.lane.b32.xlu0 %v1471, 103
    %v2255 = vpop.permute.xlu0 %2254
    %2258 = vrot.lane.b32.xlu0 %v1469, 97
    %v2259 = vpop.permute.xlu0 %2258
    %2260 = vrot.lane.b32.xlu0 %v1471, 97
    %v2261 = vpop.permute.xlu0 %2260
    %2264 = vrot.lane.b32.xlu0 %v1469, 91
    %v2265 = vpop.permute.xlu0 %2264
    %2266 = vrot.lane.b32.xlu0 %v1471, 91
    %v2267 = vpop.permute.xlu0 %2266
    %2270 = vrot.lane.b32.xlu0 %v1469, 85
    %v2271 = vpop.permute.xlu0 %2270
    %2272 = vrot.lane.b32.xlu0 %v1471, 85
    %v2273 = vpop.permute.xlu0 %2272
    %2276 = vrot.lane.b32.xlu0 %v1470, 79
    %v2277 = vpop.permute.xlu0 %2276
    %2278 = vrot.lane.b32.xlu0 %v1472, 79
    %v2279 = vpop.permute.xlu0 %2278
    %2282 = vrot.lane.b32.xlu0 %v1470, 73
    %v2283 = vpop.permute.xlu0 %2282
    %2284 = vrot.lane.b32.xlu0 %v1472, 73
    %v2285 = vpop.permute.xlu0 %2284
    %v2288 = vsel %vm1531, %v2229, %v2235
    %v2289 = vsel %vm1531, %v2231, %v2237
    %v2290 = vsel %vm1534, %v2288, %v2241
    %v2291 = vsel %vm1534, %v2289, %v2243
    %v2292 = vsel %vm1537, %v2290, %v2247
    %v2293 = vsel %vm1537, %v2291, %v2249
    %v2294 = vsel %vm1540, %v2292, %v2253
    %v2295 = vsel %vm1540, %v2293, %v2255
    %v2296 = vsel %vm1543, %v2294, %v2259
    %v2297 = vsel %vm1543, %v2295, %v2261
    %v2298 = vsel %vm1546, %v2296, %v2265
    %v2299 = vsel %vm1546, %v2297, %v2267
    %v2300 = vsel %vm1549, %v2298, %v2271
    %v2301 = vsel %vm1549, %v2299, %v2273
    %v2302 = vsel %vm1552, %v2300, %v2277
    %v2303 = vsel %vm1552, %v2301, %v2279
    %v2304 = vsel %vm1555, %v2302, %v2283
    %v2305 = vsel %vm1555, %v2303, %v2285
    %2306 = vrot.lane.b32.xlu0 %v1469, 126
    %v2307 = vpop.permute.xlu0 %2306
    %2308 = vrot.lane.b32.xlu0 %v1471, 126
    %v2309 = vpop.permute.xlu0 %2308
    %2312 = vrot.lane.b32.xlu0 %v1469, 120
    %v2313 = vpop.permute.xlu0 %2312
    %2314 = vrot.lane.b32.xlu0 %v1471, 120
    %v2315 = vpop.permute.xlu0 %2314
    %2318 = vrot.lane.b32.xlu0 %v1469, 114
    %v2319 = vpop.permute.xlu0 %2318
    %2320 = vrot.lane.b32.xlu0 %v1471, 114
    %v2321 = vpop.permute.xlu0 %2320
    %2324 = vrot.lane.b32.xlu0 %v1469, 108
    %v2325 = vpop.permute.xlu0 %2324
    %2326 = vrot.lane.b32.xlu0 %v1471, 108
    %v2327 = vpop.permute.xlu0 %2326
    %2330 = vrot.lane.b32.xlu0 %v1469, 102
    %v2331 = vpop.permute.xlu0 %2330
    %2332 = vrot.lane.b32.xlu0 %v1471, 102
    %v2333 = vpop.permute.xlu0 %2332
    %2336 = vrot.lane.b32.xlu0 %v1469, 96
    %v2337 = vpop.permute.xlu0 %2336
    %2338 = vrot.lane.b32.xlu0 %v1471, 96
    %v2339 = vpop.permute.xlu0 %2338
    %2342 = vrot.lane.b32.xlu0 %v1469, 90
    %v2343 = vpop.permute.xlu0 %2342
    %2344 = vrot.lane.b32.xlu0 %v1471, 90
    %v2345 = vpop.permute.xlu0 %2344
    %2348 = vrot.lane.b32.xlu0 %v1469, 84
    %v2349 = vpop.permute.xlu0 %2348
    %2350 = vrot.lane.b32.xlu0 %v1471, 84
    %v2351 = vpop.permute.xlu0 %2350
    %2354 = vrot.lane.b32.xlu0 %v1470, 78
    %v2355 = vpop.permute.xlu0 %2354
    %2356 = vrot.lane.b32.xlu0 %v1472, 78
    %v2357 = vpop.permute.xlu0 %2356
    %2360 = vrot.lane.b32.xlu0 %v1470, 72
    %v2361 = vpop.permute.xlu0 %2360
    %2362 = vrot.lane.b32.xlu0 %v1472, 72
    %v2363 = vpop.permute.xlu0 %2362
    %v2366 = vsel %vm1531, %v2307, %v2313
    %v2367 = vsel %vm1531, %v2309, %v2315
    %v2368 = vsel %vm1534, %v2366, %v2319
    %v2369 = vsel %vm1534, %v2367, %v2321
    %v2370 = vsel %vm1537, %v2368, %v2325
    %v2371 = vsel %vm1537, %v2369, %v2327
    %v2372 = vsel %vm1540, %v2370, %v2331
    %v2373 = vsel %vm1540, %v2371, %v2333
    %v2374 = vsel %vm1543, %v2372, %v2337
    %v2375 = vsel %vm1543, %v2373, %v2339
    %v2376 = vsel %vm1546, %v2374, %v2343
    %v2377 = vsel %vm1546, %v2375, %v2345
    %v2378 = vsel %vm1549, %v2376, %v2349
    %v2379 = vsel %vm1549, %v2377, %v2351
    %v2380 = vsel %vm1552, %v2378, %v2355
    %v2381 = vsel %vm1552, %v2379, %v2357
    %v2382 = vsel %vm1555, %v2380, %v2361
    %v2383 = vsel %vm1555, %v2381, %v2363
    %2384 = vrot.lane.b32.xlu0 %v1469, 112
    %v2385 = vpop.permute.xlu0 %2384
    %2386 = vrot.lane.b32.xlu0 %v1471, 112
    %v2387 = vpop.permute.xlu0 %2386
    %2390 = vrot.lane.b32.xlu0 %v1469, 106
    %v2391 = vpop.permute.xlu0 %2390
    %2392 = vrot.lane.b32.xlu0 %v1471, 106
    %v2393 = vpop.permute.xlu0 %2392
    %2396 = vrot.lane.b32.xlu0 %v1469, 100
    %v2397 = vpop.permute.xlu0 %2396
    %2398 = vrot.lane.b32.xlu0 %v1471, 100
    %v2399 = vpop.permute.xlu0 %2398
    %2402 = vrot.lane.b32.xlu0 %v1469, 94
    %v2403 = vpop.permute.xlu0 %2402
    %2404 = vrot.lane.b32.xlu0 %v1471, 94
    %v2405 = vpop.permute.xlu0 %2404
    %2408 = vrot.lane.b32.xlu0 %v1469, 88
    %v2409 = vpop.permute.xlu0 %2408
    %2410 = vrot.lane.b32.xlu0 %v1471, 88
    %v2411 = vpop.permute.xlu0 %2410
    %2414 = vrot.lane.b32.xlu0 %v1469, 82
    %v2415 = vpop.permute.xlu0 %2414
    %2416 = vrot.lane.b32.xlu0 %v1471, 82
    %v2417 = vpop.permute.xlu0 %2416
    %2420 = vrot.lane.b32.xlu0 %v1469, 76
    %v2421 = vpop.permute.xlu0 %2420
    %2422 = vrot.lane.b32.xlu0 %v1471, 76
    %v2423 = vpop.permute.xlu0 %2422
    %2426 = vrot.lane.b32.xlu0 %v1470, 70
    %v2427 = vpop.permute.xlu0 %2426
    %2428 = vrot.lane.b32.xlu0 %v1472, 70
    %v2429 = vpop.permute.xlu0 %2428
    %2432 = vrot.lane.b32.xlu0 %v1470, 64
    %v2433 = vpop.permute.xlu0 %2432
    %2434 = vrot.lane.b32.xlu0 %v1472, 64
    %v2435 = vpop.permute.xlu0 %2434
    %2438 = vrot.lane.b32.xlu0 %v1470, 58
    %v2439 = vpop.permute.xlu0 %2438
    %2440 = vrot.lane.b32.xlu0 %v1472, 58
    %v2441 = vpop.permute.xlu0 %2440
    %v2444 = vsel %vm1531, %v2385, %v2391
    %v2445 = vsel %vm1531, %v2387, %v2393
    %v2446 = vsel %vm1534, %v2444, %v2397
    %v2447 = vsel %vm1534, %v2445, %v2399
    %v2448 = vsel %vm1537, %v2446, %v2403
    %v2449 = vsel %vm1537, %v2447, %v2405
    %v2450 = vsel %vm1540, %v2448, %v2409
    %v2451 = vsel %vm1540, %v2449, %v2411
    %v2452 = vsel %vm1543, %v2450, %v2415
    %v2453 = vsel %vm1543, %v2451, %v2417
    %v2454 = vsel %vm1546, %v2452, %v2421
    %v2455 = vsel %vm1546, %v2453, %v2423
    %v2456 = vsel %vm1549, %v2454, %v2427
    %v2457 = vsel %vm1549, %v2455, %v2429
    %v2458 = vsel %vm1552, %v2456, %v2433
    %v2459 = vsel %vm1552, %v2457, %v2435
    %v2460 = vsel %vm1555, %v2458, %v2439
    %v2461 = vsel %vm1555, %v2459, %v2441
    %2462 = vrot.lane.b32.xlu0 %v1469, 111
    %v2463 = vpop.permute.xlu0 %2462
    %2464 = vrot.lane.b32.xlu0 %v1471, 111
    %v2465 = vpop.permute.xlu0 %2464
    %2468 = vrot.lane.b32.xlu0 %v1469, 105
    %v2469 = vpop.permute.xlu0 %2468
    %2470 = vrot.lane.b32.xlu0 %v1471, 105
    %v2471 = vpop.permute.xlu0 %2470
    %2474 = vrot.lane.b32.xlu0 %v1469, 99
    %v2475 = vpop.permute.xlu0 %2474
    %2476 = vrot.lane.b32.xlu0 %v1471, 99
    %v2477 = vpop.permute.xlu0 %2476
    %2480 = vrot.lane.b32.xlu0 %v1469, 93
    %v2481 = vpop.permute.xlu0 %2480
    %2482 = vrot.lane.b32.xlu0 %v1471, 93
    %v2483 = vpop.permute.xlu0 %2482
    %2486 = vrot.lane.b32.xlu0 %v1469, 87
    %v2487 = vpop.permute.xlu0 %2486
    %2488 = vrot.lane.b32.xlu0 %v1471, 87
    %v2489 = vpop.permute.xlu0 %2488
    %2492 = vrot.lane.b32.xlu0 %v1469, 81
    %v2493 = vpop.permute.xlu0 %2492
    %2494 = vrot.lane.b32.xlu0 %v1471, 81
    %v2495 = vpop.permute.xlu0 %2494
    %2498 = vrot.lane.b32.xlu0 %v1469, 75
    %v2499 = vpop.permute.xlu0 %2498
    %2500 = vrot.lane.b32.xlu0 %v1471, 75
    %v2501 = vpop.permute.xlu0 %2500
    %2504 = vrot.lane.b32.xlu0 %v1470, 69
    %v2505 = vpop.permute.xlu0 %2504
    %2506 = vrot.lane.b32.xlu0 %v1472, 69
    %v2507 = vpop.permute.xlu0 %2506
    %2510 = vrot.lane.b32.xlu0 %v1470, 63
    %v2511 = vpop.permute.xlu0 %2510
    %2512 = vrot.lane.b32.xlu0 %v1472, 63
    %v2513 = vpop.permute.xlu0 %2512
    %2516 = vrot.lane.b32.xlu0 %v1470, 57
    %v2517 = vpop.permute.xlu0 %2516
    %2518 = vrot.lane.b32.xlu0 %v1472, 57
    %v2519 = vpop.permute.xlu0 %2518
    %v2522 = vsel %vm1531, %v2463, %v2469
    %v2523 = vsel %vm1531, %v2465, %v2471
    %v2524 = vsel %vm1534, %v2522, %v2475
    %v2525 = vsel %vm1534, %v2523, %v2477
    %v2526 = vsel %vm1537, %v2524, %v2481
    %v2527 = vsel %vm1537, %v2525, %v2483
    %v2528 = vsel %vm1540, %v2526, %v2487
    %v2529 = vsel %vm1540, %v2527, %v2489
    %v2530 = vsel %vm1543, %v2528, %v2493
    %v2531 = vsel %vm1543, %v2529, %v2495
    %v2532 = vsel %vm1546, %v2530, %v2499
    %v2533 = vsel %vm1546, %v2531, %v2501
    %v2534 = vsel %vm1549, %v2532, %v2505
    %v2535 = vsel %vm1549, %v2533, %v2507
    %v2536 = vsel %vm1552, %v2534, %v2511
    %v2537 = vsel %vm1552, %v2535, %v2513
    %v2538 = vsel %vm1555, %v2536, %v2517
    %v2539 = vsel %vm1555, %v2537, %v2519
    %2540 = vrot.lane.b32.xlu0 %v1469, 80
    %v2541 = vpop.permute.xlu0 %2540
    %2542 = vrot.lane.b32.xlu0 %v1471, 80
    %v2543 = vpop.permute.xlu0 %2542
    %2546 = vrot.lane.b32.xlu0 %v1469, 74
    %v2547 = vpop.permute.xlu0 %2546
    %2548 = vrot.lane.b32.xlu0 %v1471, 74
    %v2549 = vpop.permute.xlu0 %2548
    %2552 = vrot.lane.b32.xlu0 %v1470, 68
    %v2553 = vpop.permute.xlu0 %2552
    %2554 = vrot.lane.b32.xlu0 %v1472, 68
    %v2555 = vpop.permute.xlu0 %2554
    %2558 = vrot.lane.b32.xlu0 %v1470, 62
    %v2559 = vpop.permute.xlu0 %2558
    %2560 = vrot.lane.b32.xlu0 %v1472, 62
    %v2561 = vpop.permute.xlu0 %2560
    %2564 = vrot.lane.b32.xlu0 %v1470, 56
    %v2565 = vpop.permute.xlu0 %2564
    %2566 = vrot.lane.b32.xlu0 %v1472, 56
    %v2567 = vpop.permute.xlu0 %2566
    %v2570 = vsel %vm1531, %v2167, %v2173
    %v2571 = vsel %vm1531, %v2169, %v2175
    %v2572 = vsel %vm1534, %v2570, %v2179
    %v2573 = vsel %vm1534, %v2571, %v2181
    %v2574 = vsel %vm1537, %v2572, %v2185
    %v2575 = vsel %vm1537, %v2573, %v2187
    %v2576 = vsel %vm1540, %v2574, %v2191
    %v2577 = vsel %vm1540, %v2575, %v2193
    %v2578 = vsel %vm1543, %v2576, %v2541
    %v2579 = vsel %vm1543, %v2577, %v2543
    %v2580 = vsel %vm1546, %v2578, %v2547
    %v2581 = vsel %vm1546, %v2579, %v2549
    %v2582 = vsel %vm1549, %v2580, %v2553
    %v2583 = vsel %vm1549, %v2581, %v2555
    %v2584 = vsel %vm1552, %v2582, %v2559
    %v2585 = vsel %vm1552, %v2583, %v2561
    %v2586 = vsel %vm1555, %v2584, %v2565
    %v2587 = vsel %vm1555, %v2585, %v2567
    %2588 = vrot.lane.b32.xlu0 %v1469, 78
    %v2589 = vpop.permute.xlu0 %2588
    %2590 = vrot.lane.b32.xlu0 %v1471, 78
    %v2591 = vpop.permute.xlu0 %2590
    %2594 = vrot.lane.b32.xlu0 %v1469, 72
    %v2595 = vpop.permute.xlu0 %2594
    %2596 = vrot.lane.b32.xlu0 %v1471, 72
    %v2597 = vpop.permute.xlu0 %2596
    %2600 = vrot.lane.b32.xlu0 %v1469, 66
    %v2601 = vpop.permute.xlu0 %2600
    %2602 = vrot.lane.b32.xlu0 %v1471, 66
    %v2603 = vpop.permute.xlu0 %2602
    %2606 = vrot.lane.b32.xlu0 %v1470, 60
    %v2607 = vpop.permute.xlu0 %2606
    %2608 = vrot.lane.b32.xlu0 %v1472, 60
    %v2609 = vpop.permute.xlu0 %2608
    %2612 = vrot.lane.b32.xlu0 %v1470, 54
    %v2613 = vpop.permute.xlu0 %2612
    %2614 = vrot.lane.b32.xlu0 %v1472, 54
    %v2615 = vpop.permute.xlu0 %2614
    %2618 = vrot.lane.b32.xlu0 %v1470, 48
    %v2619 = vpop.permute.xlu0 %2618
    %2620 = vrot.lane.b32.xlu0 %v1472, 48
    %v2621 = vpop.permute.xlu0 %2620
    %2624 = vrot.lane.b32.xlu0 %v1470, 42
    %v2625 = vpop.permute.xlu0 %2624
    %2626 = vrot.lane.b32.xlu0 %v1472, 42
    %v2627 = vpop.permute.xlu0 %2626
    %v2630 = vsel %vm1531, %v2337, %v2343
    %v2631 = vsel %vm1531, %v2339, %v2345
    %v2632 = vsel %vm1534, %v2630, %v2349
    %v2633 = vsel %vm1534, %v2631, %v2351
    %v2634 = vsel %vm1537, %v2632, %v2589
    %v2635 = vsel %vm1537, %v2633, %v2591
    %v2636 = vsel %vm1540, %v2634, %v2595
    %v2637 = vsel %vm1540, %v2635, %v2597
    %v2638 = vsel %vm1543, %v2636, %v2601
    %v2639 = vsel %vm1543, %v2637, %v2603
    %v2640 = vsel %vm1546, %v2638, %v2607
    %v2641 = vsel %vm1546, %v2639, %v2609
    %v2642 = vsel %vm1549, %v2640, %v2613
    %v2643 = vsel %vm1549, %v2641, %v2615
    %v2644 = vsel %vm1552, %v2642, %v2619
    %v2645 = vsel %vm1552, %v2643, %v2621
    %v2646 = vsel %vm1555, %v2644, %v2625
    %v2647 = vsel %vm1555, %v2645, %v2627
    %2648 = vrot.lane.b32.xlu0 %v1469, 95
    %v2649 = vpop.permute.xlu0 %2648
    %2650 = vrot.lane.b32.xlu0 %v1471, 95
    %v2651 = vpop.permute.xlu0 %2650
    %2654 = vrot.lane.b32.xlu0 %v1469, 89
    %v2655 = vpop.permute.xlu0 %2654
    %2656 = vrot.lane.b32.xlu0 %v1471, 89
    %v2657 = vpop.permute.xlu0 %2656
    %2660 = vrot.lane.b32.xlu0 %v1469, 83
    %v2661 = vpop.permute.xlu0 %2660
    %2662 = vrot.lane.b32.xlu0 %v1471, 83
    %v2663 = vpop.permute.xlu0 %2662
    %2666 = vrot.lane.b32.xlu0 %v1469, 77
    %v2667 = vpop.permute.xlu0 %2666
    %2668 = vrot.lane.b32.xlu0 %v1471, 77
    %v2669 = vpop.permute.xlu0 %2668
    %2672 = vrot.lane.b32.xlu0 %v1469, 71
    %v2673 = vpop.permute.xlu0 %2672
    %2674 = vrot.lane.b32.xlu0 %v1471, 71
    %v2675 = vpop.permute.xlu0 %2674
    %2678 = vrot.lane.b32.xlu0 %v1469, 65
    %v2679 = vpop.permute.xlu0 %2678
    %2680 = vrot.lane.b32.xlu0 %v1471, 65
    %v2681 = vpop.permute.xlu0 %2680
    %2684 = vrot.lane.b32.xlu0 %v1470, 59
    %v2685 = vpop.permute.xlu0 %2684
    %2686 = vrot.lane.b32.xlu0 %v1472, 59
    %v2687 = vpop.permute.xlu0 %2686
    %2690 = vrot.lane.b32.xlu0 %v1470, 53
    %v2691 = vpop.permute.xlu0 %2690
    %2692 = vrot.lane.b32.xlu0 %v1472, 53
    %v2693 = vpop.permute.xlu0 %2692
    %2696 = vrot.lane.b32.xlu0 %v1470, 47
    %v2697 = vpop.permute.xlu0 %2696
    %2698 = vrot.lane.b32.xlu0 %v1472, 47
    %v2699 = vpop.permute.xlu0 %2698
    %2702 = vrot.lane.b32.xlu0 %v1470, 41
    %v2703 = vpop.permute.xlu0 %2702
    %2704 = vrot.lane.b32.xlu0 %v1472, 41
    %v2705 = vpop.permute.xlu0 %2704
    %v2708 = vsel %vm1531, %v2649, %v2655
    %v2709 = vsel %vm1531, %v2651, %v2657
    %v2710 = vsel %vm1534, %v2708, %v2661
    %v2711 = vsel %vm1534, %v2709, %v2663
    %v2712 = vsel %vm1537, %v2710, %v2667
    %v2713 = vsel %vm1537, %v2711, %v2669
    %v2714 = vsel %vm1540, %v2712, %v2673
    %v2715 = vsel %vm1540, %v2713, %v2675
    %v2716 = vsel %vm1543, %v2714, %v2679
    %v2717 = vsel %vm1543, %v2715, %v2681
    %v2718 = vsel %vm1546, %v2716, %v2685
    %v2719 = vsel %vm1546, %v2717, %v2687
    %v2720 = vsel %vm1549, %v2718, %v2691
    %v2721 = vsel %vm1549, %v2719, %v2693
    %v2722 = vsel %vm1552, %v2720, %v2697
    %v2723 = vsel %vm1552, %v2721, %v2699
    %v2724 = vsel %vm1555, %v2722, %v2703
    %v2725 = vsel %vm1555, %v2723, %v2705
    %2726 = vrot.lane.b32.xlu0 %v1469, 70
    %v2727 = vpop.permute.xlu0 %2726
    %2728 = vrot.lane.b32.xlu0 %v1471, 70
    %v2729 = vpop.permute.xlu0 %2728
    %2732 = vrot.lane.b32.xlu0 %v1469, 64
    %v2733 = vpop.permute.xlu0 %2732
    %2734 = vrot.lane.b32.xlu0 %v1471, 64
    %v2735 = vpop.permute.xlu0 %2734
    %2738 = vrot.lane.b32.xlu0 %v1470, 52
    %v2739 = vpop.permute.xlu0 %2738
    %2740 = vrot.lane.b32.xlu0 %v1472, 52
    %v2741 = vpop.permute.xlu0 %2740
    %2744 = vrot.lane.b32.xlu0 %v1470, 46
    %v2745 = vpop.permute.xlu0 %2744
    %2746 = vrot.lane.b32.xlu0 %v1472, 46
    %v2747 = vpop.permute.xlu0 %2746
    %2750 = vrot.lane.b32.xlu0 %v1470, 40
    %v2751 = vpop.permute.xlu0 %2750
    %2752 = vrot.lane.b32.xlu0 %v1472, 40
    %v2753 = vpop.permute.xlu0 %2752
    %v2756 = vsel %vm1531, %v2403, %v2409
    %v2757 = vsel %vm1531, %v2405, %v2411
    %v2758 = vsel %vm1534, %v2756, %v2415
    %v2759 = vsel %vm1534, %v2757, %v2417
    %v2760 = vsel %vm1537, %v2758, %v2421
    %v2761 = vsel %vm1537, %v2759, %v2423
    %v2762 = vsel %vm1540, %v2760, %v2727
    %v2763 = vsel %vm1540, %v2761, %v2729
    %v2764 = vsel %vm1543, %v2762, %v2733
    %v2765 = vsel %vm1543, %v2763, %v2735
    %v2766 = vsel %vm1546, %v2764, %v2439
    %v2767 = vsel %vm1546, %v2765, %v2441
    %v2768 = vsel %vm1549, %v2766, %v2739
    %v2769 = vsel %vm1549, %v2767, %v2741
    %v2770 = vsel %vm1552, %v2768, %v2745
    %v2771 = vsel %vm1552, %v2769, %v2747
    %v2772 = vsel %vm1555, %v2770, %v2751
    %v2773 = vsel %vm1555, %v2771, %v2753
    %v2776 = vrot.slane %v2304, 6
    %v2777 = vrot.slane %v2305, 6
    %v2778 = vsel %vm224, %v2776, %v2777
    %v2783 = vrot.slane %v2382, 4
    %v2784 = vrot.slane %v2383, 4
    %v2785 = vsel %vm230, %v2783, %v2784
    %v2790 = vrot.slane %v2460, 2
    %v2791 = vrot.slane %v2461, 2
    %v2792 = vsel %vm236, %v2790, %v2791
    %v2796 = vrot.slane %v2586, 6
    %v2797 = vrot.slane %v2587, 6
    %v2798 = vsel %vm224, %v2796, %v2797
    %v2803 = vrot.slane %v2646, 4
    %v2804 = vrot.slane %v2647, 4
    %v2805 = vsel %vm230, %v2803, %v2804
    %v2810 = vrot.slane %v2724, 2
    %v2811 = vrot.slane %v2725, 2
    %v2812 = vsel %vm236, %v2810, %v2811
    %v2814 = vsel %vm224, %v2227, %v2776
    %v2815 = vsel %vm230, %v2778, %v2783
    %v2816 = vsel %vm236, %v2785, %v2790
    %v2817 = vsel %vm224, %v2539, %v2796
    %v2818 = vsel %vm230, %v2798, %v2803
    %v2819 = vsel %vm236, %v2805, %v2810
    %2830 = vrot.lane.b32.xlu0 %v2226, 100
    %v2831 = vpop.permute.xlu0 %2830
    %2832 = vrot.lane.b32.xlu0 %v2814, 100
    %v2833 = vpop.permute.xlu0 %2832
    %2834 = vrot.lane.b32.xlu0 %v2815, 100
    %v2835 = vpop.permute.xlu0 %2834
    %2836 = vrot.lane.b32.xlu0 %v2816, 100
    %v2837 = vpop.permute.xlu0 %2836
    %2838 = vrot.lane.b32.xlu0 %v2792, 100
    %v2839 = vpop.permute.xlu0 %2838
    %2840 = vrot.lane.b32.xlu0 %v2538, 100
    %v2841 = vpop.permute.xlu0 %2840
    %2842 = vrot.lane.b32.xlu0 %v2817, 100
    %v2843 = vpop.permute.xlu0 %2842
    %2844 = vrot.lane.b32.xlu0 %v2818, 100
    %v2845 = vpop.permute.xlu0 %2844
    %2846 = vrot.lane.b32.xlu0 %v2819, 100
    %v2847 = vpop.permute.xlu0 %2846
    %2848 = vrot.lane.b32.xlu0 %v2812, 100
    %v2849 = vpop.permute.xlu0 %2848
    %2850 = vrot.lane.b32.xlu0 %v2772, 100
    %v2851 = vpop.permute.xlu0 %2850
    %2852 = vrot.lane.b32.xlu0 %v2773, 100
    %v2853 = vpop.permute.xlu0 %2852
    %vm2866 = vcmask 818176
    %v2867 = vsel %vm2866, %v1556, %v2831
    %v2868 = vsel %vm2866, %v2146, %v2833
    %v2869 = vsel %vm2866, %v2147, %v2835
    %v2870 = vsel %vm2866, %v2148, %v2837
    %v2871 = vsel %vm2866, %v2122, %v2839
    %v2872 = vsel %vm2866, %v1868, %v2841
    %v2873 = vsel %vm2866, %v2149, %v2843
    %v2874 = vsel %vm2866, %v2150, %v2845
    %v2875 = vsel %vm2866, %v2151, %v2847
    %v2876 = vsel %vm2866, %v2143, %v2849
    %v2877 = vsel %vm2866, %v2102, %v2851
    %v2878 = vsel %vm2866, %v2103, %v2853
    %v2879 = vld [vmem:[%s4] sm:$0xff]
    %v2880 = vld [vmem:[%s4 + $0x8] sm:$0xff]
    %v2881 = vld [vmem:[%s4 + $0x10] sm:$0xf]
    %2883 = vset.pattern.permute.xlu0 0
    %2884 = vperm.xlu0 %2883, %v2879
    %v2885 = vpop.permute.xlu0 %2884
    %2888 = vset.pattern.permute.xlu0 0
    %2889 = vperm.xlu0 %2888, %v2880
    %v2890 = vpop.permute.xlu0 %2889
    %2893 = vset.pattern.permute.xlu0 0
    %2894 = vperm.xlu0 %2893, %v2881
    %v2895 = vpop.permute.xlu0 %2894
    %v2898 = vsel %vm1555, %v112, 0
    %v2901 = vsel %vm1555, %v113, 0
    %v2904 = vsel %vm1555, %v114, 0
    %v2907 = vsel %vm224, %v2878, 0
    %v2909 = vsel %vm224, %v2853, 0
    %2911 = vmatpush.msra.mxu0 0.0
    %2912 = vmatpush.msra.mxu0 0.0
    %2913 = vmatpush.msra.mxu0 0.0
    %2914 = vmatpush.msra.mxu0 0.0
    %2915 = vmatpush.msra.mxu0 %v2907
    %2916 = vmatpush.msra.mxu0 %v2877
    %2917 = vmatpush.msra.mxu0 %v2876
    %2918 = vmatpush.msra.mxu0 %v2875
    %2919 = vmatpush.msra.mxu0 %v2874
    %2920 = vmatpush.msra.mxu0 %v2873
    %2921 = vmatpush.msra.mxu0 %v2872
    %2922 = vmatpush.msra.mxu0 %v2871
    %2923 = vmatpush.msra.mxu0 %v2870
    %2924 = vmatpush.msra.mxu0 %v2869
    %2925 = vmatpush.msra.mxu0 %v2868
    %2926 = vmatpush.msra.mxu0 %v2867
    %2927 = vmatmul.f32.gmra.mxu0 %v2898
    %v2928 = vpop.f32.mrf.mxu0
    %v2929 = vadd.f32 %v2885, %v2928
    %2930 = vmatmul.f32.gmra.mxu0 %v2901
    %v2931 = vpop.f32.mrf.mxu0
    %v2932 = vadd.f32 %v2890, %v2931
    %2933 = vmatmul.f32.gmra.mxu0 %v2904
    %v2934 = vpop.f32.mrf.mxu0
    %v2935 = vadd.f32 %v2895, %v2934
    %2936 = vdwg.mxu0
    %2937 = vmatpush.msra.mxu0 0.0
    %2938 = vmatpush.msra.mxu0 0.0
    %2939 = vmatpush.msra.mxu0 0.0
    %2940 = vmatpush.msra.mxu0 0.0
    %2941 = vmatpush.msra.mxu0 %v2909
    %2942 = vmatpush.msra.mxu0 %v2851
    %2943 = vmatpush.msra.mxu0 %v2849
    %2944 = vmatpush.msra.mxu0 %v2847
    %2945 = vmatpush.msra.mxu0 %v2845
    %2946 = vmatpush.msra.mxu0 %v2843
    %2947 = vmatpush.msra.mxu0 %v2841
    %2948 = vmatpush.msra.mxu0 %v2839
    %2949 = vmatpush.msra.mxu0 %v2837
    %2950 = vmatpush.msra.mxu0 %v2835
    %2951 = vmatpush.msra.mxu0 %v2833
    %2952 = vmatpush.msra.mxu0 %v2831
    %2953 = vmatmul.f32.gmra.mxu0 %v2898
    %v2954 = vpop.f32.mrf.mxu0
    %v2955 = vadd.f32 %v2885, %v2954
    %2956 = vmatmul.f32.gmra.mxu0 %v2901
    %v2957 = vpop.f32.mrf.mxu0
    %v2958 = vadd.f32 %v2890, %v2957
    %2959 = vmatmul.f32.gmra.mxu0 %v2904
    %v2960 = vpop.f32.mrf.mxu0
    %v2961 = vadd.f32 %v2895, %v2960
    %2962 = vdwg.mxu0
    %v2964 = vrot.slane %v2929, 1
    %2965 = vrot.lane.b32.xlu0 %v2964, 100
    %v2966 = vpop.permute.xlu0 %2965
    %v2968 = vrot.slane %v2929, 2
    %2969 = vrot.lane.b32.xlu0 %v2968, 72
    %v2970 = vpop.permute.xlu0 %2969
    %v2972 = vrot.slane %v2929, 3
    %2973 = vrot.lane.b32.xlu0 %v2972, 44
    %v2974 = vpop.permute.xlu0 %2973
    %v2976 = vrot.slane %v2929, 4
    %2977 = vrot.lane.b32.xlu0 %v2976, 16
    %v2978 = vpop.permute.xlu0 %2977
    %v2980 = vrot.slane %v2929, 5
    %2981 = vrot.lane.b32.xlu0 %v2980, 116
    %v2982 = vpop.permute.xlu0 %2981
    %v2984 = vrot.slane %v2929, 6
    %2985 = vrot.lane.b32.xlu0 %v2984, 88
    %v2986 = vpop.permute.xlu0 %2985
    %v2988 = vrot.slane %v2929, 7
    %2989 = vrot.lane.b32.xlu0 %v2988, 60
    %v2990 = vpop.permute.xlu0 %2989
    %2993 = vrot.lane.b32.xlu0 %v2932, 32
    %v2994 = vpop.permute.xlu0 %2993
    %v2996 = vrot.slane %v2932, 1
    %2997 = vrot.lane.b32.xlu0 %v2996, 4
    %v2998 = vpop.permute.xlu0 %2997
    %v3000 = vrot.slane %v2932, 2
    %3001 = vrot.lane.b32.xlu0 %v3000, 104
    %v3002 = vpop.permute.xlu0 %3001
    %v3004 = vrot.slane %v2932, 3
    %3005 = vrot.lane.b32.xlu0 %v3004, 76
    %v3006 = vpop.permute.xlu0 %3005
    %v3008 = vrot.slane %v2932, 4
    %3009 = vrot.lane.b32.xlu0 %v3008, 48
    %v3010 = vpop.permute.xlu0 %3009
    %v3012 = vrot.slane %v2932, 5
    %3013 = vrot.lane.b32.xlu0 %v3012, 20
    %v3014 = vpop.permute.xlu0 %3013
    %v3016 = vrot.slane %v2932, 6
    %3017 = vrot.lane.b32.xlu0 %v3016, 120
    %v3018 = vpop.permute.xlu0 %3017
    %v3020 = vrot.slane %v2932, 7
    %3021 = vrot.lane.b32.xlu0 %v3020, 92
    %v3022 = vpop.permute.xlu0 %3021
    %v3024 = vsel %vm2866, %v2929, %v2966
    %vm3025 = vcmask 588800
    %v3026 = vsel %vm3025, %v2966, %v2970
    %vm3027 = vcmask 359424
    %v3028 = vsel %vm3027, %v2970, %v2974
    %vm3029 = vcmask 130048
    %v3030 = vsel %vm3029, %v2974, %v2978
    %vm3031 = vcmask 949248
    %v3032 = vsel %vm3031, %v3030, %v2982
    %vm3033 = vcmask 719872
    %v3034 = vsel %vm3033, %v2982, %v2986
    %v3035 = vsel %vm1546, %v2986, %v2990
    %vm3036 = vcmask 261120
    %v3037 = vsel %vm3036, %v2990, %v2994
    %vm3038 = vcmask 31744
    %v3039 = vsel %vm3038, %v2994, %v2998
    %vm3040 = vcmask 850944
    %v3041 = vsel %vm3040, %v3039, %v3002
    %vm3042 = vcmask 621568
    %v3043 = vsel %vm3042, %v3002, %v3006
    %vm3044 = vcmask 392192
    %v3045 = vsel %vm3044, %v3006, %v3010
    %v3046 = vsel %vm1534, %v3010, %v3014
    %vm3047 = vcmask 982016
    %v3048 = vsel %vm3047, %v3046, %v3018
    %vm3049 = vcmask 752640
    %v3050 = vsel %vm3049, %v3018, %v3022
    %v3052 = vrot.slane %v2935, 1
    %3053 = vrot.lane.b32.xlu0 %v3052, 100
    %v3054 = vpop.permute.xlu0 %3053
    %v3056 = vrot.slane %v2935, 2
    %3057 = vrot.lane.b32.xlu0 %v3056, 72
    %v3058 = vpop.permute.xlu0 %3057
    %v3060 = vrot.slane %v2935, 3
    %3061 = vrot.lane.b32.xlu0 %v3060, 44
    %v3062 = vpop.permute.xlu0 %3061
    %v3064 = vsel %vm2866, %v2935, %v3054
    %v3065 = vsel %vm3025, %v3054, %v3058
    %v3066 = vsel %vm3027, %v3058, %v3062
    %3070 = vrot.lane.b32.xlu0 %v3064, 64
    %v3071 = vpop.permute.xlu0 %3070
    %3072 = vrot.lane.b32.xlu0 %v3065, 64
    %v3073 = vpop.permute.xlu0 %3072
    %3074 = vrot.lane.b32.xlu0 %v3066, 64
    %v3075 = vpop.permute.xlu0 %3074
    %3076 = vrot.lane.b32.xlu0 %v3062, 64
    %v3077 = vpop.permute.xlu0 %3076
    %v3078 = vsel %vm917, %v3071, %v3073
    %v3079 = vsel %vm917, %v3073, %v3075
    %v3080 = vsel %vm917, %v3075, %v3077
    %v3085 = vsel %vm917, %v3022, %v3071
    %3087 = vrot.lane.b32.xlu0 %v2929, 28
    %v3088 = vpop.permute.xlu0 %3087
    %3089 = vrot.lane.b32.xlu0 %v2955, 28
    %v3090 = vpop.permute.xlu0 %3089
    %vm3091 = vcmask 228352
    %v3092 = vsel %vm3091, %v3088, %v3090
    %v3094 = vrot.slane %v2955, 1
    %v3097 = vrot.slane %v2955, 2
    %3098 = vrot.lane.b32.xlu0 %v2968, 100
    %v3099 = vpop.permute.xlu0 %3098
    %3100 = vrot.lane.b32.xlu0 %v3097, 100
    %v3101 = vpop.permute.xlu0 %3100
    %v3102 = vsel %vm2866, %v3099, %v3101
    %v3105 = vrot.slane %v2955, 3
    %3106 = vrot.lane.b32.xlu0 %v2972, 72
    %v3107 = vpop.permute.xlu0 %3106
    %3108 = vrot.lane.b32.xlu0 %v3105, 72
    %v3109 = vpop.permute.xlu0 %3108
    %v3110 = vsel %vm3025, %v3107, %v3109
    %v3113 = vrot.slane %v2955, 4
    %3114 = vrot.lane.b32.xlu0 %v2976, 44
    %v3115 = vpop.permute.xlu0 %3114
    %3116 = vrot.lane.b32.xlu0 %v3113, 44
    %v3117 = vpop.permute.xlu0 %3116
    %v3118 = vsel %vm3027, %v3115, %v3117
    %v3120 = vrot.slane %v2955, 5
    %3121 = vrot.lane.b32.xlu0 %v2980, 16
    %v3122 = vpop.permute.xlu0 %3121
    %3123 = vrot.lane.b32.xlu0 %v3120, 16
    %v3124 = vpop.permute.xlu0 %3123
    %v3125 = vsel %vm3029, %v3122, %v3124
    %v3128 = vrot.slane %v2955, 6
    %3129 = vrot.lane.b32.xlu0 %v2984, 116
    %v3130 = vpop.permute.xlu0 %3129
    %3131 = vrot.lane.b32.xlu0 %v3128, 116
    %v3132 = vpop.permute.xlu0 %3131
    %v3133 = vsel %vm3031, %v3130, %v3132
    %v3136 = vrot.slane %v2955, 7
    %3137 = vrot.lane.b32.xlu0 %v2988, 88
    %v3138 = vpop.permute.xlu0 %3137
    %3139 = vrot.lane.b32.xlu0 %v3136, 88
    %v3140 = vpop.permute.xlu0 %3139
    %v3141 = vsel %vm3033, %v3138, %v3140
    %3145 = vrot.lane.b32.xlu0 %v2932, 60
    %v3146 = vpop.permute.xlu0 %3145
    %3147 = vrot.lane.b32.xlu0 %v2958, 60
    %v3148 = vpop.permute.xlu0 %3147
    %v3149 = vsel %vm1546, %v3146, %v3148
    %v3152 = vrot.slane %v2958, 1
    %3153 = vrot.lane.b32.xlu0 %v2996, 32
    %v3154 = vpop.permute.xlu0 %3153
    %3155 = vrot.lane.b32.xlu0 %v3152, 32
    %v3156 = vpop.permute.xlu0 %3155
    %v3157 = vsel %vm3036, %v3154, %v3156
    %v3159 = vrot.slane %v2958, 2
    %3160 = vrot.lane.b32.xlu0 %v3000, 4
    %v3161 = vpop.permute.xlu0 %3160
    %3162 = vrot.lane.b32.xlu0 %v3159, 4
    %v3163 = vpop.permute.xlu0 %3162
    %v3164 = vsel %vm3038, %v3161, %v3163
    %v3167 = vrot.slane %v2958, 3
    %3168 = vrot.lane.b32.xlu0 %v3004, 104
    %v3169 = vpop.permute.xlu0 %3168
    %3170 = vrot.lane.b32.xlu0 %v3167, 104
    %v3171 = vpop.permute.xlu0 %3170
    %v3172 = vsel %vm3040, %v3169, %v3171
    %v3175 = vrot.slane %v2958, 4
    %3176 = vrot.lane.b32.xlu0 %v3008, 76
    %v3177 = vpop.permute.xlu0 %3176
    %3178 = vrot.lane.b32.xlu0 %v3175, 76
    %v3179 = vpop.permute.xlu0 %3178
    %v3180 = vsel %vm3042, %v3177, %v3179
    %v3183 = vrot.slane %v2958, 5
    %3184 = vrot.lane.b32.xlu0 %v3012, 48
    %v3185 = vpop.permute.xlu0 %3184
    %3186 = vrot.lane.b32.xlu0 %v3183, 48
    %v3187 = vpop.permute.xlu0 %3186
    %v3188 = vsel %vm3044, %v3185, %v3187
    %v3190 = vrot.slane %v2958, 6
    %3191 = vrot.lane.b32.xlu0 %v3016, 20
    %v3192 = vpop.permute.xlu0 %3191
    %3193 = vrot.lane.b32.xlu0 %v3190, 20
    %v3194 = vpop.permute.xlu0 %3193
    %v3195 = vsel %vm1534, %v3192, %v3194
    %v3198 = vrot.slane %v2958, 7
    %3199 = vrot.lane.b32.xlu0 %v3020, 120
    %v3200 = vpop.permute.xlu0 %3199
    %3201 = vrot.lane.b32.xlu0 %v3198, 120
    %v3202 = vpop.permute.xlu0 %3201
    %v3203 = vsel %vm3047, %v3200, %v3202
    %v3206 = vsel %vm2866, %v3092, %v2964
    %v3207 = vsel %vm3025, %v3094, %v3102
    %v3208 = vsel %vm3027, %v3101, %v3110
    %v3209 = vsel %vm3029, %v3109, %v3118
    %v3210 = vsel %vm3031, %v3209, %v3122
    %v3211 = vsel %vm3033, %v3125, %v3133
    %v3212 = vsel %vm1546, %v3132, %v3141
    %v3213 = vsel %vm3036, %v3140, %v3149
    %v3214 = vsel %vm3038, %v3148, %v3157
    %v3215 = vsel %vm3040, %v3214, %v3161
    %v3216 = vsel %vm3042, %v3164, %v3172
    %v3217 = vsel %vm3044, %v3171, %v3180
    %v3218 = vsel %vm1534, %v3179, %v3188
    %v3219 = vsel %vm3047, %v3218, %v3192
    %v3220 = vsel %vm3049, %v3195, %v3203
    %3222 = vrot.lane.b32.xlu0 %v2935, 28
    %v3223 = vpop.permute.xlu0 %3222
    %3224 = vrot.lane.b32.xlu0 %v2961, 28
    %v3225 = vpop.permute.xlu0 %3224
    %v3226 = vsel %vm3091, %v3223, %v3225
    %v3228 = vrot.slane %v2961, 1
    %v3231 = vrot.slane %v2961, 2
    %3232 = vrot.lane.b32.xlu0 %v3056, 100
    %v3233 = vpop.permute.xlu0 %3232
    %3234 = vrot.lane.b32.xlu0 %v3231, 100
    %v3235 = vpop.permute.xlu0 %3234
    %v3236 = vsel %vm2866, %v3233, %v3235
    %v3239 = vrot.slane %v2961, 3
    %3240 = vrot.lane.b32.xlu0 %v3060, 72
    %v3241 = vpop.permute.xlu0 %3240
    %3242 = vrot.lane.b32.xlu0 %v3239, 72
    %v3243 = vpop.permute.xlu0 %3242
    %v3244 = vsel %vm3025, %v3241, %v3243
    %v3246 = vsel %vm2866, %v3226, %v3052
    %v3247 = vsel %vm3025, %v3228, %v3236
    %v3248 = vsel %vm3027, %v3235, %v3244
    %3252 = vrot.lane.b32.xlu0 %v3246, 64
    %v3253 = vpop.permute.xlu0 %3252
    %3254 = vrot.lane.b32.xlu0 %v3247, 64
    %v3255 = vpop.permute.xlu0 %3254
    %3256 = vrot.lane.b32.xlu0 %v3248, 64
    %v3257 = vpop.permute.xlu0 %3256
    %3258 = vrot.lane.b32.xlu0 %v3243, 64
    %v3259 = vpop.permute.xlu0 %3258
    %v3260 = vsel %vm917, %v3253, %v3255
    %v3261 = vsel %vm917, %v3255, %v3257
    %v3262 = vsel %vm917, %v3257, %v3259
    %v3264 = vsel %vm917, %v3202, %v3253
    %v3278 = vrot.slane %v3206, 7
    %v3279 = vrot.slane %v3207, 7
    %v3280 = vrot.slane %v3208, 7
    %v3281 = vrot.slane %v3210, 7
    %v3282 = vrot.slane %v3211, 7
    %v3283 = vrot.slane %v3212, 7
    %v3284 = vrot.slane %v3213, 7
    %v3285 = vrot.slane %v3215, 7
    %v3286 = vrot.slane %v3216, 7
    %v3287 = vrot.slane %v3217, 7
    %v3288 = vrot.slane %v3219, 7
    %v3289 = vrot.slane %v3220, 7
    %v3290 = vrot.slane %v3264, 7
    %v3291 = vrot.slane %v3260, 7
    %v3292 = vrot.slane %v3261, 7
    %v3293 = vrot.slane %v3262, 7
    %v3310 = vsel %vm221, %v3024, %v3278
    %v3311 = vsel %vm221, %v3026, %v3279
    %v3312 = vsel %vm221, %v3028, %v3280
    %v3313 = vsel %vm221, %v3032, %v3281
    %v3314 = vsel %vm221, %v3034, %v3282
    %v3315 = vsel %vm221, %v3035, %v3283
    %v3316 = vsel %vm221, %v3037, %v3284
    %v3317 = vsel %vm221, %v3041, %v3285
    %v3318 = vsel %vm221, %v3043, %v3286
    %v3319 = vsel %vm221, %v3045, %v3287
    %v3320 = vsel %vm221, %v3048, %v3288
    %v3321 = vsel %vm221, %v3050, %v3289
    %v3322 = vsel %vm221, %v3085, %v3290
    %v3323 = vsel %vm221, %v3078, %v3291
    %v3324 = vsel %vm221, %v3079, %v3292
    %v3325 = vsel %vm221, %v3080, %v3293
    %v3326 = vpack.c.bf16 %v3310, %v3310
    %v3327 = vpack.c.bf16 %v3311, %v3311
    %v3328 = vpack.c.bf16 %v3312, %v3312
    %v3329 = vpack.c.bf16 %v3313, %v3313
    %v3330 = vpack.c.bf16 %v3314, %v3314
    %v3331 = vpack.c.bf16 %v3315, %v3315
    %v3332 = vpack.c.bf16 %v3316, %v3316
    %v3333 = vpack.c.bf16 %v3317, %v3317
    %v3334 = vpack.c.bf16 %v3318, %v3318
    %v3335 = vpack.c.bf16 %v3319, %v3319
    %v3336 = vpack.c.bf16 %v3320, %v3320
    %v3337 = vpack.c.bf16 %v3321, %v3321
    %v3338 = vpack.c.bf16 %v3322, %v3322
    %v3339 = vpack.c.bf16 %v3323, %v3323
    %v3340 = vpack.c.bf16 %v3324, %v3324
    %v3341 = vpack.c.bf16 %v3325, %v3325
    %v3342 = vld [vmem:[#allocation7] sm:$0xff]
    %v3343 = vld [vmem:[#allocation7 + $0x8] sm:$0xff]
    %v3344 = vld [vmem:[#allocation7 + $0x10] sm:$0xff]
    %v3345 = vld [vmem:[#allocation7 + $0x18] sm:$0xff]
    %v3346 = vld [vmem:[#allocation7 + $0x20] sm:$0xff]
    %v3347 = vld [vmem:[#allocation7 + $0x28] sm:$0xff]
    %v3348 = vld [vmem:[#allocation7 + $0x30] sm:$0xff]
    %v3349 = vld [vmem:[#allocation7 + $0x38] sm:$0xff]
    %v3350 = vld [vmem:[#allocation7 + $0x40] sm:$0xff]
    %v3351 = vld [vmem:[#allocation7 + $0x48] sm:$0xff]
    %v3352 = vld [vmem:[#allocation7 + $0x50] sm:$0xff]
    %v3353 = vld [vmem:[#allocation7 + $0x58] sm:$0xff]
    %v3354 = vld [vmem:[#allocation7 + $0x60] sm:$0xff]
    %v3355 = vld [vmem:[#allocation7 + $0x68] sm:$0xff]
    %v3356 = vld [vmem:[#allocation7 + $0x70] sm:$0xff]
    %v3357 = vld [vmem:[#allocation7 + $0x78] sm:$0xff]
    %v3358 = vld [vmem:[#allocation7 + $0x80] sm:$0xff]
    %v3359 = vld [vmem:[#allocation7 + $0x88] sm:$0xff]
    %v3360 = vld [vmem:[#allocation7 + $0x90] sm:$0xff]
    %v3361 = vld [vmem:[#allocation7 + $0x98] sm:$0xff]
    %v3362 = vld [vmem:[#allocation7 + $0xa0] sm:$0xff]
    %v3363 = vld [vmem:[#allocation7 + $0xa8] sm:$0xff]
    %v3364 = vld [vmem:[#allocation7 + $0xb0] sm:$0xff]
    %v3365 = vld [vmem:[#allocation7 + $0xb8] sm:$0xff]
    %v3366 = vld [vmem:[#allocation7 + $0xc0] sm:$0xff]
    %v3367 = vld [vmem:[#allocation7 + $0xc8] sm:$0xff]
    %v3368 = vld [vmem:[#allocation7 + $0xd0] sm:$0xff]
    %v3369 = vld [vmem:[#allocation7 + $0xd8] sm:$0xff]
    %v3370 = vld [vmem:[#allocation7 + $0xe0] sm:$0xff]
    %v3371 = vld [vmem:[#allocation7 + $0xe8] sm:$0xff]
    %v3372 = vld [vmem:[#allocation7 + $0xf0] sm:$0xff]
    %v3373 = vld [vmem:[#allocation7 + $0xf8] sm:$0xff]
    %v3374 = vld [vmem:[#allocation7 + $0x100] sm:$0xff]
    %v3375 = vld [vmem:[#allocation7 + $0x108] sm:$0xff]
    %v3376 = vld [vmem:[#allocation7 + $0x110] sm:$0xff]
    %v3377 = vld [vmem:[#allocation7 + $0x118] sm:$0xff]
    %v3378 = vld [vmem:[#allocation7 + $0x120] sm:$0xff]
    %v3379 = vld [vmem:[#allocation7 + $0x128] sm:$0xff]
    %v3380 = vld [vmem:[#allocation7 + $0x130] sm:$0xff]
    %v3381 = vld [vmem:[#allocation7 + $0x138] sm:$0xff]
    %v3382 = vld [vmem:[#allocation7 + $0x140] sm:$0xff]
    %v3383 = vld [vmem:[#allocation7 + $0x148] sm:$0xff]
    %v3384 = vld [vmem:[#allocation7 + $0x150] sm:$0xff]
    %v3385 = vld [vmem:[#allocation7 + $0x158] sm:$0xff]
    %v3386 = vld [vmem:[#allocation7 + $0x160] sm:$0xff]
    %v3387 = vld [vmem:[#allocation7 + $0x168] sm:$0xff]
    %v3388 = vld [vmem:[#allocation7 + $0x170] sm:$0xff]
    %v3389 = vld [vmem:[#allocation7 + $0x178] sm:$0xff]
    %v3390 = vld [vmem:[#allocation7 + $0x180] sm:$0xff]
    %v3391 = vld [vmem:[#allocation7 + $0x188] sm:$0xff]
    %v3392 = vld [vmem:[#allocation7 + $0x190] sm:$0xff]
    %v3393 = vld [vmem:[#allocation7 + $0x198] sm:$0xff]
    %v3394 = vld [vmem:[#allocation7 + $0x1a0] sm:$0xff]
    %v3395 = vld [vmem:[#allocation7 + $0x1a8] sm:$0xff]
    %v3396 = vld [vmem:[#allocation7 + $0x1b0] sm:$0xff]
    %v3397 = vld [vmem:[#allocation7 + $0x1b8] sm:$0xff]
    %v3398 = vld [vmem:[#allocation7 + $0x1c0] sm:$0xff]
    %v3399 = vld [vmem:[#allocation7 + $0x1c8] sm:$0xff]
    %v3400 = vld [vmem:[#allocation7 + $0x1d0] sm:$0xff]
    %v3401 = vld [vmem:[#allocation7 + $0x1d8] sm:$0xff]
    %v3402 = vld [vmem:[#allocation7 + $0x1e0] sm:$0xff]
    %v3403 = vld [vmem:[#allocation7 + $0x1e8] sm:$0xff]
    %v3404 = vld [vmem:[#allocation7 + $0x1f0] sm:$0xff]
    %v3405 = vld [vmem:[#allocation7 + $0x1f8] sm:$0xff]
    %v3406 = vld [vmem:[#allocation7 + $0x200] sm:$0xff]
    %v3407 = vld [vmem:[#allocation7 + $0x208] sm:$0xff]
    %v3408 = vld [vmem:[#allocation7 + $0x210] sm:$0xff]
    %v3409 = vld [vmem:[#allocation7 + $0x218] sm:$0xff]
    %v3410 = vld [vmem:[#allocation7 + $0x220] sm:$0xff]
    %v3411 = vld [vmem:[#allocation7 + $0x228] sm:$0xff]
    %v3412 = vld [vmem:[#allocation7 + $0x230] sm:$0xff]
    %v3413 = vld [vmem:[#allocation7 + $0x238] sm:$0xff]
    %v3414 = vld [vmem:[#allocation7 + $0x240] sm:$0xff]
    %v3415 = vld [vmem:[#allocation7 + $0x248] sm:$0xff]
    %v3416 = vld [vmem:[#allocation7 + $0x250] sm:$0xff]
    %v3417 = vld [vmem:[#allocation7 + $0x258] sm:$0xff]
    %v3418 = vld [vmem:[#allocation7 + $0x260] sm:$0xff]
    %v3419 = vld [vmem:[#allocation7 + $0x268] sm:$0xff]
    %v3420 = vld [vmem:[#allocation7 + $0x270] sm:$0xff]
    %v3421 = vld [vmem:[#allocation7 + $0x278] sm:$0xff]
    %v3422 = vld [vmem:[#allocation7 + $0x280] sm:$0xff]
    %v3423 = vld [vmem:[#allocation7 + $0x288] sm:$0xff]
    %v3424 = vld [vmem:[#allocation7 + $0x290] sm:$0xff]
    %v3425 = vld [vmem:[#allocation7 + $0x298] sm:$0xff]
    %v3426 = vld [vmem:[#allocation7 + $0x2a0] sm:$0xff]
    %v3427 = vld [vmem:[#allocation7 + $0x2a8] sm:$0xff]
    %v3428 = vld [vmem:[#allocation7 + $0x2b0] sm:$0xff]
    %v3429 = vld [vmem:[#allocation7 + $0x2b8] sm:$0xff]
    %v3430 = vld [vmem:[#allocation7 + $0x2c0] sm:$0xff]
    %v3431 = vld [vmem:[#allocation7 + $0x2c8] sm:$0xff]
    %v3432 = vld [vmem:[#allocation7 + $0x2d0] sm:$0xff]
    %v3433 = vld [vmem:[#allocation7 + $0x2d8] sm:$0xff]
    %v3434 = vld [vmem:[#allocation7 + $0x2e0] sm:$0xff]
    %v3435 = vld [vmem:[#allocation7 + $0x2e8] sm:$0xff]
    %v3436 = vld [vmem:[#allocation7 + $0x2f0] sm:$0xff]
    %v3437 = vld [vmem:[#allocation7 + $0x2f8] sm:$0xff]
    %v3438 = vld [vmem:[#allocation7 + $0x300] sm:$0xff]
    %v3439 = vld [vmem:[#allocation7 + $0x308] sm:$0xff]
    %v3440 = vld [vmem:[#allocation7 + $0x310] sm:$0xff]
    %v3441 = vld [vmem:[#allocation7 + $0x318] sm:$0xff]
    %v3442 = vld [vmem:[#allocation7 + $0x320] sm:$0xff]
    %v3443 = vld [vmem:[#allocation7 + $0x328] sm:$0xff]
    %v3444 = vld [vmem:[#allocation7 + $0x330] sm:$0xff]
    %v3445 = vld [vmem:[#allocation7 + $0x338] sm:$0xff]
    %v3446 = vld [vmem:[#allocation7 + $0x340] sm:$0xff]
    %v3447 = vld [vmem:[#allocation7 + $0x348] sm:$0xff]
    %v3448 = vld [vmem:[#allocation7 + $0x350] sm:$0xff]
    %v3449 = vld [vmem:[#allocation7 + $0x358] sm:$0xff]
    %v3450 = vld [vmem:[#allocation7 + $0x360] sm:$0xff]
    %v3451 = vld [vmem:[#allocation7 + $0x368] sm:$0xff]
    %v3452 = vld [vmem:[#allocation7 + $0x370] sm:$0xff]
    %v3453 = vld [vmem:[#allocation7 + $0x378] sm:$0xff]
    %v3454 = vld [vmem:[#allocation7 + $0x380] sm:$0xff]
    %v3455 = vld [vmem:[#allocation7 + $0x388] sm:$0xff]
    %v3456 = vld [vmem:[#allocation7 + $0x390] sm:$0xff]
    %v3457 = vld [vmem:[#allocation7 + $0x398] sm:$0xff]
    %v3458 = vld [vmem:[#allocation7 + $0x3a0] sm:$0xff]
    %v3459 = vld [vmem:[#allocation7 + $0x3a8] sm:$0xff]
    %v3460 = vld [vmem:[#allocation7 + $0x3b0] sm:$0xff]
    %v3461 = vld [vmem:[#allocation7 + $0x3b8] sm:$0xff]
    %v3462 = vld [vmem:[#allocation7 + $0x3c0] sm:$0xff]
    %v3463 = vld [vmem:[#allocation7 + $0x3c8] sm:$0xff]
    %v3464 = vld [vmem:[#allocation7 + $0x3d0] sm:$0xff]
    %v3465 = vld [vmem:[#allocation7 + $0x3d8] sm:$0xff]
    %v3466 = vld [vmem:[#allocation7 + $0x3e0] sm:$0xff]
    %v3467 = vld [vmem:[#allocation7 + $0x3e8] sm:$0xff]
    %v3468 = vld [vmem:[#allocation7 + $0x3f0] sm:$0xff]
    %v3469 = vld [vmem:[#allocation7 + $0x3f8] sm:$0xff]
    %v3470 = vld [vmem:[#allocation7 + $0x400] sm:$0xff]
    %v3471 = vld [vmem:[#allocation7 + $0x408] sm:$0xff]
    %v3472 = vld [vmem:[#allocation7 + $0x410] sm:$0xff]
    %v3473 = vld [vmem:[#allocation7 + $0x418] sm:$0xff]
    %v3474 = vld [vmem:[#allocation7 + $0x420] sm:$0xff]
    %v3475 = vld [vmem:[#allocation7 + $0x428] sm:$0xff]
    %v3476 = vld [vmem:[#allocation7 + $0x430] sm:$0xff]
    %v3477 = vld [vmem:[#allocation7 + $0x438] sm:$0xff]
    %v3478 = vld [vmem:[#allocation7 + $0x440] sm:$0xff]
    %v3479 = vld [vmem:[#allocation7 + $0x448] sm:$0xff]
    %v3480 = vld [vmem:[#allocation7 + $0x450] sm:$0xff]
    %v3481 = vld [vmem:[#allocation7 + $0x458] sm:$0xff]
    %v3482 = vld [vmem:[#allocation7 + $0x460] sm:$0xff]
    %v3483 = vld [vmem:[#allocation7 + $0x468] sm:$0xff]
    %v3484 = vld [vmem:[#allocation7 + $0x470] sm:$0xff]
    %v3485 = vld [vmem:[#allocation7 + $0x478] sm:$0xff]
    %v3486 = vld [vmem:[#allocation7 + $0x480] sm:$0xff]
    %v3487 = vld [vmem:[#allocation7 + $0x488] sm:$0xff]
    %v3488 = vld [vmem:[#allocation7 + $0x490] sm:$0xff]
    %v3489 = vld [vmem:[#allocation7 + $0x498] sm:$0xff]
    %v3490 = vld [vmem:[#allocation7 + $0x4a0] sm:$0xff]
    %v3491 = vld [vmem:[#allocation7 + $0x4a8] sm:$0xff]
    %v3492 = vld [vmem:[#allocation7 + $0x4b0] sm:$0xff]
    %v3493 = vld [vmem:[#allocation7 + $0x4b8] sm:$0xff]
    %v3494 = vld [vmem:[#allocation7 + $0x4c0] sm:$0xff]
    %v3495 = vld [vmem:[#allocation7 + $0x4c8] sm:$0xff]
    %v3496 = vld [vmem:[#allocation7 + $0x4d0] sm:$0xff]
    %v3497 = vld [vmem:[#allocation7 + $0x4d8] sm:$0xff]
    %v3498 = vld [vmem:[#allocation7 + $0x4e0] sm:$0xff]
    %v3499 = vld [vmem:[#allocation7 + $0x4e8] sm:$0xff]
    %v3500 = vld [vmem:[#allocation7 + $0x4f0] sm:$0xff]
    %v3501 = vld [vmem:[#allocation7 + $0x4f8] sm:$0xff]
    %v3502 = vld [vmem:[#allocation7 + $0x500] sm:$0xff]
    %v3503 = vld [vmem:[#allocation7 + $0x508] sm:$0xff]
    %v3504 = vld [vmem:[#allocation7 + $0x510] sm:$0xff]
    %v3505 = vld [vmem:[#allocation7 + $0x518] sm:$0xff]
    %v3506 = vld [vmem:[#allocation7 + $0x520] sm:$0xff]
    %v3507 = vld [vmem:[#allocation7 + $0x528] sm:$0xff]
    %v3508 = vld [vmem:[#allocation7 + $0x530] sm:$0xff]
    %v3509 = vld [vmem:[#allocation7 + $0x538] sm:$0xff]
    %v3510 = vld [vmem:[#allocation7 + $0x540] sm:$0xff]
    %v3511 = vld [vmem:[#allocation7 + $0x548] sm:$0xff]
    %v3512 = vld [vmem:[#allocation7 + $0x550] sm:$0xff]
    %v3513 = vld [vmem:[#allocation7 + $0x558] sm:$0xff]
    %v3514 = vld [vmem:[#allocation7 + $0x560] sm:$0xff]
    %v3515 = vld [vmem:[#allocation7 + $0x568] sm:$0xff]
    %v3516 = vld [vmem:[#allocation7 + $0x570] sm:$0xff]
    %v3517 = vld [vmem:[#allocation7 + $0x578] sm:$0xff]
    %v3518 = vld [vmem:[#allocation7 + $0x580] sm:$0xff]
    %v3519 = vld [vmem:[#allocation7 + $0x588] sm:$0xff]
    %v3520 = vld [vmem:[#allocation7 + $0x590] sm:$0xff]
    %v3521 = vld [vmem:[#allocation7 + $0x598] sm:$0xff]
    %v3522 = vld [vmem:[#allocation7 + $0x5a0] sm:$0xff]
    %v3523 = vld [vmem:[#allocation7 + $0x5a8] sm:$0xff]
    %v3524 = vld [vmem:[#allocation7 + $0x5b0] sm:$0xff]
    %v3525 = vld [vmem:[#allocation7 + $0x5b8] sm:$0xff]
    %v3526 = vld [vmem:[#allocation7 + $0x5c0] sm:$0xff]
    %v3527 = vld [vmem:[#allocation7 + $0x5c8] sm:$0xff]
    %v3528 = vld [vmem:[#allocation7 + $0x5d0] sm:$0xff]
    %v3529 = vld [vmem:[#allocation7 + $0x5d8] sm:$0xff]
    %v3530 = vld [vmem:[#allocation7 + $0x5e0] sm:$0xff]
    %v3531 = vld [vmem:[#allocation7 + $0x5e8] sm:$0xff]
    %v3532 = vld [vmem:[#allocation7 + $0x5f0] sm:$0xff]
    %v3533 = vld [vmem:[#allocation7 + $0x5f8] sm:$0xff]
    %v3534 = vld [vmem:[#allocation7 + $0x600] sm:$0xff]
    %v3535 = vld [vmem:[#allocation7 + $0x608] sm:$0xff]
    %v3536 = vld [vmem:[#allocation7 + $0x610] sm:$0xff]
    %v3537 = vld [vmem:[#allocation7 + $0x618] sm:$0xff]
    %v3538 = vld [vmem:[#allocation7 + $0x620] sm:$0xff]
    %v3539 = vld [vmem:[#allocation7 + $0x628] sm:$0xff]
    %v3540 = vld [vmem:[#allocation7 + $0x630] sm:$0xff]
    %v3541 = vld [vmem:[#allocation7 + $0x638] sm:$0xff]
    %v3542 = vld [vmem:[#allocation7 + $0x640] sm:$0xff]
    %v3543 = vld [vmem:[#allocation7 + $0x648] sm:$0xff]
    %v3544 = vld [vmem:[#allocation7 + $0x650] sm:$0xff]
    %v3545 = vld [vmem:[#allocation7 + $0x658] sm:$0xff]
    %v3546 = vld [vmem:[#allocation7 + $0x660] sm:$0xff]
    %v3547 = vld [vmem:[#allocation7 + $0x668] sm:$0xff]
    %v3548 = vld [vmem:[#allocation7 + $0x670] sm:$0xff]
    %v3549 = vld [vmem:[#allocation7 + $0x678] sm:$0xff]
    %v3550 = vld [vmem:[#allocation7 + $0x680] sm:$0xff]
    %v3551 = vld [vmem:[#allocation7 + $0x688] sm:$0xff]
    %v3552 = vld [vmem:[#allocation7 + $0x690] sm:$0xff]
    %v3553 = vld [vmem:[#allocation7 + $0x698] sm:$0xff]
    %v3554 = vld [vmem:[#allocation7 + $0x6a0] sm:$0xff]
    %v3555 = vld [vmem:[#allocation7 + $0x6a8] sm:$0xff]
    %v3556 = vld [vmem:[#allocation7 + $0x6b0] sm:$0xff]
    %v3557 = vld [vmem:[#allocation7 + $0x6b8] sm:$0xff]
    %v3558 = vld [vmem:[#allocation7 + $0x6c0] sm:$0xff]
    %v3559 = vld [vmem:[#allocation7 + $0x6c8] sm:$0xff]
    %v3560 = vld [vmem:[#allocation7 + $0x6d0] sm:$0xff]
    %v3561 = vld [vmem:[#allocation7 + $0x6d8] sm:$0xff]
    %v3562 = vld [vmem:[#allocation7 + $0x6e0] sm:$0xff]
    %v3563 = vld [vmem:[#allocation7 + $0x6e8] sm:$0xff]
    %v3564 = vld [vmem:[#allocation7 + $0x6f0] sm:$0xff]
    %v3565 = vld [vmem:[#allocation7 + $0x6f8] sm:$0xff]
    %v3566 = vld [vmem:[#allocation7 + $0x700] sm:$0xff]
    %v3567 = vld [vmem:[#allocation7 + $0x708] sm:$0xff]
    %v3568 = vld [vmem:[#allocation7 + $0x710] sm:$0xff]
    %v3569 = vld [vmem:[#allocation7 + $0x718] sm:$0xff]
    %v3570 = vld [vmem:[#allocation7 + $0x720] sm:$0xff]
    %v3571 = vld [vmem:[#allocation7 + $0x728] sm:$0xff]
    %v3572 = vld [vmem:[#allocation7 + $0x730] sm:$0xff]
    %v3573 = vld [vmem:[#allocation7 + $0x738] sm:$0xff]
    %v3574 = vld [vmem:[#allocation7 + $0x740] sm:$0xff]
    %v3575 = vld [vmem:[#allocation7 + $0x748] sm:$0xff]
    %v3576 = vld [vmem:[#allocation7 + $0x750] sm:$0xff]
    %v3577 = vld [vmem:[#allocation7 + $0x758] sm:$0xff]
    %v3578 = vld [vmem:[#allocation7 + $0x760] sm:$0xff]
    %v3579 = vld [vmem:[#allocation7 + $0x768] sm:$0xff]
    %v3580 = vld [vmem:[#allocation7 + $0x770] sm:$0xff]
    %v3581 = vld [vmem:[#allocation7 + $0x778] sm:$0xff]
    %v3582 = vld [vmem:[#allocation7 + $0x780] sm:$0xff]
    %v3583 = vld [vmem:[#allocation7 + $0x788] sm:$0xff]
    %v3584 = vld [vmem:[#allocation7 + $0x790] sm:$0xff]
    %v3585 = vld [vmem:[#allocation7 + $0x798] sm:$0xff]
    %v3586 = vld [vmem:[#allocation7 + $0x7a0] sm:$0xff]
    %v3587 = vld [vmem:[#allocation7 + $0x7a8] sm:$0xff]
    %v3588 = vld [vmem:[#allocation7 + $0x7b0] sm:$0xff]
    %v3589 = vld [vmem:[#allocation7 + $0x7b8] sm:$0xff]
    %v3590 = vld [vmem:[#allocation7 + $0x7c0] sm:$0xff]
    %v3591 = vld [vmem:[#allocation7 + $0x7c8] sm:$0xff]
    %v3592 = vld [vmem:[#allocation7 + $0x7d0] sm:$0xff]
    %v3593 = vld [vmem:[#allocation7 + $0x7d8] sm:$0xff]
    %v3594 = vld [vmem:[#allocation7 + $0x7e0] sm:$0xff]
    %v3595 = vld [vmem:[#allocation7 + $0x7e8] sm:$0xff]
    %v3596 = vld [vmem:[#allocation7 + $0x7f0] sm:$0xff]
    %v3597 = vld [vmem:[#allocation7 + $0x7f8] sm:$0xff]
    %v3598 = vld [vmem:[#allocation7 + $0x800] sm:$0xff]
    %v3599 = vld [vmem:[#allocation7 + $0x808] sm:$0xff]
    %v3600 = vld [vmem:[#allocation7 + $0x810] sm:$0xff]
    %v3601 = vld [vmem:[#allocation7 + $0x818] sm:$0xff]
    %v3602 = vld [vmem:[#allocation7 + $0x820] sm:$0xff]
    %v3603 = vld [vmem:[#allocation7 + $0x828] sm:$0xff]
    %v3604 = vld [vmem:[#allocation7 + $0x830] sm:$0xff]
    %v3605 = vld [vmem:[#allocation7 + $0x838] sm:$0xff]
    %v3606 = vld [vmem:[#allocation7 + $0x840] sm:$0xff]
    %v3607 = vld [vmem:[#allocation7 + $0x848] sm:$0xff]
    %v3608 = vld [vmem:[#allocation7 + $0x850] sm:$0xff]
    %v3609 = vld [vmem:[#allocation7 + $0x858] sm:$0xff]
    %v3610 = vld [vmem:[#allocation7 + $0x860] sm:$0xff]
    %v3611 = vld [vmem:[#allocation7 + $0x868] sm:$0xff]
    %v3612 = vld [vmem:[#allocation7 + $0x870] sm:$0xff]
    %v3613 = vld [vmem:[#allocation7 + $0x878] sm:$0xff]
    %v3614 = vld [vmem:[#allocation7 + $0x880] sm:$0xff]
    %v3615 = vld [vmem:[#allocation7 + $0x888] sm:$0xff]
    %v3616 = vld [vmem:[#allocation7 + $0x890] sm:$0xff]
    %v3617 = vld [vmem:[#allocation7 + $0x898] sm:$0xff]
    %v3618 = vld [vmem:[#allocation7 + $0x8a0] sm:$0xff]
    %v3619 = vld [vmem:[#allocation7 + $0x8a8] sm:$0xff]
    %v3620 = vld [vmem:[#allocation7 + $0x8b0] sm:$0xff]
    %v3621 = vld [vmem:[#allocation7 + $0x8b8] sm:$0xff]
    %v3622 = vld [vmem:[#allocation7 + $0x8c0] sm:$0xff]
    %v3623 = vld [vmem:[#allocation7 + $0x8c8] sm:$0xff]
    %v3624 = vld [vmem:[#allocation7 + $0x8d0] sm:$0xff]
    %v3625 = vld [vmem:[#allocation7 + $0x8d8] sm:$0xff]
    %v3626 = vld [vmem:[#allocation7 + $0x8e0] sm:$0xff]
    %v3627 = vld [vmem:[#allocation7 + $0x8e8] sm:$0xff]
    %v3628 = vld [vmem:[#allocation7 + $0x8f0] sm:$0xff]
    %v3629 = vld [vmem:[#allocation7 + $0x8f8] sm:$0xff]
    %v3630 = vld [vmem:[#allocation7 + $0x900] sm:$0xff]
    %v3631 = vld [vmem:[#allocation7 + $0x908] sm:$0xff]
    %v3632 = vld [vmem:[#allocation7 + $0x910] sm:$0xff]
    %v3633 = vld [vmem:[#allocation7 + $0x918] sm:$0xff]
    %v3634 = vld [vmem:[#allocation7 + $0x920] sm:$0xff]
    %v3635 = vld [vmem:[#allocation7 + $0x928] sm:$0xff]
    %v3636 = vld [vmem:[#allocation7 + $0x930] sm:$0xff]
    %v3637 = vld [vmem:[#allocation7 + $0x938] sm:$0xff]
    %v3638 = vld [vmem:[#allocation7 + $0x940] sm:$0xff]
    %v3639 = vld [vmem:[#allocation7 + $0x948] sm:$0xff]
    %v3640 = vld [vmem:[#allocation7 + $0x950] sm:$0xff]
    %v3641 = vld [vmem:[#allocation7 + $0x958] sm:$0xff]
    %v3642 = vld [vmem:[#allocation7 + $0x960] sm:$0xff]
    %v3643 = vld [vmem:[#allocation7 + $0x968] sm:$0xff]
    %v3644 = vld [vmem:[#allocation7 + $0x970] sm:$0xff]
    %v3645 = vld [vmem:[#allocation7 + $0x978] sm:$0xff]
    %v3646 = vld [vmem:[#allocation7 + $0x980] sm:$0xff]
    %v3647 = vld [vmem:[#allocation7 + $0x988] sm:$0xff]
    %v3648 = vld [vmem:[#allocation7 + $0x990] sm:$0xff]
    %v3649 = vld [vmem:[#allocation7 + $0x998] sm:$0xff]
    %v3650 = vld [vmem:[#allocation7 + $0x9a0] sm:$0xff]
    %v3651 = vld [vmem:[#allocation7 + $0x9a8] sm:$0xff]
    %v3652 = vld [vmem:[#allocation7 + $0x9b0] sm:$0xff]
    %v3653 = vld [vmem:[#allocation7 + $0x9b8] sm:$0xff]
    %v3654 = vld [vmem:[#allocation7 + $0x9c0] sm:$0xff]
    %v3655 = vld [vmem:[#allocation7 + $0x9c8] sm:$0xff]
    %v3656 = vld [vmem:[#allocation7 + $0x9d0] sm:$0xff]
    %v3657 = vld [vmem:[#allocation7 + $0x9d8] sm:$0xff]
    %v3658 = vld [vmem:[#allocation7 + $0x9e0] sm:$0xff]
    %v3659 = vld [vmem:[#allocation7 + $0x9e8] sm:$0xff]
    %v3660 = vld [vmem:[#allocation7 + $0x9f0] sm:$0xff]
    %v3661 = vld [vmem:[#allocation7 + $0x9f8] sm:$0xff]
    %v3662 = vld [vmem:[#allocation7 + $0xa00] sm:$0xff]
    %v3663 = vld [vmem:[#allocation7 + $0xa08] sm:$0xff]
    %v3664 = vld [vmem:[#allocation7 + $0xa10] sm:$0xff]
    %v3665 = vld [vmem:[#allocation7 + $0xa18] sm:$0xff]
    %v3666 = vld [vmem:[#allocation7 + $0xa20] sm:$0xff]
    %v3667 = vld [vmem:[#allocation7 + $0xa28] sm:$0xff]
    %v3668 = vld [vmem:[#allocation7 + $0xa30] sm:$0xff]
    %v3669 = vld [vmem:[#allocation7 + $0xa38] sm:$0xff]
    %v3670 = vld [vmem:[#allocation7 + $0xa40] sm:$0xff]
    %v3671 = vld [vmem:[#allocation7 + $0xa48] sm:$0xff]
    %v3672 = vld [vmem:[#allocation7 + $0xa50] sm:$0xff]
    %v3673 = vld [vmem:[#allocation7 + $0xa58] sm:$0xff]
    %v3674 = vld [vmem:[#allocation7 + $0xa60] sm:$0xff]
    %v3675 = vld [vmem:[#allocation7 + $0xa68] sm:$0xff]
    %v3676 = vld [vmem:[#allocation7 + $0xa70] sm:$0xff]
    %v3677 = vld [vmem:[#allocation7 + $0xa78] sm:$0xff]
    %v3678 = vld [vmem:[#allocation7 + $0xa80] sm:$0xff]
    %v3679 = vld [vmem:[#allocation7 + $0xa88] sm:$0xff]
    %v3680 = vld [vmem:[#allocation7 + $0xa90] sm:$0xff]
    %v3681 = vld [vmem:[#allocation7 + $0xa98] sm:$0xff]
    %v3682 = vld [vmem:[#allocation7 + $0xaa0] sm:$0xff]
    %v3683 = vld [vmem:[#allocation7 + $0xaa8] sm:$0xff]
    %v3684 = vld [vmem:[#allocation7 + $0xab0] sm:$0xff]
    %v3685 = vld [vmem:[#allocation7 + $0xab8] sm:$0xff]
    %v3686 = vld [vmem:[#allocation7 + $0xac0] sm:$0xff]
    %v3687 = vld [vmem:[#allocation7 + $0xac8] sm:$0xff]
    %v3688 = vld [vmem:[#allocation7 + $0xad0] sm:$0xff]
    %v3689 = vld [vmem:[#allocation7 + $0xad8] sm:$0xff]
    %v3690 = vld [vmem:[#allocation7 + $0xae0] sm:$0xff]
    %v3691 = vld [vmem:[#allocation7 + $0xae8] sm:$0xff]
    %v3692 = vld [vmem:[#allocation7 + $0xaf0] sm:$0xff]
    %v3693 = vld [vmem:[#allocation7 + $0xaf8] sm:$0xff]
    %v3694 = vld [vmem:[#allocation7 + $0xb00] sm:$0xff]
    %v3695 = vld [vmem:[#allocation7 + $0xb08] sm:$0xff]
    %v3696 = vld [vmem:[#allocation7 + $0xb10] sm:$0xff]
    %v3697 = vld [vmem:[#allocation7 + $0xb18] sm:$0xff]
    %v3698 = vld [vmem:[#allocation7 + $0xb20] sm:$0xff]
    %v3699 = vld [vmem:[#allocation7 + $0xb28] sm:$0xff]
    %v3700 = vld [vmem:[#allocation7 + $0xb30] sm:$0xff]
    %v3701 = vld [vmem:[#allocation7 + $0xb38] sm:$0xff]
    %v3702 = vld [vmem:[#allocation7 + $0xb40] sm:$0xff]
    %v3703 = vld [vmem:[#allocation7 + $0xb48] sm:$0xff]
    %v3704 = vld [vmem:[#allocation7 + $0xb50] sm:$0xff]
    %v3705 = vld [vmem:[#allocation7 + $0xb58] sm:$0xff]
    %v3706 = vld [vmem:[#allocation7 + $0xb60] sm:$0xff]
    %v3707 = vld [vmem:[#allocation7 + $0xb68] sm:$0xff]
    %v3708 = vld [vmem:[#allocation7 + $0xb70] sm:$0xff]
    %v3709 = vld [vmem:[#allocation7 + $0xb78] sm:$0xff]
    %v3710 = vld [vmem:[#allocation7 + $0xb80] sm:$0xff]
    %v3711 = vld [vmem:[#allocation7 + $0xb88] sm:$0xff]
    %v3712 = vld [vmem:[#allocation7 + $0xb90] sm:$0xff]
    %v3713 = vld [vmem:[#allocation7 + $0xb98] sm:$0xff]
    %v3714 = vld [vmem:[#allocation7 + $0xba0] sm:$0xff]
    %v3715 = vld [vmem:[#allocation7 + $0xba8] sm:$0xff]
    %v3716 = vld [vmem:[#allocation7 + $0xbb0] sm:$0xff]
    %v3717 = vld [vmem:[#allocation7 + $0xbb8] sm:$0xff]
    %v3718 = vld [vmem:[#allocation7 + $0xbc0] sm:$0xff]
    %v3719 = vld [vmem:[#allocation7 + $0xbc8] sm:$0xff]
    %v3720 = vld [vmem:[#allocation7 + $0xbd0] sm:$0xff]
    %v3721 = vld [vmem:[#allocation7 + $0xbd8] sm:$0xff]
    %v3722 = vld [vmem:[#allocation7 + $0xbe0] sm:$0xff]
    %v3723 = vld [vmem:[#allocation7 + $0xbe8] sm:$0xff]
    %v3724 = vld [vmem:[#allocation7 + $0xbf0] sm:$0xff]
    %v3725 = vld [vmem:[#allocation7 + $0xbf8] sm:$0xff]
    %v3726 = vld [vmem:[#allocation7 + $0xc00] sm:$0xff]
    %v3727 = vld [vmem:[#allocation7 + $0xc08] sm:$0xff]
    %v3728 = vld [vmem:[#allocation7 + $0xc10] sm:$0xff]
    %v3729 = vld [vmem:[#allocation7 + $0xc18] sm:$0xff]
    %v3730 = vld [vmem:[#allocation7 + $0xc20] sm:$0xff]
    %v3731 = vld [vmem:[#allocation7 + $0xc28] sm:$0xff]
    %v3732 = vld [vmem:[#allocation7 + $0xc30] sm:$0xff]
    %v3733 = vld [vmem:[#allocation7 + $0xc38] sm:$0xff]
    %v3734 = vld [vmem:[#allocation7 + $0xc40] sm:$0xff]
    %v3735 = vld [vmem:[#allocation7 + $0xc48] sm:$0xff]
    %v3736 = vld [vmem:[#allocation7 + $0xc50] sm:$0xff]
    %v3737 = vld [vmem:[#allocation7 + $0xc58] sm:$0xff]
    %v3738 = vld [vmem:[#allocation7 + $0xc60] sm:$0xff]
    %v3739 = vld [vmem:[#allocation7 + $0xc68] sm:$0xff]
    %v3740 = vld [vmem:[#allocation7 + $0xc70] sm:$0xff]
    %v3741 = vld [vmem:[#allocation7 + $0xc78] sm:$0xff]
    %v3742 = vld [vmem:[#allocation7 + $0xc80] sm:$0xff]
    %v3743 = vld [vmem:[#allocation7 + $0xc88] sm:$0xff]
    %v3744 = vld [vmem:[#allocation7 + $0xc90] sm:$0xff]
    %v3745 = vld [vmem:[#allocation7 + $0xc98] sm:$0xff]
    %v3746 = vld [vmem:[#allocation7 + $0xca0] sm:$0xff]
    %v3747 = vld [vmem:[#allocation7 + $0xca8] sm:$0xff]
    %v3748 = vld [vmem:[#allocation7 + $0xcb0] sm:$0xff]
    %v3749 = vld [vmem:[#allocation7 + $0xcb8] sm:$0xff]
    %v3750 = vld [vmem:[#allocation7 + $0xcc0] sm:$0xff]
    %v3751 = vld [vmem:[#allocation7 + $0xcc8] sm:$0xff]
    %v3752 = vld [vmem:[#allocation7 + $0xcd0] sm:$0xff]
    %v3753 = vld [vmem:[#allocation7 + $0xcd8] sm:$0xff]
    %v3754 = vld [vmem:[#allocation7 + $0xce0] sm:$0xff]
    %v3755 = vld [vmem:[#allocation7 + $0xce8] sm:$0xff]
    %v3756 = vld [vmem:[#allocation7 + $0xcf0] sm:$0xff]
    %v3757 = vld [vmem:[#allocation7 + $0xcf8] sm:$0xff]
    %v3758 = vld [vmem:[#allocation7 + $0xd00] sm:$0xff]
    %v3759 = vld [vmem:[#allocation7 + $0xd08] sm:$0xff]
    %v3760 = vld [vmem:[#allocation7 + $0xd10] sm:$0xff]
    %v3761 = vld [vmem:[#allocation7 + $0xd18] sm:$0xff]
    %v3762 = vld [vmem:[#allocation7 + $0xd20] sm:$0xff]
    %v3763 = vld [vmem:[#allocation7 + $0xd28] sm:$0xff]
    %v3764 = vld [vmem:[#allocation7 + $0xd30] sm:$0xff]
    %v3765 = vld [vmem:[#allocation7 + $0xd38] sm:$0xff]
    %v3766 = vld [vmem:[#allocation7 + $0xd40] sm:$0xff]
    %v3767 = vld [vmem:[#allocation7 + $0xd48] sm:$0xff]
    %v3768 = vld [vmem:[#allocation7 + $0xd50] sm:$0xff]
    %v3769 = vld [vmem:[#allocation7 + $0xd58] sm:$0xff]
    %v3770 = vld [vmem:[#allocation7 + $0xd60] sm:$0xff]
    %v3771 = vld [vmem:[#allocation7 + $0xd68] sm:$0xff]
    %v3772 = vld [vmem:[#allocation7 + $0xd70] sm:$0xff]
    %v3773 = vld [vmem:[#allocation7 + $0xd78] sm:$0xff]
    %v3774 = vld [vmem:[#allocation7 + $0xd80] sm:$0xff]
    %v3775 = vld [vmem:[#allocation7 + $0xd88] sm:$0xff]
    %v3776 = vld [vmem:[#allocation7 + $0xd90] sm:$0xff]
    %v3777 = vld [vmem:[#allocation7 + $0xd98] sm:$0xff]
    %v3778 = vld [vmem:[#allocation7 + $0xda0] sm:$0xff]
    %v3779 = vld [vmem:[#allocation7 + $0xda8] sm:$0xff]
    %v3780 = vld [vmem:[#allocation7 + $0xdb0] sm:$0xff]
    %v3781 = vld [vmem:[#allocation7 + $0xdb8] sm:$0xff]
    %v3782 = vld [vmem:[#allocation7 + $0xdc0] sm:$0xff]
    %v3783 = vld [vmem:[#allocation7 + $0xdc8] sm:$0xff]
    %v3784 = vld [vmem:[#allocation7 + $0xdd0] sm:$0xff]
    %v3785 = vld [vmem:[#allocation7 + $0xdd8] sm:$0xff]
    %v3786 = vld [vmem:[#allocation7 + $0xde0] sm:$0xff]
    %v3787 = vld [vmem:[#allocation7 + $0xde8] sm:$0xff]
    %v3788 = vld [vmem:[#allocation7 + $0xdf0] sm:$0xff]
    %v3789 = vld [vmem:[#allocation7 + $0xdf8] sm:$0xff]
    %v3790 = vld [vmem:[#allocation7 + $0xe00] sm:$0xff]
    %v3791 = vld [vmem:[#allocation7 + $0xe08] sm:$0xff]
    %v3792 = vld [vmem:[#allocation7 + $0xe10] sm:$0xff]
    %v3793 = vld [vmem:[#allocation7 + $0xe18] sm:$0xff]
    %v3794 = vld [vmem:[#allocation7 + $0xe20] sm:$0xff]
    %v3795 = vld [vmem:[#allocation7 + $0xe28] sm:$0xff]
    %v3796 = vld [vmem:[#allocation7 + $0xe30] sm:$0xff]
    %v3797 = vld [vmem:[#allocation7 + $0xe38] sm:$0xff]
    %v3798 = vld [vmem:[#allocation7 + $0xe40] sm:$0xff]
    %v3799 = vld [vmem:[#allocation7 + $0xe48] sm:$0xff]
    %v3800 = vld [vmem:[#allocation7 + $0xe50] sm:$0xff]
    %v3801 = vld [vmem:[#allocation7 + $0xe58] sm:$0xff]
    %v3802 = vld [vmem:[#allocation7 + $0xe60] sm:$0xff]
    %v3803 = vld [vmem:[#allocation7 + $0xe68] sm:$0xff]
    %v3804 = vld [vmem:[#allocation7 + $0xe70] sm:$0xff]
    %v3805 = vld [vmem:[#allocation7 + $0xe78] sm:$0xff]
    %v3806 = vld [vmem:[#allocation7 + $0xe80] sm:$0xff]
    %v3807 = vld [vmem:[#allocation7 + $0xe88] sm:$0xff]
    %v3808 = vld [vmem:[#allocation7 + $0xe90] sm:$0xff]
    %v3809 = vld [vmem:[#allocation7 + $0xe98] sm:$0xff]
    %v3810 = vld [vmem:[#allocation7 + $0xea0] sm:$0xff]
    %v3811 = vld [vmem:[#allocation7 + $0xea8] sm:$0xff]
    %v3812 = vld [vmem:[#allocation7 + $0xeb0] sm:$0xff]
    %v3813 = vld [vmem:[#allocation7 + $0xeb8] sm:$0xff]
    %v3814 = vld [vmem:[#allocation7 + $0xec0] sm:$0xff]
    %v3815 = vld [vmem:[#allocation7 + $0xec8] sm:$0xff]
    %v3816 = vld [vmem:[#allocation7 + $0xed0] sm:$0xff]
    %v3817 = vld [vmem:[#allocation7 + $0xed8] sm:$0xff]
    %v3818 = vld [vmem:[#allocation7 + $0xee0] sm:$0xff]
    %v3819 = vld [vmem:[#allocation7 + $0xee8] sm:$0xff]
    %v3820 = vld [vmem:[#allocation7 + $0xef0] sm:$0xff]
    %v3821 = vld [vmem:[#allocation7 + $0xef8] sm:$0xff]
    %v3822 = vld [vmem:[#allocation7 + $0xf00] sm:$0xff]
    %v3823 = vld [vmem:[#allocation7 + $0xf08] sm:$0xff]
    %v3824 = vld [vmem:[#allocation7 + $0xf10] sm:$0xff]
    %v3825 = vld [vmem:[#allocation7 + $0xf18] sm:$0xff]
    %v3826 = vld [vmem:[#allocation7 + $0xf20] sm:$0xff]
    %v3827 = vld [vmem:[#allocation7 + $0xf28] sm:$0xff]
    %v3828 = vld [vmem:[#allocation7 + $0xf30] sm:$0xff]
    %v3829 = vld [vmem:[#allocation7 + $0xf38] sm:$0xff]
    %v3830 = vld [vmem:[#allocation7 + $0xf40] sm:$0xff]
    %v3831 = vld [vmem:[#allocation7 + $0xf48] sm:$0xff]
    %v3832 = vld [vmem:[#allocation7 + $0xf50] sm:$0xff]
    %v3833 = vld [vmem:[#allocation7 + $0xf58] sm:$0xff]
    %v3834 = vld [vmem:[#allocation7 + $0xf60] sm:$0xff]
    %v3835 = vld [vmem:[#allocation7 + $0xf68] sm:$0xff]
    %v3836 = vld [vmem:[#allocation7 + $0xf70] sm:$0xff]
    %v3837 = vld [vmem:[#allocation7 + $0xf78] sm:$0xff]
    %v3838 = vld [vmem:[#allocation7 + $0xf80] sm:$0xff]
    %v3839 = vld [vmem:[#allocation7 + $0xf88] sm:$0xff]
    %v3840 = vld [vmem:[#allocation7 + $0xf90] sm:$0xff]
    %v3841 = vld [vmem:[#allocation7 + $0xf98] sm:$0xff]
    %v3842 = vld [vmem:[#allocation8] sm:$0xf]
    %v3844 = vperm.slane %v3842, 0
    %v3845 = vperm.slane %v3842, 1
    %v3846 = vperm.slane %v3842, 2
    %v3847 = vperm.slane %v3842, 3
    %v4352 = vunpack.c.l.b16 %v3342
    %v4353 = vunpack.c.h.b16 %v3342
    %v4354 = vunpack.c.l.b16 %v3343
    %v4355 = vunpack.c.h.b16 %v3343
    %v4356 = vunpack.c.l.b16 %v3344
    %v4357 = vunpack.c.h.b16 %v3344
    %v4358 = vunpack.c.l.b16 %v3345
    %v4359 = vunpack.c.h.b16 %v3345
    %v4360 = vunpack.c.l.b16 %v3346
    %v4361 = vunpack.c.h.b16 %v3346
    %v4362 = vunpack.c.l.b16 %v3347
    %v4363 = vunpack.c.h.b16 %v3347
    %v4364 = vunpack.c.l.b16 %v3348
    %v4365 = vunpack.c.h.b16 %v3348
    %v4366 = vunpack.c.l.b16 %v3349
    %v4367 = vunpack.c.h.b16 %v3349
    %v4368 = vunpack.c.l.b16 %v3350
    %v4369 = vunpack.c.h.b16 %v3350
    %v4370 = vunpack.c.l.b16 %v3351
    %v4371 = vunpack.c.h.b16 %v3351
    %v4372 = vunpack.c.l.b16 %v3352
    %v4373 = vunpack.c.h.b16 %v3352
    %v4374 = vunpack.c.l.b16 %v3353
    %v4375 = vunpack.c.h.b16 %v3353
    %v4376 = vunpack.c.l.b16 %v3354
    %v4377 = vunpack.c.h.b16 %v3354
    %v4378 = vunpack.c.l.b16 %v3355
    %v4379 = vunpack.c.h.b16 %v3355
    %v4380 = vunpack.c.l.b16 %v3356
    %v4381 = vunpack.c.h.b16 %v3356
    %v4382 = vunpack.c.l.b16 %v3357
    %v4383 = vunpack.c.h.b16 %v3357
    %v4384 = vunpack.c.l.b16 %v3358
    %v4385 = vunpack.c.h.b16 %v3358
    %v4386 = vunpack.c.l.b16 %v3359
    %v4387 = vunpack.c.h.b16 %v3359
    %v4388 = vunpack.c.l.b16 %v3360
    %v4389 = vunpack.c.h.b16 %v3360
    %v4390 = vunpack.c.l.b16 %v3361
    %v4391 = vunpack.c.h.b16 %v3361
    %v4392 = vunpack.c.l.b16 %v3362
    %v4393 = vunpack.c.h.b16 %v3362
    %v4394 = vunpack.c.l.b16 %v3363
    %v4395 = vunpack.c.h.b16 %v3363
    %v4396 = vunpack.c.l.b16 %v3364
    %v4397 = vunpack.c.h.b16 %v3364
    %v4398 = vunpack.c.l.b16 %v3365
    %v4399 = vunpack.c.h.b16 %v3365
    %v4400 = vunpack.c.l.b16 %v3366
    %v4401 = vunpack.c.h.b16 %v3366
    %v4402 = vunpack.c.l.b16 %v3367
    %v4403 = vunpack.c.h.b16 %v3367
    %v4404 = vunpack.c.l.b16 %v3368
    %v4405 = vunpack.c.h.b16 %v3368
    %v4406 = vunpack.c.l.b16 %v3369
    %v4407 = vunpack.c.h.b16 %v3369
    %v4408 = vunpack.c.l.b16 %v3370
    %v4409 = vunpack.c.h.b16 %v3370
    %v4410 = vunpack.c.l.b16 %v3371
    %v4411 = vunpack.c.h.b16 %v3371
    %v4412 = vunpack.c.l.b16 %v3372
    %v4413 = vunpack.c.h.b16 %v3372
    %v4414 = vunpack.c.l.b16 %v3373
    %v4415 = vunpack.c.h.b16 %v3373
    %v4416 = vunpack.c.l.b16 %v3374
    %v4417 = vunpack.c.h.b16 %v3374
    %v4418 = vunpack.c.l.b16 %v3375
    %v4419 = vunpack.c.h.b16 %v3375
    %v4420 = vunpack.c.l.b16 %v3376
    %v4421 = vunpack.c.h.b16 %v3376
    %v4422 = vunpack.c.l.b16 %v3377
    %v4423 = vunpack.c.h.b16 %v3377
    %v4424 = vunpack.c.l.b16 %v3378
    %v4425 = vunpack.c.h.b16 %v3378
    %v4426 = vunpack.c.l.b16 %v3379
    %v4427 = vunpack.c.h.b16 %v3379
    %v4428 = vunpack.c.l.b16 %v3380
    %v4429 = vunpack.c.h.b16 %v3380
    %v4430 = vunpack.c.l.b16 %v3381
    %v4431 = vunpack.c.h.b16 %v3381
    %v4432 = vunpack.c.l.b16 %v3382
    %v4433 = vunpack.c.h.b16 %v3382
    %v4434 = vunpack.c.l.b16 %v3383
    %v4435 = vunpack.c.h.b16 %v3383
    %v4436 = vunpack.c.l.b16 %v3384
    %v4437 = vunpack.c.h.b16 %v3384
    %v4438 = vunpack.c.l.b16 %v3385
    %v4439 = vunpack.c.h.b16 %v3385
    %v4440 = vunpack.c.l.b16 %v3386
    %v4441 = vunpack.c.h.b16 %v3386
    %v4442 = vunpack.c.l.b16 %v3387
    %v4443 = vunpack.c.h.b16 %v3387
    %v4444 = vunpack.c.l.b16 %v3388
    %v4445 = vunpack.c.h.b16 %v3388
    %v4446 = vunpack.c.l.b16 %v3389
    %v4447 = vunpack.c.h.b16 %v3389
    %v4448 = vunpack.c.l.b16 %v3390
    %v4449 = vunpack.c.h.b16 %v3390
    %v4450 = vunpack.c.l.b16 %v3391
    %v4451 = vunpack.c.h.b16 %v3391
    %v4452 = vunpack.c.l.b16 %v3392
    %v4453 = vunpack.c.h.b16 %v3392
    %v4454 = vunpack.c.l.b16 %v3393
    %v4455 = vunpack.c.h.b16 %v3393
    %v4456 = vunpack.c.l.b16 %v3394
    %v4457 = vunpack.c.h.b16 %v3394
    %v4458 = vunpack.c.l.b16 %v3395
    %v4459 = vunpack.c.h.b16 %v3395
    %v4460 = vunpack.c.l.b16 %v3396
    %v4461 = vunpack.c.h.b16 %v3396
    %v4462 = vunpack.c.l.b16 %v3397
    %v4463 = vunpack.c.h.b16 %v3397
    %v4464 = vunpack.c.l.b16 %v3398
    %v4465 = vunpack.c.h.b16 %v3398
    %v4466 = vunpack.c.l.b16 %v3399
    %v4467 = vunpack.c.h.b16 %v3399
    %v4468 = vunpack.c.l.b16 %v3400
    %v4469 = vunpack.c.h.b16 %v3400
    %v4470 = vunpack.c.l.b16 %v3401
    %v4471 = vunpack.c.h.b16 %v3401
    %v4472 = vunpack.c.l.b16 %v3402
    %v4473 = vunpack.c.h.b16 %v3402
    %v4474 = vunpack.c.l.b16 %v3403
    %v4475 = vunpack.c.h.b16 %v3403
    %v4476 = vunpack.c.l.b16 %v3404
    %v4477 = vunpack.c.h.b16 %v3404
    %v4478 = vunpack.c.l.b16 %v3405
    %v4479 = vunpack.c.h.b16 %v3405
    %v4480 = vunpack.c.l.b16 %v3406
    %v4481 = vunpack.c.h.b16 %v3406
    %v4482 = vunpack.c.l.b16 %v3407
    %v4483 = vunpack.c.h.b16 %v3407
    %v4484 = vunpack.c.l.b16 %v3408
    %v4485 = vunpack.c.h.b16 %v3408
    %v4486 = vunpack.c.l.b16 %v3409
    %v4487 = vunpack.c.h.b16 %v3409
    %v4488 = vunpack.c.l.b16 %v3410
    %v4489 = vunpack.c.h.b16 %v3410
    %v4490 = vunpack.c.l.b16 %v3411
    %v4491 = vunpack.c.h.b16 %v3411
    %v4492 = vunpack.c.l.b16 %v3412
    %v4493 = vunpack.c.h.b16 %v3412
    %v4494 = vunpack.c.l.b16 %v3413
    %v4495 = vunpack.c.h.b16 %v3413
    %v4496 = vunpack.c.l.b16 %v3414
    %v4497 = vunpack.c.h.b16 %v3414
    %v4498 = vunpack.c.l.b16 %v3415
    %v4499 = vunpack.c.h.b16 %v3415
    %v4500 = vunpack.c.l.b16 %v3416
    %v4501 = vunpack.c.h.b16 %v3416
    %v4502 = vunpack.c.l.b16 %v3417
    %v4503 = vunpack.c.h.b16 %v3417
    %v4504 = vunpack.c.l.b16 %v3418
    %v4505 = vunpack.c.h.b16 %v3418
    %v4506 = vunpack.c.l.b16 %v3419
    %v4507 = vunpack.c.h.b16 %v3419
    %v4508 = vunpack.c.l.b16 %v3420
    %v4509 = vunpack.c.h.b16 %v3420
    %v4510 = vunpack.c.l.b16 %v3421
    %v4511 = vunpack.c.h.b16 %v3421
    %v4512 = vunpack.c.l.b16 %v3422
    %v4513 = vunpack.c.h.b16 %v3422
    %v4514 = vunpack.c.l.b16 %v3423
    %v4515 = vunpack.c.h.b16 %v3423
    %v4516 = vunpack.c.l.b16 %v3424
    %v4517 = vunpack.c.h.b16 %v3424
    %v4518 = vunpack.c.l.b16 %v3425
    %v4519 = vunpack.c.h.b16 %v3425
    %v4520 = vunpack.c.l.b16 %v3426
    %v4521 = vunpack.c.h.b16 %v3426
    %v4522 = vunpack.c.l.b16 %v3427
    %v4523 = vunpack.c.h.b16 %v3427
    %v4524 = vunpack.c.l.b16 %v3428
    %v4525 = vunpack.c.h.b16 %v3428
    %v4526 = vunpack.c.l.b16 %v3429
    %v4527 = vunpack.c.h.b16 %v3429
    %v4528 = vunpack.c.l.b16 %v3430
    %v4529 = vunpack.c.h.b16 %v3430
    %v4530 = vunpack.c.l.b16 %v3431
    %v4531 = vunpack.c.h.b16 %v3431
    %v4532 = vunpack.c.l.b16 %v3432
    %v4533 = vunpack.c.h.b16 %v3432
    %v4534 = vunpack.c.l.b16 %v3433
    %v4535 = vunpack.c.h.b16 %v3433
    %v4536 = vunpack.c.l.b16 %v3434
    %v4537 = vunpack.c.h.b16 %v3434
    %v4538 = vunpack.c.l.b16 %v3435
    %v4539 = vunpack.c.h.b16 %v3435
    %v4540 = vunpack.c.l.b16 %v3436
    %v4541 = vunpack.c.h.b16 %v3436
    %v4542 = vunpack.c.l.b16 %v3437
    %v4543 = vunpack.c.h.b16 %v3437
    %v4544 = vunpack.c.l.b16 %v3438
    %v4545 = vunpack.c.h.b16 %v3438
    %v4546 = vunpack.c.l.b16 %v3439
    %v4547 = vunpack.c.h.b16 %v3439
    %v4548 = vunpack.c.l.b16 %v3440
    %v4549 = vunpack.c.h.b16 %v3440
    %v4550 = vunpack.c.l.b16 %v3441
    %v4551 = vunpack.c.h.b16 %v3441
    %v4552 = vunpack.c.l.b16 %v3442
    %v4553 = vunpack.c.h.b16 %v3442
    %v4554 = vunpack.c.l.b16 %v3443
    %v4555 = vunpack.c.h.b16 %v3443
    %v4556 = vunpack.c.l.b16 %v3444
    %v4557 = vunpack.c.h.b16 %v3444
    %v4558 = vunpack.c.l.b16 %v3445
    %v4559 = vunpack.c.h.b16 %v3445
    %v4560 = vunpack.c.l.b16 %v3446
    %v4561 = vunpack.c.h.b16 %v3446
    %v4562 = vunpack.c.l.b16 %v3447
    %v4563 = vunpack.c.h.b16 %v3447
    %v4564 = vunpack.c.l.b16 %v3448
    %v4565 = vunpack.c.h.b16 %v3448
    %v4566 = vunpack.c.l.b16 %v3449
    %v4567 = vunpack.c.h.b16 %v3449
    %v4568 = vunpack.c.l.b16 %v3450
    %v4569 = vunpack.c.h.b16 %v3450
    %v4570 = vunpack.c.l.b16 %v3451
    %v4571 = vunpack.c.h.b16 %v3451
    %v4572 = vunpack.c.l.b16 %v3452
    %v4573 = vunpack.c.h.b16 %v3452
    %v4574 = vunpack.c.l.b16 %v3453
    %v4575 = vunpack.c.h.b16 %v3453
    %v4576 = vunpack.c.l.b16 %v3454
    %v4577 = vunpack.c.h.b16 %v3454
    %v4578 = vunpack.c.l.b16 %v3455
    %v4579 = vunpack.c.h.b16 %v3455
    %v4580 = vunpack.c.l.b16 %v3456
    %v4581 = vunpack.c.h.b16 %v3456
    %v4582 = vunpack.c.l.b16 %v3457
    %v4583 = vunpack.c.h.b16 %v3457
    %v4584 = vunpack.c.l.b16 %v3458
    %v4585 = vunpack.c.h.b16 %v3458
    %v4586 = vunpack.c.l.b16 %v3459
    %v4587 = vunpack.c.h.b16 %v3459
    %v4588 = vunpack.c.l.b16 %v3460
    %v4589 = vunpack.c.h.b16 %v3460
    %v4590 = vunpack.c.l.b16 %v3461
    %v4591 = vunpack.c.h.b16 %v3461
    %v4592 = vunpack.c.l.b16 %v3462
    %v4593 = vunpack.c.h.b16 %v3462
    %v4594 = vunpack.c.l.b16 %v3463
    %v4595 = vunpack.c.h.b16 %v3463
    %v4596 = vunpack.c.l.b16 %v3464
    %v4597 = vunpack.c.h.b16 %v3464
    %v4598 = vunpack.c.l.b16 %v3465
    %v4599 = vunpack.c.h.b16 %v3465
    %v4600 = vunpack.c.l.b16 %v3466
    %v4601 = vunpack.c.h.b16 %v3466
    %v4602 = vunpack.c.l.b16 %v3467
    %v4603 = vunpack.c.h.b16 %v3467
    %v4604 = vunpack.c.l.b16 %v3468
    %v4605 = vunpack.c.h.b16 %v3468
    %v4606 = vunpack.c.l.b16 %v3469
    %v4607 = vunpack.c.h.b16 %v3469
    %v4608 = vunpack.c.l.b16 %v3470
    %v4609 = vunpack.c.h.b16 %v3470
    %v4610 = vunpack.c.l.b16 %v3471
    %v4611 = vunpack.c.h.b16 %v3471
    %v4612 = vunpack.c.l.b16 %v3472
    %v4613 = vunpack.c.h.b16 %v3472
    %v4614 = vunpack.c.l.b16 %v3473
    %v4615 = vunpack.c.h.b16 %v3473
    %v4616 = vunpack.c.l.b16 %v3474
    %v4617 = vunpack.c.h.b16 %v3474
    %v4618 = vunpack.c.l.b16 %v3475
    %v4619 = vunpack.c.h.b16 %v3475
    %v4620 = vunpack.c.l.b16 %v3476
    %v4621 = vunpack.c.h.b16 %v3476
    %v4622 = vunpack.c.l.b16 %v3477
    %v4623 = vunpack.c.h.b16 %v3477
    %v4624 = vunpack.c.l.b16 %v3478
    %v4625 = vunpack.c.h.b16 %v3478
    %v4626 = vunpack.c.l.b16 %v3479
    %v4627 = vunpack.c.h.b16 %v3479
    %v4628 = vunpack.c.l.b16 %v3480
    %v4629 = vunpack.c.h.b16 %v3480
    %v4630 = vunpack.c.l.b16 %v3481
    %v4631 = vunpack.c.h.b16 %v3481
    %v4632 = vunpack.c.l.b16 %v3482
    %v4633 = vunpack.c.h.b16 %v3482
    %v4634 = vunpack.c.l.b16 %v3483
    %v4635 = vunpack.c.h.b16 %v3483
    %v4636 = vunpack.c.l.b16 %v3484
    %v4637 = vunpack.c.h.b16 %v3484
    %v4638 = vunpack.c.l.b16 %v3485
    %v4639 = vunpack.c.h.b16 %v3485
    %v4640 = vunpack.c.l.b16 %v3486
    %v4641 = vunpack.c.h.b16 %v3486
    %v4642 = vunpack.c.l.b16 %v3487
    %v4643 = vunpack.c.h.b16 %v3487
    %v4644 = vunpack.c.l.b16 %v3488
    %v4645 = vunpack.c.h.b16 %v3488
    %v4646 = vunpack.c.l.b16 %v3489
    %v4647 = vunpack.c.h.b16 %v3489
    %v4648 = vunpack.c.l.b16 %v3490
    %v4649 = vunpack.c.h.b16 %v3490
    %v4650 = vunpack.c.l.b16 %v3491
    %v4651 = vunpack.c.h.b16 %v3491
    %v4652 = vunpack.c.l.b16 %v3492
    %v4653 = vunpack.c.h.b16 %v3492
    %v4654 = vunpack.c.l.b16 %v3493
    %v4655 = vunpack.c.h.b16 %v3493
    %v4656 = vunpack.c.l.b16 %v3494
    %v4657 = vunpack.c.h.b16 %v3494
    %v4658 = vunpack.c.l.b16 %v3495
    %v4659 = vunpack.c.h.b16 %v3495
    %v4660 = vunpack.c.l.b16 %v3496
    %v4661 = vunpack.c.h.b16 %v3496
    %v4662 = vunpack.c.l.b16 %v3497
    %v4663 = vunpack.c.h.b16 %v3497
    %v4664 = vunpack.c.l.b16 %v3498
    %v4665 = vunpack.c.h.b16 %v3498
    %v4666 = vunpack.c.l.b16 %v3499
    %v4667 = vunpack.c.h.b16 %v3499
    %v4668 = vunpack.c.l.b16 %v3500
    %v4669 = vunpack.c.h.b16 %v3500
    %v4670 = vunpack.c.l.b16 %v3501
    %v4671 = vunpack.c.h.b16 %v3501
    %v4672 = vunpack.c.l.b16 %v3502
    %v4673 = vunpack.c.h.b16 %v3502
    %v4674 = vunpack.c.l.b16 %v3503
    %v4675 = vunpack.c.h.b16 %v3503
    %v4676 = vunpack.c.l.b16 %v3504
    %v4677 = vunpack.c.h.b16 %v3504
    %v4678 = vunpack.c.l.b16 %v3505
    %v4679 = vunpack.c.h.b16 %v3505
    %v4680 = vunpack.c.l.b16 %v3506
    %v4681 = vunpack.c.h.b16 %v3506
    %v4682 = vunpack.c.l.b16 %v3507
    %v4683 = vunpack.c.h.b16 %v3507
    %v4684 = vunpack.c.l.b16 %v3508
    %v4685 = vunpack.c.h.b16 %v3508
    %v4686 = vunpack.c.l.b16 %v3509
    %v4687 = vunpack.c.h.b16 %v3509
    %v4688 = vunpack.c.l.b16 %v3510
    %v4689 = vunpack.c.h.b16 %v3510
    %v4690 = vunpack.c.l.b16 %v3511
    %v4691 = vunpack.c.h.b16 %v3511
    %v4692 = vunpack.c.l.b16 %v3512
    %v4693 = vunpack.c.h.b16 %v3512
    %v4694 = vunpack.c.l.b16 %v3513
    %v4695 = vunpack.c.h.b16 %v3513
    %v4696 = vunpack.c.l.b16 %v3514
    %v4697 = vunpack.c.h.b16 %v3514
    %v4698 = vunpack.c.l.b16 %v3515
    %v4699 = vunpack.c.h.b16 %v3515
    %v4700 = vunpack.c.l.b16 %v3516
    %v4701 = vunpack.c.h.b16 %v3516
    %v4702 = vunpack.c.l.b16 %v3517
    %v4703 = vunpack.c.h.b16 %v3517
    %v4704 = vunpack.c.l.b16 %v3518
    %v4705 = vunpack.c.h.b16 %v3518
    %v4706 = vunpack.c.l.b16 %v3519
    %v4707 = vunpack.c.h.b16 %v3519
    %v4708 = vunpack.c.l.b16 %v3520
    %v4709 = vunpack.c.h.b16 %v3520
    %v4710 = vunpack.c.l.b16 %v3521
    %v4711 = vunpack.c.h.b16 %v3521
    %v4712 = vunpack.c.l.b16 %v3522
    %v4713 = vunpack.c.h.b16 %v3522
    %v4714 = vunpack.c.l.b16 %v3523
    %v4715 = vunpack.c.h.b16 %v3523
    %v4716 = vunpack.c.l.b16 %v3524
    %v4717 = vunpack.c.h.b16 %v3524
    %v4718 = vunpack.c.l.b16 %v3525
    %v4719 = vunpack.c.h.b16 %v3525
    %v4720 = vunpack.c.l.b16 %v3526
    %v4721 = vunpack.c.h.b16 %v3526
    %v4722 = vunpack.c.l.b16 %v3527
    %v4723 = vunpack.c.h.b16 %v3527
    %v4724 = vunpack.c.l.b16 %v3528
    %v4725 = vunpack.c.h.b16 %v3528
    %v4726 = vunpack.c.l.b16 %v3529
    %v4727 = vunpack.c.h.b16 %v3529
    %v4728 = vunpack.c.l.b16 %v3530
    %v4729 = vunpack.c.h.b16 %v3530
    %v4730 = vunpack.c.l.b16 %v3531
    %v4731 = vunpack.c.h.b16 %v3531
    %v4732 = vunpack.c.l.b16 %v3532
    %v4733 = vunpack.c.h.b16 %v3532
    %v4734 = vunpack.c.l.b16 %v3533
    %v4735 = vunpack.c.h.b16 %v3533
    %v4736 = vunpack.c.l.b16 %v3534
    %v4737 = vunpack.c.h.b16 %v3534
    %v4738 = vunpack.c.l.b16 %v3535
    %v4739 = vunpack.c.h.b16 %v3535
    %v4740 = vunpack.c.l.b16 %v3536
    %v4741 = vunpack.c.h.b16 %v3536
    %v4742 = vunpack.c.l.b16 %v3537
    %v4743 = vunpack.c.h.b16 %v3537
    %v4744 = vunpack.c.l.b16 %v3538
    %v4745 = vunpack.c.h.b16 %v3538
    %v4746 = vunpack.c.l.b16 %v3539
    %v4747 = vunpack.c.h.b16 %v3539
    %v4748 = vunpack.c.l.b16 %v3540
    %v4749 = vunpack.c.h.b16 %v3540
    %v4750 = vunpack.c.l.b16 %v3541
    %v4751 = vunpack.c.h.b16 %v3541
    %v4752 = vunpack.c.l.b16 %v3542
    %v4753 = vunpack.c.h.b16 %v3542
    %v4754 = vunpack.c.l.b16 %v3543
    %v4755 = vunpack.c.h.b16 %v3543
    %v4756 = vunpack.c.l.b16 %v3544
    %v4757 = vunpack.c.h.b16 %v3544
    %v4758 = vunpack.c.l.b16 %v3545
    %v4759 = vunpack.c.h.b16 %v3545
    %v4760 = vunpack.c.l.b16 %v3546
    %v4761 = vunpack.c.h.b16 %v3546
    %v4762 = vunpack.c.l.b16 %v3547
    %v4763 = vunpack.c.h.b16 %v3547
    %v4764 = vunpack.c.l.b16 %v3548
    %v4765 = vunpack.c.h.b16 %v3548
    %v4766 = vunpack.c.l.b16 %v3549
    %v4767 = vunpack.c.h.b16 %v3549
    %v4768 = vunpack.c.l.b16 %v3550
    %v4769 = vunpack.c.h.b16 %v3550
    %v4770 = vunpack.c.l.b16 %v3551
    %v4771 = vunpack.c.h.b16 %v3551
    %v4772 = vunpack.c.l.b16 %v3552
    %v4773 = vunpack.c.h.b16 %v3552
    %v4774 = vunpack.c.l.b16 %v3553
    %v4775 = vunpack.c.h.b16 %v3553
    %v4776 = vunpack.c.l.b16 %v3554
    %v4777 = vunpack.c.h.b16 %v3554
    %v4778 = vunpack.c.l.b16 %v3555
    %v4779 = vunpack.c.h.b16 %v3555
    %v4780 = vunpack.c.l.b16 %v3556
    %v4781 = vunpack.c.h.b16 %v3556
    %v4782 = vunpack.c.l.b16 %v3557
    %v4783 = vunpack.c.h.b16 %v3557
    %v4784 = vunpack.c.l.b16 %v3558
    %v4785 = vunpack.c.h.b16 %v3558
    %v4786 = vunpack.c.l.b16 %v3559
    %v4787 = vunpack.c.h.b16 %v3559
    %v4788 = vunpack.c.l.b16 %v3560
    %v4789 = vunpack.c.h.b16 %v3560
    %v4790 = vunpack.c.l.b16 %v3561
    %v4791 = vunpack.c.h.b16 %v3561
    %v4792 = vunpack.c.l.b16 %v3562
    %v4793 = vunpack.c.h.b16 %v3562
    %v4794 = vunpack.c.l.b16 %v3563
    %v4795 = vunpack.c.h.b16 %v3563
    %v4796 = vunpack.c.l.b16 %v3564
    %v4797 = vunpack.c.h.b16 %v3564
    %v4798 = vunpack.c.l.b16 %v3565
    %v4799 = vunpack.c.h.b16 %v3565
    %v4800 = vunpack.c.l.b16 %v3566
    %v4801 = vunpack.c.h.b16 %v3566
    %v4802 = vunpack.c.l.b16 %v3567
    %v4803 = vunpack.c.h.b16 %v3567
    %v4804 = vunpack.c.l.b16 %v3568
    %v4805 = vunpack.c.h.b16 %v3568
    %v4806 = vunpack.c.l.b16 %v3569
    %v4807 = vunpack.c.h.b16 %v3569
    %v4808 = vunpack.c.l.b16 %v3570
    %v4809 = vunpack.c.h.b16 %v3570
    %v4810 = vunpack.c.l.b16 %v3571
    %v4811 = vunpack.c.h.b16 %v3571
    %v4812 = vunpack.c.l.b16 %v3572
    %v4813 = vunpack.c.h.b16 %v3572
    %v4814 = vunpack.c.l.b16 %v3573
    %v4815 = vunpack.c.h.b16 %v3573
    %v4816 = vunpack.c.l.b16 %v3574
    %v4817 = vunpack.c.h.b16 %v3574
    %v4818 = vunpack.c.l.b16 %v3575
    %v4819 = vunpack.c.h.b16 %v3575
    %v4820 = vunpack.c.l.b16 %v3576
    %v4821 = vunpack.c.h.b16 %v3576
    %v4822 = vunpack.c.l.b16 %v3577
    %v4823 = vunpack.c.h.b16 %v3577
    %v4824 = vunpack.c.l.b16 %v3578
    %v4825 = vunpack.c.h.b16 %v3578
    %v4826 = vunpack.c.l.b16 %v3579
    %v4827 = vunpack.c.h.b16 %v3579
    %v4828 = vunpack.c.l.b16 %v3580
    %v4829 = vunpack.c.h.b16 %v3580
    %v4830 = vunpack.c.l.b16 %v3581
    %v4831 = vunpack.c.h.b16 %v3581
    %v4832 = vunpack.c.l.b16 %v3582
    %v4833 = vunpack.c.h.b16 %v3582
    %v4834 = vunpack.c.l.b16 %v3583
    %v4835 = vunpack.c.h.b16 %v3583
    %v4836 = vunpack.c.l.b16 %v3584
    %v4837 = vunpack.c.h.b16 %v3584
    %v4838 = vunpack.c.l.b16 %v3585
    %v4839 = vunpack.c.h.b16 %v3585
    %v4840 = vunpack.c.l.b16 %v3586
    %v4841 = vunpack.c.h.b16 %v3586
    %v4842 = vunpack.c.l.b16 %v3587
    %v4843 = vunpack.c.h.b16 %v3587
    %v4844 = vunpack.c.l.b16 %v3588
    %v4845 = vunpack.c.h.b16 %v3588
    %v4846 = vunpack.c.l.b16 %v3589
    %v4847 = vunpack.c.h.b16 %v3589
    %v4848 = vunpack.c.l.b16 %v3590
    %v4849 = vunpack.c.h.b16 %v3590
    %v4850 = vunpack.c.l.b16 %v3591
    %v4851 = vunpack.c.h.b16 %v3591
    %v4852 = vunpack.c.l.b16 %v3592
    %v4853 = vunpack.c.h.b16 %v3592
    %v4854 = vunpack.c.l.b16 %v3593
    %v4855 = vunpack.c.h.b16 %v3593
    %v4856 = vunpack.c.l.b16 %v3594
    %v4857 = vunpack.c.h.b16 %v3594
    %v4858 = vunpack.c.l.b16 %v3595
    %v4859 = vunpack.c.h.b16 %v3595
    %v4860 = vunpack.c.l.b16 %v3596
    %v4861 = vunpack.c.h.b16 %v3596
    %v4862 = vunpack.c.l.b16 %v3597
    %v4863 = vunpack.c.h.b16 %v3597
    %v4864 = vunpack.c.l.b16 %v3598
    %v4865 = vunpack.c.h.b16 %v3598
    %v4866 = vunpack.c.l.b16 %v3599
    %v4867 = vunpack.c.h.b16 %v3599
    %v4868 = vunpack.c.l.b16 %v3600
    %v4869 = vunpack.c.h.b16 %v3600
    %v4870 = vunpack.c.l.b16 %v3601
    %v4871 = vunpack.c.h.b16 %v3601
    %v4872 = vunpack.c.l.b16 %v3602
    %v4873 = vunpack.c.h.b16 %v3602
    %v4874 = vunpack.c.l.b16 %v3603
    %v4875 = vunpack.c.h.b16 %v3603
    %v4876 = vunpack.c.l.b16 %v3604
    %v4877 = vunpack.c.h.b16 %v3604
    %v4878 = vunpack.c.l.b16 %v3605
    %v4879 = vunpack.c.h.b16 %v3605
    %v4880 = vunpack.c.l.b16 %v3606
    %v4881 = vunpack.c.h.b16 %v3606
    %v4882 = vunpack.c.l.b16 %v3607
    %v4883 = vunpack.c.h.b16 %v3607
    %v4884 = vunpack.c.l.b16 %v3608
    %v4885 = vunpack.c.h.b16 %v3608
    %v4886 = vunpack.c.l.b16 %v3609
    %v4887 = vunpack.c.h.b16 %v3609
    %v4888 = vunpack.c.l.b16 %v3610
    %v4889 = vunpack.c.h.b16 %v3610
    %v4890 = vunpack.c.l.b16 %v3611
    %v4891 = vunpack.c.h.b16 %v3611
    %v4892 = vunpack.c.l.b16 %v3612
    %v4893 = vunpack.c.h.b16 %v3612
    %v4894 = vunpack.c.l.b16 %v3613
    %v4895 = vunpack.c.h.b16 %v3613
    %v4896 = vunpack.c.l.b16 %v3614
    %v4897 = vunpack.c.h.b16 %v3614
    %v4898 = vunpack.c.l.b16 %v3615
    %v4899 = vunpack.c.h.b16 %v3615
    %v4900 = vunpack.c.l.b16 %v3616
    %v4901 = vunpack.c.h.b16 %v3616
    %v4902 = vunpack.c.l.b16 %v3617
    %v4903 = vunpack.c.h.b16 %v3617
    %v4904 = vunpack.c.l.b16 %v3618
    %v4905 = vunpack.c.h.b16 %v3618
    %v4906 = vunpack.c.l.b16 %v3619
    %v4907 = vunpack.c.h.b16 %v3619
    %v4908 = vunpack.c.l.b16 %v3620
    %v4909 = vunpack.c.h.b16 %v3620
    %v4910 = vunpack.c.l.b16 %v3621
    %v4911 = vunpack.c.h.b16 %v3621
    %v4912 = vunpack.c.l.b16 %v3622
    %v4913 = vunpack.c.h.b16 %v3622
    %v4914 = vunpack.c.l.b16 %v3623
    %v4915 = vunpack.c.h.b16 %v3623
    %v4916 = vunpack.c.l.b16 %v3624
    %v4917 = vunpack.c.h.b16 %v3624
    %v4918 = vunpack.c.l.b16 %v3625
    %v4919 = vunpack.c.h.b16 %v3625
    %v4920 = vunpack.c.l.b16 %v3626
    %v4921 = vunpack.c.h.b16 %v3626
    %v4922 = vunpack.c.l.b16 %v3627
    %v4923 = vunpack.c.h.b16 %v3627
    %v4924 = vunpack.c.l.b16 %v3628
    %v4925 = vunpack.c.h.b16 %v3628
    %v4926 = vunpack.c.l.b16 %v3629
    %v4927 = vunpack.c.h.b16 %v3629
    %v4928 = vunpack.c.l.b16 %v3630
    %v4929 = vunpack.c.h.b16 %v3630
    %v4930 = vunpack.c.l.b16 %v3631
    %v4931 = vunpack.c.h.b16 %v3631
    %v4932 = vunpack.c.l.b16 %v3632
    %v4933 = vunpack.c.h.b16 %v3632
    %v4934 = vunpack.c.l.b16 %v3633
    %v4935 = vunpack.c.h.b16 %v3633
    %v4936 = vunpack.c.l.b16 %v3634
    %v4937 = vunpack.c.h.b16 %v3634
    %v4938 = vunpack.c.l.b16 %v3635
    %v4939 = vunpack.c.h.b16 %v3635
    %v4940 = vunpack.c.l.b16 %v3636
    %v4941 = vunpack.c.h.b16 %v3636
    %v4942 = vunpack.c.l.b16 %v3637
    %v4943 = vunpack.c.h.b16 %v3637
    %v4944 = vunpack.c.l.b16 %v3638
    %v4945 = vunpack.c.h.b16 %v3638
    %v4946 = vunpack.c.l.b16 %v3639
    %v4947 = vunpack.c.h.b16 %v3639
    %v4948 = vunpack.c.l.b16 %v3640
    %v4949 = vunpack.c.h.b16 %v3640
    %v4950 = vunpack.c.l.b16 %v3641
    %v4951 = vunpack.c.h.b16 %v3641
    %v4952 = vunpack.c.l.b16 %v3642
    %v4953 = vunpack.c.h.b16 %v3642
    %v4954 = vunpack.c.l.b16 %v3643
    %v4955 = vunpack.c.h.b16 %v3643
    %v4956 = vunpack.c.l.b16 %v3644
    %v4957 = vunpack.c.h.b16 %v3644
    %v4958 = vunpack.c.l.b16 %v3645
    %v4959 = vunpack.c.h.b16 %v3645
    %v4960 = vunpack.c.l.b16 %v3646
    %v4961 = vunpack.c.h.b16 %v3646
    %v4962 = vunpack.c.l.b16 %v3647
    %v4963 = vunpack.c.h.b16 %v3647
    %v4964 = vunpack.c.l.b16 %v3648
    %v4965 = vunpack.c.h.b16 %v3648
    %v4966 = vunpack.c.l.b16 %v3649
    %v4967 = vunpack.c.h.b16 %v3649
    %v4968 = vunpack.c.l.b16 %v3650
    %v4969 = vunpack.c.h.b16 %v3650
    %v4970 = vunpack.c.l.b16 %v3651
    %v4971 = vunpack.c.h.b16 %v3651
    %v4972 = vunpack.c.l.b16 %v3652
    %v4973 = vunpack.c.h.b16 %v3652
    %v4974 = vunpack.c.l.b16 %v3653
    %v4975 = vunpack.c.h.b16 %v3653
    %v4976 = vunpack.c.l.b16 %v3654
    %v4977 = vunpack.c.h.b16 %v3654
    %v4978 = vunpack.c.l.b16 %v3655
    %v4979 = vunpack.c.h.b16 %v3655
    %v4980 = vunpack.c.l.b16 %v3656
    %v4981 = vunpack.c.h.b16 %v3656
    %v4982 = vunpack.c.l.b16 %v3657
    %v4983 = vunpack.c.h.b16 %v3657
    %v4984 = vunpack.c.l.b16 %v3658
    %v4985 = vunpack.c.h.b16 %v3658
    %v4986 = vunpack.c.l.b16 %v3659
    %v4987 = vunpack.c.h.b16 %v3659
    %v4988 = vunpack.c.l.b16 %v3660
    %v4989 = vunpack.c.h.b16 %v3660
    %v4990 = vunpack.c.l.b16 %v3661
    %v4991 = vunpack.c.h.b16 %v3661
    %v4992 = vunpack.c.l.b16 %v3662
    %v4993 = vunpack.c.h.b16 %v3662
    %v4994 = vunpack.c.l.b16 %v3663
    %v4995 = vunpack.c.h.b16 %v3663
    %v4996 = vunpack.c.l.b16 %v3664
    %v4997 = vunpack.c.h.b16 %v3664
    %v4998 = vunpack.c.l.b16 %v3665
    %v4999 = vunpack.c.h.b16 %v3665
    %v5000 = vunpack.c.l.b16 %v3666
    %v5001 = vunpack.c.h.b16 %v3666
    %v5002 = vunpack.c.l.b16 %v3667
    %v5003 = vunpack.c.h.b16 %v3667
    %v5004 = vunpack.c.l.b16 %v3668
    %v5005 = vunpack.c.h.b16 %v3668
    %v5006 = vunpack.c.l.b16 %v3669
    %v5007 = vunpack.c.h.b16 %v3669
    %v5008 = vunpack.c.l.b16 %v3670
    %v5009 = vunpack.c.h.b16 %v3670
    %v5010 = vunpack.c.l.b16 %v3671
    %v5011 = vunpack.c.h.b16 %v3671
    %v5012 = vunpack.c.l.b16 %v3672
    %v5013 = vunpack.c.h.b16 %v3672
    %v5014 = vunpack.c.l.b16 %v3673
    %v5015 = vunpack.c.h.b16 %v3673
    %v5016 = vunpack.c.l.b16 %v3674
    %v5017 = vunpack.c.h.b16 %v3674
    %v5018 = vunpack.c.l.b16 %v3675
    %v5019 = vunpack.c.h.b16 %v3675
    %v5020 = vunpack.c.l.b16 %v3676
    %v5021 = vunpack.c.h.b16 %v3676
    %v5022 = vunpack.c.l.b16 %v3677
    %v5023 = vunpack.c.h.b16 %v3677
    %v5024 = vunpack.c.l.b16 %v3678
    %v5025 = vunpack.c.h.b16 %v3678
    %v5026 = vunpack.c.l.b16 %v3679
    %v5027 = vunpack.c.h.b16 %v3679
    %v5028 = vunpack.c.l.b16 %v3680
    %v5029 = vunpack.c.h.b16 %v3680
    %v5030 = vunpack.c.l.b16 %v3681
    %v5031 = vunpack.c.h.b16 %v3681
    %v5032 = vunpack.c.l.b16 %v3682
    %v5033 = vunpack.c.h.b16 %v3682
    %v5034 = vunpack.c.l.b16 %v3683
    %v5035 = vunpack.c.h.b16 %v3683
    %v5036 = vunpack.c.l.b16 %v3684
    %v5037 = vunpack.c.h.b16 %v3684
    %v5038 = vunpack.c.l.b16 %v3685
    %v5039 = vunpack.c.h.b16 %v3685
    %v5040 = vunpack.c.l.b16 %v3686
    %v5041 = vunpack.c.h.b16 %v3686
    %v5042 = vunpack.c.l.b16 %v3687
    %v5043 = vunpack.c.h.b16 %v3687
    %v5044 = vunpack.c.l.b16 %v3688
    %v5045 = vunpack.c.h.b16 %v3688
    %v5046 = vunpack.c.l.b16 %v3689
    %v5047 = vunpack.c.h.b16 %v3689
    %v5048 = vunpack.c.l.b16 %v3690
    %v5049 = vunpack.c.h.b16 %v3690
    %v5050 = vunpack.c.l.b16 %v3691
    %v5051 = vunpack.c.h.b16 %v3691
    %v5052 = vunpack.c.l.b16 %v3692
    %v5053 = vunpack.c.h.b16 %v3692
    %v5054 = vunpack.c.l.b16 %v3693
    %v5055 = vunpack.c.h.b16 %v3693
    %v5056 = vunpack.c.l.b16 %v3694
    %v5057 = vunpack.c.h.b16 %v3694
    %v5058 = vunpack.c.l.b16 %v3695
    %v5059 = vunpack.c.h.b16 %v3695
    %v5060 = vunpack.c.l.b16 %v3696
    %v5061 = vunpack.c.h.b16 %v3696
    %v5062 = vunpack.c.l.b16 %v3697
    %v5063 = vunpack.c.h.b16 %v3697
    %v5064 = vunpack.c.l.b16 %v3698
    %v5065 = vunpack.c.h.b16 %v3698
    %v5066 = vunpack.c.l.b16 %v3699
    %v5067 = vunpack.c.h.b16 %v3699
    %v5068 = vunpack.c.l.b16 %v3700
    %v5069 = vunpack.c.h.b16 %v3700
    %v5070 = vunpack.c.l.b16 %v3701
    %v5071 = vunpack.c.h.b16 %v3701
    %v5072 = vunpack.c.l.b16 %v3702
    %v5073 = vunpack.c.h.b16 %v3702
    %v5074 = vunpack.c.l.b16 %v3703
    %v5075 = vunpack.c.h.b16 %v3703
    %v5076 = vunpack.c.l.b16 %v3704
    %v5077 = vunpack.c.h.b16 %v3704
    %v5078 = vunpack.c.l.b16 %v3705
    %v5079 = vunpack.c.h.b16 %v3705
    %v5080 = vunpack.c.l.b16 %v3706
    %v5081 = vunpack.c.h.b16 %v3706
    %v5082 = vunpack.c.l.b16 %v3707
    %v5083 = vunpack.c.h.b16 %v3707
    %v5084 = vunpack.c.l.b16 %v3708
    %v5085 = vunpack.c.h.b16 %v3708
    %v5086 = vunpack.c.l.b16 %v3709
    %v5087 = vunpack.c.h.b16 %v3709
    %v5088 = vunpack.c.l.b16 %v3710
    %v5089 = vunpack.c.h.b16 %v3710
    %v5090 = vunpack.c.l.b16 %v3711
    %v5091 = vunpack.c.h.b16 %v3711
    %v5092 = vunpack.c.l.b16 %v3712
    %v5093 = vunpack.c.h.b16 %v3712
    %v5094 = vunpack.c.l.b16 %v3713
    %v5095 = vunpack.c.h.b16 %v3713
    %v5096 = vunpack.c.l.b16 %v3714
    %v5097 = vunpack.c.h.b16 %v3714
    %v5098 = vunpack.c.l.b16 %v3715
    %v5099 = vunpack.c.h.b16 %v3715
    %v5100 = vunpack.c.l.b16 %v3716
    %v5101 = vunpack.c.h.b16 %v3716
    %v5102 = vunpack.c.l.b16 %v3717
    %v5103 = vunpack.c.h.b16 %v3717
    %v5104 = vunpack.c.l.b16 %v3718
    %v5105 = vunpack.c.h.b16 %v3718
    %v5106 = vunpack.c.l.b16 %v3719
    %v5107 = vunpack.c.h.b16 %v3719
    %v5108 = vunpack.c.l.b16 %v3720
    %v5109 = vunpack.c.h.b16 %v3720
    %v5110 = vunpack.c.l.b16 %v3721
    %v5111 = vunpack.c.h.b16 %v3721
    %v5112 = vunpack.c.l.b16 %v3722
    %v5113 = vunpack.c.h.b16 %v3722
    %v5114 = vunpack.c.l.b16 %v3723
    %v5115 = vunpack.c.h.b16 %v3723
    %v5116 = vunpack.c.l.b16 %v3724
    %v5117 = vunpack.c.h.b16 %v3724
    %v5118 = vunpack.c.l.b16 %v3725
    %v5119 = vunpack.c.h.b16 %v3725
    %v5120 = vunpack.c.l.b16 %v3726
    %v5121 = vunpack.c.h.b16 %v3726
    %v5122 = vunpack.c.l.b16 %v3727
    %v5123 = vunpack.c.h.b16 %v3727
    %v5124 = vunpack.c.l.b16 %v3728
    %v5125 = vunpack.c.h.b16 %v3728
    %v5126 = vunpack.c.l.b16 %v3729
    %v5127 = vunpack.c.h.b16 %v3729
    %v5128 = vunpack.c.l.b16 %v3730
    %v5129 = vunpack.c.h.b16 %v3730
    %v5130 = vunpack.c.l.b16 %v3731
    %v5131 = vunpack.c.h.b16 %v3731
    %v5132 = vunpack.c.l.b16 %v3732
    %v5133 = vunpack.c.h.b16 %v3732
    %v5134 = vunpack.c.l.b16 %v3733
    %v5135 = vunpack.c.h.b16 %v3733
    %v5136 = vunpack.c.l.b16 %v3734
    %v5137 = vunpack.c.h.b16 %v3734
    %v5138 = vunpack.c.l.b16 %v3735
    %v5139 = vunpack.c.h.b16 %v3735
    %v5140 = vunpack.c.l.b16 %v3736
    %v5141 = vunpack.c.h.b16 %v3736
    %v5142 = vunpack.c.l.b16 %v3737
    %v5143 = vunpack.c.h.b16 %v3737
    %v5144 = vunpack.c.l.b16 %v3738
    %v5145 = vunpack.c.h.b16 %v3738
    %v5146 = vunpack.c.l.b16 %v3739
    %v5147 = vunpack.c.h.b16 %v3739
    %v5148 = vunpack.c.l.b16 %v3740
    %v5149 = vunpack.c.h.b16 %v3740
    %v5150 = vunpack.c.l.b16 %v3741
    %v5151 = vunpack.c.h.b16 %v3741
    %v5152 = vunpack.c.l.b16 %v3742
    %v5153 = vunpack.c.h.b16 %v3742
    %v5154 = vunpack.c.l.b16 %v3743
    %v5155 = vunpack.c.h.b16 %v3743
    %v5156 = vunpack.c.l.b16 %v3744
    %v5157 = vunpack.c.h.b16 %v3744
    %v5158 = vunpack.c.l.b16 %v3745
    %v5159 = vunpack.c.h.b16 %v3745
    %v5160 = vunpack.c.l.b16 %v3746
    %v5161 = vunpack.c.h.b16 %v3746
    %v5162 = vunpack.c.l.b16 %v3747
    %v5163 = vunpack.c.h.b16 %v3747
    %v5164 = vunpack.c.l.b16 %v3748
    %v5165 = vunpack.c.h.b16 %v3748
    %v5166 = vunpack.c.l.b16 %v3749
    %v5167 = vunpack.c.h.b16 %v3749
    %v5168 = vunpack.c.l.b16 %v3750
    %v5169 = vunpack.c.h.b16 %v3750
    %v5170 = vunpack.c.l.b16 %v3751
    %v5171 = vunpack.c.h.b16 %v3751
    %v5172 = vunpack.c.l.b16 %v3752
    %v5173 = vunpack.c.h.b16 %v3752
    %v5174 = vunpack.c.l.b16 %v3753
    %v5175 = vunpack.c.h.b16 %v3753
    %v5176 = vunpack.c.l.b16 %v3754
    %v5177 = vunpack.c.h.b16 %v3754
    %v5178 = vunpack.c.l.b16 %v3755
    %v5179 = vunpack.c.h.b16 %v3755
    %v5180 = vunpack.c.l.b16 %v3756
    %v5181 = vunpack.c.h.b16 %v3756
    %v5182 = vunpack.c.l.b16 %v3757
    %v5183 = vunpack.c.h.b16 %v3757
    %v5184 = vunpack.c.l.b16 %v3758
    %v5185 = vunpack.c.h.b16 %v3758
    %v5186 = vunpack.c.l.b16 %v3759
    %v5187 = vunpack.c.h.b16 %v3759
    %v5188 = vunpack.c.l.b16 %v3760
    %v5189 = vunpack.c.h.b16 %v3760
    %v5190 = vunpack.c.l.b16 %v3761
    %v5191 = vunpack.c.h.b16 %v3761
    %v5192 = vunpack.c.l.b16 %v3762
    %v5193 = vunpack.c.h.b16 %v3762
    %v5194 = vunpack.c.l.b16 %v3763
    %v5195 = vunpack.c.h.b16 %v3763
    %v5196 = vunpack.c.l.b16 %v3764
    %v5197 = vunpack.c.h.b16 %v3764
    %v5198 = vunpack.c.l.b16 %v3765
    %v5199 = vunpack.c.h.b16 %v3765
    %v5200 = vunpack.c.l.b16 %v3766
    %v5201 = vunpack.c.h.b16 %v3766
    %v5202 = vunpack.c.l.b16 %v3767
    %v5203 = vunpack.c.h.b16 %v3767
    %v5204 = vunpack.c.l.b16 %v3768
    %v5205 = vunpack.c.h.b16 %v3768
    %v5206 = vunpack.c.l.b16 %v3769
    %v5207 = vunpack.c.h.b16 %v3769
    %v5208 = vunpack.c.l.b16 %v3770
    %v5209 = vunpack.c.h.b16 %v3770
    %v5210 = vunpack.c.l.b16 %v3771
    %v5211 = vunpack.c.h.b16 %v3771
    %v5212 = vunpack.c.l.b16 %v3772
    %v5213 = vunpack.c.h.b16 %v3772
    %v5214 = vunpack.c.l.b16 %v3773
    %v5215 = vunpack.c.h.b16 %v3773
    %v5216 = vunpack.c.l.b16 %v3774
    %v5217 = vunpack.c.h.b16 %v3774
    %v5218 = vunpack.c.l.b16 %v3775
    %v5219 = vunpack.c.h.b16 %v3775
    %v5220 = vunpack.c.l.b16 %v3776
    %v5221 = vunpack.c.h.b16 %v3776
    %v5222 = vunpack.c.l.b16 %v3777
    %v5223 = vunpack.c.h.b16 %v3777
    %v5224 = vunpack.c.l.b16 %v3778
    %v5225 = vunpack.c.h.b16 %v3778
    %v5226 = vunpack.c.l.b16 %v3779
    %v5227 = vunpack.c.h.b16 %v3779
    %v5228 = vunpack.c.l.b16 %v3780
    %v5229 = vunpack.c.h.b16 %v3780
    %v5230 = vunpack.c.l.b16 %v3781
    %v5231 = vunpack.c.h.b16 %v3781
    %v5232 = vunpack.c.l.b16 %v3782
    %v5233 = vunpack.c.h.b16 %v3782
    %v5234 = vunpack.c.l.b16 %v3783
    %v5235 = vunpack.c.h.b16 %v3783
    %v5236 = vunpack.c.l.b16 %v3784
    %v5237 = vunpack.c.h.b16 %v3784
    %v5238 = vunpack.c.l.b16 %v3785
    %v5239 = vunpack.c.h.b16 %v3785
    %v5240 = vunpack.c.l.b16 %v3786
    %v5241 = vunpack.c.h.b16 %v3786
    %v5242 = vunpack.c.l.b16 %v3787
    %v5243 = vunpack.c.h.b16 %v3787
    %v5244 = vunpack.c.l.b16 %v3788
    %v5245 = vunpack.c.h.b16 %v3788
    %v5246 = vunpack.c.l.b16 %v3789
    %v5247 = vunpack.c.h.b16 %v3789
    %v5248 = vunpack.c.l.b16 %v3790
    %v5249 = vunpack.c.h.b16 %v3790
    %v5250 = vunpack.c.l.b16 %v3791
    %v5251 = vunpack.c.h.b16 %v3791
    %v5252 = vunpack.c.l.b16 %v3792
    %v5253 = vunpack.c.h.b16 %v3792
    %v5254 = vunpack.c.l.b16 %v3793
    %v5255 = vunpack.c.h.b16 %v3793
    %v5256 = vunpack.c.l.b16 %v3794
    %v5257 = vunpack.c.h.b16 %v3794
    %v5258 = vunpack.c.l.b16 %v3795
    %v5259 = vunpack.c.h.b16 %v3795
    %v5260 = vunpack.c.l.b16 %v3796
    %v5261 = vunpack.c.h.b16 %v3796
    %v5262 = vunpack.c.l.b16 %v3797
    %v5263 = vunpack.c.h.b16 %v3797
    %v5264 = vunpack.c.l.b16 %v3798
    %v5265 = vunpack.c.h.b16 %v3798
    %v5266 = vunpack.c.l.b16 %v3799
    %v5267 = vunpack.c.h.b16 %v3799
    %v5268 = vunpack.c.l.b16 %v3800
    %v5269 = vunpack.c.h.b16 %v3800
    %v5270 = vunpack.c.l.b16 %v3801
    %v5271 = vunpack.c.h.b16 %v3801
    %v5272 = vunpack.c.l.b16 %v3802
    %v5273 = vunpack.c.h.b16 %v3802
    %v5274 = vunpack.c.l.b16 %v3803
    %v5275 = vunpack.c.h.b16 %v3803
    %v5276 = vunpack.c.l.b16 %v3804
    %v5277 = vunpack.c.h.b16 %v3804
    %v5278 = vunpack.c.l.b16 %v3805
    %v5279 = vunpack.c.h.b16 %v3805
    %v5280 = vunpack.c.l.b16 %v3806
    %v5281 = vunpack.c.h.b16 %v3806
    %v5282 = vunpack.c.l.b16 %v3807
    %v5283 = vunpack.c.h.b16 %v3807
    %v5284 = vunpack.c.l.b16 %v3808
    %v5285 = vunpack.c.h.b16 %v3808
    %v5286 = vunpack.c.l.b16 %v3809
    %v5287 = vunpack.c.h.b16 %v3809
    %v5288 = vunpack.c.l.b16 %v3810
    %v5289 = vunpack.c.h.b16 %v3810
    %v5290 = vunpack.c.l.b16 %v3811
    %v5291 = vunpack.c.h.b16 %v3811
    %v5292 = vunpack.c.l.b16 %v3812
    %v5293 = vunpack.c.h.b16 %v3812
    %v5294 = vunpack.c.l.b16 %v3813
    %v5295 = vunpack.c.h.b16 %v3813
    %v5296 = vunpack.c.l.b16 %v3814
    %v5297 = vunpack.c.h.b16 %v3814
    %v5298 = vunpack.c.l.b16 %v3815
    %v5299 = vunpack.c.h.b16 %v3815
    %v5300 = vunpack.c.l.b16 %v3816
    %v5301 = vunpack.c.h.b16 %v3816
    %v5302 = vunpack.c.l.b16 %v3817
    %v5303 = vunpack.c.h.b16 %v3817
    %v5304 = vunpack.c.l.b16 %v3818
    %v5305 = vunpack.c.h.b16 %v3818
    %v5306 = vunpack.c.l.b16 %v3819
    %v5307 = vunpack.c.h.b16 %v3819
    %v5308 = vunpack.c.l.b16 %v3820
    %v5309 = vunpack.c.h.b16 %v3820
    %v5310 = vunpack.c.l.b16 %v3821
    %v5311 = vunpack.c.h.b16 %v3821
    %v5312 = vunpack.c.l.b16 %v3822
    %v5313 = vunpack.c.h.b16 %v3822
    %v5314 = vunpack.c.l.b16 %v3823
    %v5315 = vunpack.c.h.b16 %v3823
    %v5316 = vunpack.c.l.b16 %v3824
    %v5317 = vunpack.c.h.b16 %v3824
    %v5318 = vunpack.c.l.b16 %v3825
    %v5319 = vunpack.c.h.b16 %v3825
    %v5320 = vunpack.c.l.b16 %v3826
    %v5321 = vunpack.c.h.b16 %v3826
    %v5322 = vunpack.c.l.b16 %v3827
    %v5323 = vunpack.c.h.b16 %v3827
    %v5324 = vunpack.c.l.b16 %v3828
    %v5325 = vunpack.c.h.b16 %v3828
    %v5326 = vunpack.c.l.b16 %v3829
    %v5327 = vunpack.c.h.b16 %v3829
    %v5328 = vunpack.c.l.b16 %v3830
    %v5329 = vunpack.c.h.b16 %v3830
    %v5330 = vunpack.c.l.b16 %v3831
    %v5331 = vunpack.c.h.b16 %v3831
    %v5332 = vunpack.c.l.b16 %v3832
    %v5333 = vunpack.c.h.b16 %v3832
    %v5334 = vunpack.c.l.b16 %v3833
    %v5335 = vunpack.c.h.b16 %v3833
    %v5336 = vunpack.c.l.b16 %v3834
    %v5337 = vunpack.c.h.b16 %v3834
    %v5338 = vunpack.c.l.b16 %v3835
    %v5339 = vunpack.c.h.b16 %v3835
    %v5340 = vunpack.c.l.b16 %v3836
    %v5341 = vunpack.c.h.b16 %v3836
    %v5342 = vunpack.c.l.b16 %v3837
    %v5343 = vunpack.c.h.b16 %v3837
    %v5344 = vunpack.c.l.b16 %v3838
    %v5345 = vunpack.c.h.b16 %v3838
    %v5346 = vunpack.c.l.b16 %v3839
    %v5347 = vunpack.c.h.b16 %v3839
    %v5348 = vunpack.c.l.b16 %v3840
    %v5349 = vunpack.c.h.b16 %v3840
    %v5350 = vunpack.c.l.b16 %v3841
    %v5351 = vunpack.c.h.b16 %v3841
    %v5352 = vpack.c.b16 %v4356, %v4352
    %v5353 = vpack.c.b16 %v4357, %v4353
    %v5354 = vpack.c.b16 %v4358, %v4354
    %v5355 = vpack.c.b16 %v4359, %v4355
    %v5356 = vpack.c.b16 %v4364, %v4360
    %v5357 = vpack.c.b16 %v4365, %v4361
    %v5358 = vpack.c.b16 %v4366, %v4362
    %v5359 = vpack.c.b16 %v4367, %v4363
    %v5360 = vpack.c.b16 %v4372, %v4368
    %v5361 = vpack.c.b16 %v4373, %v4369
    %v5362 = vpack.c.b16 %v4374, %v4370
    %v5363 = vpack.c.b16 %v4375, %v4371
    %v5364 = vpack.c.b16 %v4380, %v4376
    %v5365 = vpack.c.b16 %v4381, %v4377
    %v5366 = vpack.c.b16 %v4382, %v4378
    %v5367 = vpack.c.b16 %v4383, %v4379
    %v5368 = vpack.c.b16 %v4388, %v4384
    %v5369 = vpack.c.b16 %v4389, %v4385
    %v5370 = vpack.c.b16 %v4390, %v4386
    %v5371 = vpack.c.b16 %v4391, %v4387
    %v5372 = vpack.c.b16 %v4396, %v4392
    %v5373 = vpack.c.b16 %v4397, %v4393
    %v5374 = vpack.c.b16 %v4398, %v4394
    %v5375 = vpack.c.b16 %v4399, %v4395
    %v5376 = vpack.c.b16 %v4404, %v4400
    %v5377 = vpack.c.b16 %v4405, %v4401
    %v5378 = vpack.c.b16 %v4406, %v4402
    %v5379 = vpack.c.b16 %v4407, %v4403
    %v5380 = vpack.c.b16 %v4412, %v4408
    %v5381 = vpack.c.b16 %v4413, %v4409
    %v5382 = vpack.c.b16 %v4414, %v4410
    %v5383 = vpack.c.b16 %v4415, %v4411
    %v5384 = vpack.c.b16 %v4420, %v4416
    %v5385 = vpack.c.b16 %v4421, %v4417
    %v5386 = vpack.c.b16 %v4422, %v4418
    %v5387 = vpack.c.b16 %v4423, %v4419
    %v5388 = vpack.c.b16 %v4428, %v4424
    %v5389 = vpack.c.b16 %v4429, %v4425
    %v5390 = vpack.c.b16 %v4430, %v4426
    %v5391 = vpack.c.b16 %v4431, %v4427
    %v5392 = vpack.c.b16 %v4436, %v4432
    %v5393 = vpack.c.b16 %v4437, %v4433
    %v5394 = vpack.c.b16 %v4438, %v4434
    %v5395 = vpack.c.b16 %v4439, %v4435
    %v5396 = vpack.c.b16 %v4444, %v4440
    %v5397 = vpack.c.b16 %v4445, %v4441
    %v5398 = vpack.c.b16 %v4446, %v4442
    %v5399 = vpack.c.b16 %v4447, %v4443
    %v5400 = vpack.c.b16 %v4452, %v4448
    %v5401 = vpack.c.b16 %v4453, %v4449
    %v5402 = vpack.c.b16 %v4454, %v4450
    %v5403 = vpack.c.b16 %v4455, %v4451
    %v5404 = vpack.c.b16 %v4460, %v4456
    %v5405 = vpack.c.b16 %v4461, %v4457
    %v5406 = vpack.c.b16 %v4462, %v4458
    %v5407 = vpack.c.b16 %v4463, %v4459
    %v5408 = vpack.c.b16 %v4468, %v4464
    %v5409 = vpack.c.b16 %v4469, %v4465
    %v5410 = vpack.c.b16 %v4470, %v4466
    %v5411 = vpack.c.b16 %v4471, %v4467
    %v5412 = vpack.c.b16 %v4476, %v4472
    %v5413 = vpack.c.b16 %v4477, %v4473
    %v5414 = vpack.c.b16 %v4478, %v4474
    %v5415 = vpack.c.b16 %v4479, %v4475
    %v5416 = vpack.c.b16 %v4484, %v4480
    %v5417 = vpack.c.b16 %v4485, %v4481
    %v5418 = vpack.c.b16 %v4486, %v4482
    %v5419 = vpack.c.b16 %v4487, %v4483
    %v5420 = vpack.c.b16 %v4492, %v4488
    %v5421 = vpack.c.b16 %v4493, %v4489
    %v5422 = vpack.c.b16 %v4494, %v4490
    %v5423 = vpack.c.b16 %v4495, %v4491
    %v5424 = vpack.c.b16 %v4500, %v4496
    %v5425 = vpack.c.b16 %v4501, %v4497
    %v5426 = vpack.c.b16 %v4502, %v4498
    %v5427 = vpack.c.b16 %v4503, %v4499
    %v5428 = vpack.c.b16 %v4508, %v4504
    %v5429 = vpack.c.b16 %v4509, %v4505
    %v5430 = vpack.c.b16 %v4510, %v4506
    %v5431 = vpack.c.b16 %v4511, %v4507
    %v5432 = vpack.c.b16 %v4516, %v4512
    %v5433 = vpack.c.b16 %v4517, %v4513
    %v5434 = vpack.c.b16 %v4518, %v4514
    %v5435 = vpack.c.b16 %v4519, %v4515
    %v5436 = vpack.c.b16 %v4524, %v4520
    %v5437 = vpack.c.b16 %v4525, %v4521
    %v5438 = vpack.c.b16 %v4526, %v4522
    %v5439 = vpack.c.b16 %v4527, %v4523
    %v5440 = vpack.c.b16 %v4532, %v4528
    %v5441 = vpack.c.b16 %v4533, %v4529
    %v5442 = vpack.c.b16 %v4534, %v4530
    %v5443 = vpack.c.b16 %v4535, %v4531
    %v5444 = vpack.c.b16 %v4540, %v4536
    %v5445 = vpack.c.b16 %v4541, %v4537
    %v5446 = vpack.c.b16 %v4542, %v4538
    %v5447 = vpack.c.b16 %v4543, %v4539
    %v5448 = vpack.c.b16 %v4548, %v4544
    %v5449 = vpack.c.b16 %v4549, %v4545
    %v5450 = vpack.c.b16 %v4550, %v4546
    %v5451 = vpack.c.b16 %v4551, %v4547
    %v5452 = vpack.c.b16 %v4556, %v4552
    %v5453 = vpack.c.b16 %v4557, %v4553
    %v5454 = vpack.c.b16 %v4558, %v4554
    %v5455 = vpack.c.b16 %v4559, %v4555
    %v5456 = vpack.c.b16 %v4564, %v4560
    %v5457 = vpack.c.b16 %v4565, %v4561
    %v5458 = vpack.c.b16 %v4566, %v4562
    %v5459 = vpack.c.b16 %v4567, %v4563
    %v5460 = vpack.c.b16 %v4572, %v4568
    %v5461 = vpack.c.b16 %v4573, %v4569
    %v5462 = vpack.c.b16 %v4574, %v4570
    %v5463 = vpack.c.b16 %v4575, %v4571
    %v5464 = vpack.c.b16 %v4580, %v4576
    %v5465 = vpack.c.b16 %v4581, %v4577
    %v5466 = vpack.c.b16 %v4582, %v4578
    %v5467 = vpack.c.b16 %v4583, %v4579
    %v5468 = vpack.c.b16 %v4588, %v4584
    %v5469 = vpack.c.b16 %v4589, %v4585
    %v5470 = vpack.c.b16 %v4590, %v4586
    %v5471 = vpack.c.b16 %v4591, %v4587
    %v5472 = vpack.c.b16 %v4596, %v4592
    %v5473 = vpack.c.b16 %v4597, %v4593
    %v5474 = vpack.c.b16 %v4598, %v4594
    %v5475 = vpack.c.b16 %v4599, %v4595
    %v5476 = vpack.c.b16 %v4604, %v4600
    %v5477 = vpack.c.b16 %v4605, %v4601
    %v5478 = vpack.c.b16 %v4606, %v4602
    %v5479 = vpack.c.b16 %v4607, %v4603
    %v5480 = vpack.c.b16 %v4612, %v4608
    %v5481 = vpack.c.b16 %v4613, %v4609
    %v5482 = vpack.c.b16 %v4614, %v4610
    %v5483 = vpack.c.b16 %v4615, %v4611
    %v5484 = vpack.c.b16 %v4620, %v4616
    %v5485 = vpack.c.b16 %v4621, %v4617
    %v5486 = vpack.c.b16 %v4622, %v4618
    %v5487 = vpack.c.b16 %v4623, %v4619
    %v5488 = vpack.c.b16 %v4628, %v4624
    %v5489 = vpack.c.b16 %v4629, %v4625
    %v5490 = vpack.c.b16 %v4630, %v4626
    %v5491 = vpack.c.b16 %v4631, %v4627
    %v5492 = vpack.c.b16 %v4636, %v4632
    %v5493 = vpack.c.b16 %v4637, %v4633
    %v5494 = vpack.c.b16 %v4638, %v4634
    %v5495 = vpack.c.b16 %v4639, %v4635
    %v5496 = vpack.c.b16 %v4644, %v4640
    %v5497 = vpack.c.b16 %v4645, %v4641
    %v5498 = vpack.c.b16 %v4646, %v4642
    %v5499 = vpack.c.b16 %v4647, %v4643
    %v5500 = vpack.c.b16 %v4652, %v4648
    %v5501 = vpack.c.b16 %v4653, %v4649
    %v5502 = vpack.c.b16 %v4654, %v4650
    %v5503 = vpack.c.b16 %v4655, %v4651
    %v5504 = vpack.c.b16 %v4660, %v4656
    %v5505 = vpack.c.b16 %v4661, %v4657
    %v5506 = vpack.c.b16 %v4662, %v4658
    %v5507 = vpack.c.b16 %v4663, %v4659
    %v5508 = vpack.c.b16 %v4668, %v4664
    %v5509 = vpack.c.b16 %v4669, %v4665
    %v5510 = vpack.c.b16 %v4670, %v4666
    %v5511 = vpack.c.b16 %v4671, %v4667
    %v5512 = vpack.c.b16 %v4676, %v4672
    %v5513 = vpack.c.b16 %v4677, %v4673
    %v5514 = vpack.c.b16 %v4678, %v4674
    %v5515 = vpack.c.b16 %v4679, %v4675
    %v5516 = vpack.c.b16 %v4684, %v4680
    %v5517 = vpack.c.b16 %v4685, %v4681
    %v5518 = vpack.c.b16 %v4686, %v4682
    %v5519 = vpack.c.b16 %v4687, %v4683
    %v5520 = vpack.c.b16 %v4692, %v4688
    %v5521 = vpack.c.b16 %v4693, %v4689
    %v5522 = vpack.c.b16 %v4694, %v4690
    %v5523 = vpack.c.b16 %v4695, %v4691
    %v5524 = vpack.c.b16 %v4700, %v4696
    %v5525 = vpack.c.b16 %v4701, %v4697
    %v5526 = vpack.c.b16 %v4702, %v4698
    %v5527 = vpack.c.b16 %v4703, %v4699
    %v5528 = vpack.c.b16 %v4708, %v4704
    %v5529 = vpack.c.b16 %v4709, %v4705
    %v5530 = vpack.c.b16 %v4710, %v4706
    %v5531 = vpack.c.b16 %v4711, %v4707
    %v5532 = vpack.c.b16 %v4716, %v4712
    %v5533 = vpack.c.b16 %v4717, %v4713
    %v5534 = vpack.c.b16 %v4718, %v4714
    %v5535 = vpack.c.b16 %v4719, %v4715
    %v5536 = vpack.c.b16 %v4724, %v4720
    %v5537 = vpack.c.b16 %v4725, %v4721
    %v5538 = vpack.c.b16 %v4726, %v4722
    %v5539 = vpack.c.b16 %v4727, %v4723
    %v5540 = vpack.c.b16 %v4732, %v4728
    %v5541 = vpack.c.b16 %v4733, %v4729
    %v5542 = vpack.c.b16 %v4734, %v4730
    %v5543 = vpack.c.b16 %v4735, %v4731
    %v5544 = vpack.c.b16 %v4740, %v4736
    %v5545 = vpack.c.b16 %v4741, %v4737
    %v5546 = vpack.c.b16 %v4742, %v4738
    %v5547 = vpack.c.b16 %v4743, %v4739
    %v5548 = vpack.c.b16 %v4748, %v4744
    %v5549 = vpack.c.b16 %v4749, %v4745
    %v5550 = vpack.c.b16 %v4750, %v4746
    %v5551 = vpack.c.b16 %v4751, %v4747
    %v5552 = vpack.c.b16 %v4756, %v4752
    %v5553 = vpack.c.b16 %v4757, %v4753
    %v5554 = vpack.c.b16 %v4758, %v4754
    %v5555 = vpack.c.b16 %v4759, %v4755
    %v5556 = vpack.c.b16 %v4764, %v4760
    %v5557 = vpack.c.b16 %v4765, %v4761
    %v5558 = vpack.c.b16 %v4766, %v4762
    %v5559 = vpack.c.b16 %v4767, %v4763
    %v5560 = vpack.c.b16 %v4772, %v4768
    %v5561 = vpack.c.b16 %v4773, %v4769
    %v5562 = vpack.c.b16 %v4774, %v4770
    %v5563 = vpack.c.b16 %v4775, %v4771
    %v5564 = vpack.c.b16 %v4780, %v4776
    %v5565 = vpack.c.b16 %v4781, %v4777
    %v5566 = vpack.c.b16 %v4782, %v4778
    %v5567 = vpack.c.b16 %v4783, %v4779
    %v5568 = vpack.c.b16 %v4788, %v4784
    %v5569 = vpack.c.b16 %v4789, %v4785
    %v5570 = vpack.c.b16 %v4790, %v4786
    %v5571 = vpack.c.b16 %v4791, %v4787
    %v5572 = vpack.c.b16 %v4796, %v4792
    %v5573 = vpack.c.b16 %v4797, %v4793
    %v5574 = vpack.c.b16 %v4798, %v4794
    %v5575 = vpack.c.b16 %v4799, %v4795
    %v5576 = vpack.c.b16 %v4804, %v4800
    %v5577 = vpack.c.b16 %v4805, %v4801
    %v5578 = vpack.c.b16 %v4806, %v4802
    %v5579 = vpack.c.b16 %v4807, %v4803
    %v5580 = vpack.c.b16 %v4812, %v4808
    %v5581 = vpack.c.b16 %v4813, %v4809
    %v5582 = vpack.c.b16 %v4814, %v4810
    %v5583 = vpack.c.b16 %v4815, %v4811
    %v5584 = vpack.c.b16 %v4820, %v4816
    %v5585 = vpack.c.b16 %v4821, %v4817
    %v5586 = vpack.c.b16 %v4822, %v4818
    %v5587 = vpack.c.b16 %v4823, %v4819
    %v5588 = vpack.c.b16 %v4828, %v4824
    %v5589 = vpack.c.b16 %v4829, %v4825
    %v5590 = vpack.c.b16 %v4830, %v4826
    %v5591 = vpack.c.b16 %v4831, %v4827
    %v5592 = vpack.c.b16 %v4836, %v4832
    %v5593 = vpack.c.b16 %v4837, %v4833
    %v5594 = vpack.c.b16 %v4838, %v4834
    %v5595 = vpack.c.b16 %v4839, %v4835
    %v5596 = vpack.c.b16 %v4844, %v4840
    %v5597 = vpack.c.b16 %v4845, %v4841
    %v5598 = vpack.c.b16 %v4846, %v4842
    %v5599 = vpack.c.b16 %v4847, %v4843
    %v5600 = vpack.c.b16 %v4852, %v4848
    %v5601 = vpack.c.b16 %v4853, %v4849
    %v5602 = vpack.c.b16 %v4854, %v4850
    %v5603 = vpack.c.b16 %v4855, %v4851
    %v5604 = vpack.c.b16 %v4860, %v4856
    %v5605 = vpack.c.b16 %v4861, %v4857
    %v5606 = vpack.c.b16 %v4862, %v4858
    %v5607 = vpack.c.b16 %v4863, %v4859
    %v5608 = vpack.c.b16 %v4868, %v4864
    %v5609 = vpack.c.b16 %v4869, %v4865
    %v5610 = vpack.c.b16 %v4870, %v4866
    %v5611 = vpack.c.b16 %v4871, %v4867
    %v5612 = vpack.c.b16 %v4876, %v4872
    %v5613 = vpack.c.b16 %v4877, %v4873
    %v5614 = vpack.c.b16 %v4878, %v4874
    %v5615 = vpack.c.b16 %v4879, %v4875
    %v5616 = vpack.c.b16 %v4884, %v4880
    %v5617 = vpack.c.b16 %v4885, %v4881
    %v5618 = vpack.c.b16 %v4886, %v4882
    %v5619 = vpack.c.b16 %v4887, %v4883
    %v5620 = vpack.c.b16 %v4892, %v4888
    %v5621 = vpack.c.b16 %v4893, %v4889
    %v5622 = vpack.c.b16 %v4894, %v4890
    %v5623 = vpack.c.b16 %v4895, %v4891
    %v5624 = vpack.c.b16 %v4900, %v4896
    %v5625 = vpack.c.b16 %v4901, %v4897
    %v5626 = vpack.c.b16 %v4902, %v4898
    %v5627 = vpack.c.b16 %v4903, %v4899
    %v5628 = vpack.c.b16 %v4908, %v4904
    %v5629 = vpack.c.b16 %v4909, %v4905
    %v5630 = vpack.c.b16 %v4910, %v4906
    %v5631 = vpack.c.b16 %v4911, %v4907
    %v5632 = vpack.c.b16 %v4916, %v4912
    %v5633 = vpack.c.b16 %v4917, %v4913
    %v5634 = vpack.c.b16 %v4918, %v4914
    %v5635 = vpack.c.b16 %v4919, %v4915
    %v5636 = vpack.c.b16 %v4924, %v4920
    %v5637 = vpack.c.b16 %v4925, %v4921
    %v5638 = vpack.c.b16 %v4926, %v4922
    %v5639 = vpack.c.b16 %v4927, %v4923
    %v5640 = vpack.c.b16 %v4932, %v4928
    %v5641 = vpack.c.b16 %v4933, %v4929
    %v5642 = vpack.c.b16 %v4934, %v4930
    %v5643 = vpack.c.b16 %v4935, %v4931
    %v5644 = vpack.c.b16 %v4940, %v4936
    %v5645 = vpack.c.b16 %v4941, %v4937
    %v5646 = vpack.c.b16 %v4942, %v4938
    %v5647 = vpack.c.b16 %v4943, %v4939
    %v5648 = vpack.c.b16 %v4948, %v4944
    %v5649 = vpack.c.b16 %v4949, %v4945
    %v5650 = vpack.c.b16 %v4950, %v4946
    %v5651 = vpack.c.b16 %v4951, %v4947
    %v5652 = vpack.c.b16 %v4956, %v4952
    %v5653 = vpack.c.b16 %v4957, %v4953
    %v5654 = vpack.c.b16 %v4958, %v4954
    %v5655 = vpack.c.b16 %v4959, %v4955
    %v5656 = vpack.c.b16 %v4964, %v4960
    %v5657 = vpack.c.b16 %v4965, %v4961
    %v5658 = vpack.c.b16 %v4966, %v4962
    %v5659 = vpack.c.b16 %v4967, %v4963
    %v5660 = vpack.c.b16 %v4972, %v4968
    %v5661 = vpack.c.b16 %v4973, %v4969
    %v5662 = vpack.c.b16 %v4974, %v4970
    %v5663 = vpack.c.b16 %v4975, %v4971
    %v5664 = vpack.c.b16 %v4980, %v4976
    %v5665 = vpack.c.b16 %v4981, %v4977
    %v5666 = vpack.c.b16 %v4982, %v4978
    %v5667 = vpack.c.b16 %v4983, %v4979
    %v5668 = vpack.c.b16 %v4988, %v4984
    %v5669 = vpack.c.b16 %v4989, %v4985
    %v5670 = vpack.c.b16 %v4990, %v4986
    %v5671 = vpack.c.b16 %v4991, %v4987
    %v5672 = vpack.c.b16 %v4996, %v4992
    %v5673 = vpack.c.b16 %v4997, %v4993
    %v5674 = vpack.c.b16 %v4998, %v4994
    %v5675 = vpack.c.b16 %v4999, %v4995
    %v5676 = vpack.c.b16 %v5004, %v5000
    %v5677 = vpack.c.b16 %v5005, %v5001
    %v5678 = vpack.c.b16 %v5006, %v5002
    %v5679 = vpack.c.b16 %v5007, %v5003
    %v5680 = vpack.c.b16 %v5012, %v5008
    %v5681 = vpack.c.b16 %v5013, %v5009
    %v5682 = vpack.c.b16 %v5014, %v5010
    %v5683 = vpack.c.b16 %v5015, %v5011
    %v5684 = vpack.c.b16 %v5020, %v5016
    %v5685 = vpack.c.b16 %v5021, %v5017
    %v5686 = vpack.c.b16 %v5022, %v5018
    %v5687 = vpack.c.b16 %v5023, %v5019
    %v5688 = vpack.c.b16 %v5028, %v5024
    %v5689 = vpack.c.b16 %v5029, %v5025
    %v5690 = vpack.c.b16 %v5030, %v5026
    %v5691 = vpack.c.b16 %v5031, %v5027
    %v5692 = vpack.c.b16 %v5036, %v5032
    %v5693 = vpack.c.b16 %v5037, %v5033
    %v5694 = vpack.c.b16 %v5038, %v5034
    %v5695 = vpack.c.b16 %v5039, %v5035
    %v5696 = vpack.c.b16 %v5044, %v5040
    %v5697 = vpack.c.b16 %v5045, %v5041
    %v5698 = vpack.c.b16 %v5046, %v5042
    %v5699 = vpack.c.b16 %v5047, %v5043
    %v5700 = vpack.c.b16 %v5052, %v5048
    %v5701 = vpack.c.b16 %v5053, %v5049
    %v5702 = vpack.c.b16 %v5054, %v5050
    %v5703 = vpack.c.b16 %v5055, %v5051
    %v5704 = vpack.c.b16 %v5060, %v5056
    %v5705 = vpack.c.b16 %v5061, %v5057
    %v5706 = vpack.c.b16 %v5062, %v5058
    %v5707 = vpack.c.b16 %v5063, %v5059
    %v5708 = vpack.c.b16 %v5068, %v5064
    %v5709 = vpack.c.b16 %v5069, %v5065
    %v5710 = vpack.c.b16 %v5070, %v5066
    %v5711 = vpack.c.b16 %v5071, %v5067
    %v5712 = vpack.c.b16 %v5076, %v5072
    %v5713 = vpack.c.b16 %v5077, %v5073
    %v5714 = vpack.c.b16 %v5078, %v5074
    %v5715 = vpack.c.b16 %v5079, %v5075
    %v5716 = vpack.c.b16 %v5084, %v5080
    %v5717 = vpack.c.b16 %v5085, %v5081
    %v5718 = vpack.c.b16 %v5086, %v5082
    %v5719 = vpack.c.b16 %v5087, %v5083
    %v5720 = vpack.c.b16 %v5092, %v5088
    %v5721 = vpack.c.b16 %v5093, %v5089
    %v5722 = vpack.c.b16 %v5094, %v5090
    %v5723 = vpack.c.b16 %v5095, %v5091
    %v5724 = vpack.c.b16 %v5100, %v5096
    %v5725 = vpack.c.b16 %v5101, %v5097
    %v5726 = vpack.c.b16 %v5102, %v5098
    %v5727 = vpack.c.b16 %v5103, %v5099
    %v5728 = vpack.c.b16 %v5108, %v5104
    %v5729 = vpack.c.b16 %v5109, %v5105
    %v5730 = vpack.c.b16 %v5110, %v5106
    %v5731 = vpack.c.b16 %v5111, %v5107
    %v5732 = vpack.c.b16 %v5116, %v5112
    %v5733 = vpack.c.b16 %v5117, %v5113
    %v5734 = vpack.c.b16 %v5118, %v5114
    %v5735 = vpack.c.b16 %v5119, %v5115
    %v5736 = vpack.c.b16 %v5124, %v5120
    %v5737 = vpack.c.b16 %v5125, %v5121
    %v5738 = vpack.c.b16 %v5126, %v5122
    %v5739 = vpack.c.b16 %v5127, %v5123
    %v5740 = vpack.c.b16 %v5132, %v5128
    %v5741 = vpack.c.b16 %v5133, %v5129
    %v5742 = vpack.c.b16 %v5134, %v5130
    %v5743 = vpack.c.b16 %v5135, %v5131
    %v5744 = vpack.c.b16 %v5140, %v5136
    %v5745 = vpack.c.b16 %v5141, %v5137
    %v5746 = vpack.c.b16 %v5142, %v5138
    %v5747 = vpack.c.b16 %v5143, %v5139
    %v5748 = vpack.c.b16 %v5148, %v5144
    %v5749 = vpack.c.b16 %v5149, %v5145
    %v5750 = vpack.c.b16 %v5150, %v5146
    %v5751 = vpack.c.b16 %v5151, %v5147
    %v5752 = vpack.c.b16 %v5156, %v5152
    %v5753 = vpack.c.b16 %v5157, %v5153
    %v5754 = vpack.c.b16 %v5158, %v5154
    %v5755 = vpack.c.b16 %v5159, %v5155
    %v5756 = vpack.c.b16 %v5164, %v5160
    %v5757 = vpack.c.b16 %v5165, %v5161
    %v5758 = vpack.c.b16 %v5166, %v5162
    %v5759 = vpack.c.b16 %v5167, %v5163
    %v5760 = vpack.c.b16 %v5172, %v5168
    %v5761 = vpack.c.b16 %v5173, %v5169
    %v5762 = vpack.c.b16 %v5174, %v5170
    %v5763 = vpack.c.b16 %v5175, %v5171
    %v5764 = vpack.c.b16 %v5180, %v5176
    %v5765 = vpack.c.b16 %v5181, %v5177
    %v5766 = vpack.c.b16 %v5182, %v5178
    %v5767 = vpack.c.b16 %v5183, %v5179
    %v5768 = vpack.c.b16 %v5188, %v5184
    %v5769 = vpack.c.b16 %v5189, %v5185
    %v5770 = vpack.c.b16 %v5190, %v5186
    %v5771 = vpack.c.b16 %v5191, %v5187
    %v5772 = vpack.c.b16 %v5196, %v5192
    %v5773 = vpack.c.b16 %v5197, %v5193
    %v5774 = vpack.c.b16 %v5198, %v5194
    %v5775 = vpack.c.b16 %v5199, %v5195
    %v5776 = vpack.c.b16 %v5204, %v5200
    %v5777 = vpack.c.b16 %v5205, %v5201
    %v5778 = vpack.c.b16 %v5206, %v5202
    %v5779 = vpack.c.b16 %v5207, %v5203
    %v5780 = vpack.c.b16 %v5212, %v5208
    %v5781 = vpack.c.b16 %v5213, %v5209
    %v5782 = vpack.c.b16 %v5214, %v5210
    %v5783 = vpack.c.b16 %v5215, %v5211
    %v5784 = vpack.c.b16 %v5220, %v5216
    %v5785 = vpack.c.b16 %v5221, %v5217
    %v5786 = vpack.c.b16 %v5222, %v5218
    %v5787 = vpack.c.b16 %v5223, %v5219
    %v5788 = vpack.c.b16 %v5228, %v5224
    %v5789 = vpack.c.b16 %v5229, %v5225
    %v5790 = vpack.c.b16 %v5230, %v5226
    %v5791 = vpack.c.b16 %v5231, %v5227
    %v5792 = vpack.c.b16 %v5236, %v5232
    %v5793 = vpack.c.b16 %v5237, %v5233
    %v5794 = vpack.c.b16 %v5238, %v5234
    %v5795 = vpack.c.b16 %v5239, %v5235
    %v5796 = vpack.c.b16 %v5244, %v5240
    %v5797 = vpack.c.b16 %v5245, %v5241
    %v5798 = vpack.c.b16 %v5246, %v5242
    %v5799 = vpack.c.b16 %v5247, %v5243
    %v5800 = vpack.c.b16 %v5252, %v5248
    %v5801 = vpack.c.b16 %v5253, %v5249
    %v5802 = vpack.c.b16 %v5254, %v5250
    %v5803 = vpack.c.b16 %v5255, %v5251
    %v5804 = vpack.c.b16 %v5260, %v5256
    %v5805 = vpack.c.b16 %v5261, %v5257
    %v5806 = vpack.c.b16 %v5262, %v5258
    %v5807 = vpack.c.b16 %v5263, %v5259
    %v5808 = vpack.c.b16 %v5268, %v5264
    %v5809 = vpack.c.b16 %v5269, %v5265
    %v5810 = vpack.c.b16 %v5270, %v5266
    %v5811 = vpack.c.b16 %v5271, %v5267
    %v5812 = vpack.c.b16 %v5276, %v5272
    %v5813 = vpack.c.b16 %v5277, %v5273
    %v5814 = vpack.c.b16 %v5278, %v5274
    %v5815 = vpack.c.b16 %v5279, %v5275
    %v5816 = vpack.c.b16 %v5284, %v5280
    %v5817 = vpack.c.b16 %v5285, %v5281
    %v5818 = vpack.c.b16 %v5286, %v5282
    %v5819 = vpack.c.b16 %v5287, %v5283
    %v5820 = vpack.c.b16 %v5292, %v5288
    %v5821 = vpack.c.b16 %v5293, %v5289
    %v5822 = vpack.c.b16 %v5294, %v5290
    %v5823 = vpack.c.b16 %v5295, %v5291
    %v5824 = vpack.c.b16 %v5300, %v5296
    %v5825 = vpack.c.b16 %v5301, %v5297
    %v5826 = vpack.c.b16 %v5302, %v5298
    %v5827 = vpack.c.b16 %v5303, %v5299
    %v5828 = vpack.c.b16 %v5308, %v5304
    %v5829 = vpack.c.b16 %v5309, %v5305
    %v5830 = vpack.c.b16 %v5310, %v5306
    %v5831 = vpack.c.b16 %v5311, %v5307
    %v5832 = vpack.c.b16 %v5316, %v5312
    %v5833 = vpack.c.b16 %v5317, %v5313
    %v5834 = vpack.c.b16 %v5318, %v5314
    %v5835 = vpack.c.b16 %v5319, %v5315
    %v5836 = vpack.c.b16 %v5324, %v5320
    %v5837 = vpack.c.b16 %v5325, %v5321
    %v5838 = vpack.c.b16 %v5326, %v5322
    %v5839 = vpack.c.b16 %v5327, %v5323
    %v5840 = vpack.c.b16 %v5332, %v5328
    %v5841 = vpack.c.b16 %v5333, %v5329
    %v5842 = vpack.c.b16 %v5334, %v5330
    %v5843 = vpack.c.b16 %v5335, %v5331
    %v5844 = vpack.c.b16 %v5340, %v5336
    %v5845 = vpack.c.b16 %v5341, %v5337
    %v5846 = vpack.c.b16 %v5342, %v5338
    %v5847 = vpack.c.b16 %v5343, %v5339
    %v5848 = vpack.c.b16 %v5348, %v5344
    %v5849 = vpack.c.b16 %v5349, %v5345
    %v5850 = vpack.c.b16 %v5350, %v5346
    %v5851 = vpack.c.b16 %v5351, %v5347
    %v6353 = vsel %vm1552, %v3341, 0
    %6355 = vmatpush.bf16.msra.mxu0 %v5380
    %6356 = vmatpush.bf16.msra.mxu0 %v5376
    %6357 = vmatpush.bf16.msra.mxu0 %v5372
    %6358 = vmatpush.bf16.msra.mxu0 %v5368
    %6359 = vmatpush.bf16.msra.mxu0 %v5364
    %6360 = vmatpush.bf16.msra.mxu0 %v5360
    %6361 = vmatpush.bf16.msra.mxu0 %v5356
    %6362 = vmatpush.bf16.msra.mxu0 %v5352
    %6363 = vmatmul.bf16.gmra.mxu0 %v3326
    %v6364 = vpop.f32.mrf.mxu0
    %v6365 = vadd.f32 %v3844, %v6364
    %v6366 = vpop.f32.mrf.mxu0
    %6367 = vdwg.mxu0
    %6368 = vmatpush.bf16.msra.mxu0 %v5412
    %6369 = vmatpush.bf16.msra.mxu0 %v5408
    %6370 = vmatpush.bf16.msra.mxu0 %v5404
    %6371 = vmatpush.bf16.msra.mxu0 %v5400
    %6372 = vmatpush.bf16.msra.mxu0 %v5396
    %6373 = vmatpush.bf16.msra.mxu0 %v5392
    %6374 = vmatpush.bf16.msra.mxu0 %v5388
    %6375 = vmatpush.bf16.msra.mxu0 %v5384
    %6376 = vmatmul.bf16.gmra.mxu0 %v3327
    %v6377 = vpop.f32.mrf.mxu0
    %v6378 = vadd.f32 %v6365, %v6377
    %v6379 = vpop.f32.mrf.mxu0
    %6380 = vdwg.mxu0
    %6381 = vmatpush.bf16.msra.mxu0 %v5444
    %6382 = vmatpush.bf16.msra.mxu0 %v5440
    %6383 = vmatpush.bf16.msra.mxu0 %v5436
    %6384 = vmatpush.bf16.msra.mxu0 %v5432
    %6385 = vmatpush.bf16.msra.mxu0 %v5428
    %6386 = vmatpush.bf16.msra.mxu0 %v5424
    %6387 = vmatpush.bf16.msra.mxu0 %v5420
    %6388 = vmatpush.bf16.msra.mxu0 %v5416
    %6389 = vmatmul.bf16.gmra.mxu0 %v3328
    %v6390 = vpop.f32.mrf.mxu0
    %v6391 = vadd.f32 %v6378, %v6390
    %v6392 = vpop.f32.mrf.mxu0
    %6393 = vdwg.mxu0
    %6394 = vmatpush.bf16.msra.mxu0 %v5476
    %6395 = vmatpush.bf16.msra.mxu0 %v5472
    %6396 = vmatpush.bf16.msra.mxu0 %v5468
    %6397 = vmatpush.bf16.msra.mxu0 %v5464
    %6398 = vmatpush.bf16.msra.mxu0 %v5460
    %6399 = vmatpush.bf16.msra.mxu0 %v5456
    %6400 = vmatpush.bf16.msra.mxu0 %v5452
    %6401 = vmatpush.bf16.msra.mxu0 %v5448
    %6402 = vmatmul.bf16.gmra.mxu0 %v3329
    %v6403 = vpop.f32.mrf.mxu0
    %v6404 = vadd.f32 %v6391, %v6403
    %v6405 = vpop.f32.mrf.mxu0
    %6406 = vdwg.mxu0
    %6407 = vmatpush.bf16.msra.mxu0 %v5508
    %6408 = vmatpush.bf16.msra.mxu0 %v5504
    %6409 = vmatpush.bf16.msra.mxu0 %v5500
    %6410 = vmatpush.bf16.msra.mxu0 %v5496
    %6411 = vmatpush.bf16.msra.mxu0 %v5492
    %6412 = vmatpush.bf16.msra.mxu0 %v5488
    %6413 = vmatpush.bf16.msra.mxu0 %v5484
    %6414 = vmatpush.bf16.msra.mxu0 %v5480
    %6415 = vmatmul.bf16.gmra.mxu0 %v3330
    %v6416 = vpop.f32.mrf.mxu0
    %v6417 = vadd.f32 %v6404, %v6416
    %v6418 = vpop.f32.mrf.mxu0
    %6419 = vdwg.mxu0
    %6420 = vmatpush.bf16.msra.mxu0 %v5540
    %6421 = vmatpush.bf16.msra.mxu0 %v5536
    %6422 = vmatpush.bf16.msra.mxu0 %v5532
    %6423 = vmatpush.bf16.msra.mxu0 %v5528
    %6424 = vmatpush.bf16.msra.mxu0 %v5524
    %6425 = vmatpush.bf16.msra.mxu0 %v5520
    %6426 = vmatpush.bf16.msra.mxu0 %v5516
    %6427 = vmatpush.bf16.msra.mxu0 %v5512
    %6428 = vmatmul.bf16.gmra.mxu0 %v3331
    %v6429 = vpop.f32.mrf.mxu0
    %v6430 = vadd.f32 %v6417, %v6429
    %v6431 = vpop.f32.mrf.mxu0
    %6432 = vdwg.mxu0
    %6433 = vmatpush.bf16.msra.mxu0 %v5572
    %6434 = vmatpush.bf16.msra.mxu0 %v5568
    %6435 = vmatpush.bf16.msra.mxu0 %v5564
    %6436 = vmatpush.bf16.msra.mxu0 %v5560
    %6437 = vmatpush.bf16.msra.mxu0 %v5556
    %6438 = vmatpush.bf16.msra.mxu0 %v5552
    %6439 = vmatpush.bf16.msra.mxu0 %v5548
    %6440 = vmatpush.bf16.msra.mxu0 %v5544
    %6441 = vmatmul.bf16.gmra.mxu0 %v3332
    %v6442 = vpop.f32.mrf.mxu0
    %v6443 = vadd.f32 %v6430, %v6442
    %v6444 = vpop.f32.mrf.mxu0
    %6445 = vdwg.mxu0
    %6446 = vmatpush.bf16.msra.mxu0 %v5604
    %6447 = vmatpush.bf16.msra.mxu0 %v5600
    %6448 = vmatpush.bf16.msra.mxu0 %v5596
    %6449 = vmatpush.bf16.msra.mxu0 %v5592
    %6450 = vmatpush.bf16.msra.mxu0 %v5588
    %6451 = vmatpush.bf16.msra.mxu0 %v5584
    %6452 = vmatpush.bf16.msra.mxu0 %v5580
    %6453 = vmatpush.bf16.msra.mxu0 %v5576
    %6454 = vmatmul.bf16.gmra.mxu0 %v3333
    %v6455 = vpop.f32.mrf.mxu0
    %v6456 = vadd.f32 %v6443, %v6455
    %v6457 = vpop.f32.mrf.mxu0
    %6458 = vdwg.mxu0
    %6459 = vmatpush.bf16.msra.mxu0 %v5636
    %6460 = vmatpush.bf16.msra.mxu0 %v5632
    %6461 = vmatpush.bf16.msra.mxu0 %v5628
    %6462 = vmatpush.bf16.msra.mxu0 %v5624
    %6463 = vmatpush.bf16.msra.mxu0 %v5620
    %6464 = vmatpush.bf16.msra.mxu0 %v5616
    %6465 = vmatpush.bf16.msra.mxu0 %v5612
    %6466 = vmatpush.bf16.msra.mxu0 %v5608
    %6467 = vmatmul.bf16.gmra.mxu0 %v3334
    %v6468 = vpop.f32.mrf.mxu0
    %v6469 = vadd.f32 %v6456, %v6468
    %v6470 = vpop.f32.mrf.mxu0
    %6471 = vdwg.mxu0
    %6472 = vmatpush.bf16.msra.mxu0 %v5668
    %6473 = vmatpush.bf16.msra.mxu0 %v5664
    %6474 = vmatpush.bf16.msra.mxu0 %v5660
    %6475 = vmatpush.bf16.msra.mxu0 %v5656
    %6476 = vmatpush.bf16.msra.mxu0 %v5652
    %6477 = vmatpush.bf16.msra.mxu0 %v5648
    %6478 = vmatpush.bf16.msra.mxu0 %v5644
    %6479 = vmatpush.bf16.msra.mxu0 %v5640
    %6480 = vmatmul.bf16.gmra.mxu0 %v3335
    %v6481 = vpop.f32.mrf.mxu0
    %v6482 = vadd.f32 %v6469, %v6481
    %v6483 = vpop.f32.mrf.mxu0
    %6484 = vdwg.mxu0
    %6485 = vmatpush.bf16.msra.mxu0 %v5700
    %6486 = vmatpush.bf16.msra.mxu0 %v5696
    %6487 = vmatpush.bf16.msra.mxu0 %v5692
    %6488 = vmatpush.bf16.msra.mxu0 %v5688
    %6489 = vmatpush.bf16.msra.mxu0 %v5684
    %6490 = vmatpush.bf16.msra.mxu0 %v5680
    %6491 = vmatpush.bf16.msra.mxu0 %v5676
    %6492 = vmatpush.bf16.msra.mxu0 %v5672
    %6493 = vmatmul.bf16.gmra.mxu0 %v3336
    %v6494 = vpop.f32.mrf.mxu0
    %v6495 = vadd.f32 %v6482, %v6494
    %v6496 = vpop.f32.mrf.mxu0
    %6497 = vdwg.mxu0
    %6498 = vmatpush.bf16.msra.mxu0 %v5732
    %6499 = vmatpush.bf16.msra.mxu0 %v5728
    %6500 = vmatpush.bf16.msra.mxu0 %v5724
    %6501 = vmatpush.bf16.msra.mxu0 %v5720
    %6502 = vmatpush.bf16.msra.mxu0 %v5716
    %6503 = vmatpush.bf16.msra.mxu0 %v5712
    %6504 = vmatpush.bf16.msra.mxu0 %v5708
    %6505 = vmatpush.bf16.msra.mxu0 %v5704
    %6506 = vmatmul.bf16.gmra.mxu0 %v3337
    %v6507 = vpop.f32.mrf.mxu0
    %v6508 = vadd.f32 %v6495, %v6507
    %v6509 = vpop.f32.mrf.mxu0
    %6510 = vdwg.mxu0
    %6511 = vmatpush.bf16.msra.mxu0 %v5764
    %6512 = vmatpush.bf16.msra.mxu0 %v5760
    %6513 = vmatpush.bf16.msra.mxu0 %v5756
    %6514 = vmatpush.bf16.msra.mxu0 %v5752
    %6515 = vmatpush.bf16.msra.mxu0 %v5748
    %6516 = vmatpush.bf16.msra.mxu0 %v5744
    %6517 = vmatpush.bf16.msra.mxu0 %v5740
    %6518 = vmatpush.bf16.msra.mxu0 %v5736
    %6519 = vmatmul.bf16.gmra.mxu0 %v3338
    %v6520 = vpop.f32.mrf.mxu0
    %v6521 = vadd.f32 %v6508, %v6520
    %v6522 = vpop.f32.mrf.mxu0
    %6523 = vdwg.mxu0
    %6524 = vmatpush.bf16.msra.mxu0 %v5796
    %6525 = vmatpush.bf16.msra.mxu0 %v5792
    %6526 = vmatpush.bf16.msra.mxu0 %v5788
    %6527 = vmatpush.bf16.msra.mxu0 %v5784
    %6528 = vmatpush.bf16.msra.mxu0 %v5780
    %6529 = vmatpush.bf16.msra.mxu0 %v5776
    %6530 = vmatpush.bf16.msra.mxu0 %v5772
    %6531 = vmatpush.bf16.msra.mxu0 %v5768
    %6532 = vmatmul.bf16.gmra.mxu0 %v3339
    %v6533 = vpop.f32.mrf.mxu0
    %v6534 = vadd.f32 %v6521, %v6533
    %v6535 = vpop.f32.mrf.mxu0
    %6536 = vdwg.mxu0
    %6537 = vmatpush.bf16.msra.mxu0 %v5828
    %6538 = vmatpush.bf16.msra.mxu0 %v5824
    %6539 = vmatpush.bf16.msra.mxu0 %v5820
    %6540 = vmatpush.bf16.msra.mxu0 %v5816
    %6541 = vmatpush.bf16.msra.mxu0 %v5812
    %6542 = vmatpush.bf16.msra.mxu0 %v5808
    %6543 = vmatpush.bf16.msra.mxu0 %v5804
    %6544 = vmatpush.bf16.msra.mxu0 %v5800
    %6545 = vmatmul.bf16.gmra.mxu0 %v3340
    %v6546 = vpop.f32.mrf.mxu0
    %v6547 = vadd.f32 %v6534, %v6546
    %v6548 = vpop.f32.mrf.mxu0
    %6549 = vdwg.mxu0
    %6550 = vmatpush.bf16.msra.mxu0 0
    %6551 = vmatpush.bf16.msra.mxu0 0
    %6552 = vmatpush.bf16.msra.mxu0 0
    %6553 = vmatpush.bf16.msra.mxu0 %v5848
    %6554 = vmatpush.bf16.msra.mxu0 %v5844
    %6555 = vmatpush.bf16.msra.mxu0 %v5840
    %6556 = vmatpush.bf16.msra.mxu0 %v5836
    %6557 = vmatpush.bf16.msra.mxu0 %v5832
    %6558 = vmatmul.bf16.gmra.mxu0 %v6353
    %v6559 = vpop.f32.mrf.mxu0
    %v6560 = vadd.f32 %v6547, %v6559
    %v6561 = vpop.f32.mrf.mxu0
    %6562 = vdwg.mxu0
    %6563 = vmatpush.bf16.msra.mxu0 %v5381
    %6564 = vmatpush.bf16.msra.mxu0 %v5377
    %6565 = vmatpush.bf16.msra.mxu0 %v5373
    %6566 = vmatpush.bf16.msra.mxu0 %v5369
    %6567 = vmatpush.bf16.msra.mxu0 %v5365
    %6568 = vmatpush.bf16.msra.mxu0 %v5361
    %6569 = vmatpush.bf16.msra.mxu0 %v5357
    %6570 = vmatpush.bf16.msra.mxu0 %v5353
    %6571 = vmatmul.bf16.gmra.mxu0 %v3326
    %v6572 = vpop.f32.mrf.mxu0
    %v6573 = vadd.f32 %v3845, %v6572
    %v6574 = vpop.f32.mrf.mxu0
    %6575 = vdwg.mxu0
    %6576 = vmatpush.bf16.msra.mxu0 %v5413
    %6577 = vmatpush.bf16.msra.mxu0 %v5409
    %6578 = vmatpush.bf16.msra.mxu0 %v5405
    %6579 = vmatpush.bf16.msra.mxu0 %v5401
    %6580 = vmatpush.bf16.msra.mxu0 %v5397
    %6581 = vmatpush.bf16.msra.mxu0 %v5393
    %6582 = vmatpush.bf16.msra.mxu0 %v5389
    %6583 = vmatpush.bf16.msra.mxu0 %v5385
    %6584 = vmatmul.bf16.gmra.mxu0 %v3327
    %v6585 = vpop.f32.mrf.mxu0
    %v6586 = vadd.f32 %v6573, %v6585
    %v6587 = vpop.f32.mrf.mxu0
    %6588 = vdwg.mxu0
    %6589 = vmatpush.bf16.msra.mxu0 %v5445
    %6590 = vmatpush.bf16.msra.mxu0 %v5441
    %6591 = vmatpush.bf16.msra.mxu0 %v5437
    %6592 = vmatpush.bf16.msra.mxu0 %v5433
    %6593 = vmatpush.bf16.msra.mxu0 %v5429
    %6594 = vmatpush.bf16.msra.mxu0 %v5425
    %6595 = vmatpush.bf16.msra.mxu0 %v5421
    %6596 = vmatpush.bf16.msra.mxu0 %v5417
    %6597 = vmatmul.bf16.gmra.mxu0 %v3328
    %v6598 = vpop.f32.mrf.mxu0
    %v6599 = vadd.f32 %v6586, %v6598
    %v6600 = vpop.f32.mrf.mxu0
    %6601 = vdwg.mxu0
    %6602 = vmatpush.bf16.msra.mxu0 %v5477
    %6603 = vmatpush.bf16.msra.mxu0 %v5473
    %6604 = vmatpush.bf16.msra.mxu0 %v5469
    %6605 = vmatpush.bf16.msra.mxu0 %v5465
    %6606 = vmatpush.bf16.msra.mxu0 %v5461
    %6607 = vmatpush.bf16.msra.mxu0 %v5457
    %6608 = vmatpush.bf16.msra.mxu0 %v5453
    %6609 = vmatpush.bf16.msra.mxu0 %v5449
    %6610 = vmatmul.bf16.gmra.mxu0 %v3329
    %v6611 = vpop.f32.mrf.mxu0
    %v6612 = vadd.f32 %v6599, %v6611
    %v6613 = vpop.f32.mrf.mxu0
    %6614 = vdwg.mxu0
    %6615 = vmatpush.bf16.msra.mxu0 %v5509
    %6616 = vmatpush.bf16.msra.mxu0 %v5505
    %6617 = vmatpush.bf16.msra.mxu0 %v5501
    %6618 = vmatpush.bf16.msra.mxu0 %v5497
    %6619 = vmatpush.bf16.msra.mxu0 %v5493
    %6620 = vmatpush.bf16.msra.mxu0 %v5489
    %6621 = vmatpush.bf16.msra.mxu0 %v5485
    %6622 = vmatpush.bf16.msra.mxu0 %v5481
    %6623 = vmatmul.bf16.gmra.mxu0 %v3330
    %v6624 = vpop.f32.mrf.mxu0
    %v6625 = vadd.f32 %v6612, %v6624
    %v6626 = vpop.f32.mrf.mxu0
    %6627 = vdwg.mxu0
    %6628 = vmatpush.bf16.msra.mxu0 %v5541
    %6629 = vmatpush.bf16.msra.mxu0 %v5537
    %6630 = vmatpush.bf16.msra.mxu0 %v5533
    %6631 = vmatpush.bf16.msra.mxu0 %v5529
    %6632 = vmatpush.bf16.msra.mxu0 %v5525
    %6633 = vmatpush.bf16.msra.mxu0 %v5521
    %6634 = vmatpush.bf16.msra.mxu0 %v5517
    %6635 = vmatpush.bf16.msra.mxu0 %v5513
    %6636 = vmatmul.bf16.gmra.mxu0 %v3331
    %v6637 = vpop.f32.mrf.mxu0
    %v6638 = vadd.f32 %v6625, %v6637
    %v6639 = vpop.f32.mrf.mxu0
    %6640 = vdwg.mxu0
    %6641 = vmatpush.bf16.msra.mxu0 %v5573
    %6642 = vmatpush.bf16.msra.mxu0 %v5569
    %6643 = vmatpush.bf16.msra.mxu0 %v5565
    %6644 = vmatpush.bf16.msra.mxu0 %v5561
    %6645 = vmatpush.bf16.msra.mxu0 %v5557
    %6646 = vmatpush.bf16.msra.mxu0 %v5553
    %6647 = vmatpush.bf16.msra.mxu0 %v5549
    %6648 = vmatpush.bf16.msra.mxu0 %v5545
    %6649 = vmatmul.bf16.gmra.mxu0 %v3332
    %v6650 = vpop.f32.mrf.mxu0
    %v6651 = vadd.f32 %v6638, %v6650
    %v6652 = vpop.f32.mrf.mxu0
    %6653 = vdwg.mxu0
    %6654 = vmatpush.bf16.msra.mxu0 %v5605
    %6655 = vmatpush.bf16.msra.mxu0 %v5601
    %6656 = vmatpush.bf16.msra.mxu0 %v5597
    %6657 = vmatpush.bf16.msra.mxu0 %v5593
    %6658 = vmatpush.bf16.msra.mxu0 %v5589
    %6659 = vmatpush.bf16.msra.mxu0 %v5585
    %6660 = vmatpush.bf16.msra.mxu0 %v5581
    %6661 = vmatpush.bf16.msra.mxu0 %v5577
    %6662 = vmatmul.bf16.gmra.mxu0 %v3333
    %v6663 = vpop.f32.mrf.mxu0
    %v6664 = vadd.f32 %v6651, %v6663
    %v6665 = vpop.f32.mrf.mxu0
    %6666 = vdwg.mxu0
    %6667 = vmatpush.bf16.msra.mxu0 %v5637
    %6668 = vmatpush.bf16.msra.mxu0 %v5633
    %6669 = vmatpush.bf16.msra.mxu0 %v5629
    %6670 = vmatpush.bf16.msra.mxu0 %v5625
    %6671 = vmatpush.bf16.msra.mxu0 %v5621
    %6672 = vmatpush.bf16.msra.mxu0 %v5617
    %6673 = vmatpush.bf16.msra.mxu0 %v5613
    %6674 = vmatpush.bf16.msra.mxu0 %v5609
    %6675 = vmatmul.bf16.gmra.mxu0 %v3334
    %v6676 = vpop.f32.mrf.mxu0
    %v6677 = vadd.f32 %v6664, %v6676
    %v6678 = vpop.f32.mrf.mxu0
    %6679 = vdwg.mxu0
    %6680 = vmatpush.bf16.msra.mxu0 %v5669
    %6681 = vmatpush.bf16.msra.mxu0 %v5665
    %6682 = vmatpush.bf16.msra.mxu0 %v5661
    %6683 = vmatpush.bf16.msra.mxu0 %v5657
    %6684 = vmatpush.bf16.msra.mxu0 %v5653
    %6685 = vmatpush.bf16.msra.mxu0 %v5649
    %6686 = vmatpush.bf16.msra.mxu0 %v5645
    %6687 = vmatpush.bf16.msra.mxu0 %v5641
    %6688 = vmatmul.bf16.gmra.mxu0 %v3335
    %v6689 = vpop.f32.mrf.mxu0
    %v6690 = vadd.f32 %v6677, %v6689
    %v6691 = vpop.f32.mrf.mxu0
    %6692 = vdwg.mxu0
    %6693 = vmatpush.bf16.msra.mxu0 %v5701
    %6694 = vmatpush.bf16.msra.mxu0 %v5697
    %6695 = vmatpush.bf16.msra.mxu0 %v5693
    %6696 = vmatpush.bf16.msra.mxu0 %v5689
    %6697 = vmatpush.bf16.msra.mxu0 %v5685
    %6698 = vmatpush.bf16.msra.mxu0 %v5681
    %6699 = vmatpush.bf16.msra.mxu0 %v5677
    %6700 = vmatpush.bf16.msra.mxu0 %v5673
    %6701 = vmatmul.bf16.gmra.mxu0 %v3336
    %v6702 = vpop.f32.mrf.mxu0
    %v6703 = vadd.f32 %v6690, %v6702
    %v6704 = vpop.f32.mrf.mxu0
    %6705 = vdwg.mxu0
    %6706 = vmatpush.bf16.msra.mxu0 %v5733
    %6707 = vmatpush.bf16.msra.mxu0 %v5729
    %6708 = vmatpush.bf16.msra.mxu0 %v5725
    %6709 = vmatpush.bf16.msra.mxu0 %v5721
    %6710 = vmatpush.bf16.msra.mxu0 %v5717
    %6711 = vmatpush.bf16.msra.mxu0 %v5713
    %6712 = vmatpush.bf16.msra.mxu0 %v5709
    %6713 = vmatpush.bf16.msra.mxu0 %v5705
    %6714 = vmatmul.bf16.gmra.mxu0 %v3337
    %v6715 = vpop.f32.mrf.mxu0
    %v6716 = vadd.f32 %v6703, %v6715
    %v6717 = vpop.f32.mrf.mxu0
    %6718 = vdwg.mxu0
    %6719 = vmatpush.bf16.msra.mxu0 %v5765
    %6720 = vmatpush.bf16.msra.mxu0 %v5761
    %6721 = vmatpush.bf16.msra.mxu0 %v5757
    %6722 = vmatpush.bf16.msra.mxu0 %v5753
    %6723 = vmatpush.bf16.msra.mxu0 %v5749
    %6724 = vmatpush.bf16.msra.mxu0 %v5745
    %6725 = vmatpush.bf16.msra.mxu0 %v5741
    %6726 = vmatpush.bf16.msra.mxu0 %v5737
    %6727 = vmatmul.bf16.gmra.mxu0 %v3338
    %v6728 = vpop.f32.mrf.mxu0
    %v6729 = vadd.f32 %v6716, %v6728
    %v6730 = vpop.f32.mrf.mxu0
    %6731 = vdwg.mxu0
    %6732 = vmatpush.bf16.msra.mxu0 %v5797
    %6733 = vmatpush.bf16.msra.mxu0 %v5793
    %6734 = vmatpush.bf16.msra.mxu0 %v5789
    %6735 = vmatpush.bf16.msra.mxu0 %v5785
    %6736 = vmatpush.bf16.msra.mxu0 %v5781
    %6737 = vmatpush.bf16.msra.mxu0 %v5777
    %6738 = vmatpush.bf16.msra.mxu0 %v5773
    %6739 = vmatpush.bf16.msra.mxu0 %v5769
    %6740 = vmatmul.bf16.gmra.mxu0 %v3339
    %v6741 = vpop.f32.mrf.mxu0
    %v6742 = vadd.f32 %v6729, %v6741
    %v6743 = vpop.f32.mrf.mxu0
    %6744 = vdwg.mxu0
    %6745 = vmatpush.bf16.msra.mxu0 %v5829
    %6746 = vmatpush.bf16.msra.mxu0 %v5825
    %6747 = vmatpush.bf16.msra.mxu0 %v5821
    %6748 = vmatpush.bf16.msra.mxu0 %v5817
    %6749 = vmatpush.bf16.msra.mxu0 %v5813
    %6750 = vmatpush.bf16.msra.mxu0 %v5809
    %6751 = vmatpush.bf16.msra.mxu0 %v5805
    %6752 = vmatpush.bf16.msra.mxu0 %v5801
    %6753 = vmatmul.bf16.gmra.mxu0 %v3340
    %v6754 = vpop.f32.mrf.mxu0
    %v6755 = vadd.f32 %v6742, %v6754
    %v6756 = vpop.f32.mrf.mxu0
    %6757 = vdwg.mxu0
    %6758 = vmatpush.bf16.msra.mxu0 0
    %6759 = vmatpush.bf16.msra.mxu0 0
    %6760 = vmatpush.bf16.msra.mxu0 0
    %6761 = vmatpush.bf16.msra.mxu0 %v5849
    %6762 = vmatpush.bf16.msra.mxu0 %v5845
    %6763 = vmatpush.bf16.msra.mxu0 %v5841
    %6764 = vmatpush.bf16.msra.mxu0 %v5837
    %6765 = vmatpush.bf16.msra.mxu0 %v5833
    %6766 = vmatmul.bf16.gmra.mxu0 %v6353
    %v6767 = vpop.f32.mrf.mxu0
    %v6768 = vadd.f32 %v6755, %v6767
    %v6769 = vpop.f32.mrf.mxu0
    %6770 = vdwg.mxu0
    %6771 = vmatpush.bf16.msra.mxu0 %v5382
    %6772 = vmatpush.bf16.msra.mxu0 %v5378
    %6773 = vmatpush.bf16.msra.mxu0 %v5374
    %6774 = vmatpush.bf16.msra.mxu0 %v5370
    %6775 = vmatpush.bf16.msra.mxu0 %v5366
    %6776 = vmatpush.bf16.msra.mxu0 %v5362
    %6777 = vmatpush.bf16.msra.mxu0 %v5358
    %6778 = vmatpush.bf16.msra.mxu0 %v5354
    %6779 = vmatmul.bf16.gmra.mxu0 %v3326
    %v6780 = vpop.f32.mrf.mxu0
    %v6781 = vadd.f32 %v3846, %v6780
    %v6782 = vpop.f32.mrf.mxu0
    %6783 = vdwg.mxu0
    %6784 = vmatpush.bf16.msra.mxu0 %v5414
    %6785 = vmatpush.bf16.msra.mxu0 %v5410
    %6786 = vmatpush.bf16.msra.mxu0 %v5406
    %6787 = vmatpush.bf16.msra.mxu0 %v5402
    %6788 = vmatpush.bf16.msra.mxu0 %v5398
    %6789 = vmatpush.bf16.msra.mxu0 %v5394
    %6790 = vmatpush.bf16.msra.mxu0 %v5390
    %6791 = vmatpush.bf16.msra.mxu0 %v5386
    %6792 = vmatmul.bf16.gmra.mxu0 %v3327
    %v6793 = vpop.f32.mrf.mxu0
    %v6794 = vadd.f32 %v6781, %v6793
    %v6795 = vpop.f32.mrf.mxu0
    %6796 = vdwg.mxu0
    %6797 = vmatpush.bf16.msra.mxu0 %v5446
    %6798 = vmatpush.bf16.msra.mxu0 %v5442
    %6799 = vmatpush.bf16.msra.mxu0 %v5438
    %6800 = vmatpush.bf16.msra.mxu0 %v5434
    %6801 = vmatpush.bf16.msra.mxu0 %v5430
    %6802 = vmatpush.bf16.msra.mxu0 %v5426
    %6803 = vmatpush.bf16.msra.mxu0 %v5422
    %6804 = vmatpush.bf16.msra.mxu0 %v5418
    %6805 = vmatmul.bf16.gmra.mxu0 %v3328
    %v6806 = vpop.f32.mrf.mxu0
    %v6807 = vadd.f32 %v6794, %v6806
    %v6808 = vpop.f32.mrf.mxu0
    %6809 = vdwg.mxu0
    %6810 = vmatpush.bf16.msra.mxu0 %v5478
    %6811 = vmatpush.bf16.msra.mxu0 %v5474
    %6812 = vmatpush.bf16.msra.mxu0 %v5470
    %6813 = vmatpush.bf16.msra.mxu0 %v5466
    %6814 = vmatpush.bf16.msra.mxu0 %v5462
    %6815 = vmatpush.bf16.msra.mxu0 %v5458
    %6816 = vmatpush.bf16.msra.mxu0 %v5454
    %6817 = vmatpush.bf16.msra.mxu0 %v5450
    %6818 = vmatmul.bf16.gmra.mxu0 %v3329
    %v6819 = vpop.f32.mrf.mxu0
    %v6820 = vadd.f32 %v6807, %v6819
    %v6821 = vpop.f32.mrf.mxu0
    %6822 = vdwg.mxu0
    %6823 = vmatpush.bf16.msra.mxu0 %v5510
    %6824 = vmatpush.bf16.msra.mxu0 %v5506
    %6825 = vmatpush.bf16.msra.mxu0 %v5502
    %6826 = vmatpush.bf16.msra.mxu0 %v5498
    %6827 = vmatpush.bf16.msra.mxu0 %v5494
    %6828 = vmatpush.bf16.msra.mxu0 %v5490
    %6829 = vmatpush.bf16.msra.mxu0 %v5486
    %6830 = vmatpush.bf16.msra.mxu0 %v5482
    %6831 = vmatmul.bf16.gmra.mxu0 %v3330
    %v6832 = vpop.f32.mrf.mxu0
    %v6833 = vadd.f32 %v6820, %v6832
    %v6834 = vpop.f32.mrf.mxu0
    %6835 = vdwg.mxu0
    %6836 = vmatpush.bf16.msra.mxu0 %v5542
    %6837 = vmatpush.bf16.msra.mxu0 %v5538
    %6838 = vmatpush.bf16.msra.mxu0 %v5534
    %6839 = vmatpush.bf16.msra.mxu0 %v5530
    %6840 = vmatpush.bf16.msra.mxu0 %v5526
    %6841 = vmatpush.bf16.msra.mxu0 %v5522
    %6842 = vmatpush.bf16.msra.mxu0 %v5518
    %6843 = vmatpush.bf16.msra.mxu0 %v5514
    %6844 = vmatmul.bf16.gmra.mxu0 %v3331
    %v6845 = vpop.f32.mrf.mxu0
    %v6846 = vadd.f32 %v6833, %v6845
    %v6847 = vpop.f32.mrf.mxu0
    %6848 = vdwg.mxu0
    %6849 = vmatpush.bf16.msra.mxu0 %v5574
    %6850 = vmatpush.bf16.msra.mxu0 %v5570
    %6851 = vmatpush.bf16.msra.mxu0 %v5566
    %6852 = vmatpush.bf16.msra.mxu0 %v5562
    %6853 = vmatpush.bf16.msra.mxu0 %v5558
    %6854 = vmatpush.bf16.msra.mxu0 %v5554
    %6855 = vmatpush.bf16.msra.mxu0 %v5550
    %6856 = vmatpush.bf16.msra.mxu0 %v5546
    %6857 = vmatmul.bf16.gmra.mxu0 %v3332
    %v6858 = vpop.f32.mrf.mxu0
    %v6859 = vadd.f32 %v6846, %v6858
    %v6860 = vpop.f32.mrf.mxu0
    %6861 = vdwg.mxu0
    %6862 = vmatpush.bf16.msra.mxu0 %v5606
    %6863 = vmatpush.bf16.msra.mxu0 %v5602
    %6864 = vmatpush.bf16.msra.mxu0 %v5598
    %6865 = vmatpush.bf16.msra.mxu0 %v5594
    %6866 = vmatpush.bf16.msra.mxu0 %v5590
    %6867 = vmatpush.bf16.msra.mxu0 %v5586
    %6868 = vmatpush.bf16.msra.mxu0 %v5582
    %6869 = vmatpush.bf16.msra.mxu0 %v5578
    %6870 = vmatmul.bf16.gmra.mxu0 %v3333
    %v6871 = vpop.f32.mrf.mxu0
    %v6872 = vadd.f32 %v6859, %v6871
    %v6873 = vpop.f32.mrf.mxu0
    %6874 = vdwg.mxu0
    %6875 = vmatpush.bf16.msra.mxu0 %v5638
    %6876 = vmatpush.bf16.msra.mxu0 %v5634
    %6877 = vmatpush.bf16.msra.mxu0 %v5630
    %6878 = vmatpush.bf16.msra.mxu0 %v5626
    %6879 = vmatpush.bf16.msra.mxu0 %v5622
    %6880 = vmatpush.bf16.msra.mxu0 %v5618
    %6881 = vmatpush.bf16.msra.mxu0 %v5614
    %6882 = vmatpush.bf16.msra.mxu0 %v5610
    %6883 = vmatmul.bf16.gmra.mxu0 %v3334
    %v6884 = vpop.f32.mrf.mxu0
    %v6885 = vadd.f32 %v6872, %v6884
    %v6886 = vpop.f32.mrf.mxu0
    %6887 = vdwg.mxu0
    %6888 = vmatpush.bf16.msra.mxu0 %v5670
    %6889 = vmatpush.bf16.msra.mxu0 %v5666
    %6890 = vmatpush.bf16.msra.mxu0 %v5662
    %6891 = vmatpush.bf16.msra.mxu0 %v5658
    %6892 = vmatpush.bf16.msra.mxu0 %v5654
    %6893 = vmatpush.bf16.msra.mxu0 %v5650
    %6894 = vmatpush.bf16.msra.mxu0 %v5646
    %6895 = vmatpush.bf16.msra.mxu0 %v5642
    %6896 = vmatmul.bf16.gmra.mxu0 %v3335
    %v6897 = vpop.f32.mrf.mxu0
    %v6898 = vadd.f32 %v6885, %v6897
    %v6899 = vpop.f32.mrf.mxu0
    %6900 = vdwg.mxu0
    %6901 = vmatpush.bf16.msra.mxu0 %v5702
    %6902 = vmatpush.bf16.msra.mxu0 %v5698
    %6903 = vmatpush.bf16.msra.mxu0 %v5694
    %6904 = vmatpush.bf16.msra.mxu0 %v5690
    %6905 = vmatpush.bf16.msra.mxu0 %v5686
    %6906 = vmatpush.bf16.msra.mxu0 %v5682
    %6907 = vmatpush.bf16.msra.mxu0 %v5678
    %6908 = vmatpush.bf16.msra.mxu0 %v5674
    %6909 = vmatmul.bf16.gmra.mxu0 %v3336
    %v6910 = vpop.f32.mrf.mxu0
    %v6911 = vadd.f32 %v6898, %v6910
    %v6912 = vpop.f32.mrf.mxu0
    %6913 = vdwg.mxu0
    %6914 = vmatpush.bf16.msra.mxu0 %v5734
    %6915 = vmatpush.bf16.msra.mxu0 %v5730
    %6916 = vmatpush.bf16.msra.mxu0 %v5726
    %6917 = vmatpush.bf16.msra.mxu0 %v5722
    %6918 = vmatpush.bf16.msra.mxu0 %v5718
    %6919 = vmatpush.bf16.msra.mxu0 %v5714
    %6920 = vmatpush.bf16.msra.mxu0 %v5710
    %6921 = vmatpush.bf16.msra.mxu0 %v5706
    %6922 = vmatmul.bf16.gmra.mxu0 %v3337
    %v6923 = vpop.f32.mrf.mxu0
    %v6924 = vadd.f32 %v6911, %v6923
    %v6925 = vpop.f32.mrf.mxu0
    %6926 = vdwg.mxu0
    %6927 = vmatpush.bf16.msra.mxu0 %v5766
    %6928 = vmatpush.bf16.msra.mxu0 %v5762
    %6929 = vmatpush.bf16.msra.mxu0 %v5758
    %6930 = vmatpush.bf16.msra.mxu0 %v5754
    %6931 = vmatpush.bf16.msra.mxu0 %v5750
    %6932 = vmatpush.bf16.msra.mxu0 %v5746
    %6933 = vmatpush.bf16.msra.mxu0 %v5742
    %6934 = vmatpush.bf16.msra.mxu0 %v5738
    %6935 = vmatmul.bf16.gmra.mxu0 %v3338
    %v6936 = vpop.f32.mrf.mxu0
    %v6937 = vadd.f32 %v6924, %v6936
    %v6938 = vpop.f32.mrf.mxu0
    %6939 = vdwg.mxu0
    %6940 = vmatpush.bf16.msra.mxu0 %v5798
    %6941 = vmatpush.bf16.msra.mxu0 %v5794
    %6942 = vmatpush.bf16.msra.mxu0 %v5790
    %6943 = vmatpush.bf16.msra.mxu0 %v5786
    %6944 = vmatpush.bf16.msra.mxu0 %v5782
    %6945 = vmatpush.bf16.msra.mxu0 %v5778
    %6946 = vmatpush.bf16.msra.mxu0 %v5774
    %6947 = vmatpush.bf16.msra.mxu0 %v5770
    %6948 = vmatmul.bf16.gmra.mxu0 %v3339
    %v6949 = vpop.f32.mrf.mxu0
    %v6950 = vadd.f32 %v6937, %v6949
    %v6951 = vpop.f32.mrf.mxu0
    %6952 = vdwg.mxu0
    %6953 = vmatpush.bf16.msra.mxu0 %v5830
    %6954 = vmatpush.bf16.msra.mxu0 %v5826
    %6955 = vmatpush.bf16.msra.mxu0 %v5822
    %6956 = vmatpush.bf16.msra.mxu0 %v5818
    %6957 = vmatpush.bf16.msra.mxu0 %v5814
    %6958 = vmatpush.bf16.msra.mxu0 %v5810
    %6959 = vmatpush.bf16.msra.mxu0 %v5806
    %6960 = vmatpush.bf16.msra.mxu0 %v5802
    %6961 = vmatmul.bf16.gmra.mxu0 %v3340
    %v6962 = vpop.f32.mrf.mxu0
    %v6963 = vadd.f32 %v6950, %v6962
    %v6964 = vpop.f32.mrf.mxu0
    %6965 = vdwg.mxu0
    %6966 = vmatpush.bf16.msra.mxu0 0
    %6967 = vmatpush.bf16.msra.mxu0 0
    %6968 = vmatpush.bf16.msra.mxu0 0
    %6969 = vmatpush.bf16.msra.mxu0 %v5850
    %6970 = vmatpush.bf16.msra.mxu0 %v5846
    %6971 = vmatpush.bf16.msra.mxu0 %v5842
    %6972 = vmatpush.bf16.msra.mxu0 %v5838
    %6973 = vmatpush.bf16.msra.mxu0 %v5834
    %6974 = vmatmul.bf16.gmra.mxu0 %v6353
    %v6975 = vpop.f32.mrf.mxu0
    %v6976 = vadd.f32 %v6963, %v6975
    %v6977 = vpop.f32.mrf.mxu0
    %6978 = vdwg.mxu0
    %6979 = vmatpush.bf16.msra.mxu0 %v5383
    %6980 = vmatpush.bf16.msra.mxu0 %v5379
    %6981 = vmatpush.bf16.msra.mxu0 %v5375
    %6982 = vmatpush.bf16.msra.mxu0 %v5371
    %6983 = vmatpush.bf16.msra.mxu0 %v5367
    %6984 = vmatpush.bf16.msra.mxu0 %v5363
    %6985 = vmatpush.bf16.msra.mxu0 %v5359
    %6986 = vmatpush.bf16.msra.mxu0 %v5355
    %6987 = vmatmul.bf16.gmra.mxu0 %v3326
    %v6988 = vpop.f32.mrf.mxu0
    %v6989 = vadd.f32 %v3847, %v6988
    %v6990 = vpop.f32.mrf.mxu0
    %6991 = vdwg.mxu0
    %6992 = vmatpush.bf16.msra.mxu0 %v5415
    %6993 = vmatpush.bf16.msra.mxu0 %v5411
    %6994 = vmatpush.bf16.msra.mxu0 %v5407
    %6995 = vmatpush.bf16.msra.mxu0 %v5403
    %6996 = vmatpush.bf16.msra.mxu0 %v5399
    %6997 = vmatpush.bf16.msra.mxu0 %v5395
    %6998 = vmatpush.bf16.msra.mxu0 %v5391
    %6999 = vmatpush.bf16.msra.mxu0 %v5387
    %7000 = vmatmul.bf16.gmra.mxu0 %v3327
    %v7001 = vpop.f32.mrf.mxu0
    %v7002 = vadd.f32 %v6989, %v7001
    %v7003 = vpop.f32.mrf.mxu0
    %7004 = vdwg.mxu0
    %7005 = vmatpush.bf16.msra.mxu0 %v5447
    %7006 = vmatpush.bf16.msra.mxu0 %v5443
    %7007 = vmatpush.bf16.msra.mxu0 %v5439
    %7008 = vmatpush.bf16.msra.mxu0 %v5435
    %7009 = vmatpush.bf16.msra.mxu0 %v5431
    %7010 = vmatpush.bf16.msra.mxu0 %v5427
    %7011 = vmatpush.bf16.msra.mxu0 %v5423
    %7012 = vmatpush.bf16.msra.mxu0 %v5419
    %7013 = vmatmul.bf16.gmra.mxu0 %v3328
    %v7014 = vpop.f32.mrf.mxu0
    %v7015 = vadd.f32 %v7002, %v7014
    %v7016 = vpop.f32.mrf.mxu0
    %7017 = vdwg.mxu0
    %7018 = vmatpush.bf16.msra.mxu0 %v5479
    %7019 = vmatpush.bf16.msra.mxu0 %v5475
    %7020 = vmatpush.bf16.msra.mxu0 %v5471
    %7021 = vmatpush.bf16.msra.mxu0 %v5467
    %7022 = vmatpush.bf16.msra.mxu0 %v5463
    %7023 = vmatpush.bf16.msra.mxu0 %v5459
    %7024 = vmatpush.bf16.msra.mxu0 %v5455
    %7025 = vmatpush.bf16.msra.mxu0 %v5451
    %7026 = vmatmul.bf16.gmra.mxu0 %v3329
    %v7027 = vpop.f32.mrf.mxu0
    %v7028 = vadd.f32 %v7015, %v7027
    %v7029 = vpop.f32.mrf.mxu0
    %7030 = vdwg.mxu0
    %7031 = vmatpush.bf16.msra.mxu0 %v5511
    %7032 = vmatpush.bf16.msra.mxu0 %v5507
    %7033 = vmatpush.bf16.msra.mxu0 %v5503
    %7034 = vmatpush.bf16.msra.mxu0 %v5499
    %7035 = vmatpush.bf16.msra.mxu0 %v5495
    %7036 = vmatpush.bf16.msra.mxu0 %v5491
    %7037 = vmatpush.bf16.msra.mxu0 %v5487
    %7038 = vmatpush.bf16.msra.mxu0 %v5483
    %7039 = vmatmul.bf16.gmra.mxu0 %v3330
    %v7040 = vpop.f32.mrf.mxu0
    %v7041 = vadd.f32 %v7028, %v7040
    %v7042 = vpop.f32.mrf.mxu0
    %7043 = vdwg.mxu0
    %7044 = vmatpush.bf16.msra.mxu0 %v5543
    %7045 = vmatpush.bf16.msra.mxu0 %v5539
    %7046 = vmatpush.bf16.msra.mxu0 %v5535
    %7047 = vmatpush.bf16.msra.mxu0 %v5531
    %7048 = vmatpush.bf16.msra.mxu0 %v5527
    %7049 = vmatpush.bf16.msra.mxu0 %v5523
    %7050 = vmatpush.bf16.msra.mxu0 %v5519
    %7051 = vmatpush.bf16.msra.mxu0 %v5515
    %7052 = vmatmul.bf16.gmra.mxu0 %v3331
    %v7053 = vpop.f32.mrf.mxu0
    %v7054 = vadd.f32 %v7041, %v7053
    %v7055 = vpop.f32.mrf.mxu0
    %7056 = vdwg.mxu0
    %7057 = vmatpush.bf16.msra.mxu0 %v5575
    %7058 = vmatpush.bf16.msra.mxu0 %v5571
    %7059 = vmatpush.bf16.msra.mxu0 %v5567
    %7060 = vmatpush.bf16.msra.mxu0 %v5563
    %7061 = vmatpush.bf16.msra.mxu0 %v5559
    %7062 = vmatpush.bf16.msra.mxu0 %v5555
    %7063 = vmatpush.bf16.msra.mxu0 %v5551
    %7064 = vmatpush.bf16.msra.mxu0 %v5547
    %7065 = vmatmul.bf16.gmra.mxu0 %v3332
    %v7066 = vpop.f32.mrf.mxu0
    %v7067 = vadd.f32 %v7054, %v7066
    %v7068 = vpop.f32.mrf.mxu0
    %7069 = vdwg.mxu0
    %7070 = vmatpush.bf16.msra.mxu0 %v5607
    %7071 = vmatpush.bf16.msra.mxu0 %v5603
    %7072 = vmatpush.bf16.msra.mxu0 %v5599
    %7073 = vmatpush.bf16.msra.mxu0 %v5595
    %7074 = vmatpush.bf16.msra.mxu0 %v5591
    %7075 = vmatpush.bf16.msra.mxu0 %v5587
    %7076 = vmatpush.bf16.msra.mxu0 %v5583
    %7077 = vmatpush.bf16.msra.mxu0 %v5579
    %7078 = vmatmul.bf16.gmra.mxu0 %v3333
    %v7079 = vpop.f32.mrf.mxu0
    %v7080 = vadd.f32 %v7067, %v7079
    %v7081 = vpop.f32.mrf.mxu0
    %7082 = vdwg.mxu0
    %7083 = vmatpush.bf16.msra.mxu0 %v5639
    %7084 = vmatpush.bf16.msra.mxu0 %v5635
    %7085 = vmatpush.bf16.msra.mxu0 %v5631
    %7086 = vmatpush.bf16.msra.mxu0 %v5627
    %7087 = vmatpush.bf16.msra.mxu0 %v5623
    %7088 = vmatpush.bf16.msra.mxu0 %v5619
    %7089 = vmatpush.bf16.msra.mxu0 %v5615
    %7090 = vmatpush.bf16.msra.mxu0 %v5611
    %7091 = vmatmul.bf16.gmra.mxu0 %v3334
    %v7092 = vpop.f32.mrf.mxu0
    %v7093 = vadd.f32 %v7080, %v7092
    %v7094 = vpop.f32.mrf.mxu0
    %7095 = vdwg.mxu0
    %7096 = vmatpush.bf16.msra.mxu0 %v5671
    %7097 = vmatpush.bf16.msra.mxu0 %v5667
    %7098 = vmatpush.bf16.msra.mxu0 %v5663
    %7099 = vmatpush.bf16.msra.mxu0 %v5659
    %7100 = vmatpush.bf16.msra.mxu0 %v5655
    %7101 = vmatpush.bf16.msra.mxu0 %v5651
    %7102 = vmatpush.bf16.msra.mxu0 %v5647
    %7103 = vmatpush.bf16.msra.mxu0 %v5643
    %7104 = vmatmul.bf16.gmra.mxu0 %v3335
    %v7105 = vpop.f32.mrf.mxu0
    %v7106 = vadd.f32 %v7093, %v7105
    %v7107 = vpop.f32.mrf.mxu0
    %7108 = vdwg.mxu0
    %7109 = vmatpush.bf16.msra.mxu0 %v5703
    %7110 = vmatpush.bf16.msra.mxu0 %v5699
    %7111 = vmatpush.bf16.msra.mxu0 %v5695
    %7112 = vmatpush.bf16.msra.mxu0 %v5691
    %7113 = vmatpush.bf16.msra.mxu0 %v5687
    %7114 = vmatpush.bf16.msra.mxu0 %v5683
    %7115 = vmatpush.bf16.msra.mxu0 %v5679
    %7116 = vmatpush.bf16.msra.mxu0 %v5675
    %7117 = vmatmul.bf16.gmra.mxu0 %v3336
    %v7118 = vpop.f32.mrf.mxu0
    %v7119 = vadd.f32 %v7106, %v7118
    %v7120 = vpop.f32.mrf.mxu0
    %7121 = vdwg.mxu0
    %7122 = vmatpush.bf16.msra.mxu0 %v5735
    %7123 = vmatpush.bf16.msra.mxu0 %v5731
    %7124 = vmatpush.bf16.msra.mxu0 %v5727
    %7125 = vmatpush.bf16.msra.mxu0 %v5723
    %7126 = vmatpush.bf16.msra.mxu0 %v5719
    %7127 = vmatpush.bf16.msra.mxu0 %v5715
    %7128 = vmatpush.bf16.msra.mxu0 %v5711
    %7129 = vmatpush.bf16.msra.mxu0 %v5707
    %7130 = vmatmul.bf16.gmra.mxu0 %v3337
    %v7131 = vpop.f32.mrf.mxu0
    %v7132 = vadd.f32 %v7119, %v7131
    %v7133 = vpop.f32.mrf.mxu0
    %7134 = vdwg.mxu0
    %7135 = vmatpush.bf16.msra.mxu0 %v5767
    %7136 = vmatpush.bf16.msra.mxu0 %v5763
    %7137 = vmatpush.bf16.msra.mxu0 %v5759
    %7138 = vmatpush.bf16.msra.mxu0 %v5755
    %7139 = vmatpush.bf16.msra.mxu0 %v5751
    %7140 = vmatpush.bf16.msra.mxu0 %v5747
    %7141 = vmatpush.bf16.msra.mxu0 %v5743
    %7142 = vmatpush.bf16.msra.mxu0 %v5739
    %7143 = vmatmul.bf16.gmra.mxu0 %v3338
    %v7144 = vpop.f32.mrf.mxu0
    %v7145 = vadd.f32 %v7132, %v7144
    %v7146 = vpop.f32.mrf.mxu0
    %7147 = vdwg.mxu0
    %7148 = vmatpush.bf16.msra.mxu0 %v5799
    %7149 = vmatpush.bf16.msra.mxu0 %v5795
    %7150 = vmatpush.bf16.msra.mxu0 %v5791
    %7151 = vmatpush.bf16.msra.mxu0 %v5787
    %7152 = vmatpush.bf16.msra.mxu0 %v5783
    %7153 = vmatpush.bf16.msra.mxu0 %v5779
    %7154 = vmatpush.bf16.msra.mxu0 %v5775
    %7155 = vmatpush.bf16.msra.mxu0 %v5771
    %7156 = vmatmul.bf16.gmra.mxu0 %v3339
    %v7157 = vpop.f32.mrf.mxu0
    %v7158 = vadd.f32 %v7145, %v7157
    %v7159 = vpop.f32.mrf.mxu0
    %7160 = vdwg.mxu0
    %7161 = vmatpush.bf16.msra.mxu0 %v5831
    %7162 = vmatpush.bf16.msra.mxu0 %v5827
    %7163 = vmatpush.bf16.msra.mxu0 %v5823
    %7164 = vmatpush.bf16.msra.mxu0 %v5819
    %7165 = vmatpush.bf16.msra.mxu0 %v5815
    %7166 = vmatpush.bf16.msra.mxu0 %v5811
    %7167 = vmatpush.bf16.msra.mxu0 %v5807
    %7168 = vmatpush.bf16.msra.mxu0 %v5803
    %7169 = vmatmul.bf16.gmra.mxu0 %v3340
    %v7170 = vpop.f32.mrf.mxu0
    %v7171 = vadd.f32 %v7158, %v7170
    %v7172 = vpop.f32.mrf.mxu0
    %7173 = vdwg.mxu0
    %7174 = vmatpush.bf16.msra.mxu0 0
    %7175 = vmatpush.bf16.msra.mxu0 0
    %7176 = vmatpush.bf16.msra.mxu0 0
    %7177 = vmatpush.bf16.msra.mxu0 %v5851
    %7178 = vmatpush.bf16.msra.mxu0 %v5847
    %7179 = vmatpush.bf16.msra.mxu0 %v5843
    %7180 = vmatpush.bf16.msra.mxu0 %v5839
    %7181 = vmatpush.bf16.msra.mxu0 %v5835
    %7182 = vmatmul.bf16.gmra.mxu0 %v6353
    %v7183 = vpop.f32.mrf.mxu0
    %v7184 = vadd.f32 %v7171, %v7183
    %v7185 = vpop.f32.mrf.mxu0
    %7186 = vdwg.mxu0
    %v7187 = vmax.f32 %v6560, 0.0
    %v7188 = vmax.f32 %v6768, 0.0
    %v7189 = vmax.f32 %v6976, 0.0
    %v7190 = vmax.f32 %v7184, 0.0
    %v7191 = vld [vmem:[%s7] sm:$0xff]
    %v7192 = vld [vmem:[%s7 + $0x8] sm:$0xff]
    %v7193 = vld [vmem:[%s7 + $0x10] sm:$0xff]
    %v7194 = vld [vmem:[%s7 + $0x18] sm:$0xff]
    %v7195 = vld [vmem:[%s7 + $0x20] sm:$0xff]
    %v7196 = vld [vmem:[%s7 + $0x28] sm:$0xff]
    %v7197 = vld [vmem:[%s7 + $0x30] sm:$0xff]
    %v7198 = vld [vmem:[%s7 + $0x38] sm:$0xff]
    %v7199 = vld [vmem:[%s7 + $0x40] sm:$0xff]
    %v7200 = vld [vmem:[%s7 + $0x48] sm:$0xff]
    %v7201 = vld [vmem:[%s7 + $0x50] sm:$0xff]
    %v7202 = vld [vmem:[%s7 + $0x58] sm:$0xff]
    %v7203 = vld [vmem:[%s7 + $0x60] sm:$0xff]
    %v7204 = vld [vmem:[%s7 + $0x68] sm:$0xff]
    %v7205 = vld [vmem:[%s7 + $0x70] sm:$0xff]
    %v7206 = vld [vmem:[%s7 + $0x78] sm:$0xff]
    %v7207 = vld [vmem:[%s7 + $0x80] sm:$0xff]
    %v7208 = vld [vmem:[%s7 + $0x88] sm:$0xff]
    %v7209 = vld [vmem:[%s7 + $0x90] sm:$0xff]
    %v7210 = vld [vmem:[%s7 + $0x98] sm:$0xff]
    %v7211 = vld [vmem:[%s7 + $0xa0] sm:$0xff]
    %v7212 = vld [vmem:[%s7 + $0xa8] sm:$0xff]
    %v7213 = vld [vmem:[%s7 + $0xb0] sm:$0xff]
    %v7214 = vld [vmem:[%s7 + $0xb8] sm:$0xff]
    %v7215 = vld [vmem:[%s7 + $0xc0] sm:$0xff]
    %v7216 = vld [vmem:[%s7 + $0xc8] sm:$0xff]
    %v7217 = vld [vmem:[%s7 + $0xd0] sm:$0xff]
    %v7218 = vld [vmem:[%s7 + $0xd8] sm:$0xff]
    %v7219 = vld [vmem:[%s7 + $0xe0] sm:$0xff]
    %v7220 = vld [vmem:[%s7 + $0xe8] sm:$0xff]
    %v7221 = vld [vmem:[%s7 + $0xf0] sm:$0xff]
    %v7222 = vld [vmem:[%s7 + $0xf8] sm:$0xff]
    %v7223 = vld [vmem:[%s7 + $0x100] sm:$0xff]
    %v7224 = vld [vmem:[%s7 + $0x108] sm:$0xff]
    %v7225 = vld [vmem:[%s7 + $0x110] sm:$0xff]
    %v7226 = vld [vmem:[%s7 + $0x118] sm:$0xff]
    %v7227 = vld [vmem:[%s7 + $0x120] sm:$0xff]
    %v7228 = vld [vmem:[%s7 + $0x128] sm:$0xff]
    %v7229 = vld [vmem:[%s7 + $0x130] sm:$0xff]
    %v7230 = vld [vmem:[%s7 + $0x138] sm:$0xff]
    %v7231 = vld [vmem:[%s7 + $0x140] sm:$0xff]
    %v7232 = vld [vmem:[%s7 + $0x148] sm:$0xff]
    %v7233 = vld [vmem:[%s7 + $0x150] sm:$0xff]
    %v7234 = vld [vmem:[%s7 + $0x158] sm:$0xff]
    %v7235 = vld [vmem:[%s7 + $0x160] sm:$0xff]
    %v7236 = vld [vmem:[%s7 + $0x168] sm:$0xff]
    %v7237 = vld [vmem:[%s7 + $0x170] sm:$0xff]
    %v7238 = vld [vmem:[%s7 + $0x178] sm:$0xff]
    %v7239 = vld [vmem:[%s7 + $0x180] sm:$0xff]
    %v7240 = vld [vmem:[%s7 + $0x188] sm:$0xff]
    %v7241 = vld [vmem:[%s7 + $0x190] sm:$0xff]
    %v7242 = vld [vmem:[%s7 + $0x198] sm:$0xff]
    %v7243 = vld [vmem:[%s7 + $0x1a0] sm:$0xff]
    %v7244 = vld [vmem:[%s7 + $0x1a8] sm:$0xff]
    %v7245 = vld [vmem:[%s7 + $0x1b0] sm:$0xff]
    %v7246 = vld [vmem:[%s7 + $0x1b8] sm:$0xff]
    %v7247 = vld [vmem:[%s7 + $0x1c0] sm:$0xff]
    %v7248 = vld [vmem:[%s7 + $0x1c8] sm:$0xff]
    %v7249 = vld [vmem:[%s7 + $0x1d0] sm:$0xff]
    %v7250 = vld [vmem:[%s7 + $0x1d8] sm:$0xff]
    %v7251 = vld [vmem:[%s7 + $0x1e0] sm:$0xff]
    %v7252 = vld [vmem:[%s7 + $0x1e8] sm:$0xff]
    %v7253 = vld [vmem:[%s7 + $0x1f0] sm:$0xf]
    %v7254 = vld [vmem:[#allocation10] sm:$0x1]
    %v7256 = vperm.slane %v7254, 0
    %v7259 = vsel %vm3031, %v7190, 0
    %v7262 = vsel %vm230, %v7253, 0
    %7264 = vmatpush.msra.mxu0 %v7206
    %7265 = vmatpush.msra.mxu0 %v7205
    %7266 = vmatpush.msra.mxu0 %v7204
    %7267 = vmatpush.msra.mxu0 %v7203
    %7268 = vmatpush.msra.mxu0 %v7202
    %7269 = vmatpush.msra.mxu0 %v7201
    %7270 = vmatpush.msra.mxu0 %v7200
    %7271 = vmatpush.msra.mxu0 %v7199
    %7272 = vmatpush.msra.mxu0 %v7198
    %7273 = vmatpush.msra.mxu0 %v7197
    %7274 = vmatpush.msra.mxu0 %v7196
    %7275 = vmatpush.msra.mxu0 %v7195
    %7276 = vmatpush.msra.mxu0 %v7194
    %7277 = vmatpush.msra.mxu0 %v7193
    %7278 = vmatpush.msra.mxu0 %v7192
    %7279 = vmatpush.msra.mxu0 %v7191
    %7280 = vmatmul.f32.gmra.mxu0 %v7187
    %v7281 = vpop.f32.mrf.mxu0
    %v7282 = vadd.f32 %v7256, %v7281
    %7283 = vdwg.mxu0
    %7284 = vmatpush.msra.mxu0 %v7222
    %7285 = vmatpush.msra.mxu0 %v7221
    %7286 = vmatpush.msra.mxu0 %v7220
    %7287 = vmatpush.msra.mxu0 %v7219
    %7288 = vmatpush.msra.mxu0 %v7218
    %7289 = vmatpush.msra.mxu0 %v7217
    %7290 = vmatpush.msra.mxu0 %v7216
    %7291 = vmatpush.msra.mxu0 %v7215
    %7292 = vmatpush.msra.mxu0 %v7214
    %7293 = vmatpush.msra.mxu0 %v7213
    %7294 = vmatpush.msra.mxu0 %v7212
    %7295 = vmatpush.msra.mxu0 %v7211
    %7296 = vmatpush.msra.mxu0 %v7210
    %7297 = vmatpush.msra.mxu0 %v7209
    %7298 = vmatpush.msra.mxu0 %v7208
    %7299 = vmatpush.msra.mxu0 %v7207
    %7300 = vmatmul.f32.gmra.mxu0 %v7188
    %v7301 = vpop.f32.mrf.mxu0
    %v7302 = vadd.f32 %v7282, %v7301
    %7303 = vdwg.mxu0
    %7304 = vmatpush.msra.mxu0 %v7238
    %7305 = vmatpush.msra.mxu0 %v7237
    %7306 = vmatpush.msra.mxu0 %v7236
    %7307 = vmatpush.msra.mxu0 %v7235
    %7308 = vmatpush.msra.mxu0 %v7234
    %7309 = vmatpush.msra.mxu0 %v7233
    %7310 = vmatpush.msra.mxu0 %v7232
    %7311 = vmatpush.msra.mxu0 %v7231
    %7312 = vmatpush.msra.mxu0 %v7230
    %7313 = vmatpush.msra.mxu0 %v7229
    %7314 = vmatpush.msra.mxu0 %v7228
    %7315 = vmatpush.msra.mxu0 %v7227
    %7316 = vmatpush.msra.mxu0 %v7226
    %7317 = vmatpush.msra.mxu0 %v7225
    %7318 = vmatpush.msra.mxu0 %v7224
    %7319 = vmatpush.msra.mxu0 %v7223
    %7320 = vmatmul.f32.gmra.mxu0 %v7189
    %v7321 = vpop.f32.mrf.mxu0
    %v7322 = vadd.f32 %v7302, %v7321
    %7323 = vdwg.mxu0
    %7324 = vmatpush.msra.mxu0 0.0
    %7325 = vmatpush.msra.mxu0 %v7262
    %7326 = vmatpush.msra.mxu0 %v7252
    %7327 = vmatpush.msra.mxu0 %v7251
    %7328 = vmatpush.msra.mxu0 %v7250
    %7329 = vmatpush.msra.mxu0 %v7249
    %7330 = vmatpush.msra.mxu0 %v7248
    %7331 = vmatpush.msra.mxu0 %v7247
    %7332 = vmatpush.msra.mxu0 %v7246
    %7333 = vmatpush.msra.mxu0 %v7245
    %7334 = vmatpush.msra.mxu0 %v7244
    %7335 = vmatpush.msra.mxu0 %v7243
    %7336 = vmatpush.msra.mxu0 %v7242
    %7337 = vmatpush.msra.mxu0 %v7241
    %7338 = vmatpush.msra.mxu0 %v7240
    %7339 = vmatpush.msra.mxu0 %v7239
    %7340 = vmatmul.f32.gmra.mxu0 %v7259
    %v7341 = vpop.f32.mrf.mxu0
    %v7342 = vadd.f32 %v7322, %v7341
    %7343 = vdwg.mxu0
    %vm7344 = vcmask 74752
    %v7345 = vsel %vm7344, %v7342, -inf
    %7346 = vmax.xlane.f32.xlu0 %v7345
    %v7347 = vpop.xlane.xlu0 %7346
    %v7348 = vsub.f32 %v7342, %v7347
    %v7349 = vmul.f32 %v7348, 1.442695
    %v7350 = vpow.pop %v7349
    %v7351 = vsel %vm7344, %v7350, 0.0
    %7352 = vadd.xlane.f32.xlu0 %v7351
    %v7353 = vpop.xlane.xlu0 %7352
    %v7354 = vlog2.pop %v7353
    %v7355 = vmul.f32 %v7354, 0.6931472
    %v7356 = vadd.f32 %v7355, %v7347
    %v7357 = vsub.f32 %v7342, %v7356
    %7358 = vst.msk [vmem:[#allocation11] sm:$0x3] %vm7344, %v7357
    // Predicated region
    $region58: #{digit_forward.1} parent=1 // pred_check
      _
    $region59: #{digit_forward.1} parent=1 // pred_check_branch
      %7360 = sbr.rel (0) target = $region61
    $region60: #{digit_forward.1} parent=1 // pred_region
      %7362 = vsyncadd [#allocation4], 0
      %s7364 = sshll.u32 [#allocation11], 4
      %s7365 = int_to_ptr.vmem [resolvable:$true] %s7364
      %s7366 = sshll.u32 %s9, 4
      %s7367 = int_to_ptr.hbm [resolvable:$true] %s7366
      %7369 = dma.vmem_to_hbm [thread:$0]  %s7365, 32, %s7367, [#allocation4]
    $region61: #{digit_forward.1} parent=1 // pred_fallthru
      _
    // Predicated region
    $region62: #{digit_forward.1} parent=1 // pred_check
      _
    $region63: #{digit_forward.1} parent=1 // pred_check_branch
      %7371 = sbr.rel (0) target = $region65
    $region64: #{digit_forward.1} parent=1 // pred_region
      %7373 = dma.done [#allocation4], 32
    $region65: #{digit_forward.1} parent=1 // pred_fallthru
      _
    %7374 = vsyncpa [#allocation3], 1
    %7375 = vsyncpa [#allocation6], 1
    %7376 = vsyncpa [#allocation9], 1
    %7377 = vsyncpa [#allocation4], 1

</llo_original>
